<compile_context>
chip_gen: v7x
topology: tpu7x:2x2x1
jax: 0.10.0
libtpu: 0.0.40
codegen_flags: <defaults>
</compile_context>

<pallas_src>
import jax
import jax.numpy as jnp
from jax import lax
from jax.experimental import pallas as pl
from jax.experimental.pallas import tpu as pltpu

EPS = 1e-5


# ----------------------------------------------------------------------------
# Shared math helpers (used by BOTH the kernel wrapper and the reference so
# that the only divergence between them is reduction order inside the tiles).
# ----------------------------------------------------------------------------
def _affine_all(c, params):
    """gamma/beta for all CBN layers in batched einsums (depend only on c)."""
    g0 = jnp.einsum("bc,nch->nbh", c, params["g0w"]) + params["g0b"]
    b0 = jnp.einsum("bc,nch->nbh", c, params["b0w"]) + params["b0b"]
    g1 = jnp.einsum("bc,nch->nbh", c, params["g1w"]) + params["g1b"]
    b1 = jnp.einsum("bc,nch->nbh", c, params["b1w"]) + params["b1b"]
    gf = c @ params["gfw"] + params["gfb"]
    bf = c @ params["bfw"] + params["bfb"]
    return g0, b0, g1, b1, gf, bf


def _finalize_stats(s1, s2, n_pts):
    """Training-mode BatchNorm1d(affine=False) stats from sum / sum-of-squares."""
    mean = s1 / n_pts
    var = jnp.maximum(s2 / n_pts - mean * mean, 0.0)   # clamp: one-pass cancellation
    return mean, lax.rsqrt(var + EPS)


def _fold_scale_shift(gamma, beta, mean, istd):
    """Fold BN stats into the conditional affine: y = scale*x + shift."""
    scale = gamma * istd[None, :]
    shift = beta - mean[None, :] * scale
    return scale, shift


# ----------------------------------------------------------------------------
# Kernels
# ----------------------------------------------------------------------------
def _write_psums(psum_ref, y):
    """Partial sums [sum(y), sum(y*y)] over this (b_tile, t_tile) block."""
    psum_ref[0, 0, 0:1, :] = jnp.sum(y, axis=(0, 1))[None, :]
    psum_ref[0, 0, 1:2, :] = jnp.sum(y * y, axis=(0, 1))[None, :]


def _cbn_relu(x_ref, scale_ref, shift_ref):
    """CBN (stats folded into scale/shift) + ReLU: one FMA + max, in f32."""
    x = x_ref[...].astype(jnp.float32)
    return jnp.maximum(x * scale_ref[...][:, None, :] + shift_ref[...][:, None, :],
                       0.0)


def _conv_p_kernel(p_ref, wp_ref, bp_ref, y_ref, psum_ref):
    # K = dim = 3 is far too small for the MXU -> VPU FMAs.
    p = p_ref[...]                                   # (tb, tt, dim) f32
    w = wp_ref[...]                                  # (dim, H)      f32
    d = p.shape[-1]
    y = p[:, :, 0:1] * w[0][None, None, :]
    for k in range(1, d):
        y = y + p[:, :, k:k + 1] * w[k][None, None, :]
    y = y + bp_ref[...][None]                        # (tb, tt, H) f32
    y_ref[...] = y.astype(y_ref.dtype)               # store bf16
    _write_psums(psum_ref, y)                        # stats from f32 value


def _cbn_fc_kernel(x_ref, scale_ref, shift_ref, w_ref, b_ref, y_ref, psum_ref):
    tb, tt, hin = x_ref.shape
    a = _cbn_relu(x_ref, scale_ref, shift_ref)
    w = w_ref[...]                                   # (hin, hout) bf16
    y = jnp.dot(a.reshape(tb * tt, hin).astype(w.dtype), w,
                preferred_element_type=jnp.float32)
    y = y.reshape(tb, tt, -1) + b_ref[...][None]
    y_ref[...] = y.astype(y_ref.dtype)
    _write_psums(psum_ref, y)


def _cbn_fc_res_kernel(x_ref, res_ref, scale_ref, shift_ref, w_ref, b_ref,
                       y_ref, psum_ref):
    tb, tt, hin = x_ref.shape
    a = _cbn_relu(x_ref, scale_ref, shift_ref)
    w = w_ref[...]
    y = jnp.dot(a.reshape(tb * tt, hin).astype(w.dtype), w,
                preferred_element_type=jnp.float32)
    y = (y.reshape(tb, tt, -1) + b_ref[...][None]
         + res_ref[...].astype(jnp.float32))         # identity shortcut in f32
    y_ref[...] = y.astype(y_ref.dtype)
    _write_psums(psum_ref, y)


def _cbn_out_kernel(x_ref, scale_ref, shift_ref, wout_ref, bout_ref, o_ref):
    a = _cbn_relu(x_ref, scale_ref, shift_ref)
    # conv_out has one output channel -> VPU multiply + lane reduction over H.
    o_ref[...] = jnp.sum(a * wout_ref[...][None], axis=-1) + bout_ref[...]


# ----------------------------------------------------------------------------
# Tile / VMEM budget selection (per TPU generation)
# ----------------------------------------------------------------------------
def _pick_tiles(B, T, H):
    try:
        vmem_bytes = int(pltpu.get_tpu_info().vmem_capacity_bytes)
    except Exception:  # interpret mode / non-TPU backend
        vmem_bytes = 128 * 1024 * 1024
    # ~96-100 MiB on the 128 MiB parts (v5e/v6e), ~45 MiB on v7x (64 MiB/TC).
    vmem_budget = min(int(vmem_bytes * 0.70), 100 * 1024 * 1024)

    b_tile = 8 if (B > 8 and B % 8 == 0) else B      # bound block bytes vs batch
    num_b = B // b_tile

    if T % 128 != 0:
        raise ValueError(f"T={T} must be a multiple of 128")

    def vmem_use(tt):
        act = 3 * 2 * (b_tile * tt * H * 2)          # x/res/y blocks, 2x buffered, bf16
        fixed = 2 * H * H * 2 + 8 * b_tile * H * 4 + 8 * H * 4 + (2 << 20)
        return act + fixed

    t_tile = 128
    while (T % (2 * t_tile) == 0 and 2 * t_tile <= 1024
           and vmem_use(2 * t_tile) <= vmem_budget
           and num_b * (T // (2 * t_tile)) >= 8):    # keep >= 4 tiles per TC on v7x
        t_tile *= 2
    return b_tile, t_tile, vmem_budget


# ----------------------------------------------------------------------------
# Wrapper
# ----------------------------------------------------------------------------
def decoder_cbn2_forward(p, c, params, *, t_tile=None, b_tile=None):
    B, T, dim = p.shape
    H = params["wp"].shape[1]
    n_blocks = params["fc0w"].shape[0]
    n_pts = B * T

    auto_b, auto_t, vmem_budget = _pick_tiles(B, T, H)
    tb = auto_b if b_tile is None else b_tile
    tt = auto_t if t_tile is None else t_tile
    if B % tb or T % tt:
        raise ValueError("b_tile/t_tile must divide B/T")
    num_b, num_t = B // tb, T // tt
    grid = (num_b, num_t)

    cparams = pltpu.CompilerParams(
        dimension_semantics=("parallel", "parallel"),
        vmem_limit_bytes=vmem_budget)

    act_spec = lambda h: pl.BlockSpec((tb, tt, h), lambda b, t: (b, t, 0))
    row_spec = lambda h: pl.BlockSpec((tb, h), lambda b, t: (b, 0))
    full_spec = lambda shape: pl.BlockSpec(shape, lambda b, t: (0,) * len(shape))
    psum_spec = pl.BlockSpec((1, 1, 2, H), lambda b, t: (b, t, 0, 0))

    def finalize(ps):
        s = jnp.sum(ps, axis=(0, 1))                 # (2, H)
        return _finalize_stats(s[0], s[1], n_pts)

    def cbn_fc(x, scale, shift, w, b, residual=None):
        hin, hout = w.shape
        args, in_specs, aliases = [x], [act_spec(hin)], {}
        if residual is not None:
            args.append(residual)
            in_specs.append(act_spec(hout))
            aliases = {1: 0}                         # donate old `net` buffer to y
        args += [scale, shift, w, b]
        in_specs += [row_spec(hin), row_spec(hin),
                     full_spec((hin, hout)), full_spec((1, hout))]
        kernel = _cbn_fc_res_kernel if residual is not None else _cbn_fc_kernel
        y, ps = pl.pallas_call(
            kernel,
            grid=grid,
            in_specs=in_specs,
            out_specs=[act_spec(hout), psum_spec],
            out_shape=[jax.ShapeDtypeStruct((B, T, hout), jnp.bfloat16),
                       jax.ShapeDtypeStruct((num_b, num_t, 2, hout), jnp.float32)],
            input_output_aliases=aliases,
            compiler_params=cparams,
        )(*args)
        return y, finalize(ps)

    # gamma/beta for all 2*n_blocks+1 CBN layers, one batched einsum each.
    g0, b0, g1, b1, gf, bf_ = _affine_all(c, params)

    # ---- net = conv_p(p) ----------------------------------------------------
    net, ps = pl.pallas_call(
        _conv_p_kernel,
        grid=grid,
        in_specs=[pl.BlockSpec((tb, tt, dim), lambda b, t: (b, t, 0)),
                  full_spec((dim, H)), full_spec((1, H))],
        out_specs=[act_spec(H), psum_spec],
        out_shape=[jax.ShapeDtypeStruct((B, T, H), jnp.bfloat16),
                   jax.ShapeDtypeStruct((num_b, num_t, 2, H), jnp.float32)],
        compiler_params=cparams,
    )(p, params["wp"], params["bp"])
    mean, istd = finalize(ps)

    # ---- CResnetBlockConv1d blocks ------------------------------------------
    for i in range(n_blocks):
        sc0, sh0 = _fold_scale_shift(g0[i], b0[i], mean, istd)
        h, (mean_h, istd_h) = cbn_fc(net, sc0, sh0,
                                     params["fc0w"][i], params["fc0b"][i])
        sc1, sh1 = _fold_scale_shift(g1[i], b1[i], mean_h, istd_h)
        net, (mean, istd) = cbn_fc(h, sc1, sh1,
                                   params["fc1w"][i], params["fc1b"][i],
                                   residual=net)

    # ---- out = conv_out(relu(bn(net, c))) -----------------------------------
    scf, shf = _fold_scale_shift(gf, bf_, mean, istd)
    out = pl.pallas_call(
        _cbn_out_kernel,
        grid=grid,
        in_specs=[act_spec(H), row_spec(H), row_spec(H),
                  full_spec((1, H)), full_spec((1, 1))],
        out_specs=pl.BlockSpec((tb, tt), lambda b, t: (b, t)),
        out_shape=jax.ShapeDtypeStruct((B, T), jnp.float32),
        compiler_params=cparams,
    )(net, scf, shf, params["wout"], params["bout"])
    return out


# ----------------------------------------------------------------------------
# Parameters & pure-JAX reference
# ----------------------------------------------------------------------------
def init_params(key, dim, c_dim, hidden, n_blocks):
    """Synthetic parameters. Conv1d weights (out,in,1) stored transposed to
    (in,out); biases as (1,out). fc weights stored in bf16 (MXU-native)."""
    keys = iter(jax.random.split(key, 64))

    def w(shape, scale=0.1):
        return jax.random.normal(next(keys), shape, jnp.float32) * scale

    bf16 = jnp.bfloat16
    return {
        "wp": w((dim, hidden)), "bp": w((1, hidden)),
        "g0w": w((n_blocks, c_dim, hidden)), "g0b": w((n_blocks, 1, hidden)) + 1.0,
        "b0w": w((n_blocks, c_dim, hidden)), "b0b": w((n_blocks, 1, hidden)),
        "fc0w": w((n_blocks, hidden, hidden)).astype(bf16),
        "fc0b": w((n_blocks, 1, hidden)),
        "g1w": w((n_blocks, c_dim, hidden)), "g1b": w((n_blocks, 1, hidden)) + 1.0,
        "b1w": w((n_blocks, c_dim, hidden)), "b1b": w((n_blocks, 1, hidden)),
        "fc1w": w((n_blocks, hidden, hidden)).astype(bf16),
        "fc1b": w((n_blocks, 1, hidden)),
        "gfw": w((c_dim, hidden)), "gfb": w((1, hidden)) + 1.0,
        "bfw": w((c_dim, hidden)), "bfb": w((1, hidden)),
        "wout": w((1, hidden)), "bout": w((1, 1)),
    }


def reference_forward(p, c, params):
    """Pure-JAX reference with the same numerics as the kernels: bf16 matmul
    operands, bf16 inter-layer activation storage (stats from the pre-cast
    f32 value), training-mode biased variance (one-pass, clamped), folded
    scale/shift, f32 residual add."""
    f32, bf16 = jnp.float32, jnp.bfloat16
    n_blocks = params["fc0w"].shape[0]
    B, T, dim = p.shape
    n_pts = B * T

    def stats(y):
        return _finalize_stats(jnp.sum(y, axis=(0, 1)),
                               jnp.sum(y * y, axis=(0, 1)), n_pts)

    def cbn_relu(x, scale, shift):
        return jnp.maximum(x.astype(f32) * scale[:, None, :] + shift[:, None, :],
                           0.0)

    def fc(a, w, b):
        y = jnp.einsum("btk,kh->bth", a.astype(bf16), w,
                       preferred_element_type=f32)
        return y + b[None]

    g0, b0, g1, b1, gf, bf_ = _affine_all(c, params)

    # conv_p: same FMA ordering as the kernel (K = dim = 3).
    y = sum(p[:, :, k:k + 1] * params["wp"][k][None, None, :] for k in range(dim))
    y = y + params["bp"][None]
    mean, istd = stats(y)
    net = y.astype(bf16)

    for i in range(n_blocks):
        sc0, sh0 = _fold_scale_shift(g0[i], b0[i], mean, istd)
        y = fc(cbn_relu(net, sc0, sh0), params["fc0w"][i], params["fc0b"][i])
        mean_h, istd_h = stats(y)
        h = y.astype(bf16)

        sc1, sh1 = _fold_scale_shift(g1[i], b1[i], mean_h, istd_h)
        y = (fc(cbn_relu(h, sc1, sh1), params["fc1w"][i], params["fc1b"][i])
             + net.astype(f32))
        mean, istd = stats(y)
        net = y.astype(bf16)

    scf, shf = _fold_scale_shift(gf, bf_, mean, istd)
    a = cbn_relu(net, scf, shf)
    return (jnp.sum(a * params["wout"][0][None, None, :], axis=-1)
            + params["bout"][0, 0])


if __name__ == "__main__":
    B, T = 2, 2048         # batch, number of query points (T multiple of 128)
    DIM = 3                # point dimension
    C_DIM = 32             # conditioning code dimension
    HIDDEN = 128           # hidden size (lane-aligned; module default is 256)
    N_BLOCKS = 3           # number of CResnet blocks (small for the demo)

    key = jax.random.PRNGKey(0)
    kp, kc, kw = jax.random.split(key, 3)

    p = jax.random.normal(kp, (B, T, DIM), jnp.float32)   # points (B, T, dim)
    c = jax.random.normal(kc, (B, C_DIM), jnp.float32)    # condition code
    params = init_params(kw, DIM, C_DIM, HIDDEN, N_BLOCKS)

    fwd = jax.jit(decoder_cbn2_forward)
    out = jax.block_until_ready(fwd(p, c, params))

    ref = reference_forward(p, c, params)
    assert out.shape == (B, T)
    err = float(jnp.max(jnp.abs(out - ref)))
    assert jnp.allclose(out, ref, atol=2e-2, rtol=2e-2), f"max abs err {err}"

    print("KERNEL_OK")
</pallas_src>

<mosaic_0001>
module attributes {stable_mosaic.version = 11 : i64} {
  func.func @_conv_p_kernel(%arg0: i32, %arg1: i32, %arg2: memref<2x256x3xf32, #tpu.memory_space<vmem>>, %arg3: memref<3x128xf32, #tpu.memory_space<vmem>>, %arg4: memref<1x128xf32, #tpu.memory_space<vmem>>, %arg5: memref<2x256x128xbf16, #tpu.memory_space<vmem>>, %arg6: memref<1x1x2x128xf32, #tpu.memory_space<vmem>>) attributes {dimension_semantics = [#tpu.dimension_semantics<parallel>, #tpu.dimension_semantics<parallel>], iteration_bounds = array<i64: 1, 8>, scalar_prefetch = 0 : i64, scratch_operands = 0 : i64, tpu.core_type = #tpu.core_type<tc>, window_params = [{transform_indices = @transform_0, window_bounds = array<i64: 2, 256, 3>}, {pipeline_mode = #tpu.pipeline_mode<synchronous>, transform_indices = @transform_1, window_bounds = array<i64: 3, 128>}, {pipeline_mode = #tpu.pipeline_mode<synchronous>, transform_indices = @transform_2, window_bounds = array<i64: 1, 128>}, {transform_indices = @transform_3, window_bounds = array<i64: 2, 256, 128>}, {transform_indices = @transform_4, window_bounds = array<i64: 1, 1, 2, 128>}]} {
    %c0 = arith.constant 0 : index
    %c0_0 = arith.constant 0 : index
    %c0_1 = arith.constant 0 : index
    %0 = vector.load %arg2[%c0, %c0_0, %c0_1] : memref<2x256x3xf32, #tpu.memory_space<vmem>>, vector<2x256x3xf32>
    %c0_2 = arith.constant 0 : index
    %c0_3 = arith.constant 0 : index
    %1 = vector.load %arg3[%c0_2, %c0_3] : memref<3x128xf32, #tpu.memory_space<vmem>>, vector<3x128xf32>
    %2 = vector.extract_strided_slice %0 {offsets = [0, 0, 0], sizes = [2, 256, 1], strides = [1, 1, 1]} : vector<2x256x3xf32> to vector<2x256x1xf32>
    %3 = vector.extract_strided_slice %1 {offsets = [0, 0], sizes = [1, 128], strides = [1, 1]} : vector<3x128xf32> to vector<1x128xf32>
    %4 = vector.shape_cast %3 : vector<1x128xf32> to vector<128xf32>
    %5 = vector.shape_cast %4 : vector<128xf32> to vector<1x1x128xf32>
    %6 = vector.broadcast %2 : vector<2x256x1xf32> to vector<2x256x128xf32>
    %7 = vector.broadcast %5 : vector<1x1x128xf32> to vector<2x256x128xf32>
    %8 = arith.mulf %6, %7 : vector<2x256x128xf32>
    %9 = vector.extract_strided_slice %0 {offsets = [0, 0, 1], sizes = [2, 256, 1], strides = [1, 1, 1]} : vector<2x256x3xf32> to vector<2x256x1xf32>
    %10 = vector.extract_strided_slice %1 {offsets = [1, 0], sizes = [1, 128], strides = [1, 1]} : vector<3x128xf32> to vector<1x128xf32>
    %11 = vector.shape_cast %10 : vector<1x128xf32> to vector<128xf32>
    %12 = vector.shape_cast %11 : vector<128xf32> to vector<1x1x128xf32>
    %13 = vector.broadcast %9 : vector<2x256x1xf32> to vector<2x256x128xf32>
    %14 = vector.broadcast %12 : vector<1x1x128xf32> to vector<2x256x128xf32>
    %15 = arith.mulf %13, %14 : vector<2x256x128xf32>
    %16 = arith.addf %8, %15 : vector<2x256x128xf32>
    %17 = vector.extract_strided_slice %0 {offsets = [0, 0, 2], sizes = [2, 256, 1], strides = [1, 1, 1]} : vector<2x256x3xf32> to vector<2x256x1xf32>
    %18 = vector.extract_strided_slice %1 {offsets = [2, 0], sizes = [1, 128], strides = [1, 1]} : vector<3x128xf32> to vector<1x128xf32>
    %19 = vector.shape_cast %18 : vector<1x128xf32> to vector<128xf32>
    %20 = vector.shape_cast %19 : vector<128xf32> to vector<1x1x128xf32>
    %21 = vector.broadcast %17 : vector<2x256x1xf32> to vector<2x256x128xf32>
    %22 = vector.broadcast %20 : vector<1x1x128xf32> to vector<2x256x128xf32>
    %23 = arith.mulf %21, %22 : vector<2x256x128xf32>
    %24 = arith.addf %16, %23 : vector<2x256x128xf32>
    %c0_4 = arith.constant 0 : index
    %c0_5 = arith.constant 0 : index
    %25 = vector.load %arg4[%c0_4, %c0_5] : memref<1x128xf32, #tpu.memory_space<vmem>>, vector<1x128xf32>
    %26 = vector.shape_cast %25 : vector<1x128xf32> to vector<1x1x128xf32>
    %27 = vector.broadcast %26 : vector<1x1x128xf32> to vector<2x256x128xf32>
    %28 = arith.addf %24, %27 : vector<2x256x128xf32>
    %29 = arith.truncf %28 : vector<2x256x128xf32> to vector<2x256x128xbf16>
    %c0_6 = arith.constant 0 : index
    %c0_7 = arith.constant 0 : index
    %c0_8 = arith.constant 0 : index
    %30 = vector.load %arg5[%c0_6, %c0_7, %c0_8] : memref<2x256x128xbf16, #tpu.memory_space<vmem>>, vector<2x256x128xbf16>
    tpu.vector_store %arg5[%c0_6, %c0_7, %c0_8], %29 {strides = array<i32>} : memref<2x256x128xbf16, #tpu.memory_space<vmem>>, vector<2x256x128xbf16>,
    %cst = arith.constant dense<0.000000e+00> : vector<128xf32>
    %31 = vector.multi_reduction <add>, %28, %cst [0, 1] : vector<2x256x128xf32> to vector<128xf32>
    %32 = vector.shape_cast %31 : vector<128xf32> to vector<1x128xf32>
    %c0_9 = arith.constant 0 : index
    %c0_10 = arith.constant 0 : index
    %c0_11 = arith.constant 0 : index
    %c0_12 = arith.constant 0 : index
    %33 = vector.load %arg6[%c0_9, %c0_10, %c0_11, %c0_12] : memref<1x1x2x128xf32, #tpu.memory_space<vmem>>, vector<1x1x1x128xf32>
    %34 = vector.shape_cast %33 : vector<1x1x1x128xf32> to vector<1x128xf32>
    %35 = vector.shape_cast %32 : vector<1x128xf32> to vector<1x1x1x128xf32>
    tpu.vector_store %arg6[%c0_9, %c0_10, %c0_11, %c0_12], %35 {strides = array<i32>} : memref<1x1x2x128xf32, #tpu.memory_space<vmem>>, vector<1x1x1x128xf32>,
    %36 = arith.mulf %28, %28 : vector<2x256x128xf32>
    %cst_13 = arith.constant dense<0.000000e+00> : vector<128xf32>
    %37 = vector.multi_reduction <add>, %36, %cst_13 [0, 1] : vector<2x256x128xf32> to vector<128xf32>
    %38 = vector.shape_cast %37 : vector<128xf32> to vector<1x128xf32>
    %c0_14 = arith.constant 0 : index
    %c0_15 = arith.constant 0 : index
    %c1 = arith.constant 1 : index
    %c0_16 = arith.constant 0 : index
    %39 = vector.load %arg6[%c0_14, %c0_15, %c1, %c0_16] : memref<1x1x2x128xf32, #tpu.memory_space<vmem>>, vector<1x1x1x128xf32>
    %40 = vector.shape_cast %39 : vector<1x1x1x128xf32> to vector<1x128xf32>
    %41 = vector.shape_cast %38 : vector<1x128xf32> to vector<1x1x1x128xf32>
    tpu.vector_store %arg6[%c0_14, %c0_15, %c1, %c0_16], %41 {strides = array<i32>} : memref<1x1x2x128xf32, #tpu.memory_space<vmem>>, vector<1x1x1x128xf32>,
    return
  }
  func.func @transform_0(%arg0: i32, %arg1: i32) -> (i32, i32, i32) {
    %c0_i32 = arith.constant 0 : i32
    %c0_i32_0 = arith.constant 0 : i32
    return %arg0, %arg1, %c0_i32 : i32, i32, i32
  }
  func.func @transform_1(%arg0: i32, %arg1: i32) -> (i32, i32) {
    %c0_i32 = arith.constant 0 : i32
    %c0_i32_0 = arith.constant 0 : i32
    %c0_i32_1 = arith.constant 0 : i32
    return %c0_i32, %c0_i32_0 : i32, i32
  }
  func.func @transform_2(%arg0: i32, %arg1: i32) -> (i32, i32) {
    %c0_i32 = arith.constant 0 : i32
    %c0_i32_0 = arith.constant 0 : i32
    %c0_i32_1 = arith.constant 0 : i32
    return %c0_i32, %c0_i32_0 : i32, i32
  }
  func.func @transform_3(%arg0: i32, %arg1: i32) -> (i32, i32, i32) {
    %c0_i32 = arith.constant 0 : i32
    %c0_i32_0 = arith.constant 0 : i32
    return %arg0, %arg1, %c0_i32 : i32, i32, i32
  }
  func.func @transform_4(%arg0: i32, %arg1: i32) -> (i32, i32, i32, i32) {
    %c0_i32 = arith.constant 0 : i32
    %c0_i32_0 = arith.constant 0 : i32
    %c0_i32_1 = arith.constant 0 : i32
    return %arg0, %arg1, %c0_i32, %c0_i32_0 : i32, i32, i32, i32
  }
}

module attributes {stable_mosaic.version = 11 : i64} {
  func.func @_cbn_fc_kernel(%arg0: i32, %arg1: i32, %arg2: memref<2x256x128xbf16, #tpu.memory_space<vmem>>, %arg3: memref<2x128xf32, #tpu.memory_space<vmem>>, %arg4: memref<2x128xf32, #tpu.memory_space<vmem>>, %arg5: memref<128x128xbf16, #tpu.memory_space<vmem>>, %arg6: memref<1x128xf32, #tpu.memory_space<vmem>>, %arg7: memref<2x256x128xbf16, #tpu.memory_space<vmem>>, %arg8: memref<1x1x2x128xf32, #tpu.memory_space<vmem>>) attributes {dimension_semantics = [#tpu.dimension_semantics<parallel>, #tpu.dimension_semantics<parallel>], iteration_bounds = array<i64: 1, 8>, scalar_prefetch = 0 : i64, scratch_operands = 0 : i64, tpu.core_type = #tpu.core_type<tc>, window_params = [{transform_indices = @transform_0, window_bounds = array<i64: 2, 256, 128>}, {transform_indices = @transform_1, window_bounds = array<i64: 2, 128>}, {transform_indices = @transform_2, window_bounds = array<i64: 2, 128>}, {pipeline_mode = #tpu.pipeline_mode<synchronous>, transform_indices = @transform_3, window_bounds = array<i64: 128, 128>}, {pipeline_mode = #tpu.pipeline_mode<synchronous>, transform_indices = @transform_4, window_bounds = array<i64: 1, 128>}, {transform_indices = @transform_5, window_bounds = array<i64: 2, 256, 128>}, {transform_indices = @transform_6, window_bounds = array<i64: 1, 1, 2, 128>}]} {
    %c0 = arith.constant 0 : index
    %c0_0 = arith.constant 0 : index
    %c0_1 = arith.constant 0 : index
    %0 = vector.load %arg2[%c0, %c0_0, %c0_1] : memref<2x256x128xbf16, #tpu.memory_space<vmem>>, vector<2x256x128xbf16>
    %1 = arith.extf %0 : vector<2x256x128xbf16> to vector<2x256x128xf32>
    %c0_2 = arith.constant 0 : index
    %c0_3 = arith.constant 0 : index
    %2 = vector.load %arg3[%c0_2, %c0_3] : memref<2x128xf32, #tpu.memory_space<vmem>>, vector<2x128xf32>
    %3 = vector.shape_cast %2 : vector<2x128xf32> to vector<2x1x128xf32>
    %4 = vector.broadcast %3 : vector<2x1x128xf32> to vector<2x256x128xf32>
    %5 = arith.mulf %1, %4 : vector<2x256x128xf32>
    %c0_4 = arith.constant 0 : index
    %c0_5 = arith.constant 0 : index
    %6 = vector.load %arg4[%c0_4, %c0_5] : memref<2x128xf32, #tpu.memory_space<vmem>>, vector<2x128xf32>
    %7 = vector.shape_cast %6 : vector<2x128xf32> to vector<2x1x128xf32>
    %8 = vector.broadcast %7 : vector<2x1x128xf32> to vector<2x256x128xf32>
    %9 = arith.addf %5, %8 : vector<2x256x128xf32>
    %cst = arith.constant 0.000000e+00 : f32
    %10 = vector.broadcast %cst : f32 to vector<2x256x128xf32>
    %11 = arith.maximumf %9, %10 : vector<2x256x128xf32>
    %c0_6 = arith.constant 0 : index
    %c0_7 = arith.constant 0 : index
    %12 = vector.load %arg5[%c0_6, %c0_7] : memref<128x128xbf16, #tpu.memory_space<vmem>>, vector<128x128xbf16>
    %13 = vector.shape_cast %11 : vector<2x256x128xf32> to vector<512x128xf32>
    %14 = arith.truncf %13 : vector<512x128xf32> to vector<512x128xbf16>
    %cst_8 = arith.constant dense<0.000000e+00> : vector<512x128xf32>
    %15 = tpu.matmul %14, %12, %cst_8 {dimension_numbers = #tpu.dot_dimension_numbers<[1], [0], [0], [1], [0, 0, 1, 1], [], []>} : vector<512x128xbf16>, vector<128x128xbf16>, vector<512x128xf32> -> vector<512x128xf32>
    %16 = vector.shape_cast %15 : vector<512x128xf32> to vector<2x256x128xf32>
    %c0_9 = arith.constant 0 : index
    %c0_10 = arith.constant 0 : index
    %17 = vector.load %arg6[%c0_9, %c0_10] : memref<1x128xf32, #tpu.memory_space<vmem>>, vector<1x128xf32>
    %18 = vector.shape_cast %17 : vector<1x128xf32> to vector<1x1x128xf32>
    %19 = vector.broadcast %18 : vector<1x1x128xf32> to vector<2x256x128xf32>
    %20 = arith.addf %16, %19 : vector<2x256x128xf32>
    %21 = arith.truncf %20 : vector<2x256x128xf32> to vector<2x256x128xbf16>
    %c0_11 = arith.constant 0 : index
    %c0_12 = arith.constant 0 : index
    %c0_13 = arith.constant 0 : index
    %22 = vector.load %arg7[%c0_11, %c0_12, %c0_13] : memref<2x256x128xbf16, #tpu.memory_space<vmem>>, vector<2x256x128xbf16>
    tpu.vector_store %arg7[%c0_11, %c0_12, %c0_13], %21 {strides = array<i32>} : memref<2x256x128xbf16, #tpu.memory_space<vmem>>, vector<2x256x128xbf16>,
    %cst_14 = arith.constant dense<0.000000e+00> : vector<128xf32>
    %23 = vector.multi_reduction <add>, %20, %cst_14 [0, 1] : vector<2x256x128xf32> to vector<128xf32>
    %24 = vector.shape_cast %23 : vector<128xf32> to vector<1x128xf32>
    %c0_15 = arith.constant 0 : index
    %c0_16 = arith.constant 0 : index
    %c0_17 = arith.constant 0 : index
    %c0_18 = arith.constant 0 : index
    %25 = vector.load %arg8[%c0_15, %c0_16, %c0_17, %c0_18] : memref<1x1x2x128xf32, #tpu.memory_space<vmem>>, vector<1x1x1x128xf32>
    %26 = vector.shape_cast %25 : vector<1x1x1x128xf32> to vector<1x128xf32>
    %27 = vector.shape_cast %24 : vector<1x128xf32> to vector<1x1x1x128xf32>
    tpu.vector_store %arg8[%c0_15, %c0_16, %c0_17, %c0_18], %27 {strides = array<i32>} : memref<1x1x2x128xf32, #tpu.memory_space<vmem>>, vector<1x1x1x128xf32>,
    %28 = arith.mulf %20, %20 : vector<2x256x128xf32>
    %cst_19 = arith.constant dense<0.000000e+00> : vector<128xf32>
    %29 = vector.multi_reduction <add>, %28, %cst_19 [0, 1] : vector<2x256x128xf32> to vector<128xf32>
    %30 = vector.shape_cast %29 : vector<128xf32> to vector<1x128xf32>
    %c0_20 = arith.constant 0 : index
    %c0_21 = arith.constant 0 : index
    %c1 = arith.constant 1 : index
    %c0_22 = arith.constant 0 : index
    %31 = vector.load %arg8[%c0_20, %c0_21, %c1, %c0_22] : memref<1x1x2x128xf32, #tpu.memory_space<vmem>>, vector<1x1x1x128xf32>
    %32 = vector.shape_cast %31 : vector<1x1x1x128xf32> to vector<1x128xf32>
    %33 = vector.shape_cast %30 : vector<1x128xf32> to vector<1x1x1x128xf32>
    tpu.vector_store %arg8[%c0_20, %c0_21, %c1, %c0_22], %33 {strides = array<i32>} : memref<1x1x2x128xf32, #tpu.memory_space<vmem>>, vector<1x1x1x128xf32>,
    return
  }
  func.func @transform_0(%arg0: i32, %arg1: i32) -> (i32, i32, i32) {
    %c0_i32 = arith.constant 0 : i32
    %c0_i32_0 = arith.constant 0 : i32
    return %arg0, %arg1, %c0_i32 : i32, i32, i32
  }
  func.func @transform_1(%arg0: i32, %arg1: i32) -> (i32, i32) {
    %c0_i32 = arith.constant 0 : i32
    %c0_i32_0 = arith.constant 0 : i32
    return %arg0, %c0_i32 : i32, i32
  }
  func.func @transform_2(%arg0: i32, %arg1: i32) -> (i32, i32) {
    %c0_i32 = arith.constant 0 : i32
    %c0_i32_0 = arith.constant 0 : i32
    return %arg0, %c0_i32 : i32, i32
  }
  func.func @transform_3(%arg0: i32, %arg1: i32) -> (i32, i32) {
    %c0_i32 = arith.constant 0 : i32
    %c0_i32_0 = arith.constant 0 : i32
    %c0_i32_1 = arith.constant 0 : i32
    return %c0_i32, %c0_i32_0 : i32, i32
  }
  func.func @transform_4(%arg0: i32, %arg1: i32) -> (i32, i32) {
    %c0_i32 = arith.constant 0 : i32
    %c0_i32_0 = arith.constant 0 : i32
    %c0_i32_1 = arith.constant 0 : i32
    return %c0_i32, %c0_i32_0 : i32, i32
  }
  func.func @transform_5(%arg0: i32, %arg1: i32) -> (i32, i32, i32) {
    %c0_i32 = arith.constant 0 : i32
    %c0_i32_0 = arith.constant 0 : i32
    return %arg0, %arg1, %c0_i32 : i32, i32, i32
  }
  func.func @transform_6(%arg0: i32, %arg1: i32) -> (i32, i32, i32, i32) {
    %c0_i32 = arith.constant 0 : i32
    %c0_i32_0 = arith.constant 0 : i32
    %c0_i32_1 = arith.constant 0 : i32
    return %arg0, %arg1, %c0_i32, %c0_i32_0 : i32, i32, i32, i32
  }
}

module attributes {stable_mosaic.version = 11 : i64} {
  func.func @_cbn_fc_res_kernel(%arg0: i32, %arg1: i32, %arg2: memref<2x256x128xbf16, #tpu.memory_space<vmem>>, %arg3: memref<2x256x128xbf16, #tpu.memory_space<vmem>>, %arg4: memref<2x128xf32, #tpu.memory_space<vmem>>, %arg5: memref<2x128xf32, #tpu.memory_space<vmem>>, %arg6: memref<128x128xbf16, #tpu.memory_space<vmem>>, %arg7: memref<1x128xf32, #tpu.memory_space<vmem>>, %arg8: memref<2x256x128xbf16, #tpu.memory_space<vmem>>, %arg9: memref<1x1x2x128xf32, #tpu.memory_space<vmem>>) attributes {dimension_semantics = [#tpu.dimension_semantics<parallel>, #tpu.dimension_semantics<parallel>], iteration_bounds = array<i64: 1, 8>, scalar_prefetch = 0 : i64, scratch_operands = 0 : i64, tpu.core_type = #tpu.core_type<tc>, window_params = [{transform_indices = @transform_0, window_bounds = array<i64: 2, 256, 128>}, {transform_indices = @transform_1, window_bounds = array<i64: 2, 256, 128>}, {transform_indices = @transform_2, window_bounds = array<i64: 2, 128>}, {transform_indices = @transform_3, window_bounds = array<i64: 2, 128>}, {pipeline_mode = #tpu.pipeline_mode<synchronous>, transform_indices = @transform_4, window_bounds = array<i64: 128, 128>}, {pipeline_mode = #tpu.pipeline_mode<synchronous>, transform_indices = @transform_5, window_bounds = array<i64: 1, 128>}, {transform_indices = @transform_6, window_bounds = array<i64: 2, 256, 128>}, {transform_indices = @transform_7, window_bounds = array<i64: 1, 1, 2, 128>}]} {
    %c0 = arith.constant 0 : index
    %c0_0 = arith.constant 0 : index
    %c0_1 = arith.constant 0 : index
    %0 = vector.load %arg2[%c0, %c0_0, %c0_1] : memref<2x256x128xbf16, #tpu.memory_space<vmem>>, vector<2x256x128xbf16>
    %1 = arith.extf %0 : vector<2x256x128xbf16> to vector<2x256x128xf32>
    %c0_2 = arith.constant 0 : index
    %c0_3 = arith.constant 0 : index
    %2 = vector.load %arg4[%c0_2, %c0_3] : memref<2x128xf32, #tpu.memory_space<vmem>>, vector<2x128xf32>
    %3 = vector.shape_cast %2 : vector<2x128xf32> to vector<2x1x128xf32>
    %4 = vector.broadcast %3 : vector<2x1x128xf32> to vector<2x256x128xf32>
    %5 = arith.mulf %1, %4 : vector<2x256x128xf32>
    %c0_4 = arith.constant 0 : index
    %c0_5 = arith.constant 0 : index
    %6 = vector.load %arg5[%c0_4, %c0_5] : memref<2x128xf32, #tpu.memory_space<vmem>>, vector<2x128xf32>
    %7 = vector.shape_cast %6 : vector<2x128xf32> to vector<2x1x128xf32>
    %8 = vector.broadcast %7 : vector<2x1x128xf32> to vector<2x256x128xf32>
    %9 = arith.addf %5, %8 : vector<2x256x128xf32>
    %cst = arith.constant 0.000000e+00 : f32
    %10 = vector.broadcast %cst : f32 to vector<2x256x128xf32>
    %11 = arith.maximumf %9, %10 : vector<2x256x128xf32>
    %c0_6 = arith.constant 0 : index
    %c0_7 = arith.constant 0 : index
    %12 = vector.load %arg6[%c0_6, %c0_7] : memref<128x128xbf16, #tpu.memory_space<vmem>>, vector<128x128xbf16>
    %13 = vector.shape_cast %11 : vector<2x256x128xf32> to vector<512x128xf32>
    %14 = arith.truncf %13 : vector<512x128xf32> to vector<512x128xbf16>
    %cst_8 = arith.constant dense<0.000000e+00> : vector<512x128xf32>
    %15 = tpu.matmul %14, %12, %cst_8 {dimension_numbers = #tpu.dot_dimension_numbers<[1], [0], [0], [1], [0, 0, 1, 1], [], []>} : vector<512x128xbf16>, vector<128x128xbf16>, vector<512x128xf32> -> vector<512x128xf32>
    %16 = vector.shape_cast %15 : vector<512x128xf32> to vector<2x256x128xf32>
    %c0_9 = arith.constant 0 : index
    %c0_10 = arith.constant 0 : index
    %17 = vector.load %arg7[%c0_9, %c0_10] : memref<1x128xf32, #tpu.memory_space<vmem>>, vector<1x128xf32>
    %18 = vector.shape_cast %17 : vector<1x128xf32> to vector<1x1x128xf32>
    %19 = vector.broadcast %18 : vector<1x1x128xf32> to vector<2x256x128xf32>
    %20 = arith.addf %16, %19 : vector<2x256x128xf32>
    %c0_11 = arith.constant 0 : index
    %c0_12 = arith.constant 0 : index
    %c0_13 = arith.constant 0 : index
    %21 = vector.load %arg3[%c0_11, %c0_12, %c0_13] : memref<2x256x128xbf16, #tpu.memory_space<vmem>>, vector<2x256x128xbf16>
    %22 = arith.extf %21 : vector<2x256x128xbf16> to vector<2x256x128xf32>
    %23 = arith.addf %20, %22 : vector<2x256x128xf32>
    %24 = arith.truncf %23 : vector<2x256x128xf32> to vector<2x256x128xbf16>
    %c0_14 = arith.constant 0 : index
    %c0_15 = arith.constant 0 : index
    %c0_16 = arith.constant 0 : index
    %25 = vector.load %arg8[%c0_14, %c0_15, %c0_16] : memref<2x256x128xbf16, #tpu.memory_space<vmem>>, vector<2x256x128xbf16>
    tpu.vector_store %arg8[%c0_14, %c0_15, %c0_16], %24 {strides = array<i32>} : memref<2x256x128xbf16, #tpu.memory_space<vmem>>, vector<2x256x128xbf16>,
    %cst_17 = arith.constant dense<0.000000e+00> : vector<128xf32>
    %26 = vector.multi_reduction <add>, %23, %cst_17 [0, 1] : vector<2x256x128xf32> to vector<128xf32>
    %27 = vector.shape_cast %26 : vector<128xf32> to vector<1x128xf32>
    %c0_18 = arith.constant 0 : index
    %c0_19 = arith.constant 0 : index
    %c0_20 = arith.constant 0 : index
    %c0_21 = arith.constant 0 : index
    %28 = vector.load %arg9[%c0_18, %c0_19, %c0_20, %c0_21] : memref<1x1x2x128xf32, #tpu.memory_space<vmem>>, vector<1x1x1x128xf32>
    %29 = vector.shape_cast %28 : vector<1x1x1x128xf32> to vector<1x128xf32>
    %30 = vector.shape_cast %27 : vector<1x128xf32> to vector<1x1x1x128xf32>
    tpu.vector_store %arg9[%c0_18, %c0_19, %c0_20, %c0_21], %30 {strides = array<i32>} : memref<1x1x2x128xf32, #tpu.memory_space<vmem>>, vector<1x1x1x128xf32>,
    %31 = arith.mulf %23, %23 : vector<2x256x128xf32>
    %cst_22 = arith.constant dense<0.000000e+00> : vector<128xf32>
    %32 = vector.multi_reduction <add>, %31, %cst_22 [0, 1] : vector<2x256x128xf32> to vector<128xf32>
    %33 = vector.shape_cast %32 : vector<128xf32> to vector<1x128xf32>
    %c0_23 = arith.constant 0 : index
    %c0_24 = arith.constant 0 : index
    %c1 = arith.constant 1 : index
    %c0_25 = arith.constant 0 : index
    %34 = vector.load %arg9[%c0_23, %c0_24, %c1, %c0_25] : memref<1x1x2x128xf32, #tpu.memory_space<vmem>>, vector<1x1x1x128xf32>
    %35 = vector.shape_cast %34 : vector<1x1x1x128xf32> to vector<1x128xf32>
    %36 = vector.shape_cast %33 : vector<1x128xf32> to vector<1x1x1x128xf32>
    tpu.vector_store %arg9[%c0_23, %c0_24, %c1, %c0_25], %36 {strides = array<i32>} : memref<1x1x2x128xf32, #tpu.memory_space<vmem>>, vector<1x1x1x128xf32>,
    return
  }
  func.func @transform_0(%arg0: i32, %arg1: i32) -> (i32, i32, i32) {
    %c0_i32 = arith.constant 0 : i32
    %c0_i32_0 = arith.constant 0 : i32
    return %arg0, %arg1, %c0_i32 : i32, i32, i32
  }
  func.func @transform_1(%arg0: i32, %arg1: i32) -> (i32, i32, i32) {
    %c0_i32 = arith.constant 0 : i32
    %c0_i32_0 = arith.constant 0 : i32
    return %arg0, %arg1, %c0_i32 : i32, i32, i32
  }
  func.func @transform_2(%arg0: i32, %arg1: i32) -> (i32, i32) {
    %c0_i32 = arith.constant 0 : i32
    %c0_i32_0 = arith.constant 0 : i32
    return %arg0, %c0_i32 : i32, i32
  }
  func.func @transform_3(%arg0: i32, %arg1: i32) -> (i32, i32) {
    %c0_i32 = arith.constant 0 : i32
    %c0_i32_0 = arith.constant 0 : i32
    return %arg0, %c0_i32 : i32, i32
  }
  func.func @transform_4(%arg0: i32, %arg1: i32) -> (i32, i32) {
    %c0_i32 = arith.constant 0 : i32
    %c0_i32_0 = arith.constant 0 : i32
    %c0_i32_1 = arith.constant 0 : i32
    return %c0_i32, %c0_i32_0 : i32, i32
  }
  func.func @transform_5(%arg0: i32, %arg1: i32) -> (i32, i32) {
    %c0_i32 = arith.constant 0 : i32
    %c0_i32_0 = arith.constant 0 : i32
    %c0_i32_1 = arith.constant 0 : i32
    return %c0_i32, %c0_i32_0 : i32, i32
  }
  func.func @transform_6(%arg0: i32, %arg1: i32) -> (i32, i32, i32) {
    %c0_i32 = arith.constant 0 : i32
    %c0_i32_0 = arith.constant 0 : i32
    return %arg0, %arg1, %c0_i32 : i32, i32, i32
  }
  func.func @transform_7(%arg0: i32, %arg1: i32) -> (i32, i32, i32, i32) {
    %c0_i32 = arith.constant 0 : i32
    %c0_i32_0 = arith.constant 0 : i32
    %c0_i32_1 = arith.constant 0 : i32
    return %arg0, %arg1, %c0_i32, %c0_i32_0 : i32, i32, i32, i32
  }
}

module attributes {stable_mosaic.version = 11 : i64} {
  func.func @_cbn_out_kernel(%arg0: i32, %arg1: i32, %arg2: memref<2x256x128xbf16, #tpu.memory_space<vmem>>, %arg3: memref<2x128xf32, #tpu.memory_space<vmem>>, %arg4: memref<2x128xf32, #tpu.memory_space<vmem>>, %arg5: memref<1x128xf32, #tpu.memory_space<vmem>>, %arg6: memref<1x1xf32, #tpu.memory_space<vmem>>, %arg7: memref<2x256xf32, #tpu.memory_space<vmem>>) attributes {dimension_semantics = [#tpu.dimension_semantics<parallel>, #tpu.dimension_semantics<parallel>], iteration_bounds = array<i64: 1, 8>, scalar_prefetch = 0 : i64, scratch_operands = 0 : i64, tpu.core_type = #tpu.core_type<tc>, window_params = [{transform_indices = @transform_0, window_bounds = array<i64: 2, 256, 128>}, {transform_indices = @transform_1, window_bounds = array<i64: 2, 128>}, {transform_indices = @transform_2, window_bounds = array<i64: 2, 128>}, {pipeline_mode = #tpu.pipeline_mode<synchronous>, transform_indices = @transform_3, window_bounds = array<i64: 1, 128>}, {pipeline_mode = #tpu.pipeline_mode<synchronous>, transform_indices = @transform_4, window_bounds = array<i64: 1, 1>}, {transform_indices = @transform_5, window_bounds = array<i64: 2, 256>}]} {
    %c0 = arith.constant 0 : index
    %c0_0 = arith.constant 0 : index
    %c0_1 = arith.constant 0 : index
    %0 = vector.load %arg2[%c0, %c0_0, %c0_1] : memref<2x256x128xbf16, #tpu.memory_space<vmem>>, vector<2x256x128xbf16>
    %1 = arith.extf %0 : vector<2x256x128xbf16> to vector<2x256x128xf32>
    %c0_2 = arith.constant 0 : index
    %c0_3 = arith.constant 0 : index
    %2 = vector.load %arg3[%c0_2, %c0_3] : memref<2x128xf32, #tpu.memory_space<vmem>>, vector<2x128xf32>
    %3 = vector.shape_cast %2 : vector<2x128xf32> to vector<2x1x128xf32>
    %4 = vector.broadcast %3 : vector<2x1x128xf32> to vector<2x256x128xf32>
    %5 = arith.mulf %1, %4 : vector<2x256x128xf32>
    %c0_4 = arith.constant 0 : index
    %c0_5 = arith.constant 0 : index
    %6 = vector.load %arg4[%c0_4, %c0_5] : memref<2x128xf32, #tpu.memory_space<vmem>>, vector<2x128xf32>
    %7 = vector.shape_cast %6 : vector<2x128xf32> to vector<2x1x128xf32>
    %8 = vector.broadcast %7 : vector<2x1x128xf32> to vector<2x256x128xf32>
    %9 = arith.addf %5, %8 : vector<2x256x128xf32>
    %cst = arith.constant 0.000000e+00 : f32
    %10 = vector.broadcast %cst : f32 to vector<2x256x128xf32>
    %11 = arith.maximumf %9, %10 : vector<2x256x128xf32>
    %c0_6 = arith.constant 0 : index
    %c0_7 = arith.constant 0 : index
    %12 = vector.load %arg5[%c0_6, %c0_7] : memref<1x128xf32, #tpu.memory_space<vmem>>, vector<1x128xf32>
    %13 = vector.shape_cast %12 : vector<1x128xf32> to vector<1x1x128xf32>
    %14 = vector.broadcast %13 : vector<1x1x128xf32> to vector<2x256x128xf32>
    %15 = arith.mulf %11, %14 : vector<2x256x128xf32>
    %cst_8 = arith.constant dense<0.000000e+00> : vector<2x256xf32>
    %16 = vector.multi_reduction <add>, %15, %cst_8 [2] : vector<2x256x128xf32> to vector<2x256xf32>
    %c0_9 = arith.constant 0 : index
    %c0_10 = arith.constant 0 : index
    %17 = vector.load %arg6[%c0_9, %c0_10] : memref<1x1xf32, #tpu.memory_space<vmem>>, vector<1x1xf32>
    %18 = vector.broadcast %17 : vector<1x1xf32> to vector<2x256xf32>
    %19 = arith.addf %16, %18 : vector<2x256xf32>
    %c0_11 = arith.constant 0 : index
    %c0_12 = arith.constant 0 : index
    %20 = vector.load %arg7[%c0_11, %c0_12] : memref<2x256xf32, #tpu.memory_space<vmem>>, vector<2x256xf32>
    tpu.vector_store %arg7[%c0_11, %c0_12], %19 {strides = array<i32>} : memref<2x256xf32, #tpu.memory_space<vmem>>, vector<2x256xf32>,
    return
  }
  func.func @transform_0(%arg0: i32, %arg1: i32) -> (i32, i32, i32) {
    %c0_i32 = arith.constant 0 : i32
    %c0_i32_0 = arith.constant 0 : i32
    return %arg0, %arg1, %c0_i32 : i32, i32, i32
  }
  func.func @transform_1(%arg0: i32, %arg1: i32) -> (i32, i32) {
    %c0_i32 = arith.constant 0 : i32
    %c0_i32_0 = arith.constant 0 : i32
    return %arg0, %c0_i32 : i32, i32
  }
  func.func @transform_2(%arg0: i32, %arg1: i32) -> (i32, i32) {
    %c0_i32 = arith.constant 0 : i32
    %c0_i32_0 = arith.constant 0 : i32
    return %arg0, %c0_i32 : i32, i32
  }
  func.func @transform_3(%arg0: i32, %arg1: i32) -> (i32, i32) {
    %c0_i32 = arith.constant 0 : i32
    %c0_i32_0 = arith.constant 0 : i32
    %c0_i32_1 = arith.constant 0 : i32
    return %c0_i32, %c0_i32_0 : i32, i32
  }
  func.func @transform_4(%arg0: i32, %arg1: i32) -> (i32, i32) {
    %c0_i32 = arith.constant 0 : i32
    %c0_i32_0 = arith.constant 0 : i32
    %c0_i32_1 = arith.constant 0 : i32
    return %c0_i32, %c0_i32_0 : i32, i32
  }
  func.func @transform_5(%arg0: i32, %arg1: i32) -> (i32, i32) {
    %c0_i32 = arith.constant 0 : i32
    return %arg0, %arg1 : i32, i32
  }
}

</mosaic_0001>

<llo_original>
// kernel: decoder_cbn2_forward.8
$region0: #{decoder_cbn2_forward.8}
  #allocation0 [shape = 'u32[]', space=smem, size = 0x4, offset = 0x4, fixed_abs, tag = 'smem constant byte address 0x4 - core index']
  #allocation1 [shape = 'u32[144,128]{1,0:T(1,128)}', space=vmem, size = 0x12000, scoped, tag = 'internal scratch']
  #allocation11 [shape = 's32[]', space=sflag, size = 0x4, offset = 0, fixed_abs, tag = 'sflag constant byte address 0x0 - dummy sync flag']
  #allocation13 [shape = 's32[]', space=sflag, size = 0x4, offset = 0, fixed_abs, tag = 'sflag constant byte address 0x0 - dummy sync flag']
  %s0 = inlined_call_operand.hbm [shape: f32[2,2048,3], index: 0, kind: input, shape index: {}]
  %s1 = inlined_call_operand.hbm [shape: f32[3,128], index: 1, kind: input, shape index: {}]
  %s2 = inlined_call_operand.hbm [shape: f32[1,128], index: 2, kind: input, shape index: {}]
  %s3 = inlined_call_operand.hbm [shape: bf16[2,2048,128], index: 3, kind: output, shape index: {0}]
  %s4 = inlined_call_operand.hbm [shape: f32[1,8,2,128], index: 4, kind: output, shape index: {1}]
  %5 = xla_tuple %s3, %s4
  %s6 = sld [smem:[#allocation0]]
  $region65: #{decoder_cbn2_forward.8} parent=0
    _
  %s8 = ssub.s32 1, %s6
  %s9 = scalar_select 0, %s8, %s6
  $region1: #{decoder_cbn2_forward.8} parent=0
    #allocation2 [shape = 'u8[524288]{0}', space=vmem, size = 0x80000, scoped, tag = 'input window, operand 0']
    #allocation3 [shape = 's32[2]{0}', space=sflag, size = 0x8, scoped, tag = 'scoped memory for decoder_cbn2_forward.8']
    #allocation4 [shape = 's32[2]{0}', space=sflag, size = 0x8, scoped, tag = 'scoped memory for decoder_cbn2_forward.8']
    #allocation5 [shape = 'u8[2048]{0}', space=vmem, size = 0x800, scoped, tag = 'input window, operand 1, single buffered']
    #allocation6 [shape = 's32[1]{0}', space=sflag, size = 0x4, scoped, tag = 'scoped memory for decoder_cbn2_forward.8']
    #allocation7 [shape = 'u8[512]{0}', space=vmem, size = 0x400, scoped, tag = 'input window, operand 2, single buffered']
    #allocation8 [shape = 'u8[262144]{0}', space=vmem, size = 0x40000, scoped, tag = 'output window, operand 0']
    #allocation9 [shape = 'u8[2048]{0}', space=vmem, size = 0x800, scoped, tag = 'output window, operand 1']
    #allocation10 [shape = 's32[2]{0}', space=sflag, size = 0x8, scoped, tag = 'scoped memory for decoder_cbn2_forward.8']
    %10 = vsyncpa [#allocation3], 0
    %s11 = scalar_lea.sflag [#allocation3], 1
    %12 = vsyncpa %s11, 0
    %13 = vsyncpa [#allocation6], 0
    %14 = vsyncpa [#allocation4], 0
    %s15 = scalar_lea.sflag [#allocation4], 1
    %16 = vsyncpa %s15, 0
    %17 = vsyncpa [#allocation10], 0
    %s18 = scalar_lea.sflag [#allocation10], 1
    %19 = vsyncpa %s18, 0
    loop: start=0, step=1, limit=10
    $region2: #{decoder_cbn2_forward.8} parent=1 // loop_pre_header
      _
    $region3: #{decoder_cbn2_forward.8} parent=1 // loop_header
      %s21 = sphi 0, %s25
      %p22 = scmp.ge.s32.totalorder %s21, 10
      %s28 = sphi 0, %s40
      %s29 = sphi 0, %s36
      %s30 = sphi 0, %s28
      %s31 = sphi 0, %s29
      %s32 = sphi 0, %s30
      %s33 = sphi 0, %s31
      %s45 = sphi 0, %s47
      %s48 = sphi 0, %s45
      %s49 = sphi 0, %s48
      %s65 = sphi 0, %s49
      %s69 = sphi 0, %s69
      %s71 = sphi 0, %s69
      %s72 = sphi 0, %s71
      %s86 = sphi 0, %s72
      %s90 = sphi 0, %s90
      %s92 = sphi 0, %s90
      %s93 = sphi 0, %s92
      %s107 = sphi 0, %s93
      %s115 = sphi 0, %s117
      %s118 = sphi 0, %s115
      %s119 = sphi 0, %s118
      %s135 = sphi 0, %s119
      %s143 = sphi 0, %s145
      %s146 = sphi 0, %s143
      %s147 = sphi 0, %s146
      %s163 = sphi 0, %s147
    $region4: #{decoder_cbn2_forward.8} parent=1 // loop_header_branch
      %24 = sbr.rel (%p22) target = $region8
    $region5: #{decoder_cbn2_forward.8} parent=1 // loop_body
      %s26 = ssub.s32 %s21, 1
      %s27 = ssub.s32 %s21, 2
      %s34 = sadd.s32 1, %s29
      %p35 = scmp.ge.s32.totalorder %s34, 8
      %s36 = scalar_select %p35, 0, %s34
      %s37 = sadd.s32 1, %s28
      %s38 = scalar_select %p35, %s37, %s28
      %p39 = scmp.ge.s32.totalorder %s38, 1
      %s40 = scalar_select %p39, 0, %s38
      %s41 = ssub.s32 %s28, %s40
      %s42 = ssub.s32 %s29, %s36
      %s43 = sor.u32 %s41, %s42
      %p44 = scmp.eq.s32.totalorder %s43, 0
      %s46 = sadd.s32 %s45, 1
      %s47 = scalar_select %p44, %s45, %s46
      %p50 = pneg %p44
      %p51 = scmp.eq.s32.totalorder %s21, 7
      %p52 = por %p50, %p51
      %p53 = scmp.ne.s32.totalorder %s45, %s48
      %p54 = scmp.eq.s32.totalorder %s21, 0
      %p55 = por %p53, %p54
      %p56 = scmp.ne.s32.totalorder %s45, %s48
      %p57 = scmp.eq.s32.totalorder %s26, 7
      %p58 = por %p56, %p57
      %p59 = scmp.ne.s32.totalorder %s48, %s49
      %p60 = scmp.eq.s32.totalorder %s26, 0
      %p61 = por %p59, %p60
      %p62 = scmp.ne.s32.totalorder %s48, %s49
      %p63 = scmp.eq.s32.totalorder %s27, 7
      %p64 = por %p62, %p63
      %p66 = scmp.ne.s32.totalorder %s49, %s65
      %p67 = scmp.eq.s32.totalorder %s27, 0
      %p68 = por %p66, %p67
      %s70 = sadd.s32 %s69, 1
      %p73 = scmp.eq.s32.totalorder %s21, 7
      %p74 = scmp.ne.s32.totalorder %s69, %s71
      %p75 = scmp.eq.s32.totalorder %s21, 0
      %p76 = por %p74, %p75
      %p77 = scmp.ne.s32.totalorder %s69, %s71
      %p78 = scmp.eq.s32.totalorder %s26, 7
      %p79 = por %p77, %p78
      %p80 = scmp.ne.s32.totalorder %s71, %s72
      %p81 = scmp.eq.s32.totalorder %s26, 0
      %p82 = por %p80, %p81
      %p83 = scmp.ne.s32.totalorder %s71, %s72
      %p84 = scmp.eq.s32.totalorder %s27, 7
      %p85 = por %p83, %p84
      %p87 = scmp.ne.s32.totalorder %s72, %s86
      %p88 = scmp.eq.s32.totalorder %s27, 0
      %p89 = por %p87, %p88
      %s91 = sadd.s32 %s90, 1
      %p94 = scmp.eq.s32.totalorder %s21, 7
      %p95 = scmp.ne.s32.totalorder %s90, %s92
      %p96 = scmp.eq.s32.totalorder %s21, 0
      %p97 = por %p95, %p96
      %p98 = scmp.ne.s32.totalorder %s90, %s92
      %p99 = scmp.eq.s32.totalorder %s26, 7
      %p100 = por %p98, %p99
      %p101 = scmp.ne.s32.totalorder %s92, %s93
      %p102 = scmp.eq.s32.totalorder %s26, 0
      %p103 = por %p101, %p102
      %p104 = scmp.ne.s32.totalorder %s92, %s93
      %p105 = scmp.eq.s32.totalorder %s27, 7
      %p106 = por %p104, %p105
      %p108 = scmp.ne.s32.totalorder %s93, %s107
      %p109 = scmp.eq.s32.totalorder %s27, 0
      %p110 = por %p108, %p109
      %s111 = ssub.s32 %s28, %s40
      %s112 = ssub.s32 %s29, %s36
      %s113 = sor.u32 %s111, %s112
      %p114 = scmp.eq.s32.totalorder %s113, 0
      %s116 = sadd.s32 %s115, 1
      %s117 = scalar_select %p114, %s115, %s116
      %p120 = pneg %p114
      %p121 = scmp.eq.s32.totalorder %s21, 7
      %p122 = por %p120, %p121
      %p123 = scmp.ne.s32.totalorder %s115, %s118
      %p124 = scmp.eq.s32.totalorder %s21, 0
      %p125 = por %p123, %p124
      %p126 = scmp.ne.s32.totalorder %s115, %s118
      %p127 = scmp.eq.s32.totalorder %s26, 7
      %p128 = por %p126, %p127
      %p129 = scmp.ne.s32.totalorder %s118, %s119
      %p130 = scmp.eq.s32.totalorder %s26, 0
      %p131 = por %p129, %p130
      %p132 = scmp.ne.s32.totalorder %s118, %s119
      %p133 = scmp.eq.s32.totalorder %s27, 7
      %p134 = por %p132, %p133
      %p136 = scmp.ne.s32.totalorder %s119, %s135
      %p137 = scmp.eq.s32.totalorder %s27, 0
      %p138 = por %p136, %p137
      %s139 = ssub.s32 %s28, %s40
      %s140 = ssub.s32 %s29, %s36
      %s141 = sor.u32 %s139, %s140
      %p142 = scmp.eq.s32.totalorder %s141, 0
      %s144 = sadd.s32 %s143, 1
      %s145 = scalar_select %p142, %s143, %s144
      %p148 = pneg %p142
      %p149 = scmp.eq.s32.totalorder %s21, 7
      %p150 = por %p148, %p149
      %p151 = scmp.ne.s32.totalorder %s143, %s146
      %p152 = scmp.eq.s32.totalorder %s21, 0
      %p153 = por %p151, %p152
      %p154 = scmp.ne.s32.totalorder %s143, %s146
      %p155 = scmp.eq.s32.totalorder %s26, 7
      %p156 = por %p154, %p155
      %p157 = scmp.ne.s32.totalorder %s146, %s147
      %p158 = scmp.eq.s32.totalorder %s26, 0
      %p159 = por %p157, %p158
      %p160 = scmp.ne.s32.totalorder %s146, %s147
      %p161 = scmp.eq.s32.totalorder %s27, 7
      %p162 = por %p160, %p161
      %p164 = scmp.ne.s32.totalorder %s147, %s163
      %p165 = scmp.eq.s32.totalorder %s27, 0
      %p166 = por %p164, %p165
      %p167 = scmp.le.s32.totalorder 1, %s21
      %p168 = scmp.lt.s32.totalorder %s21, 9
      %p169 = pnand %p167, %p168
      %p170 = pneg %p169
      // Predicated region
      $region9: #{decoder_cbn2_forward.8} parent=5 // pred_check
        _
      $region10: #{decoder_cbn2_forward.8} parent=5 // pred_check_branch
        %172 = sbr.rel (%p169) target = $region12
      $region11: #{decoder_cbn2_forward.8} parent=5 // pred_region
        %s173 = ssub.s32 %s21, 1
        // Predicated region
        $region13: #{decoder_cbn2_forward.8} parent=11 // pred_check
          %p174 = pneg %p82
        $region14: #{decoder_cbn2_forward.8} parent=11 // pred_check_branch
          %176 = sbr.rel (%p174) target = $region16
        $region15: #{decoder_cbn2_forward.8} parent=11 // pred_region
          %s178 = ssub.s32 64, 64
          %179 = vsyncadd [#allocation6], %s178
          %s181 = sshll.u32 [#allocation5], 4
          %s182 = int_to_ptr.vmem [resolvable:$true] %s181
          %184 = dma.hbm_to_vmem [thread:$0]  %s1, 64, %s182, [#allocation6]
        $region16: #{decoder_cbn2_forward.8} parent=11 // pred_fallthru
          _
        // Predicated region
        $region17: #{decoder_cbn2_forward.8} parent=11 // pred_check
          %p185 = pneg %p103
        $region18: #{decoder_cbn2_forward.8} parent=11 // pred_check_branch
          %187 = sbr.rel (%p185) target = $region20
        $region19: #{decoder_cbn2_forward.8} parent=11 // pred_region
          %s189 = ssub.s32 16, 16
          %190 = vsyncadd [#allocation6], %s189
          %s192 = sshll.u32 [#allocation7], 4
          %s193 = int_to_ptr.vmem [resolvable:$true] %s192
          %195 = dma.hbm_to_vmem [thread:$0]  %s2, 16, %s193, [#allocation6]
        $region20: #{decoder_cbn2_forward.8} parent=11 // pred_fallthru
          _
      $region12: #{decoder_cbn2_forward.8} parent=5 // pred_fallthru
        _
      %p196 = scmp.lt.s32.totalorder %s21, 8
      // Predicated region
      $region21: #{decoder_cbn2_forward.8} parent=5 // pred_check
        %p197 = pneg %p196
      $region22: #{decoder_cbn2_forward.8} parent=5 // pred_check_branch
        %199 = sbr.rel (%p197) target = $region24
      $region23: #{decoder_cbn2_forward.8} parent=5 // pred_region
        // Predicated region
        $region25: #{decoder_cbn2_forward.8} parent=23 // pred_check
          %p200 = pneg %p55
        $region26: #{decoder_cbn2_forward.8} parent=23 // pred_check_branch
          %202 = sbr.rel (%p200) target = $region28
        $region27: #{decoder_cbn2_forward.8} parent=23 // pred_region
          #allocation12 [shape = 'u32[6]{0}', space=smem, size = 0x18, scoped, tag = 'DMA stride descriptor']
          %s203 = sand.u32 %s45, 1
          %s204 = scalar_lea.sflag [#allocation3], %s203
          %s205 = sand.u32 %s45, 1
          %s206 = smul.addr %s205, 512
          %s207 = scalar_lea.vmem [#allocation2], %s206
          %s208 = smul.u32 2, %s28
          %s209 = smul.u32 32, %s29
          %s211 = ssub.s32 8192, 8192
          %212 = vsyncadd %s204, %s211
          %s213 = smul.addr %s208, 256
          %s214 = sadd.s32 %s209, %s213
          %s215 = smul.addr %s214, 128
          %s216 = scalar_lea.hbm %s0, %s215
          %s218 = sshll.u32 1, 14
          %s219 = sxor.u32 4294967295, %s218
          %s221 = sld [smem:[#allocation0]]
          %s222 = sadd.s32 2, %s221
          %s224 = sshll.u32 7, 26
          %s225 = sxor.u32 4294967295, %s224
          %s226 = sand.u32 0, %s225
          %s227 = sshll.u32 %s222, 26
          %s228 = sor.u32 %s226, %s227
          %s229 = sshll.u32 %s207, 4
          %s230 = int_to_ptr.vmem [resolvable:$true] %s229
          %236 = sst [smem:[#allocation12]] 32768
          %s237 = scalar_lea.smem [#allocation12], 1
          %238 = sst [smem:[%s237]] 4096
          %s239 = scalar_lea.smem [#allocation12], 2
          %240 = sst [smem:[%s239]] 32
          %s241 = scalar_lea.smem [#allocation12], 3
          %242 = sst [smem:[%s241]] 128
          %s243 = scalar_lea.smem [#allocation12], 4
          %244 = sst [smem:[%s243]] 128
          %s245 = scalar_lea.smem [#allocation12], 5
          %246 = sst [smem:[%s245]] 8
          %248 = dma.general %s216, 8192, %s230, %s204, [#allocation11], [#allocation12], %s228, 0
        $region28: #{decoder_cbn2_forward.8} parent=23 // pred_fallthru
          _
      $region24: #{decoder_cbn2_forward.8} parent=5 // pred_fallthru
        _
      %p249 = scmp.le.s32.totalorder 1, %s21
      %p250 = scmp.lt.s32.totalorder %s21, 9
      %p251 = pnand %p249, %p250
      %p252 = pneg %p251
      // Predicated region
      $region29: #{decoder_cbn2_forward.8} parent=5 // pred_check
        _
      $region30: #{decoder_cbn2_forward.8} parent=5 // pred_check_branch
        %254 = sbr.rel (%p251) target = $region32
      $region31: #{decoder_cbn2_forward.8} parent=5 // pred_region
        %s255 = ssub.s32 %s21, 1
        %s256 = sand.u32 %s48, 1
        %s257 = scalar_lea.sflag [#allocation3], %s256
        %s258 = sand.u32 %s48, 1
        %s259 = smul.addr %s258, 512
        %s260 = scalar_lea.vmem [#allocation2], %s259
        // Predicated region
        $region33: #{decoder_cbn2_forward.8} parent=31 // pred_check
          %p261 = pneg %p61
        $region34: #{decoder_cbn2_forward.8} parent=31 // pred_check_branch
          %263 = sbr.rel (%p261) target = $region36
        $region35: #{decoder_cbn2_forward.8} parent=31 // pred_region
          %264 = dma.done %s257, 8192
        $region36: #{decoder_cbn2_forward.8} parent=31 // pred_fallthru
          _
        // Predicated region
        $region37: #{decoder_cbn2_forward.8} parent=31 // pred_check
          %p265 = pneg %p82
        $region38: #{decoder_cbn2_forward.8} parent=31 // pred_check_branch
          %267 = sbr.rel (%p265) target = $region40
        $region39: #{decoder_cbn2_forward.8} parent=31 // pred_region
          %268 = dma.done [#allocation6], 64
        $region40: #{decoder_cbn2_forward.8} parent=31 // pred_fallthru
          _
        // Predicated region
        $region41: #{decoder_cbn2_forward.8} parent=31 // pred_check
          %p269 = pneg %p103
        $region42: #{decoder_cbn2_forward.8} parent=31 // pred_check_branch
          %271 = sbr.rel (%p269) target = $region44
        $region43: #{decoder_cbn2_forward.8} parent=31 // pred_region
          %272 = dma.done [#allocation6], 16
        $region44: #{decoder_cbn2_forward.8} parent=31 // pred_fallthru
          _
        %s273 = sand.u32 %s48, 1
        %s274 = scalar_lea.sflag [#allocation3], %s273
        %s275 = sand.u32 %s48, 1
        %s276 = smul.addr %s275, 512
        %s277 = scalar_lea.vmem [#allocation2], %s276
        %p278 = pneg %p61
        %p279 = pneg %p58
        %p280 = pneg %p82
        %p281 = pneg %p79
        %p282 = pneg %p103
        %p283 = pneg %p100
        %p284 = pneg %p131
        %p285 = pneg %p128
        %s286 = sand.u32 %s118, 1
        %s287 = scalar_lea.sflag [#allocation4], %s286
        %s288 = sand.u32 %s118, 1
        %s289 = smul.addr %s288, 256
        %s290 = scalar_lea.vmem [#allocation8], %s289
        %p291 = pneg %p159
        %p292 = pneg %p156
        %s293 = sand.u32 %s146, 1
        %s294 = scalar_lea.sflag [#allocation10], %s293
        %s295 = sand.u32 %s146, 1
        %s296 = smul.addr %s295, 2
        %s297 = scalar_lea.vmem [#allocation9], %s296
        %s298 = smul.u32 2, %s30
        %s299 = smul.u32 32, %s31
        %s300 = smul.u32 2, %s30
        %s301 = smul.u32 32, %s31
        %v302 = vld [vmem:[%s260] sm:$0xff]
        %v303 = vld [vmem:[%s260 + $0x8] sm:$0xff]
        %v304 = vld [vmem:[%s260 + $0x10] sm:$0xff]
        %v305 = vld [vmem:[%s260 + $0x18] sm:$0xff]
        %v306 = vld [vmem:[%s260 + $0x20] sm:$0xff]
        %v307 = vld [vmem:[%s260 + $0x28] sm:$0xff]
        %v308 = vld [vmem:[%s260 + $0x30] sm:$0xff]
        %v309 = vld [vmem:[%s260 + $0x38] sm:$0xff]
        %v310 = vld [vmem:[%s260 + $0x40] sm:$0xff]
        %v311 = vld [vmem:[%s260 + $0x48] sm:$0xff]
        %v312 = vld [vmem:[%s260 + $0x50] sm:$0xff]
        %v313 = vld [vmem:[%s260 + $0x58] sm:$0xff]
        %v314 = vld [vmem:[%s260 + $0x60] sm:$0xff]
        %v315 = vld [vmem:[%s260 + $0x68] sm:$0xff]
        %v316 = vld [vmem:[%s260 + $0x70] sm:$0xff]
        %v317 = vld [vmem:[%s260 + $0x78] sm:$0xff]
        %v318 = vld [vmem:[%s260 + $0x80] sm:$0xff]
        %v319 = vld [vmem:[%s260 + $0x88] sm:$0xff]
        %v320 = vld [vmem:[%s260 + $0x90] sm:$0xff]
        %v321 = vld [vmem:[%s260 + $0x98] sm:$0xff]
        %v322 = vld [vmem:[%s260 + $0xa0] sm:$0xff]
        %v323 = vld [vmem:[%s260 + $0xa8] sm:$0xff]
        %v324 = vld [vmem:[%s260 + $0xb0] sm:$0xff]
        %v325 = vld [vmem:[%s260 + $0xb8] sm:$0xff]
        %v326 = vld [vmem:[%s260 + $0xc0] sm:$0xff]
        %v327 = vld [vmem:[%s260 + $0xc8] sm:$0xff]
        %v328 = vld [vmem:[%s260 + $0xd0] sm:$0xff]
        %v329 = vld [vmem:[%s260 + $0xd8] sm:$0xff]
        %v330 = vld [vmem:[%s260 + $0xe0] sm:$0xff]
        %v331 = vld [vmem:[%s260 + $0xe8] sm:$0xff]
        %v332 = vld [vmem:[%s260 + $0xf0] sm:$0xff]
        %v333 = vld [vmem:[%s260 + $0xf8] sm:$0xff]
        %v334 = vld [vmem:[%s260 + $0x100] sm:$0xff]
        %v335 = vld [vmem:[%s260 + $0x108] sm:$0xff]
        %v336 = vld [vmem:[%s260 + $0x110] sm:$0xff]
        %v337 = vld [vmem:[%s260 + $0x118] sm:$0xff]
        %v338 = vld [vmem:[%s260 + $0x120] sm:$0xff]
        %v339 = vld [vmem:[%s260 + $0x128] sm:$0xff]
        %v340 = vld [vmem:[%s260 + $0x130] sm:$0xff]
        %v341 = vld [vmem:[%s260 + $0x138] sm:$0xff]
        %v342 = vld [vmem:[%s260 + $0x140] sm:$0xff]
        %v343 = vld [vmem:[%s260 + $0x148] sm:$0xff]
        %v344 = vld [vmem:[%s260 + $0x150] sm:$0xff]
        %v345 = vld [vmem:[%s260 + $0x158] sm:$0xff]
        %v346 = vld [vmem:[%s260 + $0x160] sm:$0xff]
        %v347 = vld [vmem:[%s260 + $0x168] sm:$0xff]
        %v348 = vld [vmem:[%s260 + $0x170] sm:$0xff]
        %v349 = vld [vmem:[%s260 + $0x178] sm:$0xff]
        %v350 = vld [vmem:[%s260 + $0x180] sm:$0xff]
        %v351 = vld [vmem:[%s260 + $0x188] sm:$0xff]
        %v352 = vld [vmem:[%s260 + $0x190] sm:$0xff]
        %v353 = vld [vmem:[%s260 + $0x198] sm:$0xff]
        %v354 = vld [vmem:[%s260 + $0x1a0] sm:$0xff]
        %v355 = vld [vmem:[%s260 + $0x1a8] sm:$0xff]
        %v356 = vld [vmem:[%s260 + $0x1b0] sm:$0xff]
        %v357 = vld [vmem:[%s260 + $0x1b8] sm:$0xff]
        %v358 = vld [vmem:[%s260 + $0x1c0] sm:$0xff]
        %v359 = vld [vmem:[%s260 + $0x1c8] sm:$0xff]
        %v360 = vld [vmem:[%s260 + $0x1d0] sm:$0xff]
        %v361 = vld [vmem:[%s260 + $0x1d8] sm:$0xff]
        %v362 = vld [vmem:[%s260 + $0x1e0] sm:$0xff]
        %v363 = vld [vmem:[%s260 + $0x1e8] sm:$0xff]
        %v364 = vld [vmem:[%s260 + $0x1f0] sm:$0xff]
        %v365 = vld [vmem:[%s260 + $0x1f8] sm:$0xff]
        %v366 = vld [vmem:[#allocation5] sm:$0x7]
        %368 = vset.pattern.permute.xlu0 0
        %369 = vperm.xlu0 %368, %v302
        %v370 = vpop.permute.xlu0 %369
        %373 = vset.pattern.permute.xlu0 0
        %374 = vperm.xlu0 %373, %v303
        %v375 = vpop.permute.xlu0 %374
        %378 = vset.pattern.permute.xlu0 0
        %379 = vperm.xlu0 %378, %v304
        %v380 = vpop.permute.xlu0 %379
        %383 = vset.pattern.permute.xlu0 0
        %384 = vperm.xlu0 %383, %v305
        %v385 = vpop.permute.xlu0 %384
        %388 = vset.pattern.permute.xlu0 0
        %389 = vperm.xlu0 %388, %v306
        %v390 = vpop.permute.xlu0 %389
        %393 = vset.pattern.permute.xlu0 0
        %394 = vperm.xlu0 %393, %v307
        %v395 = vpop.permute.xlu0 %394
        %398 = vset.pattern.permute.xlu0 0
        %399 = vperm.xlu0 %398, %v308
        %v400 = vpop.permute.xlu0 %399
        %403 = vset.pattern.permute.xlu0 0
        %404 = vperm.xlu0 %403, %v309
        %v405 = vpop.permute.xlu0 %404
        %408 = vset.pattern.permute.xlu0 0
        %409 = vperm.xlu0 %408, %v310
        %v410 = vpop.permute.xlu0 %409
        %413 = vset.pattern.permute.xlu0 0
        %414 = vperm.xlu0 %413, %v311
        %v415 = vpop.permute.xlu0 %414
        %418 = vset.pattern.permute.xlu0 0
        %419 = vperm.xlu0 %418, %v312
        %v420 = vpop.permute.xlu0 %419
        %423 = vset.pattern.permute.xlu0 0
        %424 = vperm.xlu0 %423, %v313
        %v425 = vpop.permute.xlu0 %424
        %428 = vset.pattern.permute.xlu0 0
        %429 = vperm.xlu0 %428, %v314
        %v430 = vpop.permute.xlu0 %429
        %433 = vset.pattern.permute.xlu0 0
        %434 = vperm.xlu0 %433, %v315
        %v435 = vpop.permute.xlu0 %434
        %438 = vset.pattern.permute.xlu0 0
        %439 = vperm.xlu0 %438, %v316
        %v440 = vpop.permute.xlu0 %439
        %443 = vset.pattern.permute.xlu0 0
        %444 = vperm.xlu0 %443, %v317
        %v445 = vpop.permute.xlu0 %444
        %448 = vset.pattern.permute.xlu0 0
        %449 = vperm.xlu0 %448, %v318
        %v450 = vpop.permute.xlu0 %449
        %453 = vset.pattern.permute.xlu0 0
        %454 = vperm.xlu0 %453, %v319
        %v455 = vpop.permute.xlu0 %454
        %458 = vset.pattern.permute.xlu0 0
        %459 = vperm.xlu0 %458, %v320
        %v460 = vpop.permute.xlu0 %459
        %463 = vset.pattern.permute.xlu0 0
        %464 = vperm.xlu0 %463, %v321
        %v465 = vpop.permute.xlu0 %464
        %468 = vset.pattern.permute.xlu0 0
        %469 = vperm.xlu0 %468, %v322
        %v470 = vpop.permute.xlu0 %469
        %473 = vset.pattern.permute.xlu0 0
        %474 = vperm.xlu0 %473, %v323
        %v475 = vpop.permute.xlu0 %474
        %478 = vset.pattern.permute.xlu0 0
        %479 = vperm.xlu0 %478, %v324
        %v480 = vpop.permute.xlu0 %479
        %483 = vset.pattern.permute.xlu0 0
        %484 = vperm.xlu0 %483, %v325
        %v485 = vpop.permute.xlu0 %484
        %488 = vset.pattern.permute.xlu0 0
        %489 = vperm.xlu0 %488, %v326
        %v490 = vpop.permute.xlu0 %489
        %493 = vset.pattern.permute.xlu0 0
        %494 = vperm.xlu0 %493, %v327
        %v495 = vpop.permute.xlu0 %494
        %498 = vset.pattern.permute.xlu0 0
        %499 = vperm.xlu0 %498, %v328
        %v500 = vpop.permute.xlu0 %499
        %503 = vset.pattern.permute.xlu0 0
        %504 = vperm.xlu0 %503, %v329
        %v505 = vpop.permute.xlu0 %504
        %508 = vset.pattern.permute.xlu0 0
        %509 = vperm.xlu0 %508, %v330
        %v510 = vpop.permute.xlu0 %509
        %513 = vset.pattern.permute.xlu0 0
        %514 = vperm.xlu0 %513, %v331
        %v515 = vpop.permute.xlu0 %514
        %518 = vset.pattern.permute.xlu0 0
        %519 = vperm.xlu0 %518, %v332
        %v520 = vpop.permute.xlu0 %519
        %523 = vset.pattern.permute.xlu0 0
        %524 = vperm.xlu0 %523, %v333
        %v525 = vpop.permute.xlu0 %524
        %528 = vset.pattern.permute.xlu0 0
        %529 = vperm.xlu0 %528, %v334
        %v530 = vpop.permute.xlu0 %529
        %533 = vset.pattern.permute.xlu0 0
        %534 = vperm.xlu0 %533, %v335
        %v535 = vpop.permute.xlu0 %534
        %538 = vset.pattern.permute.xlu0 0
        %539 = vperm.xlu0 %538, %v336
        %v540 = vpop.permute.xlu0 %539
        %543 = vset.pattern.permute.xlu0 0
        %544 = vperm.xlu0 %543, %v337
        %v545 = vpop.permute.xlu0 %544
        %548 = vset.pattern.permute.xlu0 0
        %549 = vperm.xlu0 %548, %v338
        %v550 = vpop.permute.xlu0 %549
        %553 = vset.pattern.permute.xlu0 0
        %554 = vperm.xlu0 %553, %v339
        %v555 = vpop.permute.xlu0 %554
        %558 = vset.pattern.permute.xlu0 0
        %559 = vperm.xlu0 %558, %v340
        %v560 = vpop.permute.xlu0 %559
        %563 = vset.pattern.permute.xlu0 0
        %564 = vperm.xlu0 %563, %v341
        %v565 = vpop.permute.xlu0 %564
        %568 = vset.pattern.permute.xlu0 0
        %569 = vperm.xlu0 %568, %v342
        %v570 = vpop.permute.xlu0 %569
        %573 = vset.pattern.permute.xlu0 0
        %574 = vperm.xlu0 %573, %v343
        %v575 = vpop.permute.xlu0 %574
        %578 = vset.pattern.permute.xlu0 0
        %579 = vperm.xlu0 %578, %v344
        %v580 = vpop.permute.xlu0 %579
        %583 = vset.pattern.permute.xlu0 0
        %584 = vperm.xlu0 %583, %v345
        %v585 = vpop.permute.xlu0 %584
        %588 = vset.pattern.permute.xlu0 0
        %589 = vperm.xlu0 %588, %v346
        %v590 = vpop.permute.xlu0 %589
        %593 = vset.pattern.permute.xlu0 0
        %594 = vperm.xlu0 %593, %v347
        %v595 = vpop.permute.xlu0 %594
        %598 = vset.pattern.permute.xlu0 0
        %599 = vperm.xlu0 %598, %v348
        %v600 = vpop.permute.xlu0 %599
        %603 = vset.pattern.permute.xlu0 0
        %604 = vperm.xlu0 %603, %v349
        %v605 = vpop.permute.xlu0 %604
        %608 = vset.pattern.permute.xlu0 0
        %609 = vperm.xlu0 %608, %v350
        %v610 = vpop.permute.xlu0 %609
        %613 = vset.pattern.permute.xlu0 0
        %614 = vperm.xlu0 %613, %v351
        %v615 = vpop.permute.xlu0 %614
        %618 = vset.pattern.permute.xlu0 0
        %619 = vperm.xlu0 %618, %v352
        %v620 = vpop.permute.xlu0 %619
        %623 = vset.pattern.permute.xlu0 0
        %624 = vperm.xlu0 %623, %v353
        %v625 = vpop.permute.xlu0 %624
        %628 = vset.pattern.permute.xlu0 0
        %629 = vperm.xlu0 %628, %v354
        %v630 = vpop.permute.xlu0 %629
        %633 = vset.pattern.permute.xlu0 0
        %634 = vperm.xlu0 %633, %v355
        %v635 = vpop.permute.xlu0 %634
        %638 = vset.pattern.permute.xlu0 0
        %639 = vperm.xlu0 %638, %v356
        %v640 = vpop.permute.xlu0 %639
        %643 = vset.pattern.permute.xlu0 0
        %644 = vperm.xlu0 %643, %v357
        %v645 = vpop.permute.xlu0 %644
        %648 = vset.pattern.permute.xlu0 0
        %649 = vperm.xlu0 %648, %v358
        %v650 = vpop.permute.xlu0 %649
        %653 = vset.pattern.permute.xlu0 0
        %654 = vperm.xlu0 %653, %v359
        %v655 = vpop.permute.xlu0 %654
        %658 = vset.pattern.permute.xlu0 0
        %659 = vperm.xlu0 %658, %v360
        %v660 = vpop.permute.xlu0 %659
        %663 = vset.pattern.permute.xlu0 0
        %664 = vperm.xlu0 %663, %v361
        %v665 = vpop.permute.xlu0 %664
        %668 = vset.pattern.permute.xlu0 0
        %669 = vperm.xlu0 %668, %v362
        %v670 = vpop.permute.xlu0 %669
        %673 = vset.pattern.permute.xlu0 0
        %674 = vperm.xlu0 %673, %v363
        %v675 = vpop.permute.xlu0 %674
        %678 = vset.pattern.permute.xlu0 0
        %679 = vperm.xlu0 %678, %v364
        %v680 = vpop.permute.xlu0 %679
        %683 = vset.pattern.permute.xlu0 0
        %684 = vperm.xlu0 %683, %v365
        %v685 = vpop.permute.xlu0 %684
        %v687 = vlaneseq
        %v688 = vshrl.u32 %v687, 7
        %v689 = vsub.s32 0, %v688
        %v690 = vrot.slane %v366, %v689
        %v691 = vmul.f32 %v370, %v690
        %v692 = vmul.f32 %v375, %v690
        %v693 = vmul.f32 %v380, %v690
        %v694 = vmul.f32 %v385, %v690
        %v695 = vmul.f32 %v390, %v690
        %v696 = vmul.f32 %v395, %v690
        %v697 = vmul.f32 %v400, %v690
        %v698 = vmul.f32 %v405, %v690
        %v699 = vmul.f32 %v410, %v690
        %v700 = vmul.f32 %v415, %v690
        %v701 = vmul.f32 %v420, %v690
        %v702 = vmul.f32 %v425, %v690
        %v703 = vmul.f32 %v430, %v690
        %v704 = vmul.f32 %v435, %v690
        %v705 = vmul.f32 %v440, %v690
        %v706 = vmul.f32 %v445, %v690
        %v707 = vmul.f32 %v450, %v690
        %v708 = vmul.f32 %v455, %v690
        %v709 = vmul.f32 %v460, %v690
        %v710 = vmul.f32 %v465, %v690
        %v711 = vmul.f32 %v470, %v690
        %v712 = vmul.f32 %v475, %v690
        %v713 = vmul.f32 %v480, %v690
        %v714 = vmul.f32 %v485, %v690
        %v715 = vmul.f32 %v490, %v690
        %v716 = vmul.f32 %v495, %v690
        %v717 = vmul.f32 %v500, %v690
        %v718 = vmul.f32 %v505, %v690
        %v719 = vmul.f32 %v510, %v690
        %v720 = vmul.f32 %v515, %v690
        %v721 = vmul.f32 %v520, %v690
        %v722 = vmul.f32 %v525, %v690
        %v723 = vmul.f32 %v530, %v690
        %v724 = vmul.f32 %v535, %v690
        %v725 = vmul.f32 %v540, %v690
        %v726 = vmul.f32 %v545, %v690
        %v727 = vmul.f32 %v550, %v690
        %v728 = vmul.f32 %v555, %v690
        %v729 = vmul.f32 %v560, %v690
        %v730 = vmul.f32 %v565, %v690
        %v731 = vmul.f32 %v570, %v690
        %v732 = vmul.f32 %v575, %v690
        %v733 = vmul.f32 %v580, %v690
        %v734 = vmul.f32 %v585, %v690
        %v735 = vmul.f32 %v590, %v690
        %v736 = vmul.f32 %v595, %v690
        %v737 = vmul.f32 %v600, %v690
        %v738 = vmul.f32 %v605, %v690
        %v739 = vmul.f32 %v610, %v690
        %v740 = vmul.f32 %v615, %v690
        %v741 = vmul.f32 %v620, %v690
        %v742 = vmul.f32 %v625, %v690
        %v743 = vmul.f32 %v630, %v690
        %v744 = vmul.f32 %v635, %v690
        %v745 = vmul.f32 %v640, %v690
        %v746 = vmul.f32 %v645, %v690
        %v747 = vmul.f32 %v650, %v690
        %v748 = vmul.f32 %v655, %v690
        %v749 = vmul.f32 %v660, %v690
        %v750 = vmul.f32 %v665, %v690
        %v751 = vmul.f32 %v670, %v690
        %v752 = vmul.f32 %v675, %v690
        %v753 = vmul.f32 %v680, %v690
        %v754 = vmul.f32 %v685, %v690
        %755 = vset.pattern.permute.xlu0 1
        %756 = vperm.xlu0 %755, %v302
        %v757 = vpop.permute.xlu0 %756
        %759 = vset.pattern.permute.xlu0 1
        %760 = vperm.xlu0 %759, %v303
        %v761 = vpop.permute.xlu0 %760
        %763 = vset.pattern.permute.xlu0 1
        %764 = vperm.xlu0 %763, %v304
        %v765 = vpop.permute.xlu0 %764
        %767 = vset.pattern.permute.xlu0 1
        %768 = vperm.xlu0 %767, %v305
        %v769 = vpop.permute.xlu0 %768
        %771 = vset.pattern.permute.xlu0 1
        %772 = vperm.xlu0 %771, %v306
        %v773 = vpop.permute.xlu0 %772
        %775 = vset.pattern.permute.xlu0 1
        %776 = vperm.xlu0 %775, %v307
        %v777 = vpop.permute.xlu0 %776
        %779 = vset.pattern.permute.xlu0 1
        %780 = vperm.xlu0 %779, %v308
        %v781 = vpop.permute.xlu0 %780
        %783 = vset.pattern.permute.xlu0 1
        %784 = vperm.xlu0 %783, %v309
        %v785 = vpop.permute.xlu0 %784
        %787 = vset.pattern.permute.xlu0 1
        %788 = vperm.xlu0 %787, %v310
        %v789 = vpop.permute.xlu0 %788
        %791 = vset.pattern.permute.xlu0 1
        %792 = vperm.xlu0 %791, %v311
        %v793 = vpop.permute.xlu0 %792
        %795 = vset.pattern.permute.xlu0 1
        %796 = vperm.xlu0 %795, %v312
        %v797 = vpop.permute.xlu0 %796
        %799 = vset.pattern.permute.xlu0 1
        %800 = vperm.xlu0 %799, %v313
        %v801 = vpop.permute.xlu0 %800
        %803 = vset.pattern.permute.xlu0 1
        %804 = vperm.xlu0 %803, %v314
        %v805 = vpop.permute.xlu0 %804
        %807 = vset.pattern.permute.xlu0 1
        %808 = vperm.xlu0 %807, %v315
        %v809 = vpop.permute.xlu0 %808
        %811 = vset.pattern.permute.xlu0 1
        %812 = vperm.xlu0 %811, %v316
        %v813 = vpop.permute.xlu0 %812
        %815 = vset.pattern.permute.xlu0 1
        %816 = vperm.xlu0 %815, %v317
        %v817 = vpop.permute.xlu0 %816
        %819 = vset.pattern.permute.xlu0 1
        %820 = vperm.xlu0 %819, %v318
        %v821 = vpop.permute.xlu0 %820
        %823 = vset.pattern.permute.xlu0 1
        %824 = vperm.xlu0 %823, %v319
        %v825 = vpop.permute.xlu0 %824
        %827 = vset.pattern.permute.xlu0 1
        %828 = vperm.xlu0 %827, %v320
        %v829 = vpop.permute.xlu0 %828
        %831 = vset.pattern.permute.xlu0 1
        %832 = vperm.xlu0 %831, %v321
        %v833 = vpop.permute.xlu0 %832
        %835 = vset.pattern.permute.xlu0 1
        %836 = vperm.xlu0 %835, %v322
        %v837 = vpop.permute.xlu0 %836
        %839 = vset.pattern.permute.xlu0 1
        %840 = vperm.xlu0 %839, %v323
        %v841 = vpop.permute.xlu0 %840
        %843 = vset.pattern.permute.xlu0 1
        %844 = vperm.xlu0 %843, %v324
        %v845 = vpop.permute.xlu0 %844
        %847 = vset.pattern.permute.xlu0 1
        %848 = vperm.xlu0 %847, %v325
        %v849 = vpop.permute.xlu0 %848
        %851 = vset.pattern.permute.xlu0 1
        %852 = vperm.xlu0 %851, %v326
        %v853 = vpop.permute.xlu0 %852
        %855 = vset.pattern.permute.xlu0 1
        %856 = vperm.xlu0 %855, %v327
        %v857 = vpop.permute.xlu0 %856
        %859 = vset.pattern.permute.xlu0 1
        %860 = vperm.xlu0 %859, %v328
        %v861 = vpop.permute.xlu0 %860
        %863 = vset.pattern.permute.xlu0 1
        %864 = vperm.xlu0 %863, %v329
        %v865 = vpop.permute.xlu0 %864
        %867 = vset.pattern.permute.xlu0 1
        %868 = vperm.xlu0 %867, %v330
        %v869 = vpop.permute.xlu0 %868
        %871 = vset.pattern.permute.xlu0 1
        %872 = vperm.xlu0 %871, %v331
        %v873 = vpop.permute.xlu0 %872
        %875 = vset.pattern.permute.xlu0 1
        %876 = vperm.xlu0 %875, %v332
        %v877 = vpop.permute.xlu0 %876
        %879 = vset.pattern.permute.xlu0 1
        %880 = vperm.xlu0 %879, %v333
        %v881 = vpop.permute.xlu0 %880
        %883 = vset.pattern.permute.xlu0 1
        %884 = vperm.xlu0 %883, %v334
        %v885 = vpop.permute.xlu0 %884
        %887 = vset.pattern.permute.xlu0 1
        %888 = vperm.xlu0 %887, %v335
        %v889 = vpop.permute.xlu0 %888
        %891 = vset.pattern.permute.xlu0 1
        %892 = vperm.xlu0 %891, %v336
        %v893 = vpop.permute.xlu0 %892
        %895 = vset.pattern.permute.xlu0 1
        %896 = vperm.xlu0 %895, %v337
        %v897 = vpop.permute.xlu0 %896
        %899 = vset.pattern.permute.xlu0 1
        %900 = vperm.xlu0 %899, %v338
        %v901 = vpop.permute.xlu0 %900
        %903 = vset.pattern.permute.xlu0 1
        %904 = vperm.xlu0 %903, %v339
        %v905 = vpop.permute.xlu0 %904
        %907 = vset.pattern.permute.xlu0 1
        %908 = vperm.xlu0 %907, %v340
        %v909 = vpop.permute.xlu0 %908
        %911 = vset.pattern.permute.xlu0 1
        %912 = vperm.xlu0 %911, %v341
        %v913 = vpop.permute.xlu0 %912
        %915 = vset.pattern.permute.xlu0 1
        %916 = vperm.xlu0 %915, %v342
        %v917 = vpop.permute.xlu0 %916
        %919 = vset.pattern.permute.xlu0 1
        %920 = vperm.xlu0 %919, %v343
        %v921 = vpop.permute.xlu0 %920
        %923 = vset.pattern.permute.xlu0 1
        %924 = vperm.xlu0 %923, %v344
        %v925 = vpop.permute.xlu0 %924
        %927 = vset.pattern.permute.xlu0 1
        %928 = vperm.xlu0 %927, %v345
        %v929 = vpop.permute.xlu0 %928
        %931 = vset.pattern.permute.xlu0 1
        %932 = vperm.xlu0 %931, %v346
        %v933 = vpop.permute.xlu0 %932
        %935 = vset.pattern.permute.xlu0 1
        %936 = vperm.xlu0 %935, %v347
        %v937 = vpop.permute.xlu0 %936
        %939 = vset.pattern.permute.xlu0 1
        %940 = vperm.xlu0 %939, %v348
        %v941 = vpop.permute.xlu0 %940
        %943 = vset.pattern.permute.xlu0 1
        %944 = vperm.xlu0 %943, %v349
        %v945 = vpop.permute.xlu0 %944
        %947 = vset.pattern.permute.xlu0 1
        %948 = vperm.xlu0 %947, %v350
        %v949 = vpop.permute.xlu0 %948
        %951 = vset.pattern.permute.xlu0 1
        %952 = vperm.xlu0 %951, %v351
        %v953 = vpop.permute.xlu0 %952
        %955 = vset.pattern.permute.xlu0 1
        %956 = vperm.xlu0 %955, %v352
        %v957 = vpop.permute.xlu0 %956
        %959 = vset.pattern.permute.xlu0 1
        %960 = vperm.xlu0 %959, %v353
        %v961 = vpop.permute.xlu0 %960
        %963 = vset.pattern.permute.xlu0 1
        %964 = vperm.xlu0 %963, %v354
        %v965 = vpop.permute.xlu0 %964
        %967 = vset.pattern.permute.xlu0 1
        %968 = vperm.xlu0 %967, %v355
        %v969 = vpop.permute.xlu0 %968
        %971 = vset.pattern.permute.xlu0 1
        %972 = vperm.xlu0 %971, %v356
        %v973 = vpop.permute.xlu0 %972
        %975 = vset.pattern.permute.xlu0 1
        %976 = vperm.xlu0 %975, %v357
        %v977 = vpop.permute.xlu0 %976
        %979 = vset.pattern.permute.xlu0 1
        %980 = vperm.xlu0 %979, %v358
        %v981 = vpop.permute.xlu0 %980
        %983 = vset.pattern.permute.xlu0 1
        %984 = vperm.xlu0 %983, %v359
        %v985 = vpop.permute.xlu0 %984
        %987 = vset.pattern.permute.xlu0 1
        %988 = vperm.xlu0 %987, %v360
        %v989 = vpop.permute.xlu0 %988
        %991 = vset.pattern.permute.xlu0 1
        %992 = vperm.xlu0 %991, %v361
        %v993 = vpop.permute.xlu0 %992
        %995 = vset.pattern.permute.xlu0 1
        %996 = vperm.xlu0 %995, %v362
        %v997 = vpop.permute.xlu0 %996
        %999 = vset.pattern.permute.xlu0 1
        %1000 = vperm.xlu0 %999, %v363
        %v1001 = vpop.permute.xlu0 %1000
        %1003 = vset.pattern.permute.xlu0 1
        %1004 = vperm.xlu0 %1003, %v364
        %v1005 = vpop.permute.xlu0 %1004
        %1007 = vset.pattern.permute.xlu0 1
        %1008 = vperm.xlu0 %1007, %v365
        %v1009 = vpop.permute.xlu0 %1008
        %v1011 = vlaneseq
        %v1012 = vshrl.u32 %v1011, 7
        %v1013 = vsub.s32 1, %v1012
        %v1014 = vrot.slane %v366, %v1013
        %v1015 = vmul.f32 %v757, %v1014
        %v1016 = vmul.f32 %v761, %v1014
        %v1017 = vmul.f32 %v765, %v1014
        %v1018 = vmul.f32 %v769, %v1014
        %v1019 = vmul.f32 %v773, %v1014
        %v1020 = vmul.f32 %v777, %v1014
        %v1021 = vmul.f32 %v781, %v1014
        %v1022 = vmul.f32 %v785, %v1014
        %v1023 = vmul.f32 %v789, %v1014
        %v1024 = vmul.f32 %v793, %v1014
        %v1025 = vmul.f32 %v797, %v1014
        %v1026 = vmul.f32 %v801, %v1014
        %v1027 = vmul.f32 %v805, %v1014
        %v1028 = vmul.f32 %v809, %v1014
        %v1029 = vmul.f32 %v813, %v1014
        %v1030 = vmul.f32 %v817, %v1014
        %v1031 = vmul.f32 %v821, %v1014
        %v1032 = vmul.f32 %v825, %v1014
        %v1033 = vmul.f32 %v829, %v1014
        %v1034 = vmul.f32 %v833, %v1014
        %v1035 = vmul.f32 %v837, %v1014
        %v1036 = vmul.f32 %v841, %v1014
        %v1037 = vmul.f32 %v845, %v1014
        %v1038 = vmul.f32 %v849, %v1014
        %v1039 = vmul.f32 %v853, %v1014
        %v1040 = vmul.f32 %v857, %v1014
        %v1041 = vmul.f32 %v861, %v1014
        %v1042 = vmul.f32 %v865, %v1014
        %v1043 = vmul.f32 %v869, %v1014
        %v1044 = vmul.f32 %v873, %v1014
        %v1045 = vmul.f32 %v877, %v1014
        %v1046 = vmul.f32 %v881, %v1014
        %v1047 = vmul.f32 %v885, %v1014
        %v1048 = vmul.f32 %v889, %v1014
        %v1049 = vmul.f32 %v893, %v1014
        %v1050 = vmul.f32 %v897, %v1014
        %v1051 = vmul.f32 %v901, %v1014
        %v1052 = vmul.f32 %v905, %v1014
        %v1053 = vmul.f32 %v909, %v1014
        %v1054 = vmul.f32 %v913, %v1014
        %v1055 = vmul.f32 %v917, %v1014
        %v1056 = vmul.f32 %v921, %v1014
        %v1057 = vmul.f32 %v925, %v1014
        %v1058 = vmul.f32 %v929, %v1014
        %v1059 = vmul.f32 %v933, %v1014
        %v1060 = vmul.f32 %v937, %v1014
        %v1061 = vmul.f32 %v941, %v1014
        %v1062 = vmul.f32 %v945, %v1014
        %v1063 = vmul.f32 %v949, %v1014
        %v1064 = vmul.f32 %v953, %v1014
        %v1065 = vmul.f32 %v957, %v1014
        %v1066 = vmul.f32 %v961, %v1014
        %v1067 = vmul.f32 %v965, %v1014
        %v1068 = vmul.f32 %v969, %v1014
        %v1069 = vmul.f32 %v973, %v1014
        %v1070 = vmul.f32 %v977, %v1014
        %v1071 = vmul.f32 %v981, %v1014
        %v1072 = vmul.f32 %v985, %v1014
        %v1073 = vmul.f32 %v989, %v1014
        %v1074 = vmul.f32 %v993, %v1014
        %v1075 = vmul.f32 %v997, %v1014
        %v1076 = vmul.f32 %v1001, %v1014
        %v1077 = vmul.f32 %v1005, %v1014
        %v1078 = vmul.f32 %v1009, %v1014
        %v1079 = vadd.f32 %v691, %v1015
        %v1080 = vadd.f32 %v692, %v1016
        %v1081 = vadd.f32 %v693, %v1017
        %v1082 = vadd.f32 %v694, %v1018
        %v1083 = vadd.f32 %v695, %v1019
        %v1084 = vadd.f32 %v696, %v1020
        %v1085 = vadd.f32 %v697, %v1021
        %v1086 = vadd.f32 %v698, %v1022
        %v1087 = vadd.f32 %v699, %v1023
        %v1088 = vadd.f32 %v700, %v1024
        %v1089 = vadd.f32 %v701, %v1025
        %v1090 = vadd.f32 %v702, %v1026
        %v1091 = vadd.f32 %v703, %v1027
        %v1092 = vadd.f32 %v704, %v1028
        %v1093 = vadd.f32 %v705, %v1029
        %v1094 = vadd.f32 %v706, %v1030
        %v1095 = vadd.f32 %v707, %v1031
        %v1096 = vadd.f32 %v708, %v1032
        %v1097 = vadd.f32 %v709, %v1033
        %v1098 = vadd.f32 %v710, %v1034
        %v1099 = vadd.f32 %v711, %v1035
        %v1100 = vadd.f32 %v712, %v1036
        %v1101 = vadd.f32 %v713, %v1037
        %v1102 = vadd.f32 %v714, %v1038
        %v1103 = vadd.f32 %v715, %v1039
        %v1104 = vadd.f32 %v716, %v1040
        %v1105 = vadd.f32 %v717, %v1041
        %v1106 = vadd.f32 %v718, %v1042
        %v1107 = vadd.f32 %v719, %v1043
        %v1108 = vadd.f32 %v720, %v1044
        %v1109 = vadd.f32 %v721, %v1045
        %v1110 = vadd.f32 %v722, %v1046
        %v1111 = vadd.f32 %v723, %v1047
        %v1112 = vadd.f32 %v724, %v1048
        %v1113 = vadd.f32 %v725, %v1049
        %v1114 = vadd.f32 %v726, %v1050
        %v1115 = vadd.f32 %v727, %v1051
        %v1116 = vadd.f32 %v728, %v1052
        %v1117 = vadd.f32 %v729, %v1053
        %v1118 = vadd.f32 %v730, %v1054
        %v1119 = vadd.f32 %v731, %v1055
        %v1120 = vadd.f32 %v732, %v1056
        %v1121 = vadd.f32 %v733, %v1057
        %v1122 = vadd.f32 %v734, %v1058
        %v1123 = vadd.f32 %v735, %v1059
        %v1124 = vadd.f32 %v736, %v1060
        %v1125 = vadd.f32 %v737, %v1061
        %v1126 = vadd.f32 %v738, %v1062
        %v1127 = vadd.f32 %v739, %v1063
        %v1128 = vadd.f32 %v740, %v1064
        %v1129 = vadd.f32 %v741, %v1065
        %v1130 = vadd.f32 %v742, %v1066
        %v1131 = vadd.f32 %v743, %v1067
        %v1132 = vadd.f32 %v744, %v1068
        %v1133 = vadd.f32 %v745, %v1069
        %v1134 = vadd.f32 %v746, %v1070
        %v1135 = vadd.f32 %v747, %v1071
        %v1136 = vadd.f32 %v748, %v1072
        %v1137 = vadd.f32 %v749, %v1073
        %v1138 = vadd.f32 %v750, %v1074
        %v1139 = vadd.f32 %v751, %v1075
        %v1140 = vadd.f32 %v752, %v1076
        %v1141 = vadd.f32 %v753, %v1077
        %v1142 = vadd.f32 %v754, %v1078
        %1143 = vset.pattern.permute.xlu0 2
        %1144 = vperm.xlu0 %1143, %v302
        %v1145 = vpop.permute.xlu0 %1144
        %1147 = vset.pattern.permute.xlu0 2
        %1148 = vperm.xlu0 %1147, %v303
        %v1149 = vpop.permute.xlu0 %1148
        %1151 = vset.pattern.permute.xlu0 2
        %1152 = vperm.xlu0 %1151, %v304
        %v1153 = vpop.permute.xlu0 %1152
        %1155 = vset.pattern.permute.xlu0 2
        %1156 = vperm.xlu0 %1155, %v305
        %v1157 = vpop.permute.xlu0 %1156
        %1159 = vset.pattern.permute.xlu0 2
        %1160 = vperm.xlu0 %1159, %v306
        %v1161 = vpop.permute.xlu0 %1160
        %1163 = vset.pattern.permute.xlu0 2
        %1164 = vperm.xlu0 %1163, %v307
        %v1165 = vpop.permute.xlu0 %1164
        %1167 = vset.pattern.permute.xlu0 2
        %1168 = vperm.xlu0 %1167, %v308
        %v1169 = vpop.permute.xlu0 %1168
        %1171 = vset.pattern.permute.xlu0 2
        %1172 = vperm.xlu0 %1171, %v309
        %v1173 = vpop.permute.xlu0 %1172
        %1175 = vset.pattern.permute.xlu0 2
        %1176 = vperm.xlu0 %1175, %v310
        %v1177 = vpop.permute.xlu0 %1176
        %1179 = vset.pattern.permute.xlu0 2
        %1180 = vperm.xlu0 %1179, %v311
        %v1181 = vpop.permute.xlu0 %1180
        %1183 = vset.pattern.permute.xlu0 2
        %1184 = vperm.xlu0 %1183, %v312
        %v1185 = vpop.permute.xlu0 %1184
        %1187 = vset.pattern.permute.xlu0 2
        %1188 = vperm.xlu0 %1187, %v313
        %v1189 = vpop.permute.xlu0 %1188
        %1191 = vset.pattern.permute.xlu0 2
        %1192 = vperm.xlu0 %1191, %v314
        %v1193 = vpop.permute.xlu0 %1192
        %1195 = vset.pattern.permute.xlu0 2
        %1196 = vperm.xlu0 %1195, %v315
        %v1197 = vpop.permute.xlu0 %1196
        %1199 = vset.pattern.permute.xlu0 2
        %1200 = vperm.xlu0 %1199, %v316
        %v1201 = vpop.permute.xlu0 %1200
        %1203 = vset.pattern.permute.xlu0 2
        %1204 = vperm.xlu0 %1203, %v317
        %v1205 = vpop.permute.xlu0 %1204
        %1207 = vset.pattern.permute.xlu0 2
        %1208 = vperm.xlu0 %1207, %v318
        %v1209 = vpop.permute.xlu0 %1208
        %1211 = vset.pattern.permute.xlu0 2
        %1212 = vperm.xlu0 %1211, %v319
        %v1213 = vpop.permute.xlu0 %1212
        %1215 = vset.pattern.permute.xlu0 2
        %1216 = vperm.xlu0 %1215, %v320
        %v1217 = vpop.permute.xlu0 %1216
        %1219 = vset.pattern.permute.xlu0 2
        %1220 = vperm.xlu0 %1219, %v321
        %v1221 = vpop.permute.xlu0 %1220
        %1223 = vset.pattern.permute.xlu0 2
        %1224 = vperm.xlu0 %1223, %v322
        %v1225 = vpop.permute.xlu0 %1224
        %1227 = vset.pattern.permute.xlu0 2
        %1228 = vperm.xlu0 %1227, %v323
        %v1229 = vpop.permute.xlu0 %1228
        %1231 = vset.pattern.permute.xlu0 2
        %1232 = vperm.xlu0 %1231, %v324
        %v1233 = vpop.permute.xlu0 %1232
        %1235 = vset.pattern.permute.xlu0 2
        %1236 = vperm.xlu0 %1235, %v325
        %v1237 = vpop.permute.xlu0 %1236
        %1239 = vset.pattern.permute.xlu0 2
        %1240 = vperm.xlu0 %1239, %v326
        %v1241 = vpop.permute.xlu0 %1240
        %1243 = vset.pattern.permute.xlu0 2
        %1244 = vperm.xlu0 %1243, %v327
        %v1245 = vpop.permute.xlu0 %1244
        %1247 = vset.pattern.permute.xlu0 2
        %1248 = vperm.xlu0 %1247, %v328
        %v1249 = vpop.permute.xlu0 %1248
        %1251 = vset.pattern.permute.xlu0 2
        %1252 = vperm.xlu0 %1251, %v329
        %v1253 = vpop.permute.xlu0 %1252
        %1255 = vset.pattern.permute.xlu0 2
        %1256 = vperm.xlu0 %1255, %v330
        %v1257 = vpop.permute.xlu0 %1256
        %1259 = vset.pattern.permute.xlu0 2
        %1260 = vperm.xlu0 %1259, %v331
        %v1261 = vpop.permute.xlu0 %1260
        %1263 = vset.pattern.permute.xlu0 2
        %1264 = vperm.xlu0 %1263, %v332
        %v1265 = vpop.permute.xlu0 %1264
        %1267 = vset.pattern.permute.xlu0 2
        %1268 = vperm.xlu0 %1267, %v333
        %v1269 = vpop.permute.xlu0 %1268
        %1271 = vset.pattern.permute.xlu0 2
        %1272 = vperm.xlu0 %1271, %v334
        %v1273 = vpop.permute.xlu0 %1272
        %1275 = vset.pattern.permute.xlu0 2
        %1276 = vperm.xlu0 %1275, %v335
        %v1277 = vpop.permute.xlu0 %1276
        %1279 = vset.pattern.permute.xlu0 2
        %1280 = vperm.xlu0 %1279, %v336
        %v1281 = vpop.permute.xlu0 %1280
        %1283 = vset.pattern.permute.xlu0 2
        %1284 = vperm.xlu0 %1283, %v337
        %v1285 = vpop.permute.xlu0 %1284
        %1287 = vset.pattern.permute.xlu0 2
        %1288 = vperm.xlu0 %1287, %v338
        %v1289 = vpop.permute.xlu0 %1288
        %1291 = vset.pattern.permute.xlu0 2
        %1292 = vperm.xlu0 %1291, %v339
        %v1293 = vpop.permute.xlu0 %1292
        %1295 = vset.pattern.permute.xlu0 2
        %1296 = vperm.xlu0 %1295, %v340
        %v1297 = vpop.permute.xlu0 %1296
        %1299 = vset.pattern.permute.xlu0 2
        %1300 = vperm.xlu0 %1299, %v341
        %v1301 = vpop.permute.xlu0 %1300
        %1303 = vset.pattern.permute.xlu0 2
        %1304 = vperm.xlu0 %1303, %v342
        %v1305 = vpop.permute.xlu0 %1304
        %1307 = vset.pattern.permute.xlu0 2
        %1308 = vperm.xlu0 %1307, %v343
        %v1309 = vpop.permute.xlu0 %1308
        %1311 = vset.pattern.permute.xlu0 2
        %1312 = vperm.xlu0 %1311, %v344
        %v1313 = vpop.permute.xlu0 %1312
        %1315 = vset.pattern.permute.xlu0 2
        %1316 = vperm.xlu0 %1315, %v345
        %v1317 = vpop.permute.xlu0 %1316
        %1319 = vset.pattern.permute.xlu0 2
        %1320 = vperm.xlu0 %1319, %v346
        %v1321 = vpop.permute.xlu0 %1320
        %1323 = vset.pattern.permute.xlu0 2
        %1324 = vperm.xlu0 %1323, %v347
        %v1325 = vpop.permute.xlu0 %1324
        %1327 = vset.pattern.permute.xlu0 2
        %1328 = vperm.xlu0 %1327, %v348
        %v1329 = vpop.permute.xlu0 %1328
        %1331 = vset.pattern.permute.xlu0 2
        %1332 = vperm.xlu0 %1331, %v349
        %v1333 = vpop.permute.xlu0 %1332
        %1335 = vset.pattern.permute.xlu0 2
        %1336 = vperm.xlu0 %1335, %v350
        %v1337 = vpop.permute.xlu0 %1336
        %1339 = vset.pattern.permute.xlu0 2
        %1340 = vperm.xlu0 %1339, %v351
        %v1341 = vpop.permute.xlu0 %1340
        %1343 = vset.pattern.permute.xlu0 2
        %1344 = vperm.xlu0 %1343, %v352
        %v1345 = vpop.permute.xlu0 %1344
        %1347 = vset.pattern.permute.xlu0 2
        %1348 = vperm.xlu0 %1347, %v353
        %v1349 = vpop.permute.xlu0 %1348
        %1351 = vset.pattern.permute.xlu0 2
        %1352 = vperm.xlu0 %1351, %v354
        %v1353 = vpop.permute.xlu0 %1352
        %1355 = vset.pattern.permute.xlu0 2
        %1356 = vperm.xlu0 %1355, %v355
        %v1357 = vpop.permute.xlu0 %1356
        %1359 = vset.pattern.permute.xlu0 2
        %1360 = vperm.xlu0 %1359, %v356
        %v1361 = vpop.permute.xlu0 %1360
        %1363 = vset.pattern.permute.xlu0 2
        %1364 = vperm.xlu0 %1363, %v357
        %v1365 = vpop.permute.xlu0 %1364
        %1367 = vset.pattern.permute.xlu0 2
        %1368 = vperm.xlu0 %1367, %v358
        %v1369 = vpop.permute.xlu0 %1368
        %1371 = vset.pattern.permute.xlu0 2
        %1372 = vperm.xlu0 %1371, %v359
        %v1373 = vpop.permute.xlu0 %1372
        %1375 = vset.pattern.permute.xlu0 2
        %1376 = vperm.xlu0 %1375, %v360
        %v1377 = vpop.permute.xlu0 %1376
        %1379 = vset.pattern.permute.xlu0 2
        %1380 = vperm.xlu0 %1379, %v361
        %v1381 = vpop.permute.xlu0 %1380
        %1383 = vset.pattern.permute.xlu0 2
        %1384 = vperm.xlu0 %1383, %v362
        %v1385 = vpop.permute.xlu0 %1384
        %1387 = vset.pattern.permute.xlu0 2
        %1388 = vperm.xlu0 %1387, %v363
        %v1389 = vpop.permute.xlu0 %1388
        %1391 = vset.pattern.permute.xlu0 2
        %1392 = vperm.xlu0 %1391, %v364
        %v1393 = vpop.permute.xlu0 %1392
        %1395 = vset.pattern.permute.xlu0 2
        %1396 = vperm.xlu0 %1395, %v365
        %v1397 = vpop.permute.xlu0 %1396
        %v1399 = vlaneseq
        %v1400 = vshrl.u32 %v1399, 7
        %v1401 = vsub.s32 2, %v1400
        %v1402 = vrot.slane %v366, %v1401
        %v1403 = vmul.f32 %v1145, %v1402
        %v1404 = vmul.f32 %v1149, %v1402
        %v1405 = vmul.f32 %v1153, %v1402
        %v1406 = vmul.f32 %v1157, %v1402
        %v1407 = vmul.f32 %v1161, %v1402
        %v1408 = vmul.f32 %v1165, %v1402
        %v1409 = vmul.f32 %v1169, %v1402
        %v1410 = vmul.f32 %v1173, %v1402
        %v1411 = vmul.f32 %v1177, %v1402
        %v1412 = vmul.f32 %v1181, %v1402
        %v1413 = vmul.f32 %v1185, %v1402
        %v1414 = vmul.f32 %v1189, %v1402
        %v1415 = vmul.f32 %v1193, %v1402
        %v1416 = vmul.f32 %v1197, %v1402
        %v1417 = vmul.f32 %v1201, %v1402
        %v1418 = vmul.f32 %v1205, %v1402
        %v1419 = vmul.f32 %v1209, %v1402
        %v1420 = vmul.f32 %v1213, %v1402
        %v1421 = vmul.f32 %v1217, %v1402
        %v1422 = vmul.f32 %v1221, %v1402
        %v1423 = vmul.f32 %v1225, %v1402
        %v1424 = vmul.f32 %v1229, %v1402
        %v1425 = vmul.f32 %v1233, %v1402
        %v1426 = vmul.f32 %v1237, %v1402
        %v1427 = vmul.f32 %v1241, %v1402
        %v1428 = vmul.f32 %v1245, %v1402
        %v1429 = vmul.f32 %v1249, %v1402
        %v1430 = vmul.f32 %v1253, %v1402
        %v1431 = vmul.f32 %v1257, %v1402
        %v1432 = vmul.f32 %v1261, %v1402
        %v1433 = vmul.f32 %v1265, %v1402
        %v1434 = vmul.f32 %v1269, %v1402
        %v1435 = vmul.f32 %v1273, %v1402
        %v1436 = vmul.f32 %v1277, %v1402
        %v1437 = vmul.f32 %v1281, %v1402
        %v1438 = vmul.f32 %v1285, %v1402
        %v1439 = vmul.f32 %v1289, %v1402
        %v1440 = vmul.f32 %v1293, %v1402
        %v1441 = vmul.f32 %v1297, %v1402
        %v1442 = vmul.f32 %v1301, %v1402
        %v1443 = vmul.f32 %v1305, %v1402
        %v1444 = vmul.f32 %v1309, %v1402
        %v1445 = vmul.f32 %v1313, %v1402
        %v1446 = vmul.f32 %v1317, %v1402
        %v1447 = vmul.f32 %v1321, %v1402
        %v1448 = vmul.f32 %v1325, %v1402
        %v1449 = vmul.f32 %v1329, %v1402
        %v1450 = vmul.f32 %v1333, %v1402
        %v1451 = vmul.f32 %v1337, %v1402
        %v1452 = vmul.f32 %v1341, %v1402
        %v1453 = vmul.f32 %v1345, %v1402
        %v1454 = vmul.f32 %v1349, %v1402
        %v1455 = vmul.f32 %v1353, %v1402
        %v1456 = vmul.f32 %v1357, %v1402
        %v1457 = vmul.f32 %v1361, %v1402
        %v1458 = vmul.f32 %v1365, %v1402
        %v1459 = vmul.f32 %v1369, %v1402
        %v1460 = vmul.f32 %v1373, %v1402
        %v1461 = vmul.f32 %v1377, %v1402
        %v1462 = vmul.f32 %v1381, %v1402
        %v1463 = vmul.f32 %v1385, %v1402
        %v1464 = vmul.f32 %v1389, %v1402
        %v1465 = vmul.f32 %v1393, %v1402
        %v1466 = vmul.f32 %v1397, %v1402
        %v1467 = vadd.f32 %v1079, %v1403
        %v1468 = vadd.f32 %v1080, %v1404
        %v1469 = vadd.f32 %v1081, %v1405
        %v1470 = vadd.f32 %v1082, %v1406
        %v1471 = vadd.f32 %v1083, %v1407
        %v1472 = vadd.f32 %v1084, %v1408
        %v1473 = vadd.f32 %v1085, %v1409
        %v1474 = vadd.f32 %v1086, %v1410
        %v1475 = vadd.f32 %v1087, %v1411
        %v1476 = vadd.f32 %v1088, %v1412
        %v1477 = vadd.f32 %v1089, %v1413
        %v1478 = vadd.f32 %v1090, %v1414
        %v1479 = vadd.f32 %v1091, %v1415
        %v1480 = vadd.f32 %v1092, %v1416
        %v1481 = vadd.f32 %v1093, %v1417
        %v1482 = vadd.f32 %v1094, %v1418
        %v1483 = vadd.f32 %v1095, %v1419
        %v1484 = vadd.f32 %v1096, %v1420
        %v1485 = vadd.f32 %v1097, %v1421
        %v1486 = vadd.f32 %v1098, %v1422
        %v1487 = vadd.f32 %v1099, %v1423
        %v1488 = vadd.f32 %v1100, %v1424
        %v1489 = vadd.f32 %v1101, %v1425
        %v1490 = vadd.f32 %v1102, %v1426
        %v1491 = vadd.f32 %v1103, %v1427
        %v1492 = vadd.f32 %v1104, %v1428
        %v1493 = vadd.f32 %v1105, %v1429
        %v1494 = vadd.f32 %v1106, %v1430
        %v1495 = vadd.f32 %v1107, %v1431
        %v1496 = vadd.f32 %v1108, %v1432
        %v1497 = vadd.f32 %v1109, %v1433
        %v1498 = vadd.f32 %v1110, %v1434
        %v1499 = vadd.f32 %v1111, %v1435
        %v1500 = vadd.f32 %v1112, %v1436
        %v1501 = vadd.f32 %v1113, %v1437
        %v1502 = vadd.f32 %v1114, %v1438
        %v1503 = vadd.f32 %v1115, %v1439
        %v1504 = vadd.f32 %v1116, %v1440
        %v1505 = vadd.f32 %v1117, %v1441
        %v1506 = vadd.f32 %v1118, %v1442
        %v1507 = vadd.f32 %v1119, %v1443
        %v1508 = vadd.f32 %v1120, %v1444
        %v1509 = vadd.f32 %v1121, %v1445
        %v1510 = vadd.f32 %v1122, %v1446
        %v1511 = vadd.f32 %v1123, %v1447
        %v1512 = vadd.f32 %v1124, %v1448
        %v1513 = vadd.f32 %v1125, %v1449
        %v1514 = vadd.f32 %v1126, %v1450
        %v1515 = vadd.f32 %v1127, %v1451
        %v1516 = vadd.f32 %v1128, %v1452
        %v1517 = vadd.f32 %v1129, %v1453
        %v1518 = vadd.f32 %v1130, %v1454
        %v1519 = vadd.f32 %v1131, %v1455
        %v1520 = vadd.f32 %v1132, %v1456
        %v1521 = vadd.f32 %v1133, %v1457
        %v1522 = vadd.f32 %v1134, %v1458
        %v1523 = vadd.f32 %v1135, %v1459
        %v1524 = vadd.f32 %v1136, %v1460
        %v1525 = vadd.f32 %v1137, %v1461
        %v1526 = vadd.f32 %v1138, %v1462
        %v1527 = vadd.f32 %v1139, %v1463
        %v1528 = vadd.f32 %v1140, %v1464
        %v1529 = vadd.f32 %v1141, %v1465
        %v1530 = vadd.f32 %v1142, %v1466
        %v1531 = vld [vmem:[#allocation7] sm:$0x1]
        %v1533 = vlaneseq
        %v1534 = vshrl.u32 %v1533, 7
        %v1535 = vsub.s32 0, %v1534
        %v1536 = vrot.slane %v1531, %v1535
        %v1538 = vadd.f32 %v1467, %v1536
        %v1539 = vadd.f32 %v1468, %v1536
        %v1540 = vadd.f32 %v1469, %v1536
        %v1541 = vadd.f32 %v1470, %v1536
        %v1542 = vadd.f32 %v1471, %v1536
        %v1543 = vadd.f32 %v1472, %v1536
        %v1544 = vadd.f32 %v1473, %v1536
        %v1545 = vadd.f32 %v1474, %v1536
        %v1546 = vadd.f32 %v1475, %v1536
        %v1547 = vadd.f32 %v1476, %v1536
        %v1548 = vadd.f32 %v1477, %v1536
        %v1549 = vadd.f32 %v1478, %v1536
        %v1550 = vadd.f32 %v1479, %v1536
        %v1551 = vadd.f32 %v1480, %v1536
        %v1552 = vadd.f32 %v1481, %v1536
        %v1553 = vadd.f32 %v1482, %v1536
        %v1554 = vadd.f32 %v1483, %v1536
        %v1555 = vadd.f32 %v1484, %v1536
        %v1556 = vadd.f32 %v1485, %v1536
        %v1557 = vadd.f32 %v1486, %v1536
        %v1558 = vadd.f32 %v1487, %v1536
        %v1559 = vadd.f32 %v1488, %v1536
        %v1560 = vadd.f32 %v1489, %v1536
        %v1561 = vadd.f32 %v1490, %v1536
        %v1562 = vadd.f32 %v1491, %v1536
        %v1563 = vadd.f32 %v1492, %v1536
        %v1564 = vadd.f32 %v1493, %v1536
        %v1565 = vadd.f32 %v1494, %v1536
        %v1566 = vadd.f32 %v1495, %v1536
        %v1567 = vadd.f32 %v1496, %v1536
        %v1568 = vadd.f32 %v1497, %v1536
        %v1569 = vadd.f32 %v1498, %v1536
        %v1570 = vadd.f32 %v1499, %v1536
        %v1571 = vadd.f32 %v1500, %v1536
        %v1572 = vadd.f32 %v1501, %v1536
        %v1573 = vadd.f32 %v1502, %v1536
        %v1574 = vadd.f32 %v1503, %v1536
        %v1575 = vadd.f32 %v1504, %v1536
        %v1576 = vadd.f32 %v1505, %v1536
        %v1577 = vadd.f32 %v1506, %v1536
        %v1578 = vadd.f32 %v1507, %v1536
        %v1579 = vadd.f32 %v1508, %v1536
        %v1580 = vadd.f32 %v1509, %v1536
        %v1581 = vadd.f32 %v1510, %v1536
        %v1582 = vadd.f32 %v1511, %v1536
        %v1583 = vadd.f32 %v1512, %v1536
        %v1584 = vadd.f32 %v1513, %v1536
        %v1585 = vadd.f32 %v1514, %v1536
        %v1586 = vadd.f32 %v1515, %v1536
        %v1587 = vadd.f32 %v1516, %v1536
        %v1588 = vadd.f32 %v1517, %v1536
        %v1589 = vadd.f32 %v1518, %v1536
        %v1590 = vadd.f32 %v1519, %v1536
        %v1591 = vadd.f32 %v1520, %v1536
        %v1592 = vadd.f32 %v1521, %v1536
        %v1593 = vadd.f32 %v1522, %v1536
        %v1594 = vadd.f32 %v1523, %v1536
        %v1595 = vadd.f32 %v1524, %v1536
        %v1596 = vadd.f32 %v1525, %v1536
        %v1597 = vadd.f32 %v1526, %v1536
        %v1598 = vadd.f32 %v1527, %v1536
        %v1599 = vadd.f32 %v1528, %v1536
        %v1600 = vadd.f32 %v1529, %v1536
        %v1601 = vadd.f32 %v1530, %v1536
        %v1602 = vpack.c.bf16 %v1539, %v1538
        %v1603 = vpack.c.bf16 %v1541, %v1540
        %v1604 = vpack.c.bf16 %v1543, %v1542
        %v1605 = vpack.c.bf16 %v1545, %v1544
        %v1606 = vpack.c.bf16 %v1547, %v1546
        %v1607 = vpack.c.bf16 %v1549, %v1548
        %v1608 = vpack.c.bf16 %v1551, %v1550
        %v1609 = vpack.c.bf16 %v1553, %v1552
        %v1610 = vpack.c.bf16 %v1555, %v1554
        %v1611 = vpack.c.bf16 %v1557, %v1556
        %v1612 = vpack.c.bf16 %v1559, %v1558
        %v1613 = vpack.c.bf16 %v1561, %v1560
        %v1614 = vpack.c.bf16 %v1563, %v1562
        %v1615 = vpack.c.bf16 %v1565, %v1564
        %v1616 = vpack.c.bf16 %v1567, %v1566
        %v1617 = vpack.c.bf16 %v1569, %v1568
        %v1618 = vpack.c.bf16 %v1571, %v1570
        %v1619 = vpack.c.bf16 %v1573, %v1572
        %v1620 = vpack.c.bf16 %v1575, %v1574
        %v1621 = vpack.c.bf16 %v1577, %v1576
        %v1622 = vpack.c.bf16 %v1579, %v1578
        %v1623 = vpack.c.bf16 %v1581, %v1580
        %v1624 = vpack.c.bf16 %v1583, %v1582
        %v1625 = vpack.c.bf16 %v1585, %v1584
        %v1626 = vpack.c.bf16 %v1587, %v1586
        %v1627 = vpack.c.bf16 %v1589, %v1588
        %v1628 = vpack.c.bf16 %v1591, %v1590
        %v1629 = vpack.c.bf16 %v1593, %v1592
        %v1630 = vpack.c.bf16 %v1595, %v1594
        %v1631 = vpack.c.bf16 %v1597, %v1596
        %v1632 = vpack.c.bf16 %v1599, %v1598
        %v1633 = vpack.c.bf16 %v1601, %v1600
        %v1666 = vunpack.c.l.b16 %v1602
        %v1667 = vunpack.c.h.b16 %v1602
        %v1668 = vunpack.c.l.b16 %v1603
        %v1669 = vunpack.c.h.b16 %v1603
        %v1670 = vunpack.c.l.b16 %v1604
        %v1671 = vunpack.c.h.b16 %v1604
        %v1672 = vunpack.c.l.b16 %v1605
        %v1673 = vunpack.c.h.b16 %v1605
        %v1674 = vunpack.c.l.b16 %v1606
        %v1675 = vunpack.c.h.b16 %v1606
        %v1676 = vunpack.c.l.b16 %v1607
        %v1677 = vunpack.c.h.b16 %v1607
        %v1678 = vunpack.c.l.b16 %v1608
        %v1679 = vunpack.c.h.b16 %v1608
        %v1680 = vunpack.c.l.b16 %v1609
        %v1681 = vunpack.c.h.b16 %v1609
        %v1682 = vunpack.c.l.b16 %v1610
        %v1683 = vunpack.c.h.b16 %v1610
        %v1684 = vunpack.c.l.b16 %v1611
        %v1685 = vunpack.c.h.b16 %v1611
        %v1686 = vunpack.c.l.b16 %v1612
        %v1687 = vunpack.c.h.b16 %v1612
        %v1688 = vunpack.c.l.b16 %v1613
        %v1689 = vunpack.c.h.b16 %v1613
        %v1690 = vunpack.c.l.b16 %v1614
        %v1691 = vunpack.c.h.b16 %v1614
        %v1692 = vunpack.c.l.b16 %v1615
        %v1693 = vunpack.c.h.b16 %v1615
        %v1694 = vunpack.c.l.b16 %v1616
        %v1695 = vunpack.c.h.b16 %v1616
        %v1696 = vunpack.c.l.b16 %v1617
        %v1697 = vunpack.c.h.b16 %v1617
        %v1698 = vunpack.c.l.b16 %v1618
        %v1699 = vunpack.c.h.b16 %v1618
        %v1700 = vunpack.c.l.b16 %v1619
        %v1701 = vunpack.c.h.b16 %v1619
        %v1702 = vunpack.c.l.b16 %v1620
        %v1703 = vunpack.c.h.b16 %v1620
        %v1704 = vunpack.c.l.b16 %v1621
        %v1705 = vunpack.c.h.b16 %v1621
        %v1706 = vunpack.c.l.b16 %v1622
        %v1707 = vunpack.c.h.b16 %v1622
        %v1708 = vunpack.c.l.b16 %v1623
        %v1709 = vunpack.c.h.b16 %v1623
        %v1710 = vunpack.c.l.b16 %v1624
        %v1711 = vunpack.c.h.b16 %v1624
        %v1712 = vunpack.c.l.b16 %v1625
        %v1713 = vunpack.c.h.b16 %v1625
        %v1714 = vunpack.c.l.b16 %v1626
        %v1715 = vunpack.c.h.b16 %v1626
        %v1716 = vunpack.c.l.b16 %v1627
        %v1717 = vunpack.c.h.b16 %v1627
        %v1718 = vunpack.c.l.b16 %v1628
        %v1719 = vunpack.c.h.b16 %v1628
        %v1720 = vunpack.c.l.b16 %v1629
        %v1721 = vunpack.c.h.b16 %v1629
        %v1722 = vunpack.c.l.b16 %v1630
        %v1723 = vunpack.c.h.b16 %v1630
        %v1724 = vunpack.c.l.b16 %v1631
        %v1725 = vunpack.c.h.b16 %v1631
        %v1726 = vunpack.c.l.b16 %v1632
        %v1727 = vunpack.c.h.b16 %v1632
        %v1728 = vunpack.c.l.b16 %v1633
        %v1729 = vunpack.c.h.b16 %v1633
        %v1730 = vpack.c.b16 %v1666, %v1666
        %v1731 = vpack.c.b16 %v1667, %v1667
        %v1732 = vpack.c.b16 %v1668, %v1668
        %v1733 = vpack.c.b16 %v1669, %v1669
        %v1734 = vpack.c.b16 %v1670, %v1670
        %v1735 = vpack.c.b16 %v1671, %v1671
        %v1736 = vpack.c.b16 %v1672, %v1672
        %v1737 = vpack.c.b16 %v1673, %v1673
        %v1738 = vpack.c.b16 %v1674, %v1674
        %v1739 = vpack.c.b16 %v1675, %v1675
        %v1740 = vpack.c.b16 %v1676, %v1676
        %v1741 = vpack.c.b16 %v1677, %v1677
        %v1742 = vpack.c.b16 %v1678, %v1678
        %v1743 = vpack.c.b16 %v1679, %v1679
        %v1744 = vpack.c.b16 %v1680, %v1680
        %v1745 = vpack.c.b16 %v1681, %v1681
        %v1746 = vpack.c.b16 %v1682, %v1682
        %v1747 = vpack.c.b16 %v1683, %v1683
        %v1748 = vpack.c.b16 %v1684, %v1684
        %v1749 = vpack.c.b16 %v1685, %v1685
        %v1750 = vpack.c.b16 %v1686, %v1686
        %v1751 = vpack.c.b16 %v1687, %v1687
        %v1752 = vpack.c.b16 %v1688, %v1688
        %v1753 = vpack.c.b16 %v1689, %v1689
        %v1754 = vpack.c.b16 %v1690, %v1690
        %v1755 = vpack.c.b16 %v1691, %v1691
        %v1756 = vpack.c.b16 %v1692, %v1692
        %v1757 = vpack.c.b16 %v1693, %v1693
        %v1758 = vpack.c.b16 %v1694, %v1694
        %v1759 = vpack.c.b16 %v1695, %v1695
        %v1760 = vpack.c.b16 %v1696, %v1696
        %v1761 = vpack.c.b16 %v1697, %v1697
        %v1762 = vpack.c.b16 %v1698, %v1698
        %v1763 = vpack.c.b16 %v1699, %v1699
        %v1764 = vpack.c.b16 %v1700, %v1700
        %v1765 = vpack.c.b16 %v1701, %v1701
        %v1766 = vpack.c.b16 %v1702, %v1702
        %v1767 = vpack.c.b16 %v1703, %v1703
        %v1768 = vpack.c.b16 %v1704, %v1704
        %v1769 = vpack.c.b16 %v1705, %v1705
        %v1770 = vpack.c.b16 %v1706, %v1706
        %v1771 = vpack.c.b16 %v1707, %v1707
        %v1772 = vpack.c.b16 %v1708, %v1708
        %v1773 = vpack.c.b16 %v1709, %v1709
        %v1774 = vpack.c.b16 %v1710, %v1710
        %v1775 = vpack.c.b16 %v1711, %v1711
        %v1776 = vpack.c.b16 %v1712, %v1712
        %v1777 = vpack.c.b16 %v1713, %v1713
        %v1778 = vpack.c.b16 %v1714, %v1714
        %v1779 = vpack.c.b16 %v1715, %v1715
        %v1780 = vpack.c.b16 %v1716, %v1716
        %v1781 = vpack.c.b16 %v1717, %v1717
        %v1782 = vpack.c.b16 %v1718, %v1718
        %v1783 = vpack.c.b16 %v1719, %v1719
        %v1784 = vpack.c.b16 %v1720, %v1720
        %v1785 = vpack.c.b16 %v1721, %v1721
        %v1786 = vpack.c.b16 %v1722, %v1722
        %v1787 = vpack.c.b16 %v1723, %v1723
        %v1788 = vpack.c.b16 %v1724, %v1724
        %v1789 = vpack.c.b16 %v1725, %v1725
        %v1790 = vpack.c.b16 %v1726, %v1726
        %v1791 = vpack.c.b16 %v1727, %v1727
        %v1792 = vpack.c.b16 %v1728, %v1728
        %v1793 = vpack.c.b16 %v1729, %v1729
        %1858 = vst [vmem:[%s290] sm:$0xf] %v1730
        %1859 = vst [vmem:[%s290 + $0x4] sm:$0xf] %v1731
        %1860 = vst [vmem:[%s290 + $0x8] sm:$0xf] %v1732
        %1861 = vst [vmem:[%s290 + $0xc] sm:$0xf] %v1733
        %1862 = vst [vmem:[%s290 + $0x10] sm:$0xf] %v1734
        %1863 = vst [vmem:[%s290 + $0x14] sm:$0xf] %v1735
        %1864 = vst [vmem:[%s290 + $0x18] sm:$0xf] %v1736
        %1865 = vst [vmem:[%s290 + $0x1c] sm:$0xf] %v1737
        %1866 = vst [vmem:[%s290 + $0x20] sm:$0xf] %v1738
        %1867 = vst [vmem:[%s290 + $0x24] sm:$0xf] %v1739
        %1868 = vst [vmem:[%s290 + $0x28] sm:$0xf] %v1740
        %1869 = vst [vmem:[%s290 + $0x2c] sm:$0xf] %v1741
        %1870 = vst [vmem:[%s290 + $0x30] sm:$0xf] %v1742
        %1871 = vst [vmem:[%s290 + $0x34] sm:$0xf] %v1743
        %1872 = vst [vmem:[%s290 + $0x38] sm:$0xf] %v1744
        %1873 = vst [vmem:[%s290 + $0x3c] sm:$0xf] %v1745
        %1874 = vst [vmem:[%s290 + $0x40] sm:$0xf] %v1746
        %1875 = vst [vmem:[%s290 + $0x44] sm:$0xf] %v1747
        %1876 = vst [vmem:[%s290 + $0x48] sm:$0xf] %v1748
        %1877 = vst [vmem:[%s290 + $0x4c] sm:$0xf] %v1749
        %1878 = vst [vmem:[%s290 + $0x50] sm:$0xf] %v1750
        %1879 = vst [vmem:[%s290 + $0x54] sm:$0xf] %v1751
        %1880 = vst [vmem:[%s290 + $0x58] sm:$0xf] %v1752
        %1881 = vst [vmem:[%s290 + $0x5c] sm:$0xf] %v1753
        %1882 = vst [vmem:[%s290 + $0x60] sm:$0xf] %v1754
        %1883 = vst [vmem:[%s290 + $0x64] sm:$0xf] %v1755
        %1884 = vst [vmem:[%s290 + $0x68] sm:$0xf] %v1756
        %1885 = vst [vmem:[%s290 + $0x6c] sm:$0xf] %v1757
        %1886 = vst [vmem:[%s290 + $0x70] sm:$0xf] %v1758
        %1887 = vst [vmem:[%s290 + $0x74] sm:$0xf] %v1759
        %1888 = vst [vmem:[%s290 + $0x78] sm:$0xf] %v1760
        %1889 = vst [vmem:[%s290 + $0x7c] sm:$0xf] %v1761
        %1890 = vst [vmem:[%s290 + $0x80] sm:$0xf] %v1762
        %1891 = vst [vmem:[%s290 + $0x84] sm:$0xf] %v1763
        %1892 = vst [vmem:[%s290 + $0x88] sm:$0xf] %v1764
        %1893 = vst [vmem:[%s290 + $0x8c] sm:$0xf] %v1765
        %1894 = vst [vmem:[%s290 + $0x90] sm:$0xf] %v1766
        %1895 = vst [vmem:[%s290 + $0x94] sm:$0xf] %v1767
        %1896 = vst [vmem:[%s290 + $0x98] sm:$0xf] %v1768
        %1897 = vst [vmem:[%s290 + $0x9c] sm:$0xf] %v1769
        %1898 = vst [vmem:[%s290 + $0xa0] sm:$0xf] %v1770
        %1899 = vst [vmem:[%s290 + $0xa4] sm:$0xf] %v1771
        %1900 = vst [vmem:[%s290 + $0xa8] sm:$0xf] %v1772
        %1901 = vst [vmem:[%s290 + $0xac] sm:$0xf] %v1773
        %1902 = vst [vmem:[%s290 + $0xb0] sm:$0xf] %v1774
        %1903 = vst [vmem:[%s290 + $0xb4] sm:$0xf] %v1775
        %1904 = vst [vmem:[%s290 + $0xb8] sm:$0xf] %v1776
        %1905 = vst [vmem:[%s290 + $0xbc] sm:$0xf] %v1777
        %1906 = vst [vmem:[%s290 + $0xc0] sm:$0xf] %v1778
        %1907 = vst [vmem:[%s290 + $0xc4] sm:$0xf] %v1779
        %1908 = vst [vmem:[%s290 + $0xc8] sm:$0xf] %v1780
        %1909 = vst [vmem:[%s290 + $0xcc] sm:$0xf] %v1781
        %1910 = vst [vmem:[%s290 + $0xd0] sm:$0xf] %v1782
        %1911 = vst [vmem:[%s290 + $0xd4] sm:$0xf] %v1783
        %1912 = vst [vmem:[%s290 + $0xd8] sm:$0xf] %v1784
        %1913 = vst [vmem:[%s290 + $0xdc] sm:$0xf] %v1785
        %1914 = vst [vmem:[%s290 + $0xe0] sm:$0xf] %v1786
        %1915 = vst [vmem:[%s290 + $0xe4] sm:$0xf] %v1787
        %1916 = vst [vmem:[%s290 + $0xe8] sm:$0xf] %v1788
        %1917 = vst [vmem:[%s290 + $0xec] sm:$0xf] %v1789
        %1918 = vst [vmem:[%s290 + $0xf0] sm:$0xf] %v1790
        %1919 = vst [vmem:[%s290 + $0xf4] sm:$0xf] %v1791
        %1920 = vst [vmem:[%s290 + $0xf8] sm:$0xf] %v1792
        %1921 = vst [vmem:[%s290 + $0xfc] sm:$0xf] %v1793
        %v1922 = vadd.f32 %v1538, %v1539
        %v1923 = vadd.f32 %v1922, %v1540
        %v1924 = vadd.f32 %v1923, %v1541
        %v1925 = vadd.f32 %v1924, %v1542
        %v1926 = vadd.f32 %v1925, %v1543
        %v1927 = vadd.f32 %v1926, %v1544
        %v1928 = vadd.f32 %v1927, %v1545
        %v1929 = vadd.f32 %v1928, %v1546
        %v1930 = vadd.f32 %v1929, %v1547
        %v1931 = vadd.f32 %v1930, %v1548
        %v1932 = vadd.f32 %v1931, %v1549
        %v1933 = vadd.f32 %v1932, %v1550
        %v1934 = vadd.f32 %v1933, %v1551
        %v1935 = vadd.f32 %v1934, %v1552
        %v1936 = vadd.f32 %v1935, %v1553
        %v1937 = vadd.f32 %v1936, %v1554
        %v1938 = vadd.f32 %v1937, %v1555
        %v1939 = vadd.f32 %v1938, %v1556
        %v1940 = vadd.f32 %v1939, %v1557
        %v1941 = vadd.f32 %v1940, %v1558
        %v1942 = vadd.f32 %v1941, %v1559
        %v1943 = vadd.f32 %v1942, %v1560
        %v1944 = vadd.f32 %v1943, %v1561
        %v1945 = vadd.f32 %v1944, %v1562
        %v1946 = vadd.f32 %v1945, %v1563
        %v1947 = vadd.f32 %v1946, %v1564
        %v1948 = vadd.f32 %v1947, %v1565
        %v1949 = vadd.f32 %v1948, %v1566
        %v1950 = vadd.f32 %v1949, %v1567
        %v1951 = vadd.f32 %v1950, %v1568
        %v1952 = vadd.f32 %v1951, %v1569
        %v1953 = vadd.f32 %v1952, %v1570
        %v1954 = vadd.f32 %v1953, %v1571
        %v1955 = vadd.f32 %v1954, %v1572
        %v1956 = vadd.f32 %v1955, %v1573
        %v1957 = vadd.f32 %v1956, %v1574
        %v1958 = vadd.f32 %v1957, %v1575
        %v1959 = vadd.f32 %v1958, %v1576
        %v1960 = vadd.f32 %v1959, %v1577
        %v1961 = vadd.f32 %v1960, %v1578
        %v1962 = vadd.f32 %v1961, %v1579
        %v1963 = vadd.f32 %v1962, %v1580
        %v1964 = vadd.f32 %v1963, %v1581
        %v1965 = vadd.f32 %v1964, %v1582
        %v1966 = vadd.f32 %v1965, %v1583
        %v1967 = vadd.f32 %v1966, %v1584
        %v1968 = vadd.f32 %v1967, %v1585
        %v1969 = vadd.f32 %v1968, %v1586
        %v1970 = vadd.f32 %v1969, %v1587
        %v1971 = vadd.f32 %v1970, %v1588
        %v1972 = vadd.f32 %v1971, %v1589
        %v1973 = vadd.f32 %v1972, %v1590
        %v1974 = vadd.f32 %v1973, %v1591
        %v1975 = vadd.f32 %v1974, %v1592
        %v1976 = vadd.f32 %v1975, %v1593
        %v1977 = vadd.f32 %v1976, %v1594
        %v1978 = vadd.f32 %v1977, %v1595
        %v1979 = vadd.f32 %v1978, %v1596
        %v1980 = vadd.f32 %v1979, %v1597
        %v1981 = vadd.f32 %v1980, %v1598
        %v1982 = vadd.f32 %v1981, %v1599
        %v1983 = vadd.f32 %v1982, %v1600
        %v1984 = vadd.f32 %v1983, %v1601
        %v1985 = vrot.slane %v1984, 4
        %v1986 = vadd.f32 %v1984, %v1985
        %v1987 = vrot.slane %v1986, 2
        %v1988 = vadd.f32 %v1986, %v1987
        %v1989 = vrot.slane %v1988, 1
        %v1990 = vadd.f32 %v1988, %v1989
        %1991 = vst [vmem:[%s297] sm:$0x1] %v1990
        %v1992 = vmul.f32 %v1538, %v1538
        %v1993 = vmul.f32 %v1539, %v1539
        %v1994 = vmul.f32 %v1540, %v1540
        %v1995 = vmul.f32 %v1541, %v1541
        %v1996 = vmul.f32 %v1542, %v1542
        %v1997 = vmul.f32 %v1543, %v1543
        %v1998 = vmul.f32 %v1544, %v1544
        %v1999 = vmul.f32 %v1545, %v1545
        %v2000 = vmul.f32 %v1546, %v1546
        %v2001 = vmul.f32 %v1547, %v1547
        %v2002 = vmul.f32 %v1548, %v1548
        %v2003 = vmul.f32 %v1549, %v1549
        %v2004 = vmul.f32 %v1550, %v1550
        %v2005 = vmul.f32 %v1551, %v1551
        %v2006 = vmul.f32 %v1552, %v1552
        %v2007 = vmul.f32 %v1553, %v1553
        %v2008 = vmul.f32 %v1554, %v1554
        %v2009 = vmul.f32 %v1555, %v1555
        %v2010 = vmul.f32 %v1556, %v1556
        %v2011 = vmul.f32 %v1557, %v1557
        %v2012 = vmul.f32 %v1558, %v1558
        %v2013 = vmul.f32 %v1559, %v1559
        %v2014 = vmul.f32 %v1560, %v1560
        %v2015 = vmul.f32 %v1561, %v1561
        %v2016 = vmul.f32 %v1562, %v1562
        %v2017 = vmul.f32 %v1563, %v1563
        %v2018 = vmul.f32 %v1564, %v1564
        %v2019 = vmul.f32 %v1565, %v1565
        %v2020 = vmul.f32 %v1566, %v1566
        %v2021 = vmul.f32 %v1567, %v1567
        %v2022 = vmul.f32 %v1568, %v1568
        %v2023 = vmul.f32 %v1569, %v1569
        %v2024 = vmul.f32 %v1570, %v1570
        %v2025 = vmul.f32 %v1571, %v1571
        %v2026 = vmul.f32 %v1572, %v1572
        %v2027 = vmul.f32 %v1573, %v1573
        %v2028 = vmul.f32 %v1574, %v1574
        %v2029 = vmul.f32 %v1575, %v1575
        %v2030 = vmul.f32 %v1576, %v1576
        %v2031 = vmul.f32 %v1577, %v1577
        %v2032 = vmul.f32 %v1578, %v1578
        %v2033 = vmul.f32 %v1579, %v1579
        %v2034 = vmul.f32 %v1580, %v1580
        %v2035 = vmul.f32 %v1581, %v1581
        %v2036 = vmul.f32 %v1582, %v1582
        %v2037 = vmul.f32 %v1583, %v1583
        %v2038 = vmul.f32 %v1584, %v1584
        %v2039 = vmul.f32 %v1585, %v1585
        %v2040 = vmul.f32 %v1586, %v1586
        %v2041 = vmul.f32 %v1587, %v1587
        %v2042 = vmul.f32 %v1588, %v1588
        %v2043 = vmul.f32 %v1589, %v1589
        %v2044 = vmul.f32 %v1590, %v1590
        %v2045 = vmul.f32 %v1591, %v1591
        %v2046 = vmul.f32 %v1592, %v1592
        %v2047 = vmul.f32 %v1593, %v1593
        %v2048 = vmul.f32 %v1594, %v1594
        %v2049 = vmul.f32 %v1595, %v1595
        %v2050 = vmul.f32 %v1596, %v1596
        %v2051 = vmul.f32 %v1597, %v1597
        %v2052 = vmul.f32 %v1598, %v1598
        %v2053 = vmul.f32 %v1599, %v1599
        %v2054 = vmul.f32 %v1600, %v1600
        %v2055 = vmul.f32 %v1601, %v1601
        %v2056 = vadd.f32 %v1992, %v1993
        %v2057 = vadd.f32 %v2056, %v1994
        %v2058 = vadd.f32 %v2057, %v1995
        %v2059 = vadd.f32 %v2058, %v1996
        %v2060 = vadd.f32 %v2059, %v1997
        %v2061 = vadd.f32 %v2060, %v1998
        %v2062 = vadd.f32 %v2061, %v1999
        %v2063 = vadd.f32 %v2062, %v2000
        %v2064 = vadd.f32 %v2063, %v2001
        %v2065 = vadd.f32 %v2064, %v2002
        %v2066 = vadd.f32 %v2065, %v2003
        %v2067 = vadd.f32 %v2066, %v2004
        %v2068 = vadd.f32 %v2067, %v2005
        %v2069 = vadd.f32 %v2068, %v2006
        %v2070 = vadd.f32 %v2069, %v2007
        %v2071 = vadd.f32 %v2070, %v2008
        %v2072 = vadd.f32 %v2071, %v2009
        %v2073 = vadd.f32 %v2072, %v2010
        %v2074 = vadd.f32 %v2073, %v2011
        %v2075 = vadd.f32 %v2074, %v2012
        %v2076 = vadd.f32 %v2075, %v2013
        %v2077 = vadd.f32 %v2076, %v2014
        %v2078 = vadd.f32 %v2077, %v2015
        %v2079 = vadd.f32 %v2078, %v2016
        %v2080 = vadd.f32 %v2079, %v2017
        %v2081 = vadd.f32 %v2080, %v2018
        %v2082 = vadd.f32 %v2081, %v2019
        %v2083 = vadd.f32 %v2082, %v2020
        %v2084 = vadd.f32 %v2083, %v2021
        %v2085 = vadd.f32 %v2084, %v2022
        %v2086 = vadd.f32 %v2085, %v2023
        %v2087 = vadd.f32 %v2086, %v2024
        %v2088 = vadd.f32 %v2087, %v2025
        %v2089 = vadd.f32 %v2088, %v2026
        %v2090 = vadd.f32 %v2089, %v2027
        %v2091 = vadd.f32 %v2090, %v2028
        %v2092 = vadd.f32 %v2091, %v2029
        %v2093 = vadd.f32 %v2092, %v2030
        %v2094 = vadd.f32 %v2093, %v2031
        %v2095 = vadd.f32 %v2094, %v2032
        %v2096 = vadd.f32 %v2095, %v2033
        %v2097 = vadd.f32 %v2096, %v2034
        %v2098 = vadd.f32 %v2097, %v2035
        %v2099 = vadd.f32 %v2098, %v2036
        %v2100 = vadd.f32 %v2099, %v2037
        %v2101 = vadd.f32 %v2100, %v2038
        %v2102 = vadd.f32 %v2101, %v2039
        %v2103 = vadd.f32 %v2102, %v2040
        %v2104 = vadd.f32 %v2103, %v2041
        %v2105 = vadd.f32 %v2104, %v2042
        %v2106 = vadd.f32 %v2105, %v2043
        %v2107 = vadd.f32 %v2106, %v2044
        %v2108 = vadd.f32 %v2107, %v2045
        %v2109 = vadd.f32 %v2108, %v2046
        %v2110 = vadd.f32 %v2109, %v2047
        %v2111 = vadd.f32 %v2110, %v2048
        %v2112 = vadd.f32 %v2111, %v2049
        %v2113 = vadd.f32 %v2112, %v2050
        %v2114 = vadd.f32 %v2113, %v2051
        %v2115 = vadd.f32 %v2114, %v2052
        %v2116 = vadd.f32 %v2115, %v2053
        %v2117 = vadd.f32 %v2116, %v2054
        %v2118 = vadd.f32 %v2117, %v2055
        %v2119 = vrot.slane %v2118, 4
        %v2120 = vadd.f32 %v2118, %v2119
        %v2121 = vrot.slane %v2120, 2
        %v2122 = vadd.f32 %v2120, %v2121
        %v2123 = vrot.slane %v2122, 1
        %v2124 = vadd.f32 %v2122, %v2123
        %2125 = vst [vmem:[%s297 + $0x1] sm:$0x1] %v2124
        %s2126 = sand.u32 %s118, 1
        %s2127 = scalar_lea.sflag [#allocation4], %s2126
        %s2128 = sand.u32 %s118, 1
        %s2129 = smul.addr %s2128, 256
        %s2130 = scalar_lea.vmem [#allocation8], %s2129
        %s2131 = sand.u32 %s146, 1
        %s2132 = scalar_lea.sflag [#allocation10], %s2131
        %s2133 = sand.u32 %s146, 1
        %s2134 = smul.addr %s2133, 2
        %s2135 = scalar_lea.vmem [#allocation9], %s2134
        // Predicated region
        $region45: #{decoder_cbn2_forward.8} parent=31 // pred_check
          %p2136 = pneg %p128
        $region46: #{decoder_cbn2_forward.8} parent=31 // pred_check_branch
          %2138 = sbr.rel (%p2136) target = $region48
        $region47: #{decoder_cbn2_forward.8} parent=31 // pred_region
          #allocation14 [shape = 'u32[6]{0}', space=smem, size = 0x18, scoped, tag = 'DMA stride descriptor']
          %s2139 = smul.u32 2, %s30
          %s2140 = smul.u32 32, %s31
          %s2142 = ssub.s32 4096, 4096
          %2143 = vsyncadd %s2127, %s2142
          %s2144 = smul.addr %s2139, 256
          %s2145 = sadd.s32 %s2140, %s2144
          %s2146 = smul.addr %s2145, 64
          %s2147 = scalar_lea.hbm %s3, %s2146
          %s2149 = sshll.u32 1, 14
          %s2150 = sxor.u32 4294967295, %s2149
          %s2153 = sshll.u32 7, 18
          %s2154 = sxor.u32 4294967295, %s2153
          %s2155 = sand.u32 0, %s2154
          %s2157 = sor.u32 %s2155, 0
          %s2159 = sshll.u32 3, 24
          %s2160 = sxor.u32 4294967295, %s2159
          %s2161 = sand.u32 %s2157, %s2160
          %s2163 = sor.u32 %s2161, 0
          %s2164 = sshll.u32 %s2130, 4
          %s2165 = int_to_ptr.vmem [resolvable:$true] %s2164
          %2171 = sst [smem:[#allocation14]] 2048
          %s2172 = scalar_lea.smem [#allocation14], 1
          %2173 = sst [smem:[%s2172]] 16384
          %s2174 = scalar_lea.smem [#allocation14], 2
          %2175 = sst [smem:[%s2174]] 32
          %s2176 = scalar_lea.smem [#allocation14], 3
          %2177 = sst [smem:[%s2176]] 64
          %s2178 = scalar_lea.smem [#allocation14], 4
          %2179 = sst [smem:[%s2178]] 64
          %s2180 = scalar_lea.smem [#allocation14], 5
          %2181 = sst [smem:[%s2180]] 4
          %2183 = dma.general %s2165, 4096, %s2147, %s2127, [#allocation13], [#allocation14], %s2163, 0
        $region48: #{decoder_cbn2_forward.8} parent=31 // pred_fallthru
          _
        // Predicated region
        $region49: #{decoder_cbn2_forward.8} parent=31 // pred_check
          %p2184 = pneg %p156
        $region50: #{decoder_cbn2_forward.8} parent=31 // pred_check_branch
          %2186 = sbr.rel (%p2184) target = $region52
        $region51: #{decoder_cbn2_forward.8} parent=31 // pred_region
          %s2188 = ssub.s32 32, 32
          %2189 = vsyncadd %s2132, %s2188
          %s2190 = smul.addr %s30, 8
          %s2191 = sadd.s32 %s31, %s2190
          %s2192 = smul.addr %s2191, 32
          %s2193 = scalar_lea.hbm %s4, %s2192
          %s2195 = sshll.u32 %s2135, 4
          %s2196 = int_to_ptr.vmem [resolvable:$true] %s2195
          %2198 = dma.vmem_to_hbm [thread:$0]  %s2196, 32, %s2193, %s2132
        $region52: #{decoder_cbn2_forward.8} parent=31 // pred_fallthru
          _
      $region32: #{decoder_cbn2_forward.8} parent=5 // pred_fallthru
        _
      %p2199 = scmp.le.s32.totalorder 2, %s21
      // Predicated region
      $region53: #{decoder_cbn2_forward.8} parent=5 // pred_check
        %p2200 = pneg %p2199
      $region54: #{decoder_cbn2_forward.8} parent=5 // pred_check_branch
        %2202 = sbr.rel (%p2200) target = $region56
      $region55: #{decoder_cbn2_forward.8} parent=5 // pred_region
        %s2203 = ssub.s32 %s21, 2
        // Predicated region
        $region57: #{decoder_cbn2_forward.8} parent=55 // pred_check
          %p2204 = pneg %p134
        $region58: #{decoder_cbn2_forward.8} parent=55 // pred_check_branch
          %2206 = sbr.rel (%p2204) target = $region60
        $region59: #{decoder_cbn2_forward.8} parent=55 // pred_region
          %s2207 = sand.u32 %s119, 1
          %s2208 = scalar_lea.sflag [#allocation4], %s2207
          %s2209 = sand.u32 %s119, 1
          %s2210 = smul.addr %s2209, 256
          %s2211 = scalar_lea.vmem [#allocation8], %s2210
          %2212 = dma.done %s2208, 4096
        $region60: #{decoder_cbn2_forward.8} parent=55 // pred_fallthru
          _
        // Predicated region
        $region61: #{decoder_cbn2_forward.8} parent=55 // pred_check
          %p2213 = pneg %p162
        $region62: #{decoder_cbn2_forward.8} parent=55 // pred_check_branch
          %2215 = sbr.rel (%p2213) target = $region64
        $region63: #{decoder_cbn2_forward.8} parent=55 // pred_region
          %s2216 = sand.u32 %s147, 1
          %s2217 = scalar_lea.sflag [#allocation10], %s2216
          %s2218 = sand.u32 %s147, 1
          %s2219 = smul.addr %s2218, 2
          %s2220 = scalar_lea.vmem [#allocation9], %s2219
          %2221 = dma.done %s2217, 32
        $region64: #{decoder_cbn2_forward.8} parent=55 // pred_fallthru
          _
      $region56: #{decoder_cbn2_forward.8} parent=5 // pred_fallthru
        _
    $region6: #{decoder_cbn2_forward.8} parent=1 // loop_footer
      %s25 = sadd.s32 1, %s21
    $region7: #{decoder_cbn2_forward.8} parent=1 // loop_footer_branch
      %20 = sbr.rel target = $region3
    $region8: #{decoder_cbn2_forward.8} parent=1 // loop_exit
      _
    %2222 = vsyncpa [#allocation3], 1
    %s2223 = scalar_lea.sflag [#allocation3], 1
    %2224 = vsyncpa %s2223, 1
    %2225 = vsyncpa [#allocation6], 1
    %2226 = vsyncpa [#allocation4], 1
    %s2227 = scalar_lea.sflag [#allocation4], 1
    %2228 = vsyncpa %s2227, 1
    %2229 = vsyncpa [#allocation10], 1
    %s2230 = scalar_lea.sflag [#allocation10], 1
    %2231 = vsyncpa %s2230, 1

// kernel: decoder_cbn2_forward.10
$region0: #{decoder_cbn2_forward.10}
  #allocation0 [shape = 'u32[]', space=smem, size = 0x4, offset = 0x4, fixed_abs, tag = 'smem constant byte address 0x4 - core index']
  #allocation1 [shape = 'u32[144,128]{1,0:T(1,128)}', space=vmem, size = 0x12000, scoped, tag = 'internal scratch']
  #allocation16 [shape = 's32[]', space=sflag, size = 0x4, offset = 0, fixed_abs, tag = 'sflag constant byte address 0x0 - dummy sync flag']
  #allocation18 [shape = 's32[]', space=sflag, size = 0x4, offset = 0, fixed_abs, tag = 'sflag constant byte address 0x0 - dummy sync flag']
  #allocation20 [shape = 's32[]', space=sflag, size = 0x4, offset = 0, fixed_abs, tag = 'sflag constant byte address 0x0 - dummy sync flag']
  %s0 = inlined_call_operand.hbm [shape: bf16[2,2048,128], index: 0, kind: input, shape index: {}]
  %s1 = inlined_call_operand.hbm [shape: bf16[2,2048,128], index: 1, kind: input, shape index: {}, may-alias: {1,6}]
  %s2 = inlined_call_operand.hbm [shape: f32[2,128], index: 2, kind: input, shape index: {}]
  %s3 = inlined_call_operand.hbm [shape: f32[2,128], index: 3, kind: input, shape index: {}]
  %s4 = inlined_call_operand.hbm [shape: bf16[128,128], index: 4, kind: input, shape index: {}]
  %s5 = inlined_call_operand.hbm [shape: f32[1,128], index: 5, kind: input, shape index: {}]
  %s6 = inlined_call_operand.hbm [shape: bf16[2,2048,128], index: 6, kind: output, shape index: {0}, may-alias: {1,6}]
  %s7 = inlined_call_operand.hbm [shape: f32[1,8,2,128], index: 7, kind: output, shape index: {1}]
  %8 = xla_tuple %s6, %s7
  %s9 = sld [smem:[#allocation0]]
  $region89: #{decoder_cbn2_forward.10} parent=0
    _
  %s11 = ssub.s32 1, %s9
  %s12 = scalar_select 0, %s11, %s9
  $region1: #{decoder_cbn2_forward.10} parent=0
    #allocation2 [shape = 'u8[262144]{0}', space=vmem, size = 0x40000, scoped, tag = 'input window, operand 0']
    #allocation3 [shape = 's32[2]{0}', space=sflag, size = 0x8, scoped, tag = 'scoped memory for decoder_cbn2_forward.10']
    #allocation4 [shape = 's32[2]{0}', space=sflag, size = 0x8, scoped, tag = 'scoped memory for decoder_cbn2_forward.10']
    #allocation5 [shape = 'u8[262144]{0}', space=vmem, size = 0x40000, scoped, tag = 'input window, operand 1']
    #allocation6 [shape = 's32[2]{0}', space=sflag, size = 0x8, scoped, tag = 'scoped memory for decoder_cbn2_forward.10']
    #allocation7 [shape = 'u8[1024]{0}', space=vmem, size = 0x400, scoped, tag = 'input window, operand 2, single buffered']
    #allocation8 [shape = 'u8[1024]{0}', space=vmem, size = 0x400, scoped, tag = 'input window, operand 3, single buffered']
    #allocation9 [shape = 's32[1]{0}', space=sflag, size = 0x4, scoped, tag = 'scoped memory for decoder_cbn2_forward.10']
    #allocation10 [shape = 'u8[32768]{0}', space=vmem, size = 0x8000, scoped, tag = 'input window, operand 4, single buffered']
    #allocation11 [shape = 'u8[512]{0}', space=vmem, size = 0x400, scoped, tag = 'input window, operand 5, single buffered']
    #allocation12 [shape = 's32[1]{0}', space=sflag, size = 0x4, scoped, tag = 'scoped memory for decoder_cbn2_forward.10']
    #allocation13 [shape = 'u8[262144]{0}', space=vmem, size = 0x40000, scoped, tag = 'output window, operand 0']
    #allocation14 [shape = 'u8[2048]{0}', space=vmem, size = 0x800, scoped, tag = 'output window, operand 1']
    #allocation15 [shape = 's32[2]{0}', space=sflag, size = 0x8, scoped, tag = 'scoped memory for decoder_cbn2_forward.10']
    %13 = vsyncpa [#allocation3], 0
    %s14 = scalar_lea.sflag [#allocation3], 1
    %15 = vsyncpa %s14, 0
    %16 = vsyncpa [#allocation6], 0
    %s17 = scalar_lea.sflag [#allocation6], 1
    %18 = vsyncpa %s17, 0
    %19 = vsyncpa [#allocation9], 0
    %20 = vsyncpa [#allocation12], 0
    %21 = vsyncpa [#allocation4], 0
    %s22 = scalar_lea.sflag [#allocation4], 1
    %23 = vsyncpa %s22, 0
    %24 = vsyncpa [#allocation15], 0
    %s25 = scalar_lea.sflag [#allocation15], 1
    %26 = vsyncpa %s25, 0
    loop: start=0, step=1, limit=10
    $region2: #{decoder_cbn2_forward.10} parent=1 // loop_pre_header
      _
    $region3: #{decoder_cbn2_forward.10} parent=1 // loop_header
      %s28 = sphi 0, %s32
      %p29 = scmp.ge.s32.totalorder %s28, 10
      %s35 = sphi 0, %s47
      %s36 = sphi 0, %s43
      %s37 = sphi 0, %s35
      %s38 = sphi 0, %s36
      %s39 = sphi 0, %s37
      %s40 = sphi 0, %s38
      %s52 = sphi 0, %s54
      %s55 = sphi 0, %s52
      %s56 = sphi 0, %s55
      %s72 = sphi 0, %s56
      %s80 = sphi 0, %s82
      %s83 = sphi 0, %s80
      %s84 = sphi 0, %s83
      %s100 = sphi 0, %s84
      %s106 = sphi 0, %s108
      %s109 = sphi 0, %s106
      %s110 = sphi 0, %s109
      %s126 = sphi 0, %s110
      %s132 = sphi 0, %s134
      %s135 = sphi 0, %s132
      %s136 = sphi 0, %s135
      %s152 = sphi 0, %s136
      %s156 = sphi 0, %s156
      %s158 = sphi 0, %s156
      %s159 = sphi 0, %s158
      %s173 = sphi 0, %s159
      %s177 = sphi 0, %s177
      %s179 = sphi 0, %s177
      %s180 = sphi 0, %s179
      %s194 = sphi 0, %s180
      %s202 = sphi 0, %s204
      %s205 = sphi 0, %s202
      %s206 = sphi 0, %s205
      %s222 = sphi 0, %s206
      %s230 = sphi 0, %s232
      %s233 = sphi 0, %s230
      %s234 = sphi 0, %s233
      %s250 = sphi 0, %s234
    $region4: #{decoder_cbn2_forward.10} parent=1 // loop_header_branch
      %31 = sbr.rel (%p29) target = $region8
    $region5: #{decoder_cbn2_forward.10} parent=1 // loop_body
      %s33 = ssub.s32 %s28, 1
      %s34 = ssub.s32 %s28, 2
      %s41 = sadd.s32 1, %s36
      %p42 = scmp.ge.s32.totalorder %s41, 8
      %s43 = scalar_select %p42, 0, %s41
      %s44 = sadd.s32 1, %s35
      %s45 = scalar_select %p42, %s44, %s35
      %p46 = scmp.ge.s32.totalorder %s45, 1
      %s47 = scalar_select %p46, 0, %s45
      %s48 = ssub.s32 %s35, %s47
      %s49 = ssub.s32 %s36, %s43
      %s50 = sor.u32 %s48, %s49
      %p51 = scmp.eq.s32.totalorder %s50, 0
      %s53 = sadd.s32 %s52, 1
      %s54 = scalar_select %p51, %s52, %s53
      %p57 = pneg %p51
      %p58 = scmp.eq.s32.totalorder %s28, 7
      %p59 = por %p57, %p58
      %p60 = scmp.ne.s32.totalorder %s52, %s55
      %p61 = scmp.eq.s32.totalorder %s28, 0
      %p62 = por %p60, %p61
      %p63 = scmp.ne.s32.totalorder %s52, %s55
      %p64 = scmp.eq.s32.totalorder %s33, 7
      %p65 = por %p63, %p64
      %p66 = scmp.ne.s32.totalorder %s55, %s56
      %p67 = scmp.eq.s32.totalorder %s33, 0
      %p68 = por %p66, %p67
      %p69 = scmp.ne.s32.totalorder %s55, %s56
      %p70 = scmp.eq.s32.totalorder %s34, 7
      %p71 = por %p69, %p70
      %p73 = scmp.ne.s32.totalorder %s56, %s72
      %p74 = scmp.eq.s32.totalorder %s34, 0
      %p75 = por %p73, %p74
      %s76 = ssub.s32 %s35, %s47
      %s77 = ssub.s32 %s36, %s43
      %s78 = sor.u32 %s76, %s77
      %p79 = scmp.eq.s32.totalorder %s78, 0
      %s81 = sadd.s32 %s80, 1
      %s82 = scalar_select %p79, %s80, %s81
      %p85 = pneg %p79
      %p86 = scmp.eq.s32.totalorder %s28, 7
      %p87 = por %p85, %p86
      %p88 = scmp.ne.s32.totalorder %s80, %s83
      %p89 = scmp.eq.s32.totalorder %s28, 0
      %p90 = por %p88, %p89
      %p91 = scmp.ne.s32.totalorder %s80, %s83
      %p92 = scmp.eq.s32.totalorder %s33, 7
      %p93 = por %p91, %p92
      %p94 = scmp.ne.s32.totalorder %s83, %s84
      %p95 = scmp.eq.s32.totalorder %s33, 0
      %p96 = por %p94, %p95
      %p97 = scmp.ne.s32.totalorder %s83, %s84
      %p98 = scmp.eq.s32.totalorder %s34, 7
      %p99 = por %p97, %p98
      %p101 = scmp.ne.s32.totalorder %s84, %s100
      %p102 = scmp.eq.s32.totalorder %s34, 0
      %p103 = por %p101, %p102
      %s104 = ssub.s32 %s35, %s47
      %p105 = scmp.eq.s32.totalorder %s104, 0
      %s107 = sadd.s32 %s106, 1
      %s108 = scalar_select %p105, %s106, %s107
      %p111 = pneg %p105
      %p112 = scmp.eq.s32.totalorder %s28, 7
      %p113 = por %p111, %p112
      %p114 = scmp.ne.s32.totalorder %s106, %s109
      %p115 = scmp.eq.s32.totalorder %s28, 0
      %p116 = por %p114, %p115
      %p117 = scmp.ne.s32.totalorder %s106, %s109
      %p118 = scmp.eq.s32.totalorder %s33, 7
      %p119 = por %p117, %p118
      %p120 = scmp.ne.s32.totalorder %s109, %s110
      %p121 = scmp.eq.s32.totalorder %s33, 0
      %p122 = por %p120, %p121
      %p123 = scmp.ne.s32.totalorder %s109, %s110
      %p124 = scmp.eq.s32.totalorder %s34, 7
      %p125 = por %p123, %p124
      %p127 = scmp.ne.s32.totalorder %s110, %s126
      %p128 = scmp.eq.s32.totalorder %s34, 0
      %p129 = por %p127, %p128
      %s130 = ssub.s32 %s35, %s47
      %p131 = scmp.eq.s32.totalorder %s130, 0
      %s133 = sadd.s32 %s132, 1
      %s134 = scalar_select %p131, %s132, %s133
      %p137 = pneg %p131
      %p138 = scmp.eq.s32.totalorder %s28, 7
      %p139 = por %p137, %p138
      %p140 = scmp.ne.s32.totalorder %s132, %s135
      %p141 = scmp.eq.s32.totalorder %s28, 0
      %p142 = por %p140, %p141
      %p143 = scmp.ne.s32.totalorder %s132, %s135
      %p144 = scmp.eq.s32.totalorder %s33, 7
      %p145 = por %p143, %p144
      %p146 = scmp.ne.s32.totalorder %s135, %s136
      %p147 = scmp.eq.s32.totalorder %s33, 0
      %p148 = por %p146, %p147
      %p149 = scmp.ne.s32.totalorder %s135, %s136
      %p150 = scmp.eq.s32.totalorder %s34, 7
      %p151 = por %p149, %p150
      %p153 = scmp.ne.s32.totalorder %s136, %s152
      %p154 = scmp.eq.s32.totalorder %s34, 0
      %p155 = por %p153, %p154
      %s157 = sadd.s32 %s156, 1
      %p160 = scmp.eq.s32.totalorder %s28, 7
      %p161 = scmp.ne.s32.totalorder %s156, %s158
      %p162 = scmp.eq.s32.totalorder %s28, 0
      %p163 = por %p161, %p162
      %p164 = scmp.ne.s32.totalorder %s156, %s158
      %p165 = scmp.eq.s32.totalorder %s33, 7
      %p166 = por %p164, %p165
      %p167 = scmp.ne.s32.totalorder %s158, %s159
      %p168 = scmp.eq.s32.totalorder %s33, 0
      %p169 = por %p167, %p168
      %p170 = scmp.ne.s32.totalorder %s158, %s159
      %p171 = scmp.eq.s32.totalorder %s34, 7
      %p172 = por %p170, %p171
      %p174 = scmp.ne.s32.totalorder %s159, %s173
      %p175 = scmp.eq.s32.totalorder %s34, 0
      %p176 = por %p174, %p175
      %s178 = sadd.s32 %s177, 1
      %p181 = scmp.eq.s32.totalorder %s28, 7
      %p182 = scmp.ne.s32.totalorder %s177, %s179
      %p183 = scmp.eq.s32.totalorder %s28, 0
      %p184 = por %p182, %p183
      %p185 = scmp.ne.s32.totalorder %s177, %s179
      %p186 = scmp.eq.s32.totalorder %s33, 7
      %p187 = por %p185, %p186
      %p188 = scmp.ne.s32.totalorder %s179, %s180
      %p189 = scmp.eq.s32.totalorder %s33, 0
      %p190 = por %p188, %p189
      %p191 = scmp.ne.s32.totalorder %s179, %s180
      %p192 = scmp.eq.s32.totalorder %s34, 7
      %p193 = por %p191, %p192
      %p195 = scmp.ne.s32.totalorder %s180, %s194
      %p196 = scmp.eq.s32.totalorder %s34, 0
      %p197 = por %p195, %p196
      %s198 = ssub.s32 %s35, %s47
      %s199 = ssub.s32 %s36, %s43
      %s200 = sor.u32 %s198, %s199
      %p201 = scmp.eq.s32.totalorder %s200, 0
      %s203 = sadd.s32 %s202, 1
      %s204 = scalar_select %p201, %s202, %s203
      %p207 = pneg %p201
      %p208 = scmp.eq.s32.totalorder %s28, 7
      %p209 = por %p207, %p208
      %p210 = scmp.ne.s32.totalorder %s202, %s205
      %p211 = scmp.eq.s32.totalorder %s28, 0
      %p212 = por %p210, %p211
      %p213 = scmp.ne.s32.totalorder %s202, %s205
      %p214 = scmp.eq.s32.totalorder %s33, 7
      %p215 = por %p213, %p214
      %p216 = scmp.ne.s32.totalorder %s205, %s206
      %p217 = scmp.eq.s32.totalorder %s33, 0
      %p218 = por %p216, %p217
      %p219 = scmp.ne.s32.totalorder %s205, %s206
      %p220 = scmp.eq.s32.totalorder %s34, 7
      %p221 = por %p219, %p220
      %p223 = scmp.ne.s32.totalorder %s206, %s222
      %p224 = scmp.eq.s32.totalorder %s34, 0
      %p225 = por %p223, %p224
      %s226 = ssub.s32 %s35, %s47
      %s227 = ssub.s32 %s36, %s43
      %s228 = sor.u32 %s226, %s227
      %p229 = scmp.eq.s32.totalorder %s228, 0
      %s231 = sadd.s32 %s230, 1
      %s232 = scalar_select %p229, %s230, %s231
      %p235 = pneg %p229
      %p236 = scmp.eq.s32.totalorder %s28, 7
      %p237 = por %p235, %p236
      %p238 = scmp.ne.s32.totalorder %s230, %s233
      %p239 = scmp.eq.s32.totalorder %s28, 0
      %p240 = por %p238, %p239
      %p241 = scmp.ne.s32.totalorder %s230, %s233
      %p242 = scmp.eq.s32.totalorder %s33, 7
      %p243 = por %p241, %p242
      %p244 = scmp.ne.s32.totalorder %s233, %s234
      %p245 = scmp.eq.s32.totalorder %s33, 0
      %p246 = por %p244, %p245
      %p247 = scmp.ne.s32.totalorder %s233, %s234
      %p248 = scmp.eq.s32.totalorder %s34, 7
      %p249 = por %p247, %p248
      %p251 = scmp.ne.s32.totalorder %s234, %s250
      %p252 = scmp.eq.s32.totalorder %s34, 0
      %p253 = por %p251, %p252
      %p254 = scmp.le.s32.totalorder 1, %s28
      %p255 = scmp.lt.s32.totalorder %s28, 9
      %p256 = pnand %p254, %p255
      %p257 = pneg %p256
      // Predicated region
      $region9: #{decoder_cbn2_forward.10} parent=5 // pred_check
        _
      $region10: #{decoder_cbn2_forward.10} parent=5 // pred_check_branch
        %259 = sbr.rel (%p256) target = $region12
      $region11: #{decoder_cbn2_forward.10} parent=5 // pred_region
        %s260 = ssub.s32 %s28, 1
        // Predicated region
        $region13: #{decoder_cbn2_forward.10} parent=11 // pred_check
          %p261 = pneg %p122
        $region14: #{decoder_cbn2_forward.10} parent=11 // pred_check_branch
          %263 = sbr.rel (%p261) target = $region16
        $region15: #{decoder_cbn2_forward.10} parent=11 // pred_region
          %s265 = ssub.s32 32, 32
          %266 = vsyncadd [#allocation6], %s265
          %s267 = smul.addr %s37, 32
          %s268 = scalar_lea.hbm %s2, %s267
          %s270 = sshll.u32 [#allocation7], 4
          %s271 = int_to_ptr.vmem [resolvable:$true] %s270
          %273 = dma.hbm_to_vmem [thread:$0]  %s268, 32, %s271, [#allocation6]
        $region16: #{decoder_cbn2_forward.10} parent=11 // pred_fallthru
          _
        // Predicated region
        $region17: #{decoder_cbn2_forward.10} parent=11 // pred_check
          %p274 = pneg %p148
        $region18: #{decoder_cbn2_forward.10} parent=11 // pred_check_branch
          %276 = sbr.rel (%p274) target = $region20
        $region19: #{decoder_cbn2_forward.10} parent=11 // pred_region
          %s278 = ssub.s32 32, 32
          %279 = vsyncadd [#allocation9], %s278
          %s280 = smul.addr %s37, 32
          %s281 = scalar_lea.hbm %s3, %s280
          %s283 = sshll.u32 [#allocation8], 4
          %s284 = int_to_ptr.vmem [resolvable:$true] %s283
          %286 = dma.hbm_to_vmem [thread:$0]  %s281, 32, %s284, [#allocation9]
        $region20: #{decoder_cbn2_forward.10} parent=11 // pred_fallthru
          _
        // Predicated region
        $region21: #{decoder_cbn2_forward.10} parent=11 // pred_check
          %p287 = pneg %p169
        $region22: #{decoder_cbn2_forward.10} parent=11 // pred_check_branch
          %289 = sbr.rel (%p287) target = $region24
        $region23: #{decoder_cbn2_forward.10} parent=11 // pred_region
          %s291 = ssub.s32 1024, 1024
          %292 = vsyncadd [#allocation9], %s291
          %s293 = sshll.u32 [#allocation10], 4
          %s294 = int_to_ptr.vmem [resolvable:$true] %s293
          %299 = dma.hbm_to_vmem [thread:$0]  %s4, 1024, %s294, [#allocation9], 64, 64, 4
        $region24: #{decoder_cbn2_forward.10} parent=11 // pred_fallthru
          _
        // Predicated region
        $region25: #{decoder_cbn2_forward.10} parent=11 // pred_check
          %p300 = pneg %p190
        $region26: #{decoder_cbn2_forward.10} parent=11 // pred_check_branch
          %302 = sbr.rel (%p300) target = $region28
        $region27: #{decoder_cbn2_forward.10} parent=11 // pred_region
          %s304 = ssub.s32 16, 16
          %305 = vsyncadd [#allocation12], %s304
          %s307 = sshll.u32 [#allocation11], 4
          %s308 = int_to_ptr.vmem [resolvable:$true] %s307
          %310 = dma.hbm_to_vmem [thread:$0]  %s5, 16, %s308, [#allocation12]
        $region28: #{decoder_cbn2_forward.10} parent=11 // pred_fallthru
          _
      $region12: #{decoder_cbn2_forward.10} parent=5 // pred_fallthru
        _
      %p311 = scmp.lt.s32.totalorder %s28, 8
      // Predicated region
      $region29: #{decoder_cbn2_forward.10} parent=5 // pred_check
        %p312 = pneg %p311
      $region30: #{decoder_cbn2_forward.10} parent=5 // pred_check_branch
        %314 = sbr.rel (%p312) target = $region32
      $region31: #{decoder_cbn2_forward.10} parent=5 // pred_region
        // Predicated region
        $region33: #{decoder_cbn2_forward.10} parent=31 // pred_check
          %p315 = pneg %p62
        $region34: #{decoder_cbn2_forward.10} parent=31 // pred_check_branch
          %317 = sbr.rel (%p315) target = $region36
        $region35: #{decoder_cbn2_forward.10} parent=31 // pred_region
          #allocation17 [shape = 'u32[6]{0}', space=smem, size = 0x18, scoped, tag = 'DMA stride descriptor']
          %s318 = sand.u32 %s52, 1
          %s319 = scalar_lea.sflag [#allocation3], %s318
          %s320 = sand.u32 %s52, 1
          %s321 = smul.addr %s320, 256
          %s322 = scalar_lea.vmem [#allocation2], %s321
          %s323 = smul.u32 2, %s35
          %s324 = smul.u32 32, %s36
          %s326 = ssub.s32 4096, 4096
          %327 = vsyncadd %s319, %s326
          %s328 = smul.addr %s323, 256
          %s329 = sadd.s32 %s324, %s328
          %s330 = smul.addr %s329, 64
          %s331 = scalar_lea.hbm %s0, %s330
          %s333 = sshll.u32 1, 14
          %s334 = sxor.u32 4294967295, %s333
          %s336 = sld [smem:[#allocation0]]
          %s337 = sadd.s32 2, %s336
          %s339 = sshll.u32 7, 26
          %s340 = sxor.u32 4294967295, %s339
          %s341 = sand.u32 0, %s340
          %s342 = sshll.u32 %s337, 26
          %s343 = sor.u32 %s341, %s342
          %s344 = sshll.u32 %s322, 4
          %s345 = int_to_ptr.vmem [resolvable:$true] %s344
          %351 = sst [smem:[#allocation17]] 16384
          %s352 = scalar_lea.smem [#allocation17], 1
          %353 = sst [smem:[%s352]] 2048
          %s354 = scalar_lea.smem [#allocation17], 2
          %355 = sst [smem:[%s354]] 32
          %s356 = scalar_lea.smem [#allocation17], 3
          %357 = sst [smem:[%s356]] 64
          %s358 = scalar_lea.smem [#allocation17], 4
          %359 = sst [smem:[%s358]] 64
          %s360 = scalar_lea.smem [#allocation17], 5
          %361 = sst [smem:[%s360]] 4
          %363 = dma.general %s331, 4096, %s345, %s319, [#allocation16], [#allocation17], %s343, 0
        $region36: #{decoder_cbn2_forward.10} parent=31 // pred_fallthru
          _
        // Predicated region
        $region37: #{decoder_cbn2_forward.10} parent=31 // pred_check
          %p364 = pneg %p90
        $region38: #{decoder_cbn2_forward.10} parent=31 // pred_check_branch
          %366 = sbr.rel (%p364) target = $region40
        $region39: #{decoder_cbn2_forward.10} parent=31 // pred_region
          #allocation19 [shape = 'u32[6]{0}', space=smem, size = 0x18, scoped, tag = 'DMA stride descriptor']
          %s367 = sand.u32 %s28, 1
          %s368 = scalar_lea.sflag [#allocation6], %s367
          %s369 = sand.u32 %s80, 1
          %s370 = smul.addr %s369, 256
          %s371 = scalar_lea.vmem [#allocation5], %s370
          %s372 = smul.u32 2, %s35
          %s373 = smul.u32 32, %s36
          %s375 = ssub.s32 4096, 4096
          %376 = vsyncadd %s368, %s375
          %s377 = smul.addr %s372, 256
          %s378 = sadd.s32 %s373, %s377
          %s379 = smul.addr %s378, 64
          %s380 = scalar_lea.hbm %s1, %s379
          %s382 = sshll.u32 1, 14
          %s383 = sxor.u32 4294967295, %s382
          %s385 = sld [smem:[#allocation0]]
          %s386 = sadd.s32 2, %s385
          %s388 = sshll.u32 7, 26
          %s389 = sxor.u32 4294967295, %s388
          %s390 = sand.u32 0, %s389
          %s391 = sshll.u32 %s386, 26
          %s392 = sor.u32 %s390, %s391
          %s393 = sshll.u32 %s371, 4
          %s394 = int_to_ptr.vmem [resolvable:$true] %s393
          %400 = sst [smem:[#allocation19]] 16384
          %s401 = scalar_lea.smem [#allocation19], 1
          %402 = sst [smem:[%s401]] 2048
          %s403 = scalar_lea.smem [#allocation19], 2
          %404 = sst [smem:[%s403]] 32
          %s405 = scalar_lea.smem [#allocation19], 3
          %406 = sst [smem:[%s405]] 64
          %s407 = scalar_lea.smem [#allocation19], 4
          %408 = sst [smem:[%s407]] 64
          %s409 = scalar_lea.smem [#allocation19], 5
          %410 = sst [smem:[%s409]] 4
          %412 = dma.general %s380, 4096, %s394, %s368, [#allocation18], [#allocation19], %s392, 0
        $region40: #{decoder_cbn2_forward.10} parent=31 // pred_fallthru
          _
      $region32: #{decoder_cbn2_forward.10} parent=5 // pred_fallthru
        _
      %p413 = scmp.le.s32.totalorder 1, %s28
      %p414 = scmp.lt.s32.totalorder %s28, 9
      %p415 = pnand %p413, %p414
      %p416 = pneg %p415
      // Predicated region
      $region41: #{decoder_cbn2_forward.10} parent=5 // pred_check
        _
      $region42: #{decoder_cbn2_forward.10} parent=5 // pred_check_branch
        %418 = sbr.rel (%p415) target = $region44
      $region43: #{decoder_cbn2_forward.10} parent=5 // pred_region
        %s419 = ssub.s32 %s28, 1
        %s420 = sand.u32 %s55, 1
        %s421 = scalar_lea.sflag [#allocation3], %s420
        %s422 = sand.u32 %s55, 1
        %s423 = smul.addr %s422, 256
        %s424 = scalar_lea.vmem [#allocation2], %s423
        // Predicated region
        $region45: #{decoder_cbn2_forward.10} parent=43 // pred_check
          %p425 = pneg %p68
        $region46: #{decoder_cbn2_forward.10} parent=43 // pred_check_branch
          %427 = sbr.rel (%p425) target = $region48
        $region47: #{decoder_cbn2_forward.10} parent=43 // pred_region
          %428 = dma.done %s421, 4096
        $region48: #{decoder_cbn2_forward.10} parent=43 // pred_fallthru
          _
        %s429 = sand.u32 %s33, 1
        %s430 = scalar_lea.sflag [#allocation6], %s429
        %s431 = sand.u32 %s83, 1
        %s432 = smul.addr %s431, 256
        %s433 = scalar_lea.vmem [#allocation5], %s432
        // Predicated region
        $region49: #{decoder_cbn2_forward.10} parent=43 // pred_check
          %p434 = pneg %p96
        $region50: #{decoder_cbn2_forward.10} parent=43 // pred_check_branch
          %436 = sbr.rel (%p434) target = $region52
        $region51: #{decoder_cbn2_forward.10} parent=43 // pred_region
          %437 = dma.done %s430, 4096
        $region52: #{decoder_cbn2_forward.10} parent=43 // pred_fallthru
          _
        // Predicated region
        $region53: #{decoder_cbn2_forward.10} parent=43 // pred_check
          %p438 = pneg %p122
        $region54: #{decoder_cbn2_forward.10} parent=43 // pred_check_branch
          %440 = sbr.rel (%p438) target = $region56
        $region55: #{decoder_cbn2_forward.10} parent=43 // pred_region
          %441 = dma.done [#allocation6], 32
        $region56: #{decoder_cbn2_forward.10} parent=43 // pred_fallthru
          _
        // Predicated region
        $region57: #{decoder_cbn2_forward.10} parent=43 // pred_check
          %p442 = pneg %p148
        $region58: #{decoder_cbn2_forward.10} parent=43 // pred_check_branch
          %444 = sbr.rel (%p442) target = $region60
        $region59: #{decoder_cbn2_forward.10} parent=43 // pred_region
          %445 = dma.done [#allocation9], 32
        $region60: #{decoder_cbn2_forward.10} parent=43 // pred_fallthru
          _
        // Predicated region
        $region61: #{decoder_cbn2_forward.10} parent=43 // pred_check
          %p446 = pneg %p169
        $region62: #{decoder_cbn2_forward.10} parent=43 // pred_check_branch
          %448 = sbr.rel (%p446) target = $region64
        $region63: #{decoder_cbn2_forward.10} parent=43 // pred_region
          %449 = dma.done [#allocation9], 1024
        $region64: #{decoder_cbn2_forward.10} parent=43 // pred_fallthru
          _
        // Predicated region
        $region65: #{decoder_cbn2_forward.10} parent=43 // pred_check
          %p450 = pneg %p190
        $region66: #{decoder_cbn2_forward.10} parent=43 // pred_check_branch
          %452 = sbr.rel (%p450) target = $region68
        $region67: #{decoder_cbn2_forward.10} parent=43 // pred_region
          %453 = dma.done [#allocation12], 16
        $region68: #{decoder_cbn2_forward.10} parent=43 // pred_fallthru
          _
        %s454 = sand.u32 %s55, 1
        %s455 = scalar_lea.sflag [#allocation3], %s454
        %s456 = sand.u32 %s55, 1
        %s457 = smul.addr %s456, 256
        %s458 = scalar_lea.vmem [#allocation2], %s457
        %p459 = pneg %p68
        %p460 = pneg %p65
        %s461 = sand.u32 %s33, 1
        %s462 = scalar_lea.sflag [#allocation6], %s461
        %s463 = sand.u32 %s83, 1
        %s464 = smul.addr %s463, 256
        %s465 = scalar_lea.vmem [#allocation5], %s464
        %p466 = pneg %p96
        %p467 = pneg %p93
        %p468 = pneg %p122
        %p469 = pneg %p119
        %p470 = pneg %p148
        %p471 = pneg %p145
        %p472 = pneg %p169
        %p473 = pneg %p166
        %p474 = pneg %p190
        %p475 = pneg %p187
        %p476 = pneg %p218
        %p477 = pneg %p215
        %s478 = sand.u32 %s205, 1
        %s479 = scalar_lea.sflag [#allocation4], %s478
        %s480 = sand.u32 %s205, 1
        %s481 = smul.addr %s480, 256
        %s482 = scalar_lea.vmem [#allocation13], %s481
        %p483 = pneg %p246
        %p484 = pneg %p243
        %s485 = sand.u32 %s233, 1
        %s486 = scalar_lea.sflag [#allocation15], %s485
        %s487 = sand.u32 %s233, 1
        %s488 = smul.addr %s487, 2
        %s489 = scalar_lea.vmem [#allocation14], %s488
        %s490 = smul.u32 2, %s37
        %s491 = smul.u32 32, %s38
        %s492 = smul.u32 2, %s37
        %s493 = smul.u32 32, %s38
        %s494 = smul.u32 2, %s37
        %s495 = smul.u32 32, %s38
        %v497 = vld [vmem:[%s424] sm:$0xf]
        %v498 = vld [vmem:[%s424 + $0x4] sm:$0xf]
        %v499 = vld [vmem:[%s424 + $0x8] sm:$0xf]
        %v500 = vld [vmem:[%s424 + $0xc] sm:$0xf]
        %v501 = vld [vmem:[%s424 + $0x10] sm:$0xf]
        %v502 = vld [vmem:[%s424 + $0x14] sm:$0xf]
        %v503 = vld [vmem:[%s424 + $0x18] sm:$0xf]
        %v504 = vld [vmem:[%s424 + $0x1c] sm:$0xf]
        %v505 = vld [vmem:[%s424 + $0x20] sm:$0xf]
        %v506 = vld [vmem:[%s424 + $0x24] sm:$0xf]
        %v507 = vld [vmem:[%s424 + $0x28] sm:$0xf]
        %v508 = vld [vmem:[%s424 + $0x2c] sm:$0xf]
        %v509 = vld [vmem:[%s424 + $0x30] sm:$0xf]
        %v510 = vld [vmem:[%s424 + $0x34] sm:$0xf]
        %v511 = vld [vmem:[%s424 + $0x38] sm:$0xf]
        %v512 = vld [vmem:[%s424 + $0x3c] sm:$0xf]
        %v513 = vld [vmem:[%s424 + $0x40] sm:$0xf]
        %v514 = vld [vmem:[%s424 + $0x44] sm:$0xf]
        %v515 = vld [vmem:[%s424 + $0x48] sm:$0xf]
        %v516 = vld [vmem:[%s424 + $0x4c] sm:$0xf]
        %v517 = vld [vmem:[%s424 + $0x50] sm:$0xf]
        %v518 = vld [vmem:[%s424 + $0x54] sm:$0xf]
        %v519 = vld [vmem:[%s424 + $0x58] sm:$0xf]
        %v520 = vld [vmem:[%s424 + $0x5c] sm:$0xf]
        %v521 = vld [vmem:[%s424 + $0x60] sm:$0xf]
        %v522 = vld [vmem:[%s424 + $0x64] sm:$0xf]
        %v523 = vld [vmem:[%s424 + $0x68] sm:$0xf]
        %v524 = vld [vmem:[%s424 + $0x6c] sm:$0xf]
        %v525 = vld [vmem:[%s424 + $0x70] sm:$0xf]
        %v526 = vld [vmem:[%s424 + $0x74] sm:$0xf]
        %v527 = vld [vmem:[%s424 + $0x78] sm:$0xf]
        %v528 = vld [vmem:[%s424 + $0x7c] sm:$0xf]
        %v529 = vld [vmem:[%s424 + $0x80] sm:$0xf]
        %v530 = vld [vmem:[%s424 + $0x84] sm:$0xf]
        %v531 = vld [vmem:[%s424 + $0x88] sm:$0xf]
        %v532 = vld [vmem:[%s424 + $0x8c] sm:$0xf]
        %v533 = vld [vmem:[%s424 + $0x90] sm:$0xf]
        %v534 = vld [vmem:[%s424 + $0x94] sm:$0xf]
        %v535 = vld [vmem:[%s424 + $0x98] sm:$0xf]
        %v536 = vld [vmem:[%s424 + $0x9c] sm:$0xf]
        %v537 = vld [vmem:[%s424 + $0xa0] sm:$0xf]
        %v538 = vld [vmem:[%s424 + $0xa4] sm:$0xf]
        %v539 = vld [vmem:[%s424 + $0xa8] sm:$0xf]
        %v540 = vld [vmem:[%s424 + $0xac] sm:$0xf]
        %v541 = vld [vmem:[%s424 + $0xb0] sm:$0xf]
        %v542 = vld [vmem:[%s424 + $0xb4] sm:$0xf]
        %v543 = vld [vmem:[%s424 + $0xb8] sm:$0xf]
        %v544 = vld [vmem:[%s424 + $0xbc] sm:$0xf]
        %v545 = vld [vmem:[%s424 + $0xc0] sm:$0xf]
        %v546 = vld [vmem:[%s424 + $0xc4] sm:$0xf]
        %v547 = vld [vmem:[%s424 + $0xc8] sm:$0xf]
        %v548 = vld [vmem:[%s424 + $0xcc] sm:$0xf]
        %v549 = vld [vmem:[%s424 + $0xd0] sm:$0xf]
        %v550 = vld [vmem:[%s424 + $0xd4] sm:$0xf]
        %v551 = vld [vmem:[%s424 + $0xd8] sm:$0xf]
        %v552 = vld [vmem:[%s424 + $0xdc] sm:$0xf]
        %v553 = vld [vmem:[%s424 + $0xe0] sm:$0xf]
        %v554 = vld [vmem:[%s424 + $0xe4] sm:$0xf]
        %v555 = vld [vmem:[%s424 + $0xe8] sm:$0xf]
        %v556 = vld [vmem:[%s424 + $0xec] sm:$0xf]
        %v557 = vld [vmem:[%s424 + $0xf0] sm:$0xf]
        %v558 = vld [vmem:[%s424 + $0xf4] sm:$0xf]
        %v559 = vld [vmem:[%s424 + $0xf8] sm:$0xf]
        %v560 = vld [vmem:[%s424 + $0xfc] sm:$0xf]
        %v561 = vunpack.c.l.bf16 %v497
        %v562 = vunpack.c.l.bf16 %v498
        %v563 = vunpack.c.l.bf16 %v499
        %v564 = vunpack.c.l.bf16 %v500
        %v565 = vunpack.c.l.bf16 %v501
        %v566 = vunpack.c.l.bf16 %v502
        %v567 = vunpack.c.l.bf16 %v503
        %v568 = vunpack.c.l.bf16 %v504
        %v569 = vunpack.c.l.bf16 %v505
        %v570 = vunpack.c.l.bf16 %v506
        %v571 = vunpack.c.l.bf16 %v507
        %v572 = vunpack.c.l.bf16 %v508
        %v573 = vunpack.c.l.bf16 %v509
        %v574 = vunpack.c.l.bf16 %v510
        %v575 = vunpack.c.l.bf16 %v511
        %v576 = vunpack.c.l.bf16 %v512
        %v577 = vunpack.c.l.bf16 %v513
        %v578 = vunpack.c.l.bf16 %v514
        %v579 = vunpack.c.l.bf16 %v515
        %v580 = vunpack.c.l.bf16 %v516
        %v581 = vunpack.c.l.bf16 %v517
        %v582 = vunpack.c.l.bf16 %v518
        %v583 = vunpack.c.l.bf16 %v519
        %v584 = vunpack.c.l.bf16 %v520
        %v585 = vunpack.c.l.bf16 %v521
        %v586 = vunpack.c.l.bf16 %v522
        %v587 = vunpack.c.l.bf16 %v523
        %v588 = vunpack.c.l.bf16 %v524
        %v589 = vunpack.c.l.bf16 %v525
        %v590 = vunpack.c.l.bf16 %v526
        %v591 = vunpack.c.l.bf16 %v527
        %v592 = vunpack.c.l.bf16 %v528
        %v593 = vunpack.c.l.bf16 %v529
        %v594 = vunpack.c.l.bf16 %v530
        %v595 = vunpack.c.l.bf16 %v531
        %v596 = vunpack.c.l.bf16 %v532
        %v597 = vunpack.c.l.bf16 %v533
        %v598 = vunpack.c.l.bf16 %v534
        %v599 = vunpack.c.l.bf16 %v535
        %v600 = vunpack.c.l.bf16 %v536
        %v601 = vunpack.c.l.bf16 %v537
        %v602 = vunpack.c.l.bf16 %v538
        %v603 = vunpack.c.l.bf16 %v539
        %v604 = vunpack.c.l.bf16 %v540
        %v605 = vunpack.c.l.bf16 %v541
        %v606 = vunpack.c.l.bf16 %v542
        %v607 = vunpack.c.l.bf16 %v543
        %v608 = vunpack.c.l.bf16 %v544
        %v609 = vunpack.c.l.bf16 %v545
        %v610 = vunpack.c.l.bf16 %v546
        %v611 = vunpack.c.l.bf16 %v547
        %v612 = vunpack.c.l.bf16 %v548
        %v613 = vunpack.c.l.bf16 %v549
        %v614 = vunpack.c.l.bf16 %v550
        %v615 = vunpack.c.l.bf16 %v551
        %v616 = vunpack.c.l.bf16 %v552
        %v617 = vunpack.c.l.bf16 %v553
        %v618 = vunpack.c.l.bf16 %v554
        %v619 = vunpack.c.l.bf16 %v555
        %v620 = vunpack.c.l.bf16 %v556
        %v621 = vunpack.c.l.bf16 %v557
        %v622 = vunpack.c.l.bf16 %v558
        %v623 = vunpack.c.l.bf16 %v559
        %v624 = vunpack.c.l.bf16 %v560
        %v625 = vld [vmem:[#allocation7] sm:$0x3]
        %v628 = vunpack.c.l.s4 1966171168
        %v629 = vunpack.c.0.s8 %v628
        %v630 = vlaneseq
        %v631 = vshrl.u32 %v630, 7
        %v632 = vsub.s32 %v629, %v631
        %v633 = vrot.slane %v625, %v632
        %v634 = vcombine.high %v633, %v633
        %v636 = vunpack.c.l.s4 1966171168
        %v637 = vunpack.c.0.s8 %v636
        %v638 = vlaneseq
        %v639 = vshrl.u32 %v638, 7
        %v640 = vsub.s32 %v637, %v639
        %v641 = vrot.slane %v633, %v640
        %v643 = vunpack.c.l.s4 1966171168
        %v644 = vunpack.c.0.s8 %v643
        %v645 = vlaneseq
        %v646 = vshrl.u32 %v645, 7
        %v647 = vsub.s32 %v644, %v646
        %v648 = vrot.slane %v634, %v647
        %v649 = vlaneseq
        %v650 = vshrl.u32 %v649, 7
        %v651 = vsub.s32 0, %v650
        %v652 = vrot.slane %v641, %v651
        %v653 = vlaneseq
        %v654 = vshrl.u32 %v653, 7
        %v655 = vsub.s32 0, %v654
        %v656 = vrot.slane %v648, %v655
        %v659 = vmul.f32 %v561, %v652
        %v660 = vmul.f32 %v562, %v652
        %v661 = vmul.f32 %v563, %v652
        %v662 = vmul.f32 %v564, %v652
        %v663 = vmul.f32 %v565, %v652
        %v664 = vmul.f32 %v566, %v652
        %v665 = vmul.f32 %v567, %v652
        %v666 = vmul.f32 %v568, %v652
        %v667 = vmul.f32 %v569, %v652
        %v668 = vmul.f32 %v570, %v652
        %v669 = vmul.f32 %v571, %v652
        %v670 = vmul.f32 %v572, %v652
        %v671 = vmul.f32 %v573, %v652
        %v672 = vmul.f32 %v574, %v652
        %v673 = vmul.f32 %v575, %v652
        %v674 = vmul.f32 %v576, %v652
        %v675 = vmul.f32 %v577, %v652
        %v676 = vmul.f32 %v578, %v652
        %v677 = vmul.f32 %v579, %v652
        %v678 = vmul.f32 %v580, %v652
        %v679 = vmul.f32 %v581, %v652
        %v680 = vmul.f32 %v582, %v652
        %v681 = vmul.f32 %v583, %v652
        %v682 = vmul.f32 %v584, %v652
        %v683 = vmul.f32 %v585, %v652
        %v684 = vmul.f32 %v586, %v652
        %v685 = vmul.f32 %v587, %v652
        %v686 = vmul.f32 %v588, %v652
        %v687 = vmul.f32 %v589, %v652
        %v688 = vmul.f32 %v590, %v652
        %v689 = vmul.f32 %v591, %v652
        %v690 = vmul.f32 %v592, %v652
        %v691 = vmul.f32 %v593, %v656
        %v692 = vmul.f32 %v594, %v656
        %v693 = vmul.f32 %v595, %v656
        %v694 = vmul.f32 %v596, %v656
        %v695 = vmul.f32 %v597, %v656
        %v696 = vmul.f32 %v598, %v656
        %v697 = vmul.f32 %v599, %v656
        %v698 = vmul.f32 %v600, %v656
        %v699 = vmul.f32 %v601, %v656
        %v700 = vmul.f32 %v602, %v656
        %v701 = vmul.f32 %v603, %v656
        %v702 = vmul.f32 %v604, %v656
        %v703 = vmul.f32 %v605, %v656
        %v704 = vmul.f32 %v606, %v656
        %v705 = vmul.f32 %v607, %v656
        %v706 = vmul.f32 %v608, %v656
        %v707 = vmul.f32 %v609, %v656
        %v708 = vmul.f32 %v610, %v656
        %v709 = vmul.f32 %v611, %v656
        %v710 = vmul.f32 %v612, %v656
        %v711 = vmul.f32 %v613, %v656
        %v712 = vmul.f32 %v614, %v656
        %v713 = vmul.f32 %v615, %v656
        %v714 = vmul.f32 %v616, %v656
        %v715 = vmul.f32 %v617, %v656
        %v716 = vmul.f32 %v618, %v656
        %v717 = vmul.f32 %v619, %v656
        %v718 = vmul.f32 %v620, %v656
        %v719 = vmul.f32 %v621, %v656
        %v720 = vmul.f32 %v622, %v656
        %v721 = vmul.f32 %v623, %v656
        %v722 = vmul.f32 %v624, %v656
        %v723 = vld [vmem:[#allocation8] sm:$0x3]
        %v726 = vunpack.c.l.s4 1966171168
        %v727 = vunpack.c.0.s8 %v726
        %v728 = vlaneseq
        %v729 = vshrl.u32 %v728, 7
        %v730 = vsub.s32 %v727, %v729
        %v731 = vrot.slane %v723, %v730
        %v732 = vcombine.high %v731, %v731
        %v734 = vunpack.c.l.s4 1966171168
        %v735 = vunpack.c.0.s8 %v734
        %v736 = vlaneseq
        %v737 = vshrl.u32 %v736, 7
        %v738 = vsub.s32 %v735, %v737
        %v739 = vrot.slane %v731, %v738
        %v741 = vunpack.c.l.s4 1966171168
        %v742 = vunpack.c.0.s8 %v741
        %v743 = vlaneseq
        %v744 = vshrl.u32 %v743, 7
        %v745 = vsub.s32 %v742, %v744
        %v746 = vrot.slane %v732, %v745
        %v747 = vlaneseq
        %v748 = vshrl.u32 %v747, 7
        %v749 = vsub.s32 0, %v748
        %v750 = vrot.slane %v739, %v749
        %v751 = vlaneseq
        %v752 = vshrl.u32 %v751, 7
        %v753 = vsub.s32 0, %v752
        %v754 = vrot.slane %v746, %v753
        %v757 = vadd.f32 %v659, %v750
        %v758 = vadd.f32 %v660, %v750
        %v759 = vadd.f32 %v661, %v750
        %v760 = vadd.f32 %v662, %v750
        %v761 = vadd.f32 %v663, %v750
        %v762 = vadd.f32 %v664, %v750
        %v763 = vadd.f32 %v665, %v750
        %v764 = vadd.f32 %v666, %v750
        %v765 = vadd.f32 %v667, %v750
        %v766 = vadd.f32 %v668, %v750
        %v767 = vadd.f32 %v669, %v750
        %v768 = vadd.f32 %v670, %v750
        %v769 = vadd.f32 %v671, %v750
        %v770 = vadd.f32 %v672, %v750
        %v771 = vadd.f32 %v673, %v750
        %v772 = vadd.f32 %v674, %v750
        %v773 = vadd.f32 %v675, %v750
        %v774 = vadd.f32 %v676, %v750
        %v775 = vadd.f32 %v677, %v750
        %v776 = vadd.f32 %v678, %v750
        %v777 = vadd.f32 %v679, %v750
        %v778 = vadd.f32 %v680, %v750
        %v779 = vadd.f32 %v681, %v750
        %v780 = vadd.f32 %v682, %v750
        %v781 = vadd.f32 %v683, %v750
        %v782 = vadd.f32 %v684, %v750
        %v783 = vadd.f32 %v685, %v750
        %v784 = vadd.f32 %v686, %v750
        %v785 = vadd.f32 %v687, %v750
        %v786 = vadd.f32 %v688, %v750
        %v787 = vadd.f32 %v689, %v750
        %v788 = vadd.f32 %v690, %v750
        %v789 = vadd.f32 %v691, %v754
        %v790 = vadd.f32 %v692, %v754
        %v791 = vadd.f32 %v693, %v754
        %v792 = vadd.f32 %v694, %v754
        %v793 = vadd.f32 %v695, %v754
        %v794 = vadd.f32 %v696, %v754
        %v795 = vadd.f32 %v697, %v754
        %v796 = vadd.f32 %v698, %v754
        %v797 = vadd.f32 %v699, %v754
        %v798 = vadd.f32 %v700, %v754
        %v799 = vadd.f32 %v701, %v754
        %v800 = vadd.f32 %v702, %v754
        %v801 = vadd.f32 %v703, %v754
        %v802 = vadd.f32 %v704, %v754
        %v803 = vadd.f32 %v705, %v754
        %v804 = vadd.f32 %v706, %v754
        %v805 = vadd.f32 %v707, %v754
        %v806 = vadd.f32 %v708, %v754
        %v807 = vadd.f32 %v709, %v754
        %v808 = vadd.f32 %v710, %v754
        %v809 = vadd.f32 %v711, %v754
        %v810 = vadd.f32 %v712, %v754
        %v811 = vadd.f32 %v713, %v754
        %v812 = vadd.f32 %v714, %v754
        %v813 = vadd.f32 %v715, %v754
        %v814 = vadd.f32 %v716, %v754
        %v815 = vadd.f32 %v717, %v754
        %v816 = vadd.f32 %v718, %v754
        %v817 = vadd.f32 %v719, %v754
        %v818 = vadd.f32 %v720, %v754
        %v819 = vadd.f32 %v721, %v754
        %v820 = vadd.f32 %v722, %v754
        %v821 = vmax.f32 %v757, 0.0
        %v822 = vmax.f32 %v758, 0.0
        %v823 = vmax.f32 %v759, 0.0
        %v824 = vmax.f32 %v760, 0.0
        %v825 = vmax.f32 %v761, 0.0
        %v826 = vmax.f32 %v762, 0.0
        %v827 = vmax.f32 %v763, 0.0
        %v828 = vmax.f32 %v764, 0.0
        %v829 = vmax.f32 %v765, 0.0
        %v830 = vmax.f32 %v766, 0.0
        %v831 = vmax.f32 %v767, 0.0
        %v832 = vmax.f32 %v768, 0.0
        %v833 = vmax.f32 %v769, 0.0
        %v834 = vmax.f32 %v770, 0.0
        %v835 = vmax.f32 %v771, 0.0
        %v836 = vmax.f32 %v772, 0.0
        %v837 = vmax.f32 %v773, 0.0
        %v838 = vmax.f32 %v774, 0.0
        %v839 = vmax.f32 %v775, 0.0
        %v840 = vmax.f32 %v776, 0.0
        %v841 = vmax.f32 %v777, 0.0
        %v842 = vmax.f32 %v778, 0.0
        %v843 = vmax.f32 %v779, 0.0
        %v844 = vmax.f32 %v780, 0.0
        %v845 = vmax.f32 %v781, 0.0
        %v846 = vmax.f32 %v782, 0.0
        %v847 = vmax.f32 %v783, 0.0
        %v848 = vmax.f32 %v784, 0.0
        %v849 = vmax.f32 %v785, 0.0
        %v850 = vmax.f32 %v786, 0.0
        %v851 = vmax.f32 %v787, 0.0
        %v852 = vmax.f32 %v788, 0.0
        %v853 = vmax.f32 %v789, 0.0
        %v854 = vmax.f32 %v790, 0.0
        %v855 = vmax.f32 %v791, 0.0
        %v856 = vmax.f32 %v792, 0.0
        %v857 = vmax.f32 %v793, 0.0
        %v858 = vmax.f32 %v794, 0.0
        %v859 = vmax.f32 %v795, 0.0
        %v860 = vmax.f32 %v796, 0.0
        %v861 = vmax.f32 %v797, 0.0
        %v862 = vmax.f32 %v798, 0.0
        %v863 = vmax.f32 %v799, 0.0
        %v864 = vmax.f32 %v800, 0.0
        %v865 = vmax.f32 %v801, 0.0
        %v866 = vmax.f32 %v802, 0.0
        %v867 = vmax.f32 %v803, 0.0
        %v868 = vmax.f32 %v804, 0.0
        %v869 = vmax.f32 %v805, 0.0
        %v870 = vmax.f32 %v806, 0.0
        %v871 = vmax.f32 %v807, 0.0
        %v872 = vmax.f32 %v808, 0.0
        %v873 = vmax.f32 %v809, 0.0
        %v874 = vmax.f32 %v810, 0.0
        %v875 = vmax.f32 %v811, 0.0
        %v876 = vmax.f32 %v812, 0.0
        %v877 = vmax.f32 %v813, 0.0
        %v878 = vmax.f32 %v814, 0.0
        %v879 = vmax.f32 %v815, 0.0
        %v880 = vmax.f32 %v816, 0.0
        %v881 = vmax.f32 %v817, 0.0
        %v882 = vmax.f32 %v818, 0.0
        %v883 = vmax.f32 %v819, 0.0
        %v884 = vmax.f32 %v820, 0.0
        %v885 = vld [vmem:[#allocation10] sm:$0xf]
        %v886 = vld [vmem:[#allocation10 + $0x4] sm:$0xf]
        %v887 = vld [vmem:[#allocation10 + $0x8] sm:$0xf]
        %v888 = vld [vmem:[#allocation10 + $0xc] sm:$0xf]
        %v889 = vld [vmem:[#allocation10 + $0x10] sm:$0xf]
        %v890 = vld [vmem:[#allocation10 + $0x14] sm:$0xf]
        %v891 = vld [vmem:[#allocation10 + $0x18] sm:$0xf]
        %v892 = vld [vmem:[#allocation10 + $0x1c] sm:$0xf]
        %v893 = vld [vmem:[#allocation10 + $0x20] sm:$0xf]
        %v894 = vld [vmem:[#allocation10 + $0x24] sm:$0xf]
        %v895 = vld [vmem:[#allocation10 + $0x28] sm:$0xf]
        %v896 = vld [vmem:[#allocation10 + $0x2c] sm:$0xf]
        %v897 = vld [vmem:[#allocation10 + $0x30] sm:$0xf]
        %v898 = vld [vmem:[#allocation10 + $0x34] sm:$0xf]
        %v899 = vld [vmem:[#allocation10 + $0x38] sm:$0xf]
        %v900 = vld [vmem:[#allocation10 + $0x3c] sm:$0xf]
        %v901 = vpack.c.bf16 %v822, %v821
        %v902 = vpack.c.bf16 %v824, %v823
        %v903 = vpack.c.bf16 %v826, %v825
        %v904 = vpack.c.bf16 %v828, %v827
        %v905 = vpack.c.bf16 %v830, %v829
        %v906 = vpack.c.bf16 %v832, %v831
        %v907 = vpack.c.bf16 %v834, %v833
        %v908 = vpack.c.bf16 %v836, %v835
        %v909 = vpack.c.bf16 %v838, %v837
        %v910 = vpack.c.bf16 %v840, %v839
        %v911 = vpack.c.bf16 %v842, %v841
        %v912 = vpack.c.bf16 %v844, %v843
        %v913 = vpack.c.bf16 %v846, %v845
        %v914 = vpack.c.bf16 %v848, %v847
        %v915 = vpack.c.bf16 %v850, %v849
        %v916 = vpack.c.bf16 %v852, %v851
        %v917 = vpack.c.bf16 %v854, %v853
        %v918 = vpack.c.bf16 %v856, %v855
        %v919 = vpack.c.bf16 %v858, %v857
        %v920 = vpack.c.bf16 %v860, %v859
        %v921 = vpack.c.bf16 %v862, %v861
        %v922 = vpack.c.bf16 %v864, %v863
        %v923 = vpack.c.bf16 %v866, %v865
        %v924 = vpack.c.bf16 %v868, %v867
        %v925 = vpack.c.bf16 %v870, %v869
        %v926 = vpack.c.bf16 %v872, %v871
        %v927 = vpack.c.bf16 %v874, %v873
        %v928 = vpack.c.bf16 %v876, %v875
        %v929 = vpack.c.bf16 %v878, %v877
        %v930 = vpack.c.bf16 %v880, %v879
        %v931 = vpack.c.bf16 %v882, %v881
        %v932 = vpack.c.bf16 %v884, %v883
        %v949 = vunpack.c.l.b16 %v885
        %v950 = vunpack.c.l.b16 %v886
        %v951 = vunpack.c.l.b16 %v887
        %v952 = vunpack.c.l.b16 %v888
        %v953 = vunpack.c.l.b16 %v889
        %v954 = vunpack.c.l.b16 %v890
        %v955 = vunpack.c.l.b16 %v891
        %v956 = vunpack.c.l.b16 %v892
        %v957 = vunpack.c.l.b16 %v893
        %v958 = vunpack.c.l.b16 %v894
        %v959 = vunpack.c.l.b16 %v895
        %v960 = vunpack.c.l.b16 %v896
        %v961 = vunpack.c.l.b16 %v897
        %v962 = vunpack.c.l.b16 %v898
        %v963 = vunpack.c.l.b16 %v899
        %v964 = vunpack.c.l.b16 %v900
        %v965 = vpack.c.b16 %v950, %v949
        %v966 = vpack.c.b16 %v952, %v951
        %v967 = vpack.c.b16 %v954, %v953
        %v968 = vpack.c.b16 %v956, %v955
        %v969 = vpack.c.b16 %v958, %v957
        %v970 = vpack.c.b16 %v960, %v959
        %v971 = vpack.c.b16 %v962, %v961
        %v972 = vpack.c.b16 %v964, %v963
        %981 = vmatprep.subr.bf16.mxu0 0
        %982 = vmatpush1.bf16.msra.mxu0 %v965
        %983 = vmatprep.subr.bf16.mxu0 0
        %984 = vmatpush1.bf16.msra.mxu0 %v966
        %985 = vmatprep.subr.bf16.mxu0 0
        %986 = vmatpush1.bf16.msra.mxu0 %v967
        %987 = vmatprep.subr.bf16.mxu0 0
        %988 = vmatpush1.bf16.msra.mxu0 %v968
        %989 = vmatprep.subr.bf16.mxu0 0
        %990 = vmatpush1.bf16.msra.mxu0 %v969
        %991 = vmatprep.subr.bf16.mxu0 0
        %992 = vmatpush1.bf16.msra.mxu0 %v970
        %993 = vmatprep.subr.bf16.mxu0 0
        %994 = vmatpush1.bf16.msra.mxu0 %v971
        %995 = vmatprep.subr.bf16.mxu0 0
        %996 = vmatpush1.bf16.msra.mxu0 %v972
        %997 = vmatprep.subr.bf16.mxu0 0
        %998 = vmatpush1.bf16.msra.mxu0 0
        %999 = vmatprep.subr.bf16.mxu0 0
        %1000 = vmatpush1.bf16.msra.mxu0 0
        %1001 = vmatprep.subr.bf16.mxu0 0
        %1002 = vmatpush1.bf16.msra.mxu0 0
        %1003 = vmatprep.subr.bf16.mxu0 0
        %1004 = vmatpush1.bf16.msra.mxu0 0
        %1005 = vmatprep.subr.bf16.mxu0 0
        %1006 = vmatpush1.bf16.msra.mxu0 0
        %1007 = vmatprep.subr.bf16.mxu0 0
        %1008 = vmatpush1.bf16.msra.mxu0 0
        %1009 = vmatprep.subr.bf16.mxu0 0
        %1010 = vmatpush1.bf16.msra.mxu0 0
        %1011 = vmatprep.subr.bf16.mxu0 0
        %1012 = vmatpush1.bf16.msra.mxu0 0
        %1013 = vmatprep.mubr.bf16.mxu0 0
        %1014 = vmatmul.mubr.bf16.gmra.mrb[0].mxu0 %v901
        %v1015 = vpop.f32.mrb[0].mxu0
        %v1016 = vadd.f32 0.0, %v1015
        %v1017 = vpop.f32.mrb[0].mxu0
        %v1018 = vpop.f32.mrb[0].mxu0
        %v1019 = vadd.f32 0.0, %v1018
        %v1020 = vpop.f32.mrb[0].mxu0
        %1021 = vmatprep.mubr.bf16.mxu0 0
        %1022 = vmatmul.mubr.bf16.gmra.mrb[0].mxu0 %v902
        %v1023 = vpop.f32.mrb[0].mxu0
        %v1024 = vadd.f32 0.0, %v1023
        %v1025 = vpop.f32.mrb[0].mxu0
        %v1026 = vpop.f32.mrb[0].mxu0
        %v1027 = vadd.f32 0.0, %v1026
        %v1028 = vpop.f32.mrb[0].mxu0
        %1029 = vmatprep.mubr.bf16.mxu0 0
        %1030 = vmatmul.mubr.bf16.gmra.mrb[0].mxu0 %v903
        %v1031 = vpop.f32.mrb[0].mxu0
        %v1032 = vadd.f32 0.0, %v1031
        %v1033 = vpop.f32.mrb[0].mxu0
        %v1034 = vpop.f32.mrb[0].mxu0
        %v1035 = vadd.f32 0.0, %v1034
        %v1036 = vpop.f32.mrb[0].mxu0
        %1037 = vmatprep.mubr.bf16.mxu0 0
        %1038 = vmatmul.mubr.bf16.gmra.mrb[0].mxu0 %v904
        %v1039 = vpop.f32.mrb[0].mxu0
        %v1040 = vadd.f32 0.0, %v1039
        %v1041 = vpop.f32.mrb[0].mxu0
        %v1042 = vpop.f32.mrb[0].mxu0
        %v1043 = vadd.f32 0.0, %v1042
        %v1044 = vpop.f32.mrb[0].mxu0
        %1045 = vmatprep.mubr.bf16.mxu0 0
        %1046 = vmatmul.mubr.bf16.gmra.mrb[0].mxu0 %v905
        %v1047 = vpop.f32.mrb[0].mxu0
        %v1048 = vadd.f32 0.0, %v1047
        %v1049 = vpop.f32.mrb[0].mxu0
        %v1050 = vpop.f32.mrb[0].mxu0
        %v1051 = vadd.f32 0.0, %v1050
        %v1052 = vpop.f32.mrb[0].mxu0
        %1053 = vmatprep.mubr.bf16.mxu0 0
        %1054 = vmatmul.mubr.bf16.gmra.mrb[0].mxu0 %v906
        %v1055 = vpop.f32.mrb[0].mxu0
        %v1056 = vadd.f32 0.0, %v1055
        %v1057 = vpop.f32.mrb[0].mxu0
        %v1058 = vpop.f32.mrb[0].mxu0
        %v1059 = vadd.f32 0.0, %v1058
        %v1060 = vpop.f32.mrb[0].mxu0
        %1061 = vmatprep.mubr.bf16.mxu0 0
        %1062 = vmatmul.mubr.bf16.gmra.mrb[0].mxu0 %v907
        %v1063 = vpop.f32.mrb[0].mxu0
        %v1064 = vadd.f32 0.0, %v1063
        %v1065 = vpop.f32.mrb[0].mxu0
        %v1066 = vpop.f32.mrb[0].mxu0
        %v1067 = vadd.f32 0.0, %v1066
        %v1068 = vpop.f32.mrb[0].mxu0
        %1069 = vmatprep.mubr.bf16.mxu0 0
        %1070 = vmatmul.mubr.bf16.gmra.mrb[0].mxu0 %v908
        %v1071 = vpop.f32.mrb[0].mxu0
        %v1072 = vadd.f32 0.0, %v1071
        %v1073 = vpop.f32.mrb[0].mxu0
        %v1074 = vpop.f32.mrb[0].mxu0
        %v1075 = vadd.f32 0.0, %v1074
        %v1076 = vpop.f32.mrb[0].mxu0
        %1077 = vmatprep.mubr.bf16.mxu0 0
        %1078 = vmatmul.mubr.bf16.gmra.mrb[0].mxu0 %v909
        %v1079 = vpop.f32.mrb[0].mxu0
        %v1080 = vadd.f32 0.0, %v1079
        %v1081 = vpop.f32.mrb[0].mxu0
        %v1082 = vpop.f32.mrb[0].mxu0
        %v1083 = vadd.f32 0.0, %v1082
        %v1084 = vpop.f32.mrb[0].mxu0
        %1085 = vmatprep.mubr.bf16.mxu0 0
        %1086 = vmatmul.mubr.bf16.gmra.mrb[0].mxu0 %v910
        %v1087 = vpop.f32.mrb[0].mxu0
        %v1088 = vadd.f32 0.0, %v1087
        %v1089 = vpop.f32.mrb[0].mxu0
        %v1090 = vpop.f32.mrb[0].mxu0
        %v1091 = vadd.f32 0.0, %v1090
        %v1092 = vpop.f32.mrb[0].mxu0
        %1093 = vmatprep.mubr.bf16.mxu0 0
        %1094 = vmatmul.mubr.bf16.gmra.mrb[0].mxu0 %v911
        %v1095 = vpop.f32.mrb[0].mxu0
        %v1096 = vadd.f32 0.0, %v1095
        %v1097 = vpop.f32.mrb[0].mxu0
        %v1098 = vpop.f32.mrb[0].mxu0
        %v1099 = vadd.f32 0.0, %v1098
        %v1100 = vpop.f32.mrb[0].mxu0
        %1101 = vmatprep.mubr.bf16.mxu0 0
        %1102 = vmatmul.mubr.bf16.gmra.mrb[0].mxu0 %v912
        %v1103 = vpop.f32.mrb[0].mxu0
        %v1104 = vadd.f32 0.0, %v1103
        %v1105 = vpop.f32.mrb[0].mxu0
        %v1106 = vpop.f32.mrb[0].mxu0
        %v1107 = vadd.f32 0.0, %v1106
        %v1108 = vpop.f32.mrb[0].mxu0
        %1109 = vmatprep.mubr.bf16.mxu0 0
        %1110 = vmatmul.mubr.bf16.gmra.mrb[0].mxu0 %v913
        %v1111 = vpop.f32.mrb[0].mxu0
        %v1112 = vadd.f32 0.0, %v1111
        %v1113 = vpop.f32.mrb[0].mxu0
        %v1114 = vpop.f32.mrb[0].mxu0
        %v1115 = vadd.f32 0.0, %v1114
        %v1116 = vpop.f32.mrb[0].mxu0
        %1117 = vmatprep.mubr.bf16.mxu0 0
        %1118 = vmatmul.mubr.bf16.gmra.mrb[0].mxu0 %v914
        %v1119 = vpop.f32.mrb[0].mxu0
        %v1120 = vadd.f32 0.0, %v1119
        %v1121 = vpop.f32.mrb[0].mxu0
        %v1122 = vpop.f32.mrb[0].mxu0
        %v1123 = vadd.f32 0.0, %v1122
        %v1124 = vpop.f32.mrb[0].mxu0
        %1125 = vmatprep.mubr.bf16.mxu0 0
        %1126 = vmatmul.mubr.bf16.gmra.mrb[0].mxu0 %v915
        %v1127 = vpop.f32.mrb[0].mxu0
        %v1128 = vadd.f32 0.0, %v1127
        %v1129 = vpop.f32.mrb[0].mxu0
        %v1130 = vpop.f32.mrb[0].mxu0
        %v1131 = vadd.f32 0.0, %v1130
        %v1132 = vpop.f32.mrb[0].mxu0
        %1133 = vmatprep.mubr.bf16.mxu0 0
        %1134 = vmatmul.mubr.bf16.gmra.mrb[0].mxu0 %v916
        %v1135 = vpop.f32.mrb[0].mxu0
        %v1136 = vadd.f32 0.0, %v1135
        %v1137 = vpop.f32.mrb[0].mxu0
        %v1138 = vpop.f32.mrb[0].mxu0
        %v1139 = vadd.f32 0.0, %v1138
        %v1140 = vpop.f32.mrb[0].mxu0
        %1141 = vmatprep.mubr.bf16.mxu0 0
        %1142 = vmatmul.mubr.bf16.gmra.mrb[0].mxu0 %v917
        %v1143 = vpop.f32.mrb[0].mxu0
        %v1144 = vadd.f32 0.0, %v1143
        %v1145 = vpop.f32.mrb[0].mxu0
        %v1146 = vpop.f32.mrb[0].mxu0
        %v1147 = vadd.f32 0.0, %v1146
        %v1148 = vpop.f32.mrb[0].mxu0
        %1149 = vmatprep.mubr.bf16.mxu0 0
        %1150 = vmatmul.mubr.bf16.gmra.mrb[0].mxu0 %v918
        %v1151 = vpop.f32.mrb[0].mxu0
        %v1152 = vadd.f32 0.0, %v1151
        %v1153 = vpop.f32.mrb[0].mxu0
        %v1154 = vpop.f32.mrb[0].mxu0
        %v1155 = vadd.f32 0.0, %v1154
        %v1156 = vpop.f32.mrb[0].mxu0
        %1157 = vmatprep.mubr.bf16.mxu0 0
        %1158 = vmatmul.mubr.bf16.gmra.mrb[0].mxu0 %v919
        %v1159 = vpop.f32.mrb[0].mxu0
        %v1160 = vadd.f32 0.0, %v1159
        %v1161 = vpop.f32.mrb[0].mxu0
        %v1162 = vpop.f32.mrb[0].mxu0
        %v1163 = vadd.f32 0.0, %v1162
        %v1164 = vpop.f32.mrb[0].mxu0
        %1165 = vmatprep.mubr.bf16.mxu0 0
        %1166 = vmatmul.mubr.bf16.gmra.mrb[0].mxu0 %v920
        %v1167 = vpop.f32.mrb[0].mxu0
        %v1168 = vadd.f32 0.0, %v1167
        %v1169 = vpop.f32.mrb[0].mxu0
        %v1170 = vpop.f32.mrb[0].mxu0
        %v1171 = vadd.f32 0.0, %v1170
        %v1172 = vpop.f32.mrb[0].mxu0
        %1173 = vmatprep.mubr.bf16.mxu0 0
        %1174 = vmatmul.mubr.bf16.gmra.mrb[0].mxu0 %v921
        %v1175 = vpop.f32.mrb[0].mxu0
        %v1176 = vadd.f32 0.0, %v1175
        %v1177 = vpop.f32.mrb[0].mxu0
        %v1178 = vpop.f32.mrb[0].mxu0
        %v1179 = vadd.f32 0.0, %v1178
        %v1180 = vpop.f32.mrb[0].mxu0
        %1181 = vmatprep.mubr.bf16.mxu0 0
        %1182 = vmatmul.mubr.bf16.gmra.mrb[0].mxu0 %v922
        %v1183 = vpop.f32.mrb[0].mxu0
        %v1184 = vadd.f32 0.0, %v1183
        %v1185 = vpop.f32.mrb[0].mxu0
        %v1186 = vpop.f32.mrb[0].mxu0
        %v1187 = vadd.f32 0.0, %v1186
        %v1188 = vpop.f32.mrb[0].mxu0
        %1189 = vmatprep.mubr.bf16.mxu0 0
        %1190 = vmatmul.mubr.bf16.gmra.mrb[0].mxu0 %v923
        %v1191 = vpop.f32.mrb[0].mxu0
        %v1192 = vadd.f32 0.0, %v1191
        %v1193 = vpop.f32.mrb[0].mxu0
        %v1194 = vpop.f32.mrb[0].mxu0
        %v1195 = vadd.f32 0.0, %v1194
        %v1196 = vpop.f32.mrb[0].mxu0
        %1197 = vmatprep.mubr.bf16.mxu0 0
        %1198 = vmatmul.mubr.bf16.gmra.mrb[0].mxu0 %v924
        %v1199 = vpop.f32.mrb[0].mxu0
        %v1200 = vadd.f32 0.0, %v1199
        %v1201 = vpop.f32.mrb[0].mxu0
        %v1202 = vpop.f32.mrb[0].mxu0
        %v1203 = vadd.f32 0.0, %v1202
        %v1204 = vpop.f32.mrb[0].mxu0
        %1205 = vmatprep.mubr.bf16.mxu0 0
        %1206 = vmatmul.mubr.bf16.gmra.mrb[0].mxu0 %v925
        %v1207 = vpop.f32.mrb[0].mxu0
        %v1208 = vadd.f32 0.0, %v1207
        %v1209 = vpop.f32.mrb[0].mxu0
        %v1210 = vpop.f32.mrb[0].mxu0
        %v1211 = vadd.f32 0.0, %v1210
        %v1212 = vpop.f32.mrb[0].mxu0
        %1213 = vmatprep.mubr.bf16.mxu0 0
        %1214 = vmatmul.mubr.bf16.gmra.mrb[0].mxu0 %v926
        %v1215 = vpop.f32.mrb[0].mxu0
        %v1216 = vadd.f32 0.0, %v1215
        %v1217 = vpop.f32.mrb[0].mxu0
        %v1218 = vpop.f32.mrb[0].mxu0
        %v1219 = vadd.f32 0.0, %v1218
        %v1220 = vpop.f32.mrb[0].mxu0
        %1221 = vmatprep.mubr.bf16.mxu0 0
        %1222 = vmatmul.mubr.bf16.gmra.mrb[0].mxu0 %v927
        %v1223 = vpop.f32.mrb[0].mxu0
        %v1224 = vadd.f32 0.0, %v1223
        %v1225 = vpop.f32.mrb[0].mxu0
        %v1226 = vpop.f32.mrb[0].mxu0
        %v1227 = vadd.f32 0.0, %v1226
        %v1228 = vpop.f32.mrb[0].mxu0
        %1229 = vmatprep.mubr.bf16.mxu0 0
        %1230 = vmatmul.mubr.bf16.gmra.mrb[0].mxu0 %v928
        %v1231 = vpop.f32.mrb[0].mxu0
        %v1232 = vadd.f32 0.0, %v1231
        %v1233 = vpop.f32.mrb[0].mxu0
        %v1234 = vpop.f32.mrb[0].mxu0
        %v1235 = vadd.f32 0.0, %v1234
        %v1236 = vpop.f32.mrb[0].mxu0
        %1237 = vmatprep.mubr.bf16.mxu0 0
        %1238 = vmatmul.mubr.bf16.gmra.mrb[0].mxu0 %v929
        %v1239 = vpop.f32.mrb[0].mxu0
        %v1240 = vadd.f32 0.0, %v1239
        %v1241 = vpop.f32.mrb[0].mxu0
        %v1242 = vpop.f32.mrb[0].mxu0
        %v1243 = vadd.f32 0.0, %v1242
        %v1244 = vpop.f32.mrb[0].mxu0
        %1245 = vmatprep.mubr.bf16.mxu0 0
        %1246 = vmatmul.mubr.bf16.gmra.mrb[0].mxu0 %v930
        %v1247 = vpop.f32.mrb[0].mxu0
        %v1248 = vadd.f32 0.0, %v1247
        %v1249 = vpop.f32.mrb[0].mxu0
        %v1250 = vpop.f32.mrb[0].mxu0
        %v1251 = vadd.f32 0.0, %v1250
        %v1252 = vpop.f32.mrb[0].mxu0
        %1253 = vmatprep.mubr.bf16.mxu0 0
        %1254 = vmatmul.mubr.bf16.gmra.mrb[0].mxu0 %v931
        %v1255 = vpop.f32.mrb[0].mxu0
        %v1256 = vadd.f32 0.0, %v1255
        %v1257 = vpop.f32.mrb[0].mxu0
        %v1258 = vpop.f32.mrb[0].mxu0
        %v1259 = vadd.f32 0.0, %v1258
        %v1260 = vpop.f32.mrb[0].mxu0
        %1261 = vmatprep.mubr.bf16.mxu0 0
        %1262 = vmatmul.mubr.bf16.gmra.mrb[0].mxu0 %v932
        %v1263 = vpop.f32.mrb[0].mxu0
        %v1264 = vadd.f32 0.0, %v1263
        %v1265 = vpop.f32.mrb[0].mxu0
        %v1266 = vpop.f32.mrb[0].mxu0
        %v1267 = vadd.f32 0.0, %v1266
        %v1268 = vpop.f32.mrb[0].mxu0
        %1269 = vdwg.mxu0
        %v1270 = vld [vmem:[#allocation11] sm:$0x1]
        %v1272 = vlaneseq
        %v1273 = vshrl.u32 %v1272, 7
        %v1274 = vsub.s32 0, %v1273
        %v1275 = vrot.slane %v1270, %v1274
        %v1277 = vadd.f32 %v1016, %v1275
        %v1278 = vadd.f32 %v1019, %v1275
        %v1279 = vadd.f32 %v1024, %v1275
        %v1280 = vadd.f32 %v1027, %v1275
        %v1281 = vadd.f32 %v1032, %v1275
        %v1282 = vadd.f32 %v1035, %v1275
        %v1283 = vadd.f32 %v1040, %v1275
        %v1284 = vadd.f32 %v1043, %v1275
        %v1285 = vadd.f32 %v1048, %v1275
        %v1286 = vadd.f32 %v1051, %v1275
        %v1287 = vadd.f32 %v1056, %v1275
        %v1288 = vadd.f32 %v1059, %v1275
        %v1289 = vadd.f32 %v1064, %v1275
        %v1290 = vadd.f32 %v1067, %v1275
        %v1291 = vadd.f32 %v1072, %v1275
        %v1292 = vadd.f32 %v1075, %v1275
        %v1293 = vadd.f32 %v1080, %v1275
        %v1294 = vadd.f32 %v1083, %v1275
        %v1295 = vadd.f32 %v1088, %v1275
        %v1296 = vadd.f32 %v1091, %v1275
        %v1297 = vadd.f32 %v1096, %v1275
        %v1298 = vadd.f32 %v1099, %v1275
        %v1299 = vadd.f32 %v1104, %v1275
        %v1300 = vadd.f32 %v1107, %v1275
        %v1301 = vadd.f32 %v1112, %v1275
        %v1302 = vadd.f32 %v1115, %v1275
        %v1303 = vadd.f32 %v1120, %v1275
        %v1304 = vadd.f32 %v1123, %v1275
        %v1305 = vadd.f32 %v1128, %v1275
        %v1306 = vadd.f32 %v1131, %v1275
        %v1307 = vadd.f32 %v1136, %v1275
        %v1308 = vadd.f32 %v1139, %v1275
        %v1309 = vadd.f32 %v1144, %v1275
        %v1310 = vadd.f32 %v1147, %v1275
        %v1311 = vadd.f32 %v1152, %v1275
        %v1312 = vadd.f32 %v1155, %v1275
        %v1313 = vadd.f32 %v1160, %v1275
        %v1314 = vadd.f32 %v1163, %v1275
        %v1315 = vadd.f32 %v1168, %v1275
        %v1316 = vadd.f32 %v1171, %v1275
        %v1317 = vadd.f32 %v1176, %v1275
        %v1318 = vadd.f32 %v1179, %v1275
        %v1319 = vadd.f32 %v1184, %v1275
        %v1320 = vadd.f32 %v1187, %v1275
        %v1321 = vadd.f32 %v1192, %v1275
        %v1322 = vadd.f32 %v1195, %v1275
        %v1323 = vadd.f32 %v1200, %v1275
        %v1324 = vadd.f32 %v1203, %v1275
        %v1325 = vadd.f32 %v1208, %v1275
        %v1326 = vadd.f32 %v1211, %v1275
        %v1327 = vadd.f32 %v1216, %v1275
        %v1328 = vadd.f32 %v1219, %v1275
        %v1329 = vadd.f32 %v1224, %v1275
        %v1330 = vadd.f32 %v1227, %v1275
        %v1331 = vadd.f32 %v1232, %v1275
        %v1332 = vadd.f32 %v1235, %v1275
        %v1333 = vadd.f32 %v1240, %v1275
        %v1334 = vadd.f32 %v1243, %v1275
        %v1335 = vadd.f32 %v1248, %v1275
        %v1336 = vadd.f32 %v1251, %v1275
        %v1337 = vadd.f32 %v1256, %v1275
        %v1338 = vadd.f32 %v1259, %v1275
        %v1339 = vadd.f32 %v1264, %v1275
        %v1340 = vadd.f32 %v1267, %v1275
        %v1341 = vld [vmem:[%s433] sm:$0xf]
        %v1342 = vld [vmem:[%s433 + $0x4] sm:$0xf]
        %v1343 = vld [vmem:[%s433 + $0x8] sm:$0xf]
        %v1344 = vld [vmem:[%s433 + $0xc] sm:$0xf]
        %v1345 = vld [vmem:[%s433 + $0x10] sm:$0xf]
        %v1346 = vld [vmem:[%s433 + $0x14] sm:$0xf]
        %v1347 = vld [vmem:[%s433 + $0x18] sm:$0xf]
        %v1348 = vld [vmem:[%s433 + $0x1c] sm:$0xf]
        %v1349 = vld [vmem:[%s433 + $0x20] sm:$0xf]
        %v1350 = vld [vmem:[%s433 + $0x24] sm:$0xf]
        %v1351 = vld [vmem:[%s433 + $0x28] sm:$0xf]
        %v1352 = vld [vmem:[%s433 + $0x2c] sm:$0xf]
        %v1353 = vld [vmem:[%s433 + $0x30] sm:$0xf]
        %v1354 = vld [vmem:[%s433 + $0x34] sm:$0xf]
        %v1355 = vld [vmem:[%s433 + $0x38] sm:$0xf]
        %v1356 = vld [vmem:[%s433 + $0x3c] sm:$0xf]
        %v1357 = vld [vmem:[%s433 + $0x40] sm:$0xf]
        %v1358 = vld [vmem:[%s433 + $0x44] sm:$0xf]
        %v1359 = vld [vmem:[%s433 + $0x48] sm:$0xf]
        %v1360 = vld [vmem:[%s433 + $0x4c] sm:$0xf]
        %v1361 = vld [vmem:[%s433 + $0x50] sm:$0xf]
        %v1362 = vld [vmem:[%s433 + $0x54] sm:$0xf]
        %v1363 = vld [vmem:[%s433 + $0x58] sm:$0xf]
        %v1364 = vld [vmem:[%s433 + $0x5c] sm:$0xf]
        %v1365 = vld [vmem:[%s433 + $0x60] sm:$0xf]
        %v1366 = vld [vmem:[%s433 + $0x64] sm:$0xf]
        %v1367 = vld [vmem:[%s433 + $0x68] sm:$0xf]
        %v1368 = vld [vmem:[%s433 + $0x6c] sm:$0xf]
        %v1369 = vld [vmem:[%s433 + $0x70] sm:$0xf]
        %v1370 = vld [vmem:[%s433 + $0x74] sm:$0xf]
        %v1371 = vld [vmem:[%s433 + $0x78] sm:$0xf]
        %v1372 = vld [vmem:[%s433 + $0x7c] sm:$0xf]
        %v1373 = vld [vmem:[%s433 + $0x80] sm:$0xf]
        %v1374 = vld [vmem:[%s433 + $0x84] sm:$0xf]
        %v1375 = vld [vmem:[%s433 + $0x88] sm:$0xf]
        %v1376 = vld [vmem:[%s433 + $0x8c] sm:$0xf]
        %v1377 = vld [vmem:[%s433 + $0x90] sm:$0xf]
        %v1378 = vld [vmem:[%s433 + $0x94] sm:$0xf]
        %v1379 = vld [vmem:[%s433 + $0x98] sm:$0xf]
        %v1380 = vld [vmem:[%s433 + $0x9c] sm:$0xf]
        %v1381 = vld [vmem:[%s433 + $0xa0] sm:$0xf]
        %v1382 = vld [vmem:[%s433 + $0xa4] sm:$0xf]
        %v1383 = vld [vmem:[%s433 + $0xa8] sm:$0xf]
        %v1384 = vld [vmem:[%s433 + $0xac] sm:$0xf]
        %v1385 = vld [vmem:[%s433 + $0xb0] sm:$0xf]
        %v1386 = vld [vmem:[%s433 + $0xb4] sm:$0xf]
        %v1387 = vld [vmem:[%s433 + $0xb8] sm:$0xf]
        %v1388 = vld [vmem:[%s433 + $0xbc] sm:$0xf]
        %v1389 = vld [vmem:[%s433 + $0xc0] sm:$0xf]
        %v1390 = vld [vmem:[%s433 + $0xc4] sm:$0xf]
        %v1391 = vld [vmem:[%s433 + $0xc8] sm:$0xf]
        %v1392 = vld [vmem:[%s433 + $0xcc] sm:$0xf]
        %v1393 = vld [vmem:[%s433 + $0xd0] sm:$0xf]
        %v1394 = vld [vmem:[%s433 + $0xd4] sm:$0xf]
        %v1395 = vld [vmem:[%s433 + $0xd8] sm:$0xf]
        %v1396 = vld [vmem:[%s433 + $0xdc] sm:$0xf]
        %v1397 = vld [vmem:[%s433 + $0xe0] sm:$0xf]
        %v1398 = vld [vmem:[%s433 + $0xe4] sm:$0xf]
        %v1399 = vld [vmem:[%s433 + $0xe8] sm:$0xf]
        %v1400 = vld [vmem:[%s433 + $0xec] sm:$0xf]
        %v1401 = vld [vmem:[%s433 + $0xf0] sm:$0xf]
        %v1402 = vld [vmem:[%s433 + $0xf4] sm:$0xf]
        %v1403 = vld [vmem:[%s433 + $0xf8] sm:$0xf]
        %v1404 = vld [vmem:[%s433 + $0xfc] sm:$0xf]
        %v1405 = vunpack.c.l.bf16 %v1341
        %v1406 = vunpack.c.l.bf16 %v1342
        %v1407 = vunpack.c.l.bf16 %v1343
        %v1408 = vunpack.c.l.bf16 %v1344
        %v1409 = vunpack.c.l.bf16 %v1345
        %v1410 = vunpack.c.l.bf16 %v1346
        %v1411 = vunpack.c.l.bf16 %v1347
        %v1412 = vunpack.c.l.bf16 %v1348
        %v1413 = vunpack.c.l.bf16 %v1349
        %v1414 = vunpack.c.l.bf16 %v1350
        %v1415 = vunpack.c.l.bf16 %v1351
        %v1416 = vunpack.c.l.bf16 %v1352
        %v1417 = vunpack.c.l.bf16 %v1353
        %v1418 = vunpack.c.l.bf16 %v1354
        %v1419 = vunpack.c.l.bf16 %v1355
        %v1420 = vunpack.c.l.bf16 %v1356
        %v1421 = vunpack.c.l.bf16 %v1357
        %v1422 = vunpack.c.l.bf16 %v1358
        %v1423 = vunpack.c.l.bf16 %v1359
        %v1424 = vunpack.c.l.bf16 %v1360
        %v1425 = vunpack.c.l.bf16 %v1361
        %v1426 = vunpack.c.l.bf16 %v1362
        %v1427 = vunpack.c.l.bf16 %v1363
        %v1428 = vunpack.c.l.bf16 %v1364
        %v1429 = vunpack.c.l.bf16 %v1365
        %v1430 = vunpack.c.l.bf16 %v1366
        %v1431 = vunpack.c.l.bf16 %v1367
        %v1432 = vunpack.c.l.bf16 %v1368
        %v1433 = vunpack.c.l.bf16 %v1369
        %v1434 = vunpack.c.l.bf16 %v1370
        %v1435 = vunpack.c.l.bf16 %v1371
        %v1436 = vunpack.c.l.bf16 %v1372
        %v1437 = vunpack.c.l.bf16 %v1373
        %v1438 = vunpack.c.l.bf16 %v1374
        %v1439 = vunpack.c.l.bf16 %v1375
        %v1440 = vunpack.c.l.bf16 %v1376
        %v1441 = vunpack.c.l.bf16 %v1377
        %v1442 = vunpack.c.l.bf16 %v1378
        %v1443 = vunpack.c.l.bf16 %v1379
        %v1444 = vunpack.c.l.bf16 %v1380
        %v1445 = vunpack.c.l.bf16 %v1381
        %v1446 = vunpack.c.l.bf16 %v1382
        %v1447 = vunpack.c.l.bf16 %v1383
        %v1448 = vunpack.c.l.bf16 %v1384
        %v1449 = vunpack.c.l.bf16 %v1385
        %v1450 = vunpack.c.l.bf16 %v1386
        %v1451 = vunpack.c.l.bf16 %v1387
        %v1452 = vunpack.c.l.bf16 %v1388
        %v1453 = vunpack.c.l.bf16 %v1389
        %v1454 = vunpack.c.l.bf16 %v1390
        %v1455 = vunpack.c.l.bf16 %v1391
        %v1456 = vunpack.c.l.bf16 %v1392
        %v1457 = vunpack.c.l.bf16 %v1393
        %v1458 = vunpack.c.l.bf16 %v1394
        %v1459 = vunpack.c.l.bf16 %v1395
        %v1460 = vunpack.c.l.bf16 %v1396
        %v1461 = vunpack.c.l.bf16 %v1397
        %v1462 = vunpack.c.l.bf16 %v1398
        %v1463 = vunpack.c.l.bf16 %v1399
        %v1464 = vunpack.c.l.bf16 %v1400
        %v1465 = vunpack.c.l.bf16 %v1401
        %v1466 = vunpack.c.l.bf16 %v1402
        %v1467 = vunpack.c.l.bf16 %v1403
        %v1468 = vunpack.c.l.bf16 %v1404
        %v1469 = vadd.f32 %v1277, %v1405
        %v1470 = vadd.f32 %v1278, %v1406
        %v1471 = vadd.f32 %v1279, %v1407
        %v1472 = vadd.f32 %v1280, %v1408
        %v1473 = vadd.f32 %v1281, %v1409
        %v1474 = vadd.f32 %v1282, %v1410
        %v1475 = vadd.f32 %v1283, %v1411
        %v1476 = vadd.f32 %v1284, %v1412
        %v1477 = vadd.f32 %v1285, %v1413
        %v1478 = vadd.f32 %v1286, %v1414
        %v1479 = vadd.f32 %v1287, %v1415
        %v1480 = vadd.f32 %v1288, %v1416
        %v1481 = vadd.f32 %v1289, %v1417
        %v1482 = vadd.f32 %v1290, %v1418
        %v1483 = vadd.f32 %v1291, %v1419
        %v1484 = vadd.f32 %v1292, %v1420
        %v1485 = vadd.f32 %v1293, %v1421
        %v1486 = vadd.f32 %v1294, %v1422
        %v1487 = vadd.f32 %v1295, %v1423
        %v1488 = vadd.f32 %v1296, %v1424
        %v1489 = vadd.f32 %v1297, %v1425
        %v1490 = vadd.f32 %v1298, %v1426
        %v1491 = vadd.f32 %v1299, %v1427
        %v1492 = vadd.f32 %v1300, %v1428
        %v1493 = vadd.f32 %v1301, %v1429
        %v1494 = vadd.f32 %v1302, %v1430
        %v1495 = vadd.f32 %v1303, %v1431
        %v1496 = vadd.f32 %v1304, %v1432
        %v1497 = vadd.f32 %v1305, %v1433
        %v1498 = vadd.f32 %v1306, %v1434
        %v1499 = vadd.f32 %v1307, %v1435
        %v1500 = vadd.f32 %v1308, %v1436
        %v1501 = vadd.f32 %v1309, %v1437
        %v1502 = vadd.f32 %v1310, %v1438
        %v1503 = vadd.f32 %v1311, %v1439
        %v1504 = vadd.f32 %v1312, %v1440
        %v1505 = vadd.f32 %v1313, %v1441
        %v1506 = vadd.f32 %v1314, %v1442
        %v1507 = vadd.f32 %v1315, %v1443
        %v1508 = vadd.f32 %v1316, %v1444
        %v1509 = vadd.f32 %v1317, %v1445
        %v1510 = vadd.f32 %v1318, %v1446
        %v1511 = vadd.f32 %v1319, %v1447
        %v1512 = vadd.f32 %v1320, %v1448
        %v1513 = vadd.f32 %v1321, %v1449
        %v1514 = vadd.f32 %v1322, %v1450
        %v1515 = vadd.f32 %v1323, %v1451
        %v1516 = vadd.f32 %v1324, %v1452
        %v1517 = vadd.f32 %v1325, %v1453
        %v1518 = vadd.f32 %v1326, %v1454
        %v1519 = vadd.f32 %v1327, %v1455
        %v1520 = vadd.f32 %v1328, %v1456
        %v1521 = vadd.f32 %v1329, %v1457
        %v1522 = vadd.f32 %v1330, %v1458
        %v1523 = vadd.f32 %v1331, %v1459
        %v1524 = vadd.f32 %v1332, %v1460
        %v1525 = vadd.f32 %v1333, %v1461
        %v1526 = vadd.f32 %v1334, %v1462
        %v1527 = vadd.f32 %v1335, %v1463
        %v1528 = vadd.f32 %v1336, %v1464
        %v1529 = vadd.f32 %v1337, %v1465
        %v1530 = vadd.f32 %v1338, %v1466
        %v1531 = vadd.f32 %v1339, %v1467
        %v1532 = vadd.f32 %v1340, %v1468
        %v1533 = vpack.c.bf16 %v1470, %v1469
        %v1534 = vpack.c.bf16 %v1472, %v1471
        %v1535 = vpack.c.bf16 %v1474, %v1473
        %v1536 = vpack.c.bf16 %v1476, %v1475
        %v1537 = vpack.c.bf16 %v1478, %v1477
        %v1538 = vpack.c.bf16 %v1480, %v1479
        %v1539 = vpack.c.bf16 %v1482, %v1481
        %v1540 = vpack.c.bf16 %v1484, %v1483
        %v1541 = vpack.c.bf16 %v1486, %v1485
        %v1542 = vpack.c.bf16 %v1488, %v1487
        %v1543 = vpack.c.bf16 %v1490, %v1489
        %v1544 = vpack.c.bf16 %v1492, %v1491
        %v1545 = vpack.c.bf16 %v1494, %v1493
        %v1546 = vpack.c.bf16 %v1496, %v1495
        %v1547 = vpack.c.bf16 %v1498, %v1497
        %v1548 = vpack.c.bf16 %v1500, %v1499
        %v1549 = vpack.c.bf16 %v1502, %v1501
        %v1550 = vpack.c.bf16 %v1504, %v1503
        %v1551 = vpack.c.bf16 %v1506, %v1505
        %v1552 = vpack.c.bf16 %v1508, %v1507
        %v1553 = vpack.c.bf16 %v1510, %v1509
        %v1554 = vpack.c.bf16 %v1512, %v1511
        %v1555 = vpack.c.bf16 %v1514, %v1513
        %v1556 = vpack.c.bf16 %v1516, %v1515
        %v1557 = vpack.c.bf16 %v1518, %v1517
        %v1558 = vpack.c.bf16 %v1520, %v1519
        %v1559 = vpack.c.bf16 %v1522, %v1521
        %v1560 = vpack.c.bf16 %v1524, %v1523
        %v1561 = vpack.c.bf16 %v1526, %v1525
        %v1562 = vpack.c.bf16 %v1528, %v1527
        %v1563 = vpack.c.bf16 %v1530, %v1529
        %v1564 = vpack.c.bf16 %v1532, %v1531
        %v1597 = vunpack.c.l.b16 %v1533
        %v1598 = vunpack.c.h.b16 %v1533
        %v1599 = vunpack.c.l.b16 %v1534
        %v1600 = vunpack.c.h.b16 %v1534
        %v1601 = vunpack.c.l.b16 %v1535
        %v1602 = vunpack.c.h.b16 %v1535
        %v1603 = vunpack.c.l.b16 %v1536
        %v1604 = vunpack.c.h.b16 %v1536
        %v1605 = vunpack.c.l.b16 %v1537
        %v1606 = vunpack.c.h.b16 %v1537
        %v1607 = vunpack.c.l.b16 %v1538
        %v1608 = vunpack.c.h.b16 %v1538
        %v1609 = vunpack.c.l.b16 %v1539
        %v1610 = vunpack.c.h.b16 %v1539
        %v1611 = vunpack.c.l.b16 %v1540
        %v1612 = vunpack.c.h.b16 %v1540
        %v1613 = vunpack.c.l.b16 %v1541
        %v1614 = vunpack.c.h.b16 %v1541
        %v1615 = vunpack.c.l.b16 %v1542
        %v1616 = vunpack.c.h.b16 %v1542
        %v1617 = vunpack.c.l.b16 %v1543
        %v1618 = vunpack.c.h.b16 %v1543
        %v1619 = vunpack.c.l.b16 %v1544
        %v1620 = vunpack.c.h.b16 %v1544
        %v1621 = vunpack.c.l.b16 %v1545
        %v1622 = vunpack.c.h.b16 %v1545
        %v1623 = vunpack.c.l.b16 %v1546
        %v1624 = vunpack.c.h.b16 %v1546
        %v1625 = vunpack.c.l.b16 %v1547
        %v1626 = vunpack.c.h.b16 %v1547
        %v1627 = vunpack.c.l.b16 %v1548
        %v1628 = vunpack.c.h.b16 %v1548
        %v1629 = vunpack.c.l.b16 %v1549
        %v1630 = vunpack.c.h.b16 %v1549
        %v1631 = vunpack.c.l.b16 %v1550
        %v1632 = vunpack.c.h.b16 %v1550
        %v1633 = vunpack.c.l.b16 %v1551
        %v1634 = vunpack.c.h.b16 %v1551
        %v1635 = vunpack.c.l.b16 %v1552
        %v1636 = vunpack.c.h.b16 %v1552
        %v1637 = vunpack.c.l.b16 %v1553
        %v1638 = vunpack.c.h.b16 %v1553
        %v1639 = vunpack.c.l.b16 %v1554
        %v1640 = vunpack.c.h.b16 %v1554
        %v1641 = vunpack.c.l.b16 %v1555
        %v1642 = vunpack.c.h.b16 %v1555
        %v1643 = vunpack.c.l.b16 %v1556
        %v1644 = vunpack.c.h.b16 %v1556
        %v1645 = vunpack.c.l.b16 %v1557
        %v1646 = vunpack.c.h.b16 %v1557
        %v1647 = vunpack.c.l.b16 %v1558
        %v1648 = vunpack.c.h.b16 %v1558
        %v1649 = vunpack.c.l.b16 %v1559
        %v1650 = vunpack.c.h.b16 %v1559
        %v1651 = vunpack.c.l.b16 %v1560
        %v1652 = vunpack.c.h.b16 %v1560
        %v1653 = vunpack.c.l.b16 %v1561
        %v1654 = vunpack.c.h.b16 %v1561
        %v1655 = vunpack.c.l.b16 %v1562
        %v1656 = vunpack.c.h.b16 %v1562
        %v1657 = vunpack.c.l.b16 %v1563
        %v1658 = vunpack.c.h.b16 %v1563
        %v1659 = vunpack.c.l.b16 %v1564
        %v1660 = vunpack.c.h.b16 %v1564
        %v1661 = vpack.c.b16 %v1597, %v1597
        %v1662 = vpack.c.b16 %v1598, %v1598
        %v1663 = vpack.c.b16 %v1599, %v1599
        %v1664 = vpack.c.b16 %v1600, %v1600
        %v1665 = vpack.c.b16 %v1601, %v1601
        %v1666 = vpack.c.b16 %v1602, %v1602
        %v1667 = vpack.c.b16 %v1603, %v1603
        %v1668 = vpack.c.b16 %v1604, %v1604
        %v1669 = vpack.c.b16 %v1605, %v1605
        %v1670 = vpack.c.b16 %v1606, %v1606
        %v1671 = vpack.c.b16 %v1607, %v1607
        %v1672 = vpack.c.b16 %v1608, %v1608
        %v1673 = vpack.c.b16 %v1609, %v1609
        %v1674 = vpack.c.b16 %v1610, %v1610
        %v1675 = vpack.c.b16 %v1611, %v1611
        %v1676 = vpack.c.b16 %v1612, %v1612
        %v1677 = vpack.c.b16 %v1613, %v1613
        %v1678 = vpack.c.b16 %v1614, %v1614
        %v1679 = vpack.c.b16 %v1615, %v1615
        %v1680 = vpack.c.b16 %v1616, %v1616
        %v1681 = vpack.c.b16 %v1617, %v1617
        %v1682 = vpack.c.b16 %v1618, %v1618
        %v1683 = vpack.c.b16 %v1619, %v1619
        %v1684 = vpack.c.b16 %v1620, %v1620
        %v1685 = vpack.c.b16 %v1621, %v1621
        %v1686 = vpack.c.b16 %v1622, %v1622
        %v1687 = vpack.c.b16 %v1623, %v1623
        %v1688 = vpack.c.b16 %v1624, %v1624
        %v1689 = vpack.c.b16 %v1625, %v1625
        %v1690 = vpack.c.b16 %v1626, %v1626
        %v1691 = vpack.c.b16 %v1627, %v1627
        %v1692 = vpack.c.b16 %v1628, %v1628
        %v1693 = vpack.c.b16 %v1629, %v1629
        %v1694 = vpack.c.b16 %v1630, %v1630
        %v1695 = vpack.c.b16 %v1631, %v1631
        %v1696 = vpack.c.b16 %v1632, %v1632
        %v1697 = vpack.c.b16 %v1633, %v1633
        %v1698 = vpack.c.b16 %v1634, %v1634
        %v1699 = vpack.c.b16 %v1635, %v1635
        %v1700 = vpack.c.b16 %v1636, %v1636
        %v1701 = vpack.c.b16 %v1637, %v1637
        %v1702 = vpack.c.b16 %v1638, %v1638
        %v1703 = vpack.c.b16 %v1639, %v1639
        %v1704 = vpack.c.b16 %v1640, %v1640
        %v1705 = vpack.c.b16 %v1641, %v1641
        %v1706 = vpack.c.b16 %v1642, %v1642
        %v1707 = vpack.c.b16 %v1643, %v1643
        %v1708 = vpack.c.b16 %v1644, %v1644
        %v1709 = vpack.c.b16 %v1645, %v1645
        %v1710 = vpack.c.b16 %v1646, %v1646
        %v1711 = vpack.c.b16 %v1647, %v1647
        %v1712 = vpack.c.b16 %v1648, %v1648
        %v1713 = vpack.c.b16 %v1649, %v1649
        %v1714 = vpack.c.b16 %v1650, %v1650
        %v1715 = vpack.c.b16 %v1651, %v1651
        %v1716 = vpack.c.b16 %v1652, %v1652
        %v1717 = vpack.c.b16 %v1653, %v1653
        %v1718 = vpack.c.b16 %v1654, %v1654
        %v1719 = vpack.c.b16 %v1655, %v1655
        %v1720 = vpack.c.b16 %v1656, %v1656
        %v1721 = vpack.c.b16 %v1657, %v1657
        %v1722 = vpack.c.b16 %v1658, %v1658
        %v1723 = vpack.c.b16 %v1659, %v1659
        %v1724 = vpack.c.b16 %v1660, %v1660
        %1789 = vst [vmem:[%s482] sm:$0xf] %v1661
        %1790 = vst [vmem:[%s482 + $0x4] sm:$0xf] %v1662
        %1791 = vst [vmem:[%s482 + $0x8] sm:$0xf] %v1663
        %1792 = vst [vmem:[%s482 + $0xc] sm:$0xf] %v1664
        %1793 = vst [vmem:[%s482 + $0x10] sm:$0xf] %v1665
        %1794 = vst [vmem:[%s482 + $0x14] sm:$0xf] %v1666
        %1795 = vst [vmem:[%s482 + $0x18] sm:$0xf] %v1667
        %1796 = vst [vmem:[%s482 + $0x1c] sm:$0xf] %v1668
        %1797 = vst [vmem:[%s482 + $0x20] sm:$0xf] %v1669
        %1798 = vst [vmem:[%s482 + $0x24] sm:$0xf] %v1670
        %1799 = vst [vmem:[%s482 + $0x28] sm:$0xf] %v1671
        %1800 = vst [vmem:[%s482 + $0x2c] sm:$0xf] %v1672
        %1801 = vst [vmem:[%s482 + $0x30] sm:$0xf] %v1673
        %1802 = vst [vmem:[%s482 + $0x34] sm:$0xf] %v1674
        %1803 = vst [vmem:[%s482 + $0x38] sm:$0xf] %v1675
        %1804 = vst [vmem:[%s482 + $0x3c] sm:$0xf] %v1676
        %1805 = vst [vmem:[%s482 + $0x40] sm:$0xf] %v1677
        %1806 = vst [vmem:[%s482 + $0x44] sm:$0xf] %v1678
        %1807 = vst [vmem:[%s482 + $0x48] sm:$0xf] %v1679
        %1808 = vst [vmem:[%s482 + $0x4c] sm:$0xf] %v1680
        %1809 = vst [vmem:[%s482 + $0x50] sm:$0xf] %v1681
        %1810 = vst [vmem:[%s482 + $0x54] sm:$0xf] %v1682
        %1811 = vst [vmem:[%s482 + $0x58] sm:$0xf] %v1683
        %1812 = vst [vmem:[%s482 + $0x5c] sm:$0xf] %v1684
        %1813 = vst [vmem:[%s482 + $0x60] sm:$0xf] %v1685
        %1814 = vst [vmem:[%s482 + $0x64] sm:$0xf] %v1686
        %1815 = vst [vmem:[%s482 + $0x68] sm:$0xf] %v1687
        %1816 = vst [vmem:[%s482 + $0x6c] sm:$0xf] %v1688
        %1817 = vst [vmem:[%s482 + $0x70] sm:$0xf] %v1689
        %1818 = vst [vmem:[%s482 + $0x74] sm:$0xf] %v1690
        %1819 = vst [vmem:[%s482 + $0x78] sm:$0xf] %v1691
        %1820 = vst [vmem:[%s482 + $0x7c] sm:$0xf] %v1692
        %1821 = vst [vmem:[%s482 + $0x80] sm:$0xf] %v1693
        %1822 = vst [vmem:[%s482 + $0x84] sm:$0xf] %v1694
        %1823 = vst [vmem:[%s482 + $0x88] sm:$0xf] %v1695
        %1824 = vst [vmem:[%s482 + $0x8c] sm:$0xf] %v1696
        %1825 = vst [vmem:[%s482 + $0x90] sm:$0xf] %v1697
        %1826 = vst [vmem:[%s482 + $0x94] sm:$0xf] %v1698
        %1827 = vst [vmem:[%s482 + $0x98] sm:$0xf] %v1699
        %1828 = vst [vmem:[%s482 + $0x9c] sm:$0xf] %v1700
        %1829 = vst [vmem:[%s482 + $0xa0] sm:$0xf] %v1701
        %1830 = vst [vmem:[%s482 + $0xa4] sm:$0xf] %v1702
        %1831 = vst [vmem:[%s482 + $0xa8] sm:$0xf] %v1703
        %1832 = vst [vmem:[%s482 + $0xac] sm:$0xf] %v1704
        %1833 = vst [vmem:[%s482 + $0xb0] sm:$0xf] %v1705
        %1834 = vst [vmem:[%s482 + $0xb4] sm:$0xf] %v1706
        %1835 = vst [vmem:[%s482 + $0xb8] sm:$0xf] %v1707
        %1836 = vst [vmem:[%s482 + $0xbc] sm:$0xf] %v1708
        %1837 = vst [vmem:[%s482 + $0xc0] sm:$0xf] %v1709
        %1838 = vst [vmem:[%s482 + $0xc4] sm:$0xf] %v1710
        %1839 = vst [vmem:[%s482 + $0xc8] sm:$0xf] %v1711
        %1840 = vst [vmem:[%s482 + $0xcc] sm:$0xf] %v1712
        %1841 = vst [vmem:[%s482 + $0xd0] sm:$0xf] %v1713
        %1842 = vst [vmem:[%s482 + $0xd4] sm:$0xf] %v1714
        %1843 = vst [vmem:[%s482 + $0xd8] sm:$0xf] %v1715
        %1844 = vst [vmem:[%s482 + $0xdc] sm:$0xf] %v1716
        %1845 = vst [vmem:[%s482 + $0xe0] sm:$0xf] %v1717
        %1846 = vst [vmem:[%s482 + $0xe4] sm:$0xf] %v1718
        %1847 = vst [vmem:[%s482 + $0xe8] sm:$0xf] %v1719
        %1848 = vst [vmem:[%s482 + $0xec] sm:$0xf] %v1720
        %1849 = vst [vmem:[%s482 + $0xf0] sm:$0xf] %v1721
        %1850 = vst [vmem:[%s482 + $0xf4] sm:$0xf] %v1722
        %1851 = vst [vmem:[%s482 + $0xf8] sm:$0xf] %v1723
        %1852 = vst [vmem:[%s482 + $0xfc] sm:$0xf] %v1724
        %v1853 = vadd.f32 %v1469, %v1470
        %v1854 = vadd.f32 %v1853, %v1471
        %v1855 = vadd.f32 %v1854, %v1472
        %v1856 = vadd.f32 %v1855, %v1473
        %v1857 = vadd.f32 %v1856, %v1474
        %v1858 = vadd.f32 %v1857, %v1475
        %v1859 = vadd.f32 %v1858, %v1476
        %v1860 = vadd.f32 %v1859, %v1477
        %v1861 = vadd.f32 %v1860, %v1478
        %v1862 = vadd.f32 %v1861, %v1479
        %v1863 = vadd.f32 %v1862, %v1480
        %v1864 = vadd.f32 %v1863, %v1481
        %v1865 = vadd.f32 %v1864, %v1482
        %v1866 = vadd.f32 %v1865, %v1483
        %v1867 = vadd.f32 %v1866, %v1484
        %v1868 = vadd.f32 %v1867, %v1485
        %v1869 = vadd.f32 %v1868, %v1486
        %v1870 = vadd.f32 %v1869, %v1487
        %v1871 = vadd.f32 %v1870, %v1488
        %v1872 = vadd.f32 %v1871, %v1489
        %v1873 = vadd.f32 %v1872, %v1490
        %v1874 = vadd.f32 %v1873, %v1491
        %v1875 = vadd.f32 %v1874, %v1492
        %v1876 = vadd.f32 %v1875, %v1493
        %v1877 = vadd.f32 %v1876, %v1494
        %v1878 = vadd.f32 %v1877, %v1495
        %v1879 = vadd.f32 %v1878, %v1496
        %v1880 = vadd.f32 %v1879, %v1497
        %v1881 = vadd.f32 %v1880, %v1498
        %v1882 = vadd.f32 %v1881, %v1499
        %v1883 = vadd.f32 %v1882, %v1500
        %v1884 = vadd.f32 %v1883, %v1501
        %v1885 = vadd.f32 %v1884, %v1502
        %v1886 = vadd.f32 %v1885, %v1503
        %v1887 = vadd.f32 %v1886, %v1504
        %v1888 = vadd.f32 %v1887, %v1505
        %v1889 = vadd.f32 %v1888, %v1506
        %v1890 = vadd.f32 %v1889, %v1507
        %v1891 = vadd.f32 %v1890, %v1508
        %v1892 = vadd.f32 %v1891, %v1509
        %v1893 = vadd.f32 %v1892, %v1510
        %v1894 = vadd.f32 %v1893, %v1511
        %v1895 = vadd.f32 %v1894, %v1512
        %v1896 = vadd.f32 %v1895, %v1513
        %v1897 = vadd.f32 %v1896, %v1514
        %v1898 = vadd.f32 %v1897, %v1515
        %v1899 = vadd.f32 %v1898, %v1516
        %v1900 = vadd.f32 %v1899, %v1517
        %v1901 = vadd.f32 %v1900, %v1518
        %v1902 = vadd.f32 %v1901, %v1519
        %v1903 = vadd.f32 %v1902, %v1520
        %v1904 = vadd.f32 %v1903, %v1521
        %v1905 = vadd.f32 %v1904, %v1522
        %v1906 = vadd.f32 %v1905, %v1523
        %v1907 = vadd.f32 %v1906, %v1524
        %v1908 = vadd.f32 %v1907, %v1525
        %v1909 = vadd.f32 %v1908, %v1526
        %v1910 = vadd.f32 %v1909, %v1527
        %v1911 = vadd.f32 %v1910, %v1528
        %v1912 = vadd.f32 %v1911, %v1529
        %v1913 = vadd.f32 %v1912, %v1530
        %v1914 = vadd.f32 %v1913, %v1531
        %v1915 = vadd.f32 %v1914, %v1532
        %v1916 = vrot.slane %v1915, 4
        %v1917 = vadd.f32 %v1915, %v1916
        %v1918 = vrot.slane %v1917, 2
        %v1919 = vadd.f32 %v1917, %v1918
        %v1920 = vrot.slane %v1919, 1
        %v1921 = vadd.f32 %v1919, %v1920
        %1922 = vst [vmem:[%s489] sm:$0x1] %v1921
        %v1923 = vmul.f32 %v1469, %v1469
        %v1924 = vmul.f32 %v1470, %v1470
        %v1925 = vmul.f32 %v1471, %v1471
        %v1926 = vmul.f32 %v1472, %v1472
        %v1927 = vmul.f32 %v1473, %v1473
        %v1928 = vmul.f32 %v1474, %v1474
        %v1929 = vmul.f32 %v1475, %v1475
        %v1930 = vmul.f32 %v1476, %v1476
        %v1931 = vmul.f32 %v1477, %v1477
        %v1932 = vmul.f32 %v1478, %v1478
        %v1933 = vmul.f32 %v1479, %v1479
        %v1934 = vmul.f32 %v1480, %v1480
        %v1935 = vmul.f32 %v1481, %v1481
        %v1936 = vmul.f32 %v1482, %v1482
        %v1937 = vmul.f32 %v1483, %v1483
        %v1938 = vmul.f32 %v1484, %v1484
        %v1939 = vmul.f32 %v1485, %v1485
        %v1940 = vmul.f32 %v1486, %v1486
        %v1941 = vmul.f32 %v1487, %v1487
        %v1942 = vmul.f32 %v1488, %v1488
        %v1943 = vmul.f32 %v1489, %v1489
        %v1944 = vmul.f32 %v1490, %v1490
        %v1945 = vmul.f32 %v1491, %v1491
        %v1946 = vmul.f32 %v1492, %v1492
        %v1947 = vmul.f32 %v1493, %v1493
        %v1948 = vmul.f32 %v1494, %v1494
        %v1949 = vmul.f32 %v1495, %v1495
        %v1950 = vmul.f32 %v1496, %v1496
        %v1951 = vmul.f32 %v1497, %v1497
        %v1952 = vmul.f32 %v1498, %v1498
        %v1953 = vmul.f32 %v1499, %v1499
        %v1954 = vmul.f32 %v1500, %v1500
        %v1955 = vmul.f32 %v1501, %v1501
        %v1956 = vmul.f32 %v1502, %v1502
        %v1957 = vmul.f32 %v1503, %v1503
        %v1958 = vmul.f32 %v1504, %v1504
        %v1959 = vmul.f32 %v1505, %v1505
        %v1960 = vmul.f32 %v1506, %v1506
        %v1961 = vmul.f32 %v1507, %v1507
        %v1962 = vmul.f32 %v1508, %v1508
        %v1963 = vmul.f32 %v1509, %v1509
        %v1964 = vmul.f32 %v1510, %v1510
        %v1965 = vmul.f32 %v1511, %v1511
        %v1966 = vmul.f32 %v1512, %v1512
        %v1967 = vmul.f32 %v1513, %v1513
        %v1968 = vmul.f32 %v1514, %v1514
        %v1969 = vmul.f32 %v1515, %v1515
        %v1970 = vmul.f32 %v1516, %v1516
        %v1971 = vmul.f32 %v1517, %v1517
        %v1972 = vmul.f32 %v1518, %v1518
        %v1973 = vmul.f32 %v1519, %v1519
        %v1974 = vmul.f32 %v1520, %v1520
        %v1975 = vmul.f32 %v1521, %v1521
        %v1976 = vmul.f32 %v1522, %v1522
        %v1977 = vmul.f32 %v1523, %v1523
        %v1978 = vmul.f32 %v1524, %v1524
        %v1979 = vmul.f32 %v1525, %v1525
        %v1980 = vmul.f32 %v1526, %v1526
        %v1981 = vmul.f32 %v1527, %v1527
        %v1982 = vmul.f32 %v1528, %v1528
        %v1983 = vmul.f32 %v1529, %v1529
        %v1984 = vmul.f32 %v1530, %v1530
        %v1985 = vmul.f32 %v1531, %v1531
        %v1986 = vmul.f32 %v1532, %v1532
        %v1987 = vadd.f32 %v1923, %v1924
        %v1988 = vadd.f32 %v1987, %v1925
        %v1989 = vadd.f32 %v1988, %v1926
        %v1990 = vadd.f32 %v1989, %v1927
        %v1991 = vadd.f32 %v1990, %v1928
        %v1992 = vadd.f32 %v1991, %v1929
        %v1993 = vadd.f32 %v1992, %v1930
        %v1994 = vadd.f32 %v1993, %v1931
        %v1995 = vadd.f32 %v1994, %v1932
        %v1996 = vadd.f32 %v1995, %v1933
        %v1997 = vadd.f32 %v1996, %v1934
        %v1998 = vadd.f32 %v1997, %v1935
        %v1999 = vadd.f32 %v1998, %v1936
        %v2000 = vadd.f32 %v1999, %v1937
        %v2001 = vadd.f32 %v2000, %v1938
        %v2002 = vadd.f32 %v2001, %v1939
        %v2003 = vadd.f32 %v2002, %v1940
        %v2004 = vadd.f32 %v2003, %v1941
        %v2005 = vadd.f32 %v2004, %v1942
        %v2006 = vadd.f32 %v2005, %v1943
        %v2007 = vadd.f32 %v2006, %v1944
        %v2008 = vadd.f32 %v2007, %v1945
        %v2009 = vadd.f32 %v2008, %v1946
        %v2010 = vadd.f32 %v2009, %v1947
        %v2011 = vadd.f32 %v2010, %v1948
        %v2012 = vadd.f32 %v2011, %v1949
        %v2013 = vadd.f32 %v2012, %v1950
        %v2014 = vadd.f32 %v2013, %v1951
        %v2015 = vadd.f32 %v2014, %v1952
        %v2016 = vadd.f32 %v2015, %v1953
        %v2017 = vadd.f32 %v2016, %v1954
        %v2018 = vadd.f32 %v2017, %v1955
        %v2019 = vadd.f32 %v2018, %v1956
        %v2020 = vadd.f32 %v2019, %v1957
        %v2021 = vadd.f32 %v2020, %v1958
        %v2022 = vadd.f32 %v2021, %v1959
        %v2023 = vadd.f32 %v2022, %v1960
        %v2024 = vadd.f32 %v2023, %v1961
        %v2025 = vadd.f32 %v2024, %v1962
        %v2026 = vadd.f32 %v2025, %v1963
        %v2027 = vadd.f32 %v2026, %v1964
        %v2028 = vadd.f32 %v2027, %v1965
        %v2029 = vadd.f32 %v2028, %v1966
        %v2030 = vadd.f32 %v2029, %v1967
        %v2031 = vadd.f32 %v2030, %v1968
        %v2032 = vadd.f32 %v2031, %v1969
        %v2033 = vadd.f32 %v2032, %v1970
        %v2034 = vadd.f32 %v2033, %v1971
        %v2035 = vadd.f32 %v2034, %v1972
        %v2036 = vadd.f32 %v2035, %v1973
        %v2037 = vadd.f32 %v2036, %v1974
        %v2038 = vadd.f32 %v2037, %v1975
        %v2039 = vadd.f32 %v2038, %v1976
        %v2040 = vadd.f32 %v2039, %v1977
        %v2041 = vadd.f32 %v2040, %v1978
        %v2042 = vadd.f32 %v2041, %v1979
        %v2043 = vadd.f32 %v2042, %v1980
        %v2044 = vadd.f32 %v2043, %v1981
        %v2045 = vadd.f32 %v2044, %v1982
        %v2046 = vadd.f32 %v2045, %v1983
        %v2047 = vadd.f32 %v2046, %v1984
        %v2048 = vadd.f32 %v2047, %v1985
        %v2049 = vadd.f32 %v2048, %v1986
        %v2050 = vrot.slane %v2049, 4
        %v2051 = vadd.f32 %v2049, %v2050
        %v2052 = vrot.slane %v2051, 2
        %v2053 = vadd.f32 %v2051, %v2052
        %v2054 = vrot.slane %v2053, 1
        %v2055 = vadd.f32 %v2053, %v2054
        %2056 = vst [vmem:[%s489 + $0x1] sm:$0x1] %v2055
        %s2057 = sand.u32 %s205, 1
        %s2058 = scalar_lea.sflag [#allocation4], %s2057
        %s2059 = sand.u32 %s205, 1
        %s2060 = smul.addr %s2059, 256
        %s2061 = scalar_lea.vmem [#allocation13], %s2060
        %s2062 = sand.u32 %s233, 1
        %s2063 = scalar_lea.sflag [#allocation15], %s2062
        %s2064 = sand.u32 %s233, 1
        %s2065 = smul.addr %s2064, 2
        %s2066 = scalar_lea.vmem [#allocation14], %s2065
        // Predicated region
        $region69: #{decoder_cbn2_forward.10} parent=43 // pred_check
          %p2067 = pneg %p215
        $region70: #{decoder_cbn2_forward.10} parent=43 // pred_check_branch
          %2069 = sbr.rel (%p2067) target = $region72
        $region71: #{decoder_cbn2_forward.10} parent=43 // pred_region
          #allocation21 [shape = 'u32[6]{0}', space=smem, size = 0x18, scoped, tag = 'DMA stride descriptor']
          %s2070 = smul.u32 2, %s37
          %s2071 = smul.u32 32, %s38
          %s2073 = ssub.s32 4096, 4096
          %2074 = vsyncadd %s2058, %s2073
          %s2075 = smul.addr %s2070, 256
          %s2076 = sadd.s32 %s2071, %s2075
          %s2077 = smul.addr %s2076, 64
          %s2078 = scalar_lea.hbm %s6, %s2077
          %s2080 = sshll.u32 1, 14
          %s2081 = sxor.u32 4294967295, %s2080
          %s2084 = sshll.u32 7, 18
          %s2085 = sxor.u32 4294967295, %s2084
          %s2086 = sand.u32 0, %s2085
          %s2088 = sor.u32 %s2086, 0
          %s2090 = sshll.u32 3, 24
          %s2091 = sxor.u32 4294967295, %s2090
          %s2092 = sand.u32 %s2088, %s2091
          %s2094 = sor.u32 %s2092, 0
          %s2095 = sshll.u32 %s2061, 4
          %s2096 = int_to_ptr.vmem [resolvable:$true] %s2095
          %2102 = sst [smem:[#allocation21]] 2048
          %s2103 = scalar_lea.smem [#allocation21], 1
          %2104 = sst [smem:[%s2103]] 16384
          %s2105 = scalar_lea.smem [#allocation21], 2
          %2106 = sst [smem:[%s2105]] 32
          %s2107 = scalar_lea.smem [#allocation21], 3
          %2108 = sst [smem:[%s2107]] 64
          %s2109 = scalar_lea.smem [#allocation21], 4
          %2110 = sst [smem:[%s2109]] 64
          %s2111 = scalar_lea.smem [#allocation21], 5
          %2112 = sst [smem:[%s2111]] 4
          %2114 = dma.general %s2096, 4096, %s2078, %s2058, [#allocation20], [#allocation21], %s2094, 0
        $region72: #{decoder_cbn2_forward.10} parent=43 // pred_fallthru
          _
        // Predicated region
        $region73: #{decoder_cbn2_forward.10} parent=43 // pred_check
          %p2115 = pneg %p243
        $region74: #{decoder_cbn2_forward.10} parent=43 // pred_check_branch
          %2117 = sbr.rel (%p2115) target = $region76
        $region75: #{decoder_cbn2_forward.10} parent=43 // pred_region
          %s2119 = ssub.s32 32, 32
          %2120 = vsyncadd %s2063, %s2119
          %s2121 = smul.addr %s37, 8
          %s2122 = sadd.s32 %s38, %s2121
          %s2123 = smul.addr %s2122, 32
          %s2124 = scalar_lea.hbm %s7, %s2123
          %s2126 = sshll.u32 %s2066, 4
          %s2127 = int_to_ptr.vmem [resolvable:$true] %s2126
          %2129 = dma.vmem_to_hbm [thread:$0]  %s2127, 32, %s2124, %s2063
        $region76: #{decoder_cbn2_forward.10} parent=43 // pred_fallthru
          _
      $region44: #{decoder_cbn2_forward.10} parent=5 // pred_fallthru
        _
      %p2130 = scmp.le.s32.totalorder 2, %s28
      // Predicated region
      $region77: #{decoder_cbn2_forward.10} parent=5 // pred_check
        %p2131 = pneg %p2130
      $region78: #{decoder_cbn2_forward.10} parent=5 // pred_check_branch
        %2133 = sbr.rel (%p2131) target = $region80
      $region79: #{decoder_cbn2_forward.10} parent=5 // pred_region
        %s2134 = ssub.s32 %s28, 2
        // Predicated region
        $region81: #{decoder_cbn2_forward.10} parent=79 // pred_check
          %p2135 = pneg %p221
        $region82: #{decoder_cbn2_forward.10} parent=79 // pred_check_branch
          %2137 = sbr.rel (%p2135) target = $region84
        $region83: #{decoder_cbn2_forward.10} parent=79 // pred_region
          %s2138 = sand.u32 %s206, 1
          %s2139 = scalar_lea.sflag [#allocation4], %s2138
          %s2140 = sand.u32 %s206, 1
          %s2141 = smul.addr %s2140, 256
          %s2142 = scalar_lea.vmem [#allocation13], %s2141
          %2143 = dma.done %s2139, 4096
        $region84: #{decoder_cbn2_forward.10} parent=79 // pred_fallthru
          _
        // Predicated region
        $region85: #{decoder_cbn2_forward.10} parent=79 // pred_check
          %p2144 = pneg %p249
        $region86: #{decoder_cbn2_forward.10} parent=79 // pred_check_branch
          %2146 = sbr.rel (%p2144) target = $region88
        $region87: #{decoder_cbn2_forward.10} parent=79 // pred_region
          %s2147 = sand.u32 %s234, 1
          %s2148 = scalar_lea.sflag [#allocation15], %s2147
          %s2149 = sand.u32 %s234, 1
          %s2150 = smul.addr %s2149, 2
          %s2151 = scalar_lea.vmem [#allocation14], %s2150
          %2152 = dma.done %s2148, 32
        $region88: #{decoder_cbn2_forward.10} parent=79 // pred_fallthru
          _
      $region80: #{decoder_cbn2_forward.10} parent=5 // pred_fallthru
        _
    $region6: #{decoder_cbn2_forward.10} parent=1 // loop_footer
      %s32 = sadd.s32 1, %s28
    $region7: #{decoder_cbn2_forward.10} parent=1 // loop_footer_branch
      %27 = sbr.rel target = $region3
    $region8: #{decoder_cbn2_forward.10} parent=1 // loop_exit
      _
    %2153 = vsyncpa [#allocation3], 1
    %s2154 = scalar_lea.sflag [#allocation3], 1
    %2155 = vsyncpa %s2154, 1
    %2156 = vsyncpa [#allocation6], 1
    %s2157 = scalar_lea.sflag [#allocation6], 1
    %2158 = vsyncpa %s2157, 1
    %2159 = vsyncpa [#allocation9], 1
    %2160 = vsyncpa [#allocation12], 1
    %2161 = vsyncpa [#allocation4], 1
    %s2162 = scalar_lea.sflag [#allocation4], 1
    %2163 = vsyncpa %s2162, 1
    %2164 = vsyncpa [#allocation15], 1
    %s2165 = scalar_lea.sflag [#allocation15], 1
    %2166 = vsyncpa %s2165, 1

// kernel: decoder_cbn2_forward.9
$region0: #{decoder_cbn2_forward.9}
  #allocation0 [shape = 'u32[]', space=smem, size = 0x4, offset = 0x4, fixed_abs, tag = 'smem constant byte address 0x4 - core index']
  #allocation1 [shape = 'u32[144,128]{1,0:T(1,128)}', space=vmem, size = 0x12000, scoped, tag = 'internal scratch']
  #allocation14 [shape = 's32[]', space=sflag, size = 0x4, offset = 0, fixed_abs, tag = 'sflag constant byte address 0x0 - dummy sync flag']
  #allocation16 [shape = 's32[]', space=sflag, size = 0x4, offset = 0, fixed_abs, tag = 'sflag constant byte address 0x0 - dummy sync flag']
  %s0 = inlined_call_operand.hbm [shape: bf16[2,2048,128], index: 0, kind: input, shape index: {}]
  %s1 = inlined_call_operand.hbm [shape: f32[2,128], index: 1, kind: input, shape index: {}]
  %s2 = inlined_call_operand.hbm [shape: f32[2,128], index: 2, kind: input, shape index: {}]
  %s3 = inlined_call_operand.hbm [shape: bf16[128,128], index: 3, kind: input, shape index: {}]
  %s4 = inlined_call_operand.hbm [shape: f32[1,128], index: 4, kind: input, shape index: {}]
  %s5 = inlined_call_operand.hbm [shape: bf16[2,2048,128], index: 5, kind: output, shape index: {0}]
  %s6 = inlined_call_operand.hbm [shape: f32[1,8,2,128], index: 6, kind: output, shape index: {1}]
  %7 = xla_tuple %s5, %s6
  %s8 = sld [smem:[#allocation0]]
  $region81: #{decoder_cbn2_forward.9} parent=0
    _
  %s10 = ssub.s32 1, %s8
  %s11 = scalar_select 0, %s10, %s8
  $region1: #{decoder_cbn2_forward.9} parent=0
    #allocation2 [shape = 'u8[262144]{0}', space=vmem, size = 0x40000, scoped, tag = 'input window, operand 0']
    #allocation3 [shape = 's32[2]{0}', space=sflag, size = 0x8, scoped, tag = 'scoped memory for decoder_cbn2_forward.9']
    #allocation4 [shape = 's32[2]{0}', space=sflag, size = 0x8, scoped, tag = 'scoped memory for decoder_cbn2_forward.9']
    #allocation5 [shape = 'u8[1024]{0}', space=vmem, size = 0x400, scoped, tag = 'input window, operand 1, single buffered']
    #allocation6 [shape = 's32[1]{0}', space=sflag, size = 0x4, scoped, tag = 'scoped memory for decoder_cbn2_forward.9']
    #allocation7 [shape = 'u8[1024]{0}', space=vmem, size = 0x400, scoped, tag = 'input window, operand 2, single buffered']
    #allocation8 [shape = 'u8[32768]{0}', space=vmem, size = 0x8000, scoped, tag = 'input window, operand 3, single buffered']
    #allocation9 [shape = 's32[1]{0}', space=sflag, size = 0x4, scoped, tag = 'scoped memory for decoder_cbn2_forward.9']
    #allocation10 [shape = 'u8[512]{0}', space=vmem, size = 0x400, scoped, tag = 'input window, operand 4, single buffered']
    #allocation11 [shape = 'u8[262144]{0}', space=vmem, size = 0x40000, scoped, tag = 'output window, operand 0']
    #allocation12 [shape = 'u8[2048]{0}', space=vmem, size = 0x800, scoped, tag = 'output window, operand 1']
    #allocation13 [shape = 's32[2]{0}', space=sflag, size = 0x8, scoped, tag = 'scoped memory for decoder_cbn2_forward.9']
    %12 = vsyncpa [#allocation3], 0
    %s13 = scalar_lea.sflag [#allocation3], 1
    %14 = vsyncpa %s13, 0
    %15 = vsyncpa [#allocation6], 0
    %16 = vsyncpa [#allocation9], 0
    %17 = vsyncpa [#allocation4], 0
    %s18 = scalar_lea.sflag [#allocation4], 1
    %19 = vsyncpa %s18, 0
    %20 = vsyncpa [#allocation13], 0
    %s21 = scalar_lea.sflag [#allocation13], 1
    %22 = vsyncpa %s21, 0
    loop: start=0, step=1, limit=10
    $region2: #{decoder_cbn2_forward.9} parent=1 // loop_pre_header
      _
    $region3: #{decoder_cbn2_forward.9} parent=1 // loop_header
      %s24 = sphi 0, %s28
      %p25 = scmp.ge.s32.totalorder %s24, 10
      %s31 = sphi 0, %s43
      %s32 = sphi 0, %s39
      %s33 = sphi 0, %s31
      %s34 = sphi 0, %s32
      %s35 = sphi 0, %s33
      %s36 = sphi 0, %s34
      %s48 = sphi 0, %s50
      %s51 = sphi 0, %s48
      %s52 = sphi 0, %s51
      %s68 = sphi 0, %s52
      %s74 = sphi 0, %s76
      %s77 = sphi 0, %s74
      %s78 = sphi 0, %s77
      %s94 = sphi 0, %s78
      %s100 = sphi 0, %s102
      %s103 = sphi 0, %s100
      %s104 = sphi 0, %s103
      %s120 = sphi 0, %s104
      %s124 = sphi 0, %s124
      %s126 = sphi 0, %s124
      %s127 = sphi 0, %s126
      %s141 = sphi 0, %s127
      %s145 = sphi 0, %s145
      %s147 = sphi 0, %s145
      %s148 = sphi 0, %s147
      %s162 = sphi 0, %s148
      %s170 = sphi 0, %s172
      %s173 = sphi 0, %s170
      %s174 = sphi 0, %s173
      %s190 = sphi 0, %s174
      %s198 = sphi 0, %s200
      %s201 = sphi 0, %s198
      %s202 = sphi 0, %s201
      %s218 = sphi 0, %s202
    $region4: #{decoder_cbn2_forward.9} parent=1 // loop_header_branch
      %27 = sbr.rel (%p25) target = $region8
    $region5: #{decoder_cbn2_forward.9} parent=1 // loop_body
      %s29 = ssub.s32 %s24, 1
      %s30 = ssub.s32 %s24, 2
      %s37 = sadd.s32 1, %s32
      %p38 = scmp.ge.s32.totalorder %s37, 8
      %s39 = scalar_select %p38, 0, %s37
      %s40 = sadd.s32 1, %s31
      %s41 = scalar_select %p38, %s40, %s31
      %p42 = scmp.ge.s32.totalorder %s41, 1
      %s43 = scalar_select %p42, 0, %s41
      %s44 = ssub.s32 %s31, %s43
      %s45 = ssub.s32 %s32, %s39
      %s46 = sor.u32 %s44, %s45
      %p47 = scmp.eq.s32.totalorder %s46, 0
      %s49 = sadd.s32 %s48, 1
      %s50 = scalar_select %p47, %s48, %s49
      %p53 = pneg %p47
      %p54 = scmp.eq.s32.totalorder %s24, 7
      %p55 = por %p53, %p54
      %p56 = scmp.ne.s32.totalorder %s48, %s51
      %p57 = scmp.eq.s32.totalorder %s24, 0
      %p58 = por %p56, %p57
      %p59 = scmp.ne.s32.totalorder %s48, %s51
      %p60 = scmp.eq.s32.totalorder %s29, 7
      %p61 = por %p59, %p60
      %p62 = scmp.ne.s32.totalorder %s51, %s52
      %p63 = scmp.eq.s32.totalorder %s29, 0
      %p64 = por %p62, %p63
      %p65 = scmp.ne.s32.totalorder %s51, %s52
      %p66 = scmp.eq.s32.totalorder %s30, 7
      %p67 = por %p65, %p66
      %p69 = scmp.ne.s32.totalorder %s52, %s68
      %p70 = scmp.eq.s32.totalorder %s30, 0
      %p71 = por %p69, %p70
      %s72 = ssub.s32 %s31, %s43
      %p73 = scmp.eq.s32.totalorder %s72, 0
      %s75 = sadd.s32 %s74, 1
      %s76 = scalar_select %p73, %s74, %s75
      %p79 = pneg %p73
      %p80 = scmp.eq.s32.totalorder %s24, 7
      %p81 = por %p79, %p80
      %p82 = scmp.ne.s32.totalorder %s74, %s77
      %p83 = scmp.eq.s32.totalorder %s24, 0
      %p84 = por %p82, %p83
      %p85 = scmp.ne.s32.totalorder %s74, %s77
      %p86 = scmp.eq.s32.totalorder %s29, 7
      %p87 = por %p85, %p86
      %p88 = scmp.ne.s32.totalorder %s77, %s78
      %p89 = scmp.eq.s32.totalorder %s29, 0
      %p90 = por %p88, %p89
      %p91 = scmp.ne.s32.totalorder %s77, %s78
      %p92 = scmp.eq.s32.totalorder %s30, 7
      %p93 = por %p91, %p92
      %p95 = scmp.ne.s32.totalorder %s78, %s94
      %p96 = scmp.eq.s32.totalorder %s30, 0
      %p97 = por %p95, %p96
      %s98 = ssub.s32 %s31, %s43
      %p99 = scmp.eq.s32.totalorder %s98, 0
      %s101 = sadd.s32 %s100, 1
      %s102 = scalar_select %p99, %s100, %s101
      %p105 = pneg %p99
      %p106 = scmp.eq.s32.totalorder %s24, 7
      %p107 = por %p105, %p106
      %p108 = scmp.ne.s32.totalorder %s100, %s103
      %p109 = scmp.eq.s32.totalorder %s24, 0
      %p110 = por %p108, %p109
      %p111 = scmp.ne.s32.totalorder %s100, %s103
      %p112 = scmp.eq.s32.totalorder %s29, 7
      %p113 = por %p111, %p112
      %p114 = scmp.ne.s32.totalorder %s103, %s104
      %p115 = scmp.eq.s32.totalorder %s29, 0
      %p116 = por %p114, %p115
      %p117 = scmp.ne.s32.totalorder %s103, %s104
      %p118 = scmp.eq.s32.totalorder %s30, 7
      %p119 = por %p117, %p118
      %p121 = scmp.ne.s32.totalorder %s104, %s120
      %p122 = scmp.eq.s32.totalorder %s30, 0
      %p123 = por %p121, %p122
      %s125 = sadd.s32 %s124, 1
      %p128 = scmp.eq.s32.totalorder %s24, 7
      %p129 = scmp.ne.s32.totalorder %s124, %s126
      %p130 = scmp.eq.s32.totalorder %s24, 0
      %p131 = por %p129, %p130
      %p132 = scmp.ne.s32.totalorder %s124, %s126
      %p133 = scmp.eq.s32.totalorder %s29, 7
      %p134 = por %p132, %p133
      %p135 = scmp.ne.s32.totalorder %s126, %s127
      %p136 = scmp.eq.s32.totalorder %s29, 0
      %p137 = por %p135, %p136
      %p138 = scmp.ne.s32.totalorder %s126, %s127
      %p139 = scmp.eq.s32.totalorder %s30, 7
      %p140 = por %p138, %p139
      %p142 = scmp.ne.s32.totalorder %s127, %s141
      %p143 = scmp.eq.s32.totalorder %s30, 0
      %p144 = por %p142, %p143
      %s146 = sadd.s32 %s145, 1
      %p149 = scmp.eq.s32.totalorder %s24, 7
      %p150 = scmp.ne.s32.totalorder %s145, %s147
      %p151 = scmp.eq.s32.totalorder %s24, 0
      %p152 = por %p150, %p151
      %p153 = scmp.ne.s32.totalorder %s145, %s147
      %p154 = scmp.eq.s32.totalorder %s29, 7
      %p155 = por %p153, %p154
      %p156 = scmp.ne.s32.totalorder %s147, %s148
      %p157 = scmp.eq.s32.totalorder %s29, 0
      %p158 = por %p156, %p157
      %p159 = scmp.ne.s32.totalorder %s147, %s148
      %p160 = scmp.eq.s32.totalorder %s30, 7
      %p161 = por %p159, %p160
      %p163 = scmp.ne.s32.totalorder %s148, %s162
      %p164 = scmp.eq.s32.totalorder %s30, 0
      %p165 = por %p163, %p164
      %s166 = ssub.s32 %s31, %s43
      %s167 = ssub.s32 %s32, %s39
      %s168 = sor.u32 %s166, %s167
      %p169 = scmp.eq.s32.totalorder %s168, 0
      %s171 = sadd.s32 %s170, 1
      %s172 = scalar_select %p169, %s170, %s171
      %p175 = pneg %p169
      %p176 = scmp.eq.s32.totalorder %s24, 7
      %p177 = por %p175, %p176
      %p178 = scmp.ne.s32.totalorder %s170, %s173
      %p179 = scmp.eq.s32.totalorder %s24, 0
      %p180 = por %p178, %p179
      %p181 = scmp.ne.s32.totalorder %s170, %s173
      %p182 = scmp.eq.s32.totalorder %s29, 7
      %p183 = por %p181, %p182
      %p184 = scmp.ne.s32.totalorder %s173, %s174
      %p185 = scmp.eq.s32.totalorder %s29, 0
      %p186 = por %p184, %p185
      %p187 = scmp.ne.s32.totalorder %s173, %s174
      %p188 = scmp.eq.s32.totalorder %s30, 7
      %p189 = por %p187, %p188
      %p191 = scmp.ne.s32.totalorder %s174, %s190
      %p192 = scmp.eq.s32.totalorder %s30, 0
      %p193 = por %p191, %p192
      %s194 = ssub.s32 %s31, %s43
      %s195 = ssub.s32 %s32, %s39
      %s196 = sor.u32 %s194, %s195
      %p197 = scmp.eq.s32.totalorder %s196, 0
      %s199 = sadd.s32 %s198, 1
      %s200 = scalar_select %p197, %s198, %s199
      %p203 = pneg %p197
      %p204 = scmp.eq.s32.totalorder %s24, 7
      %p205 = por %p203, %p204
      %p206 = scmp.ne.s32.totalorder %s198, %s201
      %p207 = scmp.eq.s32.totalorder %s24, 0
      %p208 = por %p206, %p207
      %p209 = scmp.ne.s32.totalorder %s198, %s201
      %p210 = scmp.eq.s32.totalorder %s29, 7
      %p211 = por %p209, %p210
      %p212 = scmp.ne.s32.totalorder %s201, %s202
      %p213 = scmp.eq.s32.totalorder %s29, 0
      %p214 = por %p212, %p213
      %p215 = scmp.ne.s32.totalorder %s201, %s202
      %p216 = scmp.eq.s32.totalorder %s30, 7
      %p217 = por %p215, %p216
      %p219 = scmp.ne.s32.totalorder %s202, %s218
      %p220 = scmp.eq.s32.totalorder %s30, 0
      %p221 = por %p219, %p220
      %p222 = scmp.le.s32.totalorder 1, %s24
      %p223 = scmp.lt.s32.totalorder %s24, 9
      %p224 = pnand %p222, %p223
      %p225 = pneg %p224
      // Predicated region
      $region9: #{decoder_cbn2_forward.9} parent=5 // pred_check
        _
      $region10: #{decoder_cbn2_forward.9} parent=5 // pred_check_branch
        %227 = sbr.rel (%p224) target = $region12
      $region11: #{decoder_cbn2_forward.9} parent=5 // pred_region
        %s228 = ssub.s32 %s24, 1
        // Predicated region
        $region13: #{decoder_cbn2_forward.9} parent=11 // pred_check
          %p229 = pneg %p90
        $region14: #{decoder_cbn2_forward.9} parent=11 // pred_check_branch
          %231 = sbr.rel (%p229) target = $region16
        $region15: #{decoder_cbn2_forward.9} parent=11 // pred_region
          %s233 = ssub.s32 32, 32
          %234 = vsyncadd [#allocation6], %s233
          %s235 = smul.addr %s33, 32
          %s236 = scalar_lea.hbm %s1, %s235
          %s238 = sshll.u32 [#allocation5], 4
          %s239 = int_to_ptr.vmem [resolvable:$true] %s238
          %241 = dma.hbm_to_vmem [thread:$0]  %s236, 32, %s239, [#allocation6]
        $region16: #{decoder_cbn2_forward.9} parent=11 // pred_fallthru
          _
        // Predicated region
        $region17: #{decoder_cbn2_forward.9} parent=11 // pred_check
          %p242 = pneg %p116
        $region18: #{decoder_cbn2_forward.9} parent=11 // pred_check_branch
          %244 = sbr.rel (%p242) target = $region20
        $region19: #{decoder_cbn2_forward.9} parent=11 // pred_region
          %s246 = ssub.s32 32, 32
          %247 = vsyncadd [#allocation6], %s246
          %s248 = smul.addr %s33, 32
          %s249 = scalar_lea.hbm %s2, %s248
          %s251 = sshll.u32 [#allocation7], 4
          %s252 = int_to_ptr.vmem [resolvable:$true] %s251
          %254 = dma.hbm_to_vmem [thread:$0]  %s249, 32, %s252, [#allocation6]
        $region20: #{decoder_cbn2_forward.9} parent=11 // pred_fallthru
          _
        // Predicated region
        $region21: #{decoder_cbn2_forward.9} parent=11 // pred_check
          %p255 = pneg %p137
        $region22: #{decoder_cbn2_forward.9} parent=11 // pred_check_branch
          %257 = sbr.rel (%p255) target = $region24
        $region23: #{decoder_cbn2_forward.9} parent=11 // pred_region
          %s259 = ssub.s32 1024, 1024
          %260 = vsyncadd [#allocation9], %s259
          %s261 = sshll.u32 [#allocation8], 4
          %s262 = int_to_ptr.vmem [resolvable:$true] %s261
          %267 = dma.hbm_to_vmem [thread:$0]  %s3, 1024, %s262, [#allocation9], 64, 64, 4
        $region24: #{decoder_cbn2_forward.9} parent=11 // pred_fallthru
          _
        // Predicated region
        $region25: #{decoder_cbn2_forward.9} parent=11 // pred_check
          %p268 = pneg %p158
        $region26: #{decoder_cbn2_forward.9} parent=11 // pred_check_branch
          %270 = sbr.rel (%p268) target = $region28
        $region27: #{decoder_cbn2_forward.9} parent=11 // pred_region
          %s272 = ssub.s32 16, 16
          %273 = vsyncadd [#allocation9], %s272
          %s275 = sshll.u32 [#allocation10], 4
          %s276 = int_to_ptr.vmem [resolvable:$true] %s275
          %278 = dma.hbm_to_vmem [thread:$0]  %s4, 16, %s276, [#allocation9]
        $region28: #{decoder_cbn2_forward.9} parent=11 // pred_fallthru
          _
      $region12: #{decoder_cbn2_forward.9} parent=5 // pred_fallthru
        _
      %p279 = scmp.lt.s32.totalorder %s24, 8
      // Predicated region
      $region29: #{decoder_cbn2_forward.9} parent=5 // pred_check
        %p280 = pneg %p279
      $region30: #{decoder_cbn2_forward.9} parent=5 // pred_check_branch
        %282 = sbr.rel (%p280) target = $region32
      $region31: #{decoder_cbn2_forward.9} parent=5 // pred_region
        // Predicated region
        $region33: #{decoder_cbn2_forward.9} parent=31 // pred_check
          %p283 = pneg %p58
        $region34: #{decoder_cbn2_forward.9} parent=31 // pred_check_branch
          %285 = sbr.rel (%p283) target = $region36
        $region35: #{decoder_cbn2_forward.9} parent=31 // pred_region
          #allocation15 [shape = 'u32[6]{0}', space=smem, size = 0x18, scoped, tag = 'DMA stride descriptor']
          %s286 = sand.u32 %s48, 1
          %s287 = scalar_lea.sflag [#allocation3], %s286
          %s288 = sand.u32 %s48, 1
          %s289 = smul.addr %s288, 256
          %s290 = scalar_lea.vmem [#allocation2], %s289
          %s291 = smul.u32 2, %s31
          %s292 = smul.u32 32, %s32
          %s294 = ssub.s32 4096, 4096
          %295 = vsyncadd %s287, %s294
          %s296 = smul.addr %s291, 256
          %s297 = sadd.s32 %s292, %s296
          %s298 = smul.addr %s297, 64
          %s299 = scalar_lea.hbm %s0, %s298
          %s301 = sshll.u32 1, 14
          %s302 = sxor.u32 4294967295, %s301
          %s304 = sld [smem:[#allocation0]]
          %s305 = sadd.s32 2, %s304
          %s307 = sshll.u32 7, 26
          %s308 = sxor.u32 4294967295, %s307
          %s309 = sand.u32 0, %s308
          %s310 = sshll.u32 %s305, 26
          %s311 = sor.u32 %s309, %s310
          %s312 = sshll.u32 %s290, 4
          %s313 = int_to_ptr.vmem [resolvable:$true] %s312
          %319 = sst [smem:[#allocation15]] 16384
          %s320 = scalar_lea.smem [#allocation15], 1
          %321 = sst [smem:[%s320]] 2048
          %s322 = scalar_lea.smem [#allocation15], 2
          %323 = sst [smem:[%s322]] 32
          %s324 = scalar_lea.smem [#allocation15], 3
          %325 = sst [smem:[%s324]] 64
          %s326 = scalar_lea.smem [#allocation15], 4
          %327 = sst [smem:[%s326]] 64
          %s328 = scalar_lea.smem [#allocation15], 5
          %329 = sst [smem:[%s328]] 4
          %331 = dma.general %s299, 4096, %s313, %s287, [#allocation14], [#allocation15], %s311, 0
        $region36: #{decoder_cbn2_forward.9} parent=31 // pred_fallthru
          _
      $region32: #{decoder_cbn2_forward.9} parent=5 // pred_fallthru
        _
      %p332 = scmp.le.s32.totalorder 1, %s24
      %p333 = scmp.lt.s32.totalorder %s24, 9
      %p334 = pnand %p332, %p333
      %p335 = pneg %p334
      // Predicated region
      $region37: #{decoder_cbn2_forward.9} parent=5 // pred_check
        _
      $region38: #{decoder_cbn2_forward.9} parent=5 // pred_check_branch
        %337 = sbr.rel (%p334) target = $region40
      $region39: #{decoder_cbn2_forward.9} parent=5 // pred_region
        %s338 = ssub.s32 %s24, 1
        %s339 = sand.u32 %s51, 1
        %s340 = scalar_lea.sflag [#allocation3], %s339
        %s341 = sand.u32 %s51, 1
        %s342 = smul.addr %s341, 256
        %s343 = scalar_lea.vmem [#allocation2], %s342
        // Predicated region
        $region41: #{decoder_cbn2_forward.9} parent=39 // pred_check
          %p344 = pneg %p64
        $region42: #{decoder_cbn2_forward.9} parent=39 // pred_check_branch
          %346 = sbr.rel (%p344) target = $region44
        $region43: #{decoder_cbn2_forward.9} parent=39 // pred_region
          %347 = dma.done %s340, 4096
        $region44: #{decoder_cbn2_forward.9} parent=39 // pred_fallthru
          _
        // Predicated region
        $region45: #{decoder_cbn2_forward.9} parent=39 // pred_check
          %p348 = pneg %p90
        $region46: #{decoder_cbn2_forward.9} parent=39 // pred_check_branch
          %350 = sbr.rel (%p348) target = $region48
        $region47: #{decoder_cbn2_forward.9} parent=39 // pred_region
          %351 = dma.done [#allocation6], 32
        $region48: #{decoder_cbn2_forward.9} parent=39 // pred_fallthru
          _
        // Predicated region
        $region49: #{decoder_cbn2_forward.9} parent=39 // pred_check
          %p352 = pneg %p116
        $region50: #{decoder_cbn2_forward.9} parent=39 // pred_check_branch
          %354 = sbr.rel (%p352) target = $region52
        $region51: #{decoder_cbn2_forward.9} parent=39 // pred_region
          %355 = dma.done [#allocation6], 32
        $region52: #{decoder_cbn2_forward.9} parent=39 // pred_fallthru
          _
        // Predicated region
        $region53: #{decoder_cbn2_forward.9} parent=39 // pred_check
          %p356 = pneg %p137
        $region54: #{decoder_cbn2_forward.9} parent=39 // pred_check_branch
          %358 = sbr.rel (%p356) target = $region56
        $region55: #{decoder_cbn2_forward.9} parent=39 // pred_region
          %359 = dma.done [#allocation9], 1024
        $region56: #{decoder_cbn2_forward.9} parent=39 // pred_fallthru
          _
        // Predicated region
        $region57: #{decoder_cbn2_forward.9} parent=39 // pred_check
          %p360 = pneg %p158
        $region58: #{decoder_cbn2_forward.9} parent=39 // pred_check_branch
          %362 = sbr.rel (%p360) target = $region60
        $region59: #{decoder_cbn2_forward.9} parent=39 // pred_region
          %363 = dma.done [#allocation9], 16
        $region60: #{decoder_cbn2_forward.9} parent=39 // pred_fallthru
          _
        %s364 = sand.u32 %s51, 1
        %s365 = scalar_lea.sflag [#allocation3], %s364
        %s366 = sand.u32 %s51, 1
        %s367 = smul.addr %s366, 256
        %s368 = scalar_lea.vmem [#allocation2], %s367
        %p369 = pneg %p64
        %p370 = pneg %p61
        %p371 = pneg %p90
        %p372 = pneg %p87
        %p373 = pneg %p116
        %p374 = pneg %p113
        %p375 = pneg %p137
        %p376 = pneg %p134
        %p377 = pneg %p158
        %p378 = pneg %p155
        %p379 = pneg %p186
        %p380 = pneg %p183
        %s381 = sand.u32 %s173, 1
        %s382 = scalar_lea.sflag [#allocation4], %s381
        %s383 = sand.u32 %s173, 1
        %s384 = smul.addr %s383, 256
        %s385 = scalar_lea.vmem [#allocation11], %s384
        %p386 = pneg %p214
        %p387 = pneg %p211
        %s388 = sand.u32 %s201, 1
        %s389 = scalar_lea.sflag [#allocation13], %s388
        %s390 = sand.u32 %s201, 1
        %s391 = smul.addr %s390, 2
        %s392 = scalar_lea.vmem [#allocation12], %s391
        %s393 = smul.u32 2, %s33
        %s394 = smul.u32 32, %s34
        %s395 = smul.u32 2, %s33
        %s396 = smul.u32 32, %s34
        %v398 = vld [vmem:[%s343] sm:$0xf]
        %v399 = vld [vmem:[%s343 + $0x4] sm:$0xf]
        %v400 = vld [vmem:[%s343 + $0x8] sm:$0xf]
        %v401 = vld [vmem:[%s343 + $0xc] sm:$0xf]
        %v402 = vld [vmem:[%s343 + $0x10] sm:$0xf]
        %v403 = vld [vmem:[%s343 + $0x14] sm:$0xf]
        %v404 = vld [vmem:[%s343 + $0x18] sm:$0xf]
        %v405 = vld [vmem:[%s343 + $0x1c] sm:$0xf]
        %v406 = vld [vmem:[%s343 + $0x20] sm:$0xf]
        %v407 = vld [vmem:[%s343 + $0x24] sm:$0xf]
        %v408 = vld [vmem:[%s343 + $0x28] sm:$0xf]
        %v409 = vld [vmem:[%s343 + $0x2c] sm:$0xf]
        %v410 = vld [vmem:[%s343 + $0x30] sm:$0xf]
        %v411 = vld [vmem:[%s343 + $0x34] sm:$0xf]
        %v412 = vld [vmem:[%s343 + $0x38] sm:$0xf]
        %v413 = vld [vmem:[%s343 + $0x3c] sm:$0xf]
        %v414 = vld [vmem:[%s343 + $0x40] sm:$0xf]
        %v415 = vld [vmem:[%s343 + $0x44] sm:$0xf]
        %v416 = vld [vmem:[%s343 + $0x48] sm:$0xf]
        %v417 = vld [vmem:[%s343 + $0x4c] sm:$0xf]
        %v418 = vld [vmem:[%s343 + $0x50] sm:$0xf]
        %v419 = vld [vmem:[%s343 + $0x54] sm:$0xf]
        %v420 = vld [vmem:[%s343 + $0x58] sm:$0xf]
        %v421 = vld [vmem:[%s343 + $0x5c] sm:$0xf]
        %v422 = vld [vmem:[%s343 + $0x60] sm:$0xf]
        %v423 = vld [vmem:[%s343 + $0x64] sm:$0xf]
        %v424 = vld [vmem:[%s343 + $0x68] sm:$0xf]
        %v425 = vld [vmem:[%s343 + $0x6c] sm:$0xf]
        %v426 = vld [vmem:[%s343 + $0x70] sm:$0xf]
        %v427 = vld [vmem:[%s343 + $0x74] sm:$0xf]
        %v428 = vld [vmem:[%s343 + $0x78] sm:$0xf]
        %v429 = vld [vmem:[%s343 + $0x7c] sm:$0xf]
        %v430 = vld [vmem:[%s343 + $0x80] sm:$0xf]
        %v431 = vld [vmem:[%s343 + $0x84] sm:$0xf]
        %v432 = vld [vmem:[%s343 + $0x88] sm:$0xf]
        %v433 = vld [vmem:[%s343 + $0x8c] sm:$0xf]
        %v434 = vld [vmem:[%s343 + $0x90] sm:$0xf]
        %v435 = vld [vmem:[%s343 + $0x94] sm:$0xf]
        %v436 = vld [vmem:[%s343 + $0x98] sm:$0xf]
        %v437 = vld [vmem:[%s343 + $0x9c] sm:$0xf]
        %v438 = vld [vmem:[%s343 + $0xa0] sm:$0xf]
        %v439 = vld [vmem:[%s343 + $0xa4] sm:$0xf]
        %v440 = vld [vmem:[%s343 + $0xa8] sm:$0xf]
        %v441 = vld [vmem:[%s343 + $0xac] sm:$0xf]
        %v442 = vld [vmem:[%s343 + $0xb0] sm:$0xf]
        %v443 = vld [vmem:[%s343 + $0xb4] sm:$0xf]
        %v444 = vld [vmem:[%s343 + $0xb8] sm:$0xf]
        %v445 = vld [vmem:[%s343 + $0xbc] sm:$0xf]
        %v446 = vld [vmem:[%s343 + $0xc0] sm:$0xf]
        %v447 = vld [vmem:[%s343 + $0xc4] sm:$0xf]
        %v448 = vld [vmem:[%s343 + $0xc8] sm:$0xf]
        %v449 = vld [vmem:[%s343 + $0xcc] sm:$0xf]
        %v450 = vld [vmem:[%s343 + $0xd0] sm:$0xf]
        %v451 = vld [vmem:[%s343 + $0xd4] sm:$0xf]
        %v452 = vld [vmem:[%s343 + $0xd8] sm:$0xf]
        %v453 = vld [vmem:[%s343 + $0xdc] sm:$0xf]
        %v454 = vld [vmem:[%s343 + $0xe0] sm:$0xf]
        %v455 = vld [vmem:[%s343 + $0xe4] sm:$0xf]
        %v456 = vld [vmem:[%s343 + $0xe8] sm:$0xf]
        %v457 = vld [vmem:[%s343 + $0xec] sm:$0xf]
        %v458 = vld [vmem:[%s343 + $0xf0] sm:$0xf]
        %v459 = vld [vmem:[%s343 + $0xf4] sm:$0xf]
        %v460 = vld [vmem:[%s343 + $0xf8] sm:$0xf]
        %v461 = vld [vmem:[%s343 + $0xfc] sm:$0xf]
        %v462 = vunpack.c.l.bf16 %v398
        %v463 = vunpack.c.l.bf16 %v399
        %v464 = vunpack.c.l.bf16 %v400
        %v465 = vunpack.c.l.bf16 %v401
        %v466 = vunpack.c.l.bf16 %v402
        %v467 = vunpack.c.l.bf16 %v403
        %v468 = vunpack.c.l.bf16 %v404
        %v469 = vunpack.c.l.bf16 %v405
        %v470 = vunpack.c.l.bf16 %v406
        %v471 = vunpack.c.l.bf16 %v407
        %v472 = vunpack.c.l.bf16 %v408
        %v473 = vunpack.c.l.bf16 %v409
        %v474 = vunpack.c.l.bf16 %v410
        %v475 = vunpack.c.l.bf16 %v411
        %v476 = vunpack.c.l.bf16 %v412
        %v477 = vunpack.c.l.bf16 %v413
        %v478 = vunpack.c.l.bf16 %v414
        %v479 = vunpack.c.l.bf16 %v415
        %v480 = vunpack.c.l.bf16 %v416
        %v481 = vunpack.c.l.bf16 %v417
        %v482 = vunpack.c.l.bf16 %v418
        %v483 = vunpack.c.l.bf16 %v419
        %v484 = vunpack.c.l.bf16 %v420
        %v485 = vunpack.c.l.bf16 %v421
        %v486 = vunpack.c.l.bf16 %v422
        %v487 = vunpack.c.l.bf16 %v423
        %v488 = vunpack.c.l.bf16 %v424
        %v489 = vunpack.c.l.bf16 %v425
        %v490 = vunpack.c.l.bf16 %v426
        %v491 = vunpack.c.l.bf16 %v427
        %v492 = vunpack.c.l.bf16 %v428
        %v493 = vunpack.c.l.bf16 %v429
        %v494 = vunpack.c.l.bf16 %v430
        %v495 = vunpack.c.l.bf16 %v431
        %v496 = vunpack.c.l.bf16 %v432
        %v497 = vunpack.c.l.bf16 %v433
        %v498 = vunpack.c.l.bf16 %v434
        %v499 = vunpack.c.l.bf16 %v435
        %v500 = vunpack.c.l.bf16 %v436
        %v501 = vunpack.c.l.bf16 %v437
        %v502 = vunpack.c.l.bf16 %v438
        %v503 = vunpack.c.l.bf16 %v439
        %v504 = vunpack.c.l.bf16 %v440
        %v505 = vunpack.c.l.bf16 %v441
        %v506 = vunpack.c.l.bf16 %v442
        %v507 = vunpack.c.l.bf16 %v443
        %v508 = vunpack.c.l.bf16 %v444
        %v509 = vunpack.c.l.bf16 %v445
        %v510 = vunpack.c.l.bf16 %v446
        %v511 = vunpack.c.l.bf16 %v447
        %v512 = vunpack.c.l.bf16 %v448
        %v513 = vunpack.c.l.bf16 %v449
        %v514 = vunpack.c.l.bf16 %v450
        %v515 = vunpack.c.l.bf16 %v451
        %v516 = vunpack.c.l.bf16 %v452
        %v517 = vunpack.c.l.bf16 %v453
        %v518 = vunpack.c.l.bf16 %v454
        %v519 = vunpack.c.l.bf16 %v455
        %v520 = vunpack.c.l.bf16 %v456
        %v521 = vunpack.c.l.bf16 %v457
        %v522 = vunpack.c.l.bf16 %v458
        %v523 = vunpack.c.l.bf16 %v459
        %v524 = vunpack.c.l.bf16 %v460
        %v525 = vunpack.c.l.bf16 %v461
        %v526 = vld [vmem:[#allocation5] sm:$0x3]
        %v529 = vunpack.c.l.s4 1966171168
        %v530 = vunpack.c.0.s8 %v529
        %v531 = vlaneseq
        %v532 = vshrl.u32 %v531, 7
        %v533 = vsub.s32 %v530, %v532
        %v534 = vrot.slane %v526, %v533
        %v535 = vcombine.high %v534, %v534
        %v537 = vunpack.c.l.s4 1966171168
        %v538 = vunpack.c.0.s8 %v537
        %v539 = vlaneseq
        %v540 = vshrl.u32 %v539, 7
        %v541 = vsub.s32 %v538, %v540
        %v542 = vrot.slane %v534, %v541
        %v544 = vunpack.c.l.s4 1966171168
        %v545 = vunpack.c.0.s8 %v544
        %v546 = vlaneseq
        %v547 = vshrl.u32 %v546, 7
        %v548 = vsub.s32 %v545, %v547
        %v549 = vrot.slane %v535, %v548
        %v550 = vlaneseq
        %v551 = vshrl.u32 %v550, 7
        %v552 = vsub.s32 0, %v551
        %v553 = vrot.slane %v542, %v552
        %v554 = vlaneseq
        %v555 = vshrl.u32 %v554, 7
        %v556 = vsub.s32 0, %v555
        %v557 = vrot.slane %v549, %v556
        %v560 = vmul.f32 %v462, %v553
        %v561 = vmul.f32 %v463, %v553
        %v562 = vmul.f32 %v464, %v553
        %v563 = vmul.f32 %v465, %v553
        %v564 = vmul.f32 %v466, %v553
        %v565 = vmul.f32 %v467, %v553
        %v566 = vmul.f32 %v468, %v553
        %v567 = vmul.f32 %v469, %v553
        %v568 = vmul.f32 %v470, %v553
        %v569 = vmul.f32 %v471, %v553
        %v570 = vmul.f32 %v472, %v553
        %v571 = vmul.f32 %v473, %v553
        %v572 = vmul.f32 %v474, %v553
        %v573 = vmul.f32 %v475, %v553
        %v574 = vmul.f32 %v476, %v553
        %v575 = vmul.f32 %v477, %v553
        %v576 = vmul.f32 %v478, %v553
        %v577 = vmul.f32 %v479, %v553
        %v578 = vmul.f32 %v480, %v553
        %v579 = vmul.f32 %v481, %v553
        %v580 = vmul.f32 %v482, %v553
        %v581 = vmul.f32 %v483, %v553
        %v582 = vmul.f32 %v484, %v553
        %v583 = vmul.f32 %v485, %v553
        %v584 = vmul.f32 %v486, %v553
        %v585 = vmul.f32 %v487, %v553
        %v586 = vmul.f32 %v488, %v553
        %v587 = vmul.f32 %v489, %v553
        %v588 = vmul.f32 %v490, %v553
        %v589 = vmul.f32 %v491, %v553
        %v590 = vmul.f32 %v492, %v553
        %v591 = vmul.f32 %v493, %v553
        %v592 = vmul.f32 %v494, %v557
        %v593 = vmul.f32 %v495, %v557
        %v594 = vmul.f32 %v496, %v557
        %v595 = vmul.f32 %v497, %v557
        %v596 = vmul.f32 %v498, %v557
        %v597 = vmul.f32 %v499, %v557
        %v598 = vmul.f32 %v500, %v557
        %v599 = vmul.f32 %v501, %v557
        %v600 = vmul.f32 %v502, %v557
        %v601 = vmul.f32 %v503, %v557
        %v602 = vmul.f32 %v504, %v557
        %v603 = vmul.f32 %v505, %v557
        %v604 = vmul.f32 %v506, %v557
        %v605 = vmul.f32 %v507, %v557
        %v606 = vmul.f32 %v508, %v557
        %v607 = vmul.f32 %v509, %v557
        %v608 = vmul.f32 %v510, %v557
        %v609 = vmul.f32 %v511, %v557
        %v610 = vmul.f32 %v512, %v557
        %v611 = vmul.f32 %v513, %v557
        %v612 = vmul.f32 %v514, %v557
        %v613 = vmul.f32 %v515, %v557
        %v614 = vmul.f32 %v516, %v557
        %v615 = vmul.f32 %v517, %v557
        %v616 = vmul.f32 %v518, %v557
        %v617 = vmul.f32 %v519, %v557
        %v618 = vmul.f32 %v520, %v557
        %v619 = vmul.f32 %v521, %v557
        %v620 = vmul.f32 %v522, %v557
        %v621 = vmul.f32 %v523, %v557
        %v622 = vmul.f32 %v524, %v557
        %v623 = vmul.f32 %v525, %v557
        %v624 = vld [vmem:[#allocation7] sm:$0x3]
        %v627 = vunpack.c.l.s4 1966171168
        %v628 = vunpack.c.0.s8 %v627
        %v629 = vlaneseq
        %v630 = vshrl.u32 %v629, 7
        %v631 = vsub.s32 %v628, %v630
        %v632 = vrot.slane %v624, %v631
        %v633 = vcombine.high %v632, %v632
        %v635 = vunpack.c.l.s4 1966171168
        %v636 = vunpack.c.0.s8 %v635
        %v637 = vlaneseq
        %v638 = vshrl.u32 %v637, 7
        %v639 = vsub.s32 %v636, %v638
        %v640 = vrot.slane %v632, %v639
        %v642 = vunpack.c.l.s4 1966171168
        %v643 = vunpack.c.0.s8 %v642
        %v644 = vlaneseq
        %v645 = vshrl.u32 %v644, 7
        %v646 = vsub.s32 %v643, %v645
        %v647 = vrot.slane %v633, %v646
        %v648 = vlaneseq
        %v649 = vshrl.u32 %v648, 7
        %v650 = vsub.s32 0, %v649
        %v651 = vrot.slane %v640, %v650
        %v652 = vlaneseq
        %v653 = vshrl.u32 %v652, 7
        %v654 = vsub.s32 0, %v653
        %v655 = vrot.slane %v647, %v654
        %v658 = vadd.f32 %v560, %v651
        %v659 = vadd.f32 %v561, %v651
        %v660 = vadd.f32 %v562, %v651
        %v661 = vadd.f32 %v563, %v651
        %v662 = vadd.f32 %v564, %v651
        %v663 = vadd.f32 %v565, %v651
        %v664 = vadd.f32 %v566, %v651
        %v665 = vadd.f32 %v567, %v651
        %v666 = vadd.f32 %v568, %v651
        %v667 = vadd.f32 %v569, %v651
        %v668 = vadd.f32 %v570, %v651
        %v669 = vadd.f32 %v571, %v651
        %v670 = vadd.f32 %v572, %v651
        %v671 = vadd.f32 %v573, %v651
        %v672 = vadd.f32 %v574, %v651
        %v673 = vadd.f32 %v575, %v651
        %v674 = vadd.f32 %v576, %v651
        %v675 = vadd.f32 %v577, %v651
        %v676 = vadd.f32 %v578, %v651
        %v677 = vadd.f32 %v579, %v651
        %v678 = vadd.f32 %v580, %v651
        %v679 = vadd.f32 %v581, %v651
        %v680 = vadd.f32 %v582, %v651
        %v681 = vadd.f32 %v583, %v651
        %v682 = vadd.f32 %v584, %v651
        %v683 = vadd.f32 %v585, %v651
        %v684 = vadd.f32 %v586, %v651
        %v685 = vadd.f32 %v587, %v651
        %v686 = vadd.f32 %v588, %v651
        %v687 = vadd.f32 %v589, %v651
        %v688 = vadd.f32 %v590, %v651
        %v689 = vadd.f32 %v591, %v651
        %v690 = vadd.f32 %v592, %v655
        %v691 = vadd.f32 %v593, %v655
        %v692 = vadd.f32 %v594, %v655
        %v693 = vadd.f32 %v595, %v655
        %v694 = vadd.f32 %v596, %v655
        %v695 = vadd.f32 %v597, %v655
        %v696 = vadd.f32 %v598, %v655
        %v697 = vadd.f32 %v599, %v655
        %v698 = vadd.f32 %v600, %v655
        %v699 = vadd.f32 %v601, %v655
        %v700 = vadd.f32 %v602, %v655
        %v701 = vadd.f32 %v603, %v655
        %v702 = vadd.f32 %v604, %v655
        %v703 = vadd.f32 %v605, %v655
        %v704 = vadd.f32 %v606, %v655
        %v705 = vadd.f32 %v607, %v655
        %v706 = vadd.f32 %v608, %v655
        %v707 = vadd.f32 %v609, %v655
        %v708 = vadd.f32 %v610, %v655
        %v709 = vadd.f32 %v611, %v655
        %v710 = vadd.f32 %v612, %v655
        %v711 = vadd.f32 %v613, %v655
        %v712 = vadd.f32 %v614, %v655
        %v713 = vadd.f32 %v615, %v655
        %v714 = vadd.f32 %v616, %v655
        %v715 = vadd.f32 %v617, %v655
        %v716 = vadd.f32 %v618, %v655
        %v717 = vadd.f32 %v619, %v655
        %v718 = vadd.f32 %v620, %v655
        %v719 = vadd.f32 %v621, %v655
        %v720 = vadd.f32 %v622, %v655
        %v721 = vadd.f32 %v623, %v655
        %v722 = vmax.f32 %v658, 0.0
        %v723 = vmax.f32 %v659, 0.0
        %v724 = vmax.f32 %v660, 0.0
        %v725 = vmax.f32 %v661, 0.0
        %v726 = vmax.f32 %v662, 0.0
        %v727 = vmax.f32 %v663, 0.0
        %v728 = vmax.f32 %v664, 0.0
        %v729 = vmax.f32 %v665, 0.0
        %v730 = vmax.f32 %v666, 0.0
        %v731 = vmax.f32 %v667, 0.0
        %v732 = vmax.f32 %v668, 0.0
        %v733 = vmax.f32 %v669, 0.0
        %v734 = vmax.f32 %v670, 0.0
        %v735 = vmax.f32 %v671, 0.0
        %v736 = vmax.f32 %v672, 0.0
        %v737 = vmax.f32 %v673, 0.0
        %v738 = vmax.f32 %v674, 0.0
        %v739 = vmax.f32 %v675, 0.0
        %v740 = vmax.f32 %v676, 0.0
        %v741 = vmax.f32 %v677, 0.0
        %v742 = vmax.f32 %v678, 0.0
        %v743 = vmax.f32 %v679, 0.0
        %v744 = vmax.f32 %v680, 0.0
        %v745 = vmax.f32 %v681, 0.0
        %v746 = vmax.f32 %v682, 0.0
        %v747 = vmax.f32 %v683, 0.0
        %v748 = vmax.f32 %v684, 0.0
        %v749 = vmax.f32 %v685, 0.0
        %v750 = vmax.f32 %v686, 0.0
        %v751 = vmax.f32 %v687, 0.0
        %v752 = vmax.f32 %v688, 0.0
        %v753 = vmax.f32 %v689, 0.0
        %v754 = vmax.f32 %v690, 0.0
        %v755 = vmax.f32 %v691, 0.0
        %v756 = vmax.f32 %v692, 0.0
        %v757 = vmax.f32 %v693, 0.0
        %v758 = vmax.f32 %v694, 0.0
        %v759 = vmax.f32 %v695, 0.0
        %v760 = vmax.f32 %v696, 0.0
        %v761 = vmax.f32 %v697, 0.0
        %v762 = vmax.f32 %v698, 0.0
        %v763 = vmax.f32 %v699, 0.0
        %v764 = vmax.f32 %v700, 0.0
        %v765 = vmax.f32 %v701, 0.0
        %v766 = vmax.f32 %v702, 0.0
        %v767 = vmax.f32 %v703, 0.0
        %v768 = vmax.f32 %v704, 0.0
        %v769 = vmax.f32 %v705, 0.0
        %v770 = vmax.f32 %v706, 0.0
        %v771 = vmax.f32 %v707, 0.0
        %v772 = vmax.f32 %v708, 0.0
        %v773 = vmax.f32 %v709, 0.0
        %v774 = vmax.f32 %v710, 0.0
        %v775 = vmax.f32 %v711, 0.0
        %v776 = vmax.f32 %v712, 0.0
        %v777 = vmax.f32 %v713, 0.0
        %v778 = vmax.f32 %v714, 0.0
        %v779 = vmax.f32 %v715, 0.0
        %v780 = vmax.f32 %v716, 0.0
        %v781 = vmax.f32 %v717, 0.0
        %v782 = vmax.f32 %v718, 0.0
        %v783 = vmax.f32 %v719, 0.0
        %v784 = vmax.f32 %v720, 0.0
        %v785 = vmax.f32 %v721, 0.0
        %v786 = vld [vmem:[#allocation8] sm:$0xf]
        %v787 = vld [vmem:[#allocation8 + $0x4] sm:$0xf]
        %v788 = vld [vmem:[#allocation8 + $0x8] sm:$0xf]
        %v789 = vld [vmem:[#allocation8 + $0xc] sm:$0xf]
        %v790 = vld [vmem:[#allocation8 + $0x10] sm:$0xf]
        %v791 = vld [vmem:[#allocation8 + $0x14] sm:$0xf]
        %v792 = vld [vmem:[#allocation8 + $0x18] sm:$0xf]
        %v793 = vld [vmem:[#allocation8 + $0x1c] sm:$0xf]
        %v794 = vld [vmem:[#allocation8 + $0x20] sm:$0xf]
        %v795 = vld [vmem:[#allocation8 + $0x24] sm:$0xf]
        %v796 = vld [vmem:[#allocation8 + $0x28] sm:$0xf]
        %v797 = vld [vmem:[#allocation8 + $0x2c] sm:$0xf]
        %v798 = vld [vmem:[#allocation8 + $0x30] sm:$0xf]
        %v799 = vld [vmem:[#allocation8 + $0x34] sm:$0xf]
        %v800 = vld [vmem:[#allocation8 + $0x38] sm:$0xf]
        %v801 = vld [vmem:[#allocation8 + $0x3c] sm:$0xf]
        %v802 = vpack.c.bf16 %v723, %v722
        %v803 = vpack.c.bf16 %v725, %v724
        %v804 = vpack.c.bf16 %v727, %v726
        %v805 = vpack.c.bf16 %v729, %v728
        %v806 = vpack.c.bf16 %v731, %v730
        %v807 = vpack.c.bf16 %v733, %v732
        %v808 = vpack.c.bf16 %v735, %v734
        %v809 = vpack.c.bf16 %v737, %v736
        %v810 = vpack.c.bf16 %v739, %v738
        %v811 = vpack.c.bf16 %v741, %v740
        %v812 = vpack.c.bf16 %v743, %v742
        %v813 = vpack.c.bf16 %v745, %v744
        %v814 = vpack.c.bf16 %v747, %v746
        %v815 = vpack.c.bf16 %v749, %v748
        %v816 = vpack.c.bf16 %v751, %v750
        %v817 = vpack.c.bf16 %v753, %v752
        %v818 = vpack.c.bf16 %v755, %v754
        %v819 = vpack.c.bf16 %v757, %v756
        %v820 = vpack.c.bf16 %v759, %v758
        %v821 = vpack.c.bf16 %v761, %v760
        %v822 = vpack.c.bf16 %v763, %v762
        %v823 = vpack.c.bf16 %v765, %v764
        %v824 = vpack.c.bf16 %v767, %v766
        %v825 = vpack.c.bf16 %v769, %v768
        %v826 = vpack.c.bf16 %v771, %v770
        %v827 = vpack.c.bf16 %v773, %v772
        %v828 = vpack.c.bf16 %v775, %v774
        %v829 = vpack.c.bf16 %v777, %v776
        %v830 = vpack.c.bf16 %v779, %v778
        %v831 = vpack.c.bf16 %v781, %v780
        %v832 = vpack.c.bf16 %v783, %v782
        %v833 = vpack.c.bf16 %v785, %v784
        %v850 = vunpack.c.l.b16 %v786
        %v851 = vunpack.c.l.b16 %v787
        %v852 = vunpack.c.l.b16 %v788
        %v853 = vunpack.c.l.b16 %v789
        %v854 = vunpack.c.l.b16 %v790
        %v855 = vunpack.c.l.b16 %v791
        %v856 = vunpack.c.l.b16 %v792
        %v857 = vunpack.c.l.b16 %v793
        %v858 = vunpack.c.l.b16 %v794
        %v859 = vunpack.c.l.b16 %v795
        %v860 = vunpack.c.l.b16 %v796
        %v861 = vunpack.c.l.b16 %v797
        %v862 = vunpack.c.l.b16 %v798
        %v863 = vunpack.c.l.b16 %v799
        %v864 = vunpack.c.l.b16 %v800
        %v865 = vunpack.c.l.b16 %v801
        %v866 = vpack.c.b16 %v851, %v850
        %v867 = vpack.c.b16 %v853, %v852
        %v868 = vpack.c.b16 %v855, %v854
        %v869 = vpack.c.b16 %v857, %v856
        %v870 = vpack.c.b16 %v859, %v858
        %v871 = vpack.c.b16 %v861, %v860
        %v872 = vpack.c.b16 %v863, %v862
        %v873 = vpack.c.b16 %v865, %v864
        %882 = vmatprep.subr.bf16.mxu0 0
        %883 = vmatpush1.bf16.msra.mxu0 %v866
        %884 = vmatprep.subr.bf16.mxu0 0
        %885 = vmatpush1.bf16.msra.mxu0 %v867
        %886 = vmatprep.subr.bf16.mxu0 0
        %887 = vmatpush1.bf16.msra.mxu0 %v868
        %888 = vmatprep.subr.bf16.mxu0 0
        %889 = vmatpush1.bf16.msra.mxu0 %v869
        %890 = vmatprep.subr.bf16.mxu0 0
        %891 = vmatpush1.bf16.msra.mxu0 %v870
        %892 = vmatprep.subr.bf16.mxu0 0
        %893 = vmatpush1.bf16.msra.mxu0 %v871
        %894 = vmatprep.subr.bf16.mxu0 0
        %895 = vmatpush1.bf16.msra.mxu0 %v872
        %896 = vmatprep.subr.bf16.mxu0 0
        %897 = vmatpush1.bf16.msra.mxu0 %v873
        %898 = vmatprep.subr.bf16.mxu0 0
        %899 = vmatpush1.bf16.msra.mxu0 0
        %900 = vmatprep.subr.bf16.mxu0 0
        %901 = vmatpush1.bf16.msra.mxu0 0
        %902 = vmatprep.subr.bf16.mxu0 0
        %903 = vmatpush1.bf16.msra.mxu0 0
        %904 = vmatprep.subr.bf16.mxu0 0
        %905 = vmatpush1.bf16.msra.mxu0 0
        %906 = vmatprep.subr.bf16.mxu0 0
        %907 = vmatpush1.bf16.msra.mxu0 0
        %908 = vmatprep.subr.bf16.mxu0 0
        %909 = vmatpush1.bf16.msra.mxu0 0
        %910 = vmatprep.subr.bf16.mxu0 0
        %911 = vmatpush1.bf16.msra.mxu0 0
        %912 = vmatprep.subr.bf16.mxu0 0
        %913 = vmatpush1.bf16.msra.mxu0 0
        %914 = vmatprep.mubr.bf16.mxu0 0
        %915 = vmatmul.mubr.bf16.gmra.mrb[0].mxu0 %v802
        %v916 = vpop.f32.mrb[0].mxu0
        %v917 = vadd.f32 0.0, %v916
        %v918 = vpop.f32.mrb[0].mxu0
        %v919 = vpop.f32.mrb[0].mxu0
        %v920 = vadd.f32 0.0, %v919
        %v921 = vpop.f32.mrb[0].mxu0
        %922 = vmatprep.mubr.bf16.mxu0 0
        %923 = vmatmul.mubr.bf16.gmra.mrb[0].mxu0 %v803
        %v924 = vpop.f32.mrb[0].mxu0
        %v925 = vadd.f32 0.0, %v924
        %v926 = vpop.f32.mrb[0].mxu0
        %v927 = vpop.f32.mrb[0].mxu0
        %v928 = vadd.f32 0.0, %v927
        %v929 = vpop.f32.mrb[0].mxu0
        %930 = vmatprep.mubr.bf16.mxu0 0
        %931 = vmatmul.mubr.bf16.gmra.mrb[0].mxu0 %v804
        %v932 = vpop.f32.mrb[0].mxu0
        %v933 = vadd.f32 0.0, %v932
        %v934 = vpop.f32.mrb[0].mxu0
        %v935 = vpop.f32.mrb[0].mxu0
        %v936 = vadd.f32 0.0, %v935
        %v937 = vpop.f32.mrb[0].mxu0
        %938 = vmatprep.mubr.bf16.mxu0 0
        %939 = vmatmul.mubr.bf16.gmra.mrb[0].mxu0 %v805
        %v940 = vpop.f32.mrb[0].mxu0
        %v941 = vadd.f32 0.0, %v940
        %v942 = vpop.f32.mrb[0].mxu0
        %v943 = vpop.f32.mrb[0].mxu0
        %v944 = vadd.f32 0.0, %v943
        %v945 = vpop.f32.mrb[0].mxu0
        %946 = vmatprep.mubr.bf16.mxu0 0
        %947 = vmatmul.mubr.bf16.gmra.mrb[0].mxu0 %v806
        %v948 = vpop.f32.mrb[0].mxu0
        %v949 = vadd.f32 0.0, %v948
        %v950 = vpop.f32.mrb[0].mxu0
        %v951 = vpop.f32.mrb[0].mxu0
        %v952 = vadd.f32 0.0, %v951
        %v953 = vpop.f32.mrb[0].mxu0
        %954 = vmatprep.mubr.bf16.mxu0 0
        %955 = vmatmul.mubr.bf16.gmra.mrb[0].mxu0 %v807
        %v956 = vpop.f32.mrb[0].mxu0
        %v957 = vadd.f32 0.0, %v956
        %v958 = vpop.f32.mrb[0].mxu0
        %v959 = vpop.f32.mrb[0].mxu0
        %v960 = vadd.f32 0.0, %v959
        %v961 = vpop.f32.mrb[0].mxu0
        %962 = vmatprep.mubr.bf16.mxu0 0
        %963 = vmatmul.mubr.bf16.gmra.mrb[0].mxu0 %v808
        %v964 = vpop.f32.mrb[0].mxu0
        %v965 = vadd.f32 0.0, %v964
        %v966 = vpop.f32.mrb[0].mxu0
        %v967 = vpop.f32.mrb[0].mxu0
        %v968 = vadd.f32 0.0, %v967
        %v969 = vpop.f32.mrb[0].mxu0
        %970 = vmatprep.mubr.bf16.mxu0 0
        %971 = vmatmul.mubr.bf16.gmra.mrb[0].mxu0 %v809
        %v972 = vpop.f32.mrb[0].mxu0
        %v973 = vadd.f32 0.0, %v972
        %v974 = vpop.f32.mrb[0].mxu0
        %v975 = vpop.f32.mrb[0].mxu0
        %v976 = vadd.f32 0.0, %v975
        %v977 = vpop.f32.mrb[0].mxu0
        %978 = vmatprep.mubr.bf16.mxu0 0
        %979 = vmatmul.mubr.bf16.gmra.mrb[0].mxu0 %v810
        %v980 = vpop.f32.mrb[0].mxu0
        %v981 = vadd.f32 0.0, %v980
        %v982 = vpop.f32.mrb[0].mxu0
        %v983 = vpop.f32.mrb[0].mxu0
        %v984 = vadd.f32 0.0, %v983
        %v985 = vpop.f32.mrb[0].mxu0
        %986 = vmatprep.mubr.bf16.mxu0 0
        %987 = vmatmul.mubr.bf16.gmra.mrb[0].mxu0 %v811
        %v988 = vpop.f32.mrb[0].mxu0
        %v989 = vadd.f32 0.0, %v988
        %v990 = vpop.f32.mrb[0].mxu0
        %v991 = vpop.f32.mrb[0].mxu0
        %v992 = vadd.f32 0.0, %v991
        %v993 = vpop.f32.mrb[0].mxu0
        %994 = vmatprep.mubr.bf16.mxu0 0
        %995 = vmatmul.mubr.bf16.gmra.mrb[0].mxu0 %v812
        %v996 = vpop.f32.mrb[0].mxu0
        %v997 = vadd.f32 0.0, %v996
        %v998 = vpop.f32.mrb[0].mxu0
        %v999 = vpop.f32.mrb[0].mxu0
        %v1000 = vadd.f32 0.0, %v999
        %v1001 = vpop.f32.mrb[0].mxu0
        %1002 = vmatprep.mubr.bf16.mxu0 0
        %1003 = vmatmul.mubr.bf16.gmra.mrb[0].mxu0 %v813
        %v1004 = vpop.f32.mrb[0].mxu0
        %v1005 = vadd.f32 0.0, %v1004
        %v1006 = vpop.f32.mrb[0].mxu0
        %v1007 = vpop.f32.mrb[0].mxu0
        %v1008 = vadd.f32 0.0, %v1007
        %v1009 = vpop.f32.mrb[0].mxu0
        %1010 = vmatprep.mubr.bf16.mxu0 0
        %1011 = vmatmul.mubr.bf16.gmra.mrb[0].mxu0 %v814
        %v1012 = vpop.f32.mrb[0].mxu0
        %v1013 = vadd.f32 0.0, %v1012
        %v1014 = vpop.f32.mrb[0].mxu0
        %v1015 = vpop.f32.mrb[0].mxu0
        %v1016 = vadd.f32 0.0, %v1015
        %v1017 = vpop.f32.mrb[0].mxu0
        %1018 = vmatprep.mubr.bf16.mxu0 0
        %1019 = vmatmul.mubr.bf16.gmra.mrb[0].mxu0 %v815
        %v1020 = vpop.f32.mrb[0].mxu0
        %v1021 = vadd.f32 0.0, %v1020
        %v1022 = vpop.f32.mrb[0].mxu0
        %v1023 = vpop.f32.mrb[0].mxu0
        %v1024 = vadd.f32 0.0, %v1023
        %v1025 = vpop.f32.mrb[0].mxu0
        %1026 = vmatprep.mubr.bf16.mxu0 0
        %1027 = vmatmul.mubr.bf16.gmra.mrb[0].mxu0 %v816
        %v1028 = vpop.f32.mrb[0].mxu0
        %v1029 = vadd.f32 0.0, %v1028
        %v1030 = vpop.f32.mrb[0].mxu0
        %v1031 = vpop.f32.mrb[0].mxu0
        %v1032 = vadd.f32 0.0, %v1031
        %v1033 = vpop.f32.mrb[0].mxu0
        %1034 = vmatprep.mubr.bf16.mxu0 0
        %1035 = vmatmul.mubr.bf16.gmra.mrb[0].mxu0 %v817
        %v1036 = vpop.f32.mrb[0].mxu0
        %v1037 = vadd.f32 0.0, %v1036
        %v1038 = vpop.f32.mrb[0].mxu0
        %v1039 = vpop.f32.mrb[0].mxu0
        %v1040 = vadd.f32 0.0, %v1039
        %v1041 = vpop.f32.mrb[0].mxu0
        %1042 = vmatprep.mubr.bf16.mxu0 0
        %1043 = vmatmul.mubr.bf16.gmra.mrb[0].mxu0 %v818
        %v1044 = vpop.f32.mrb[0].mxu0
        %v1045 = vadd.f32 0.0, %v1044
        %v1046 = vpop.f32.mrb[0].mxu0
        %v1047 = vpop.f32.mrb[0].mxu0
        %v1048 = vadd.f32 0.0, %v1047
        %v1049 = vpop.f32.mrb[0].mxu0
        %1050 = vmatprep.mubr.bf16.mxu0 0
        %1051 = vmatmul.mubr.bf16.gmra.mrb[0].mxu0 %v819
        %v1052 = vpop.f32.mrb[0].mxu0
        %v1053 = vadd.f32 0.0, %v1052
        %v1054 = vpop.f32.mrb[0].mxu0
        %v1055 = vpop.f32.mrb[0].mxu0
        %v1056 = vadd.f32 0.0, %v1055
        %v1057 = vpop.f32.mrb[0].mxu0
        %1058 = vmatprep.mubr.bf16.mxu0 0
        %1059 = vmatmul.mubr.bf16.gmra.mrb[0].mxu0 %v820
        %v1060 = vpop.f32.mrb[0].mxu0
        %v1061 = vadd.f32 0.0, %v1060
        %v1062 = vpop.f32.mrb[0].mxu0
        %v1063 = vpop.f32.mrb[0].mxu0
        %v1064 = vadd.f32 0.0, %v1063
        %v1065 = vpop.f32.mrb[0].mxu0
        %1066 = vmatprep.mubr.bf16.mxu0 0
        %1067 = vmatmul.mubr.bf16.gmra.mrb[0].mxu0 %v821
        %v1068 = vpop.f32.mrb[0].mxu0
        %v1069 = vadd.f32 0.0, %v1068
        %v1070 = vpop.f32.mrb[0].mxu0
        %v1071 = vpop.f32.mrb[0].mxu0
        %v1072 = vadd.f32 0.0, %v1071
        %v1073 = vpop.f32.mrb[0].mxu0
        %1074 = vmatprep.mubr.bf16.mxu0 0
        %1075 = vmatmul.mubr.bf16.gmra.mrb[0].mxu0 %v822
        %v1076 = vpop.f32.mrb[0].mxu0
        %v1077 = vadd.f32 0.0, %v1076
        %v1078 = vpop.f32.mrb[0].mxu0
        %v1079 = vpop.f32.mrb[0].mxu0
        %v1080 = vadd.f32 0.0, %v1079
        %v1081 = vpop.f32.mrb[0].mxu0
        %1082 = vmatprep.mubr.bf16.mxu0 0
        %1083 = vmatmul.mubr.bf16.gmra.mrb[0].mxu0 %v823
        %v1084 = vpop.f32.mrb[0].mxu0
        %v1085 = vadd.f32 0.0, %v1084
        %v1086 = vpop.f32.mrb[0].mxu0
        %v1087 = vpop.f32.mrb[0].mxu0
        %v1088 = vadd.f32 0.0, %v1087
        %v1089 = vpop.f32.mrb[0].mxu0
        %1090 = vmatprep.mubr.bf16.mxu0 0
        %1091 = vmatmul.mubr.bf16.gmra.mrb[0].mxu0 %v824
        %v1092 = vpop.f32.mrb[0].mxu0
        %v1093 = vadd.f32 0.0, %v1092
        %v1094 = vpop.f32.mrb[0].mxu0
        %v1095 = vpop.f32.mrb[0].mxu0
        %v1096 = vadd.f32 0.0, %v1095
        %v1097 = vpop.f32.mrb[0].mxu0
        %1098 = vmatprep.mubr.bf16.mxu0 0
        %1099 = vmatmul.mubr.bf16.gmra.mrb[0].mxu0 %v825
        %v1100 = vpop.f32.mrb[0].mxu0
        %v1101 = vadd.f32 0.0, %v1100
        %v1102 = vpop.f32.mrb[0].mxu0
        %v1103 = vpop.f32.mrb[0].mxu0
        %v1104 = vadd.f32 0.0, %v1103
        %v1105 = vpop.f32.mrb[0].mxu0
        %1106 = vmatprep.mubr.bf16.mxu0 0
        %1107 = vmatmul.mubr.bf16.gmra.mrb[0].mxu0 %v826
        %v1108 = vpop.f32.mrb[0].mxu0
        %v1109 = vadd.f32 0.0, %v1108
        %v1110 = vpop.f32.mrb[0].mxu0
        %v1111 = vpop.f32.mrb[0].mxu0
        %v1112 = vadd.f32 0.0, %v1111
        %v1113 = vpop.f32.mrb[0].mxu0
        %1114 = vmatprep.mubr.bf16.mxu0 0
        %1115 = vmatmul.mubr.bf16.gmra.mrb[0].mxu0 %v827
        %v1116 = vpop.f32.mrb[0].mxu0
        %v1117 = vadd.f32 0.0, %v1116
        %v1118 = vpop.f32.mrb[0].mxu0
        %v1119 = vpop.f32.mrb[0].mxu0
        %v1120 = vadd.f32 0.0, %v1119
        %v1121 = vpop.f32.mrb[0].mxu0
        %1122 = vmatprep.mubr.bf16.mxu0 0
        %1123 = vmatmul.mubr.bf16.gmra.mrb[0].mxu0 %v828
        %v1124 = vpop.f32.mrb[0].mxu0
        %v1125 = vadd.f32 0.0, %v1124
        %v1126 = vpop.f32.mrb[0].mxu0
        %v1127 = vpop.f32.mrb[0].mxu0
        %v1128 = vadd.f32 0.0, %v1127
        %v1129 = vpop.f32.mrb[0].mxu0
        %1130 = vmatprep.mubr.bf16.mxu0 0
        %1131 = vmatmul.mubr.bf16.gmra.mrb[0].mxu0 %v829
        %v1132 = vpop.f32.mrb[0].mxu0
        %v1133 = vadd.f32 0.0, %v1132
        %v1134 = vpop.f32.mrb[0].mxu0
        %v1135 = vpop.f32.mrb[0].mxu0
        %v1136 = vadd.f32 0.0, %v1135
        %v1137 = vpop.f32.mrb[0].mxu0
        %1138 = vmatprep.mubr.bf16.mxu0 0
        %1139 = vmatmul.mubr.bf16.gmra.mrb[0].mxu0 %v830
        %v1140 = vpop.f32.mrb[0].mxu0
        %v1141 = vadd.f32 0.0, %v1140
        %v1142 = vpop.f32.mrb[0].mxu0
        %v1143 = vpop.f32.mrb[0].mxu0
        %v1144 = vadd.f32 0.0, %v1143
        %v1145 = vpop.f32.mrb[0].mxu0
        %1146 = vmatprep.mubr.bf16.mxu0 0
        %1147 = vmatmul.mubr.bf16.gmra.mrb[0].mxu0 %v831
        %v1148 = vpop.f32.mrb[0].mxu0
        %v1149 = vadd.f32 0.0, %v1148
        %v1150 = vpop.f32.mrb[0].mxu0
        %v1151 = vpop.f32.mrb[0].mxu0
        %v1152 = vadd.f32 0.0, %v1151
        %v1153 = vpop.f32.mrb[0].mxu0
        %1154 = vmatprep.mubr.bf16.mxu0 0
        %1155 = vmatmul.mubr.bf16.gmra.mrb[0].mxu0 %v832
        %v1156 = vpop.f32.mrb[0].mxu0
        %v1157 = vadd.f32 0.0, %v1156
        %v1158 = vpop.f32.mrb[0].mxu0
        %v1159 = vpop.f32.mrb[0].mxu0
        %v1160 = vadd.f32 0.0, %v1159
        %v1161 = vpop.f32.mrb[0].mxu0
        %1162 = vmatprep.mubr.bf16.mxu0 0
        %1163 = vmatmul.mubr.bf16.gmra.mrb[0].mxu0 %v833
        %v1164 = vpop.f32.mrb[0].mxu0
        %v1165 = vadd.f32 0.0, %v1164
        %v1166 = vpop.f32.mrb[0].mxu0
        %v1167 = vpop.f32.mrb[0].mxu0
        %v1168 = vadd.f32 0.0, %v1167
        %v1169 = vpop.f32.mrb[0].mxu0
        %1170 = vdwg.mxu0
        %v1171 = vld [vmem:[#allocation10] sm:$0x1]
        %v1173 = vlaneseq
        %v1174 = vshrl.u32 %v1173, 7
        %v1175 = vsub.s32 0, %v1174
        %v1176 = vrot.slane %v1171, %v1175
        %v1178 = vadd.f32 %v917, %v1176
        %v1179 = vadd.f32 %v920, %v1176
        %v1180 = vadd.f32 %v925, %v1176
        %v1181 = vadd.f32 %v928, %v1176
        %v1182 = vadd.f32 %v933, %v1176
        %v1183 = vadd.f32 %v936, %v1176
        %v1184 = vadd.f32 %v941, %v1176
        %v1185 = vadd.f32 %v944, %v1176
        %v1186 = vadd.f32 %v949, %v1176
        %v1187 = vadd.f32 %v952, %v1176
        %v1188 = vadd.f32 %v957, %v1176
        %v1189 = vadd.f32 %v960, %v1176
        %v1190 = vadd.f32 %v965, %v1176
        %v1191 = vadd.f32 %v968, %v1176
        %v1192 = vadd.f32 %v973, %v1176
        %v1193 = vadd.f32 %v976, %v1176
        %v1194 = vadd.f32 %v981, %v1176
        %v1195 = vadd.f32 %v984, %v1176
        %v1196 = vadd.f32 %v989, %v1176
        %v1197 = vadd.f32 %v992, %v1176
        %v1198 = vadd.f32 %v997, %v1176
        %v1199 = vadd.f32 %v1000, %v1176
        %v1200 = vadd.f32 %v1005, %v1176
        %v1201 = vadd.f32 %v1008, %v1176
        %v1202 = vadd.f32 %v1013, %v1176
        %v1203 = vadd.f32 %v1016, %v1176
        %v1204 = vadd.f32 %v1021, %v1176
        %v1205 = vadd.f32 %v1024, %v1176
        %v1206 = vadd.f32 %v1029, %v1176
        %v1207 = vadd.f32 %v1032, %v1176
        %v1208 = vadd.f32 %v1037, %v1176
        %v1209 = vadd.f32 %v1040, %v1176
        %v1210 = vadd.f32 %v1045, %v1176
        %v1211 = vadd.f32 %v1048, %v1176
        %v1212 = vadd.f32 %v1053, %v1176
        %v1213 = vadd.f32 %v1056, %v1176
        %v1214 = vadd.f32 %v1061, %v1176
        %v1215 = vadd.f32 %v1064, %v1176
        %v1216 = vadd.f32 %v1069, %v1176
        %v1217 = vadd.f32 %v1072, %v1176
        %v1218 = vadd.f32 %v1077, %v1176
        %v1219 = vadd.f32 %v1080, %v1176
        %v1220 = vadd.f32 %v1085, %v1176
        %v1221 = vadd.f32 %v1088, %v1176
        %v1222 = vadd.f32 %v1093, %v1176
        %v1223 = vadd.f32 %v1096, %v1176
        %v1224 = vadd.f32 %v1101, %v1176
        %v1225 = vadd.f32 %v1104, %v1176
        %v1226 = vadd.f32 %v1109, %v1176
        %v1227 = vadd.f32 %v1112, %v1176
        %v1228 = vadd.f32 %v1117, %v1176
        %v1229 = vadd.f32 %v1120, %v1176
        %v1230 = vadd.f32 %v1125, %v1176
        %v1231 = vadd.f32 %v1128, %v1176
        %v1232 = vadd.f32 %v1133, %v1176
        %v1233 = vadd.f32 %v1136, %v1176
        %v1234 = vadd.f32 %v1141, %v1176
        %v1235 = vadd.f32 %v1144, %v1176
        %v1236 = vadd.f32 %v1149, %v1176
        %v1237 = vadd.f32 %v1152, %v1176
        %v1238 = vadd.f32 %v1157, %v1176
        %v1239 = vadd.f32 %v1160, %v1176
        %v1240 = vadd.f32 %v1165, %v1176
        %v1241 = vadd.f32 %v1168, %v1176
        %v1242 = vpack.c.bf16 %v1179, %v1178
        %v1243 = vpack.c.bf16 %v1181, %v1180
        %v1244 = vpack.c.bf16 %v1183, %v1182
        %v1245 = vpack.c.bf16 %v1185, %v1184
        %v1246 = vpack.c.bf16 %v1187, %v1186
        %v1247 = vpack.c.bf16 %v1189, %v1188
        %v1248 = vpack.c.bf16 %v1191, %v1190
        %v1249 = vpack.c.bf16 %v1193, %v1192
        %v1250 = vpack.c.bf16 %v1195, %v1194
        %v1251 = vpack.c.bf16 %v1197, %v1196
        %v1252 = vpack.c.bf16 %v1199, %v1198
        %v1253 = vpack.c.bf16 %v1201, %v1200
        %v1254 = vpack.c.bf16 %v1203, %v1202
        %v1255 = vpack.c.bf16 %v1205, %v1204
        %v1256 = vpack.c.bf16 %v1207, %v1206
        %v1257 = vpack.c.bf16 %v1209, %v1208
        %v1258 = vpack.c.bf16 %v1211, %v1210
        %v1259 = vpack.c.bf16 %v1213, %v1212
        %v1260 = vpack.c.bf16 %v1215, %v1214
        %v1261 = vpack.c.bf16 %v1217, %v1216
        %v1262 = vpack.c.bf16 %v1219, %v1218
        %v1263 = vpack.c.bf16 %v1221, %v1220
        %v1264 = vpack.c.bf16 %v1223, %v1222
        %v1265 = vpack.c.bf16 %v1225, %v1224
        %v1266 = vpack.c.bf16 %v1227, %v1226
        %v1267 = vpack.c.bf16 %v1229, %v1228
        %v1268 = vpack.c.bf16 %v1231, %v1230
        %v1269 = vpack.c.bf16 %v1233, %v1232
        %v1270 = vpack.c.bf16 %v1235, %v1234
        %v1271 = vpack.c.bf16 %v1237, %v1236
        %v1272 = vpack.c.bf16 %v1239, %v1238
        %v1273 = vpack.c.bf16 %v1241, %v1240
        %v1306 = vunpack.c.l.b16 %v1242
        %v1307 = vunpack.c.h.b16 %v1242
        %v1308 = vunpack.c.l.b16 %v1243
        %v1309 = vunpack.c.h.b16 %v1243
        %v1310 = vunpack.c.l.b16 %v1244
        %v1311 = vunpack.c.h.b16 %v1244
        %v1312 = vunpack.c.l.b16 %v1245
        %v1313 = vunpack.c.h.b16 %v1245
        %v1314 = vunpack.c.l.b16 %v1246
        %v1315 = vunpack.c.h.b16 %v1246
        %v1316 = vunpack.c.l.b16 %v1247
        %v1317 = vunpack.c.h.b16 %v1247
        %v1318 = vunpack.c.l.b16 %v1248
        %v1319 = vunpack.c.h.b16 %v1248
        %v1320 = vunpack.c.l.b16 %v1249
        %v1321 = vunpack.c.h.b16 %v1249
        %v1322 = vunpack.c.l.b16 %v1250
        %v1323 = vunpack.c.h.b16 %v1250
        %v1324 = vunpack.c.l.b16 %v1251
        %v1325 = vunpack.c.h.b16 %v1251
        %v1326 = vunpack.c.l.b16 %v1252
        %v1327 = vunpack.c.h.b16 %v1252
        %v1328 = vunpack.c.l.b16 %v1253
        %v1329 = vunpack.c.h.b16 %v1253
        %v1330 = vunpack.c.l.b16 %v1254
        %v1331 = vunpack.c.h.b16 %v1254
        %v1332 = vunpack.c.l.b16 %v1255
        %v1333 = vunpack.c.h.b16 %v1255
        %v1334 = vunpack.c.l.b16 %v1256
        %v1335 = vunpack.c.h.b16 %v1256
        %v1336 = vunpack.c.l.b16 %v1257
        %v1337 = vunpack.c.h.b16 %v1257
        %v1338 = vunpack.c.l.b16 %v1258
        %v1339 = vunpack.c.h.b16 %v1258
        %v1340 = vunpack.c.l.b16 %v1259
        %v1341 = vunpack.c.h.b16 %v1259
        %v1342 = vunpack.c.l.b16 %v1260
        %v1343 = vunpack.c.h.b16 %v1260
        %v1344 = vunpack.c.l.b16 %v1261
        %v1345 = vunpack.c.h.b16 %v1261
        %v1346 = vunpack.c.l.b16 %v1262
        %v1347 = vunpack.c.h.b16 %v1262
        %v1348 = vunpack.c.l.b16 %v1263
        %v1349 = vunpack.c.h.b16 %v1263
        %v1350 = vunpack.c.l.b16 %v1264
        %v1351 = vunpack.c.h.b16 %v1264
        %v1352 = vunpack.c.l.b16 %v1265
        %v1353 = vunpack.c.h.b16 %v1265
        %v1354 = vunpack.c.l.b16 %v1266
        %v1355 = vunpack.c.h.b16 %v1266
        %v1356 = vunpack.c.l.b16 %v1267
        %v1357 = vunpack.c.h.b16 %v1267
        %v1358 = vunpack.c.l.b16 %v1268
        %v1359 = vunpack.c.h.b16 %v1268
        %v1360 = vunpack.c.l.b16 %v1269
        %v1361 = vunpack.c.h.b16 %v1269
        %v1362 = vunpack.c.l.b16 %v1270
        %v1363 = vunpack.c.h.b16 %v1270
        %v1364 = vunpack.c.l.b16 %v1271
        %v1365 = vunpack.c.h.b16 %v1271
        %v1366 = vunpack.c.l.b16 %v1272
        %v1367 = vunpack.c.h.b16 %v1272
        %v1368 = vunpack.c.l.b16 %v1273
        %v1369 = vunpack.c.h.b16 %v1273
        %v1370 = vpack.c.b16 %v1306, %v1306
        %v1371 = vpack.c.b16 %v1307, %v1307
        %v1372 = vpack.c.b16 %v1308, %v1308
        %v1373 = vpack.c.b16 %v1309, %v1309
        %v1374 = vpack.c.b16 %v1310, %v1310
        %v1375 = vpack.c.b16 %v1311, %v1311
        %v1376 = vpack.c.b16 %v1312, %v1312
        %v1377 = vpack.c.b16 %v1313, %v1313
        %v1378 = vpack.c.b16 %v1314, %v1314
        %v1379 = vpack.c.b16 %v1315, %v1315
        %v1380 = vpack.c.b16 %v1316, %v1316
        %v1381 = vpack.c.b16 %v1317, %v1317
        %v1382 = vpack.c.b16 %v1318, %v1318
        %v1383 = vpack.c.b16 %v1319, %v1319
        %v1384 = vpack.c.b16 %v1320, %v1320
        %v1385 = vpack.c.b16 %v1321, %v1321
        %v1386 = vpack.c.b16 %v1322, %v1322
        %v1387 = vpack.c.b16 %v1323, %v1323
        %v1388 = vpack.c.b16 %v1324, %v1324
        %v1389 = vpack.c.b16 %v1325, %v1325
        %v1390 = vpack.c.b16 %v1326, %v1326
        %v1391 = vpack.c.b16 %v1327, %v1327
        %v1392 = vpack.c.b16 %v1328, %v1328
        %v1393 = vpack.c.b16 %v1329, %v1329
        %v1394 = vpack.c.b16 %v1330, %v1330
        %v1395 = vpack.c.b16 %v1331, %v1331
        %v1396 = vpack.c.b16 %v1332, %v1332
        %v1397 = vpack.c.b16 %v1333, %v1333
        %v1398 = vpack.c.b16 %v1334, %v1334
        %v1399 = vpack.c.b16 %v1335, %v1335
        %v1400 = vpack.c.b16 %v1336, %v1336
        %v1401 = vpack.c.b16 %v1337, %v1337
        %v1402 = vpack.c.b16 %v1338, %v1338
        %v1403 = vpack.c.b16 %v1339, %v1339
        %v1404 = vpack.c.b16 %v1340, %v1340
        %v1405 = vpack.c.b16 %v1341, %v1341
        %v1406 = vpack.c.b16 %v1342, %v1342
        %v1407 = vpack.c.b16 %v1343, %v1343
        %v1408 = vpack.c.b16 %v1344, %v1344
        %v1409 = vpack.c.b16 %v1345, %v1345
        %v1410 = vpack.c.b16 %v1346, %v1346
        %v1411 = vpack.c.b16 %v1347, %v1347
        %v1412 = vpack.c.b16 %v1348, %v1348
        %v1413 = vpack.c.b16 %v1349, %v1349
        %v1414 = vpack.c.b16 %v1350, %v1350
        %v1415 = vpack.c.b16 %v1351, %v1351
        %v1416 = vpack.c.b16 %v1352, %v1352
        %v1417 = vpack.c.b16 %v1353, %v1353
        %v1418 = vpack.c.b16 %v1354, %v1354
        %v1419 = vpack.c.b16 %v1355, %v1355
        %v1420 = vpack.c.b16 %v1356, %v1356
        %v1421 = vpack.c.b16 %v1357, %v1357
        %v1422 = vpack.c.b16 %v1358, %v1358
        %v1423 = vpack.c.b16 %v1359, %v1359
        %v1424 = vpack.c.b16 %v1360, %v1360
        %v1425 = vpack.c.b16 %v1361, %v1361
        %v1426 = vpack.c.b16 %v1362, %v1362
        %v1427 = vpack.c.b16 %v1363, %v1363
        %v1428 = vpack.c.b16 %v1364, %v1364
        %v1429 = vpack.c.b16 %v1365, %v1365
        %v1430 = vpack.c.b16 %v1366, %v1366
        %v1431 = vpack.c.b16 %v1367, %v1367
        %v1432 = vpack.c.b16 %v1368, %v1368
        %v1433 = vpack.c.b16 %v1369, %v1369
        %1498 = vst [vmem:[%s385] sm:$0xf] %v1370
        %1499 = vst [vmem:[%s385 + $0x4] sm:$0xf] %v1371
        %1500 = vst [vmem:[%s385 + $0x8] sm:$0xf] %v1372
        %1501 = vst [vmem:[%s385 + $0xc] sm:$0xf] %v1373
        %1502 = vst [vmem:[%s385 + $0x10] sm:$0xf] %v1374
        %1503 = vst [vmem:[%s385 + $0x14] sm:$0xf] %v1375
        %1504 = vst [vmem:[%s385 + $0x18] sm:$0xf] %v1376
        %1505 = vst [vmem:[%s385 + $0x1c] sm:$0xf] %v1377
        %1506 = vst [vmem:[%s385 + $0x20] sm:$0xf] %v1378
        %1507 = vst [vmem:[%s385 + $0x24] sm:$0xf] %v1379
        %1508 = vst [vmem:[%s385 + $0x28] sm:$0xf] %v1380
        %1509 = vst [vmem:[%s385 + $0x2c] sm:$0xf] %v1381
        %1510 = vst [vmem:[%s385 + $0x30] sm:$0xf] %v1382
        %1511 = vst [vmem:[%s385 + $0x34] sm:$0xf] %v1383
        %1512 = vst [vmem:[%s385 + $0x38] sm:$0xf] %v1384
        %1513 = vst [vmem:[%s385 + $0x3c] sm:$0xf] %v1385
        %1514 = vst [vmem:[%s385 + $0x40] sm:$0xf] %v1386
        %1515 = vst [vmem:[%s385 + $0x44] sm:$0xf] %v1387
        %1516 = vst [vmem:[%s385 + $0x48] sm:$0xf] %v1388
        %1517 = vst [vmem:[%s385 + $0x4c] sm:$0xf] %v1389
        %1518 = vst [vmem:[%s385 + $0x50] sm:$0xf] %v1390
        %1519 = vst [vmem:[%s385 + $0x54] sm:$0xf] %v1391
        %1520 = vst [vmem:[%s385 + $0x58] sm:$0xf] %v1392
        %1521 = vst [vmem:[%s385 + $0x5c] sm:$0xf] %v1393
        %1522 = vst [vmem:[%s385 + $0x60] sm:$0xf] %v1394
        %1523 = vst [vmem:[%s385 + $0x64] sm:$0xf] %v1395
        %1524 = vst [vmem:[%s385 + $0x68] sm:$0xf] %v1396
        %1525 = vst [vmem:[%s385 + $0x6c] sm:$0xf] %v1397
        %1526 = vst [vmem:[%s385 + $0x70] sm:$0xf] %v1398
        %1527 = vst [vmem:[%s385 + $0x74] sm:$0xf] %v1399
        %1528 = vst [vmem:[%s385 + $0x78] sm:$0xf] %v1400
        %1529 = vst [vmem:[%s385 + $0x7c] sm:$0xf] %v1401
        %1530 = vst [vmem:[%s385 + $0x80] sm:$0xf] %v1402
        %1531 = vst [vmem:[%s385 + $0x84] sm:$0xf] %v1403
        %1532 = vst [vmem:[%s385 + $0x88] sm:$0xf] %v1404
        %1533 = vst [vmem:[%s385 + $0x8c] sm:$0xf] %v1405
        %1534 = vst [vmem:[%s385 + $0x90] sm:$0xf] %v1406
        %1535 = vst [vmem:[%s385 + $0x94] sm:$0xf] %v1407
        %1536 = vst [vmem:[%s385 + $0x98] sm:$0xf] %v1408
        %1537 = vst [vmem:[%s385 + $0x9c] sm:$0xf] %v1409
        %1538 = vst [vmem:[%s385 + $0xa0] sm:$0xf] %v1410
        %1539 = vst [vmem:[%s385 + $0xa4] sm:$0xf] %v1411
        %1540 = vst [vmem:[%s385 + $0xa8] sm:$0xf] %v1412
        %1541 = vst [vmem:[%s385 + $0xac] sm:$0xf] %v1413
        %1542 = vst [vmem:[%s385 + $0xb0] sm:$0xf] %v1414
        %1543 = vst [vmem:[%s385 + $0xb4] sm:$0xf] %v1415
        %1544 = vst [vmem:[%s385 + $0xb8] sm:$0xf] %v1416
        %1545 = vst [vmem:[%s385 + $0xbc] sm:$0xf] %v1417
        %1546 = vst [vmem:[%s385 + $0xc0] sm:$0xf] %v1418
        %1547 = vst [vmem:[%s385 + $0xc4] sm:$0xf] %v1419
        %1548 = vst [vmem:[%s385 + $0xc8] sm:$0xf] %v1420
        %1549 = vst [vmem:[%s385 + $0xcc] sm:$0xf] %v1421
        %1550 = vst [vmem:[%s385 + $0xd0] sm:$0xf] %v1422
        %1551 = vst [vmem:[%s385 + $0xd4] sm:$0xf] %v1423
        %1552 = vst [vmem:[%s385 + $0xd8] sm:$0xf] %v1424
        %1553 = vst [vmem:[%s385 + $0xdc] sm:$0xf] %v1425
        %1554 = vst [vmem:[%s385 + $0xe0] sm:$0xf] %v1426
        %1555 = vst [vmem:[%s385 + $0xe4] sm:$0xf] %v1427
        %1556 = vst [vmem:[%s385 + $0xe8] sm:$0xf] %v1428
        %1557 = vst [vmem:[%s385 + $0xec] sm:$0xf] %v1429
        %1558 = vst [vmem:[%s385 + $0xf0] sm:$0xf] %v1430
        %1559 = vst [vmem:[%s385 + $0xf4] sm:$0xf] %v1431
        %1560 = vst [vmem:[%s385 + $0xf8] sm:$0xf] %v1432
        %1561 = vst [vmem:[%s385 + $0xfc] sm:$0xf] %v1433
        %v1562 = vadd.f32 %v1178, %v1179
        %v1563 = vadd.f32 %v1562, %v1180
        %v1564 = vadd.f32 %v1563, %v1181
        %v1565 = vadd.f32 %v1564, %v1182
        %v1566 = vadd.f32 %v1565, %v1183
        %v1567 = vadd.f32 %v1566, %v1184
        %v1568 = vadd.f32 %v1567, %v1185
        %v1569 = vadd.f32 %v1568, %v1186
        %v1570 = vadd.f32 %v1569, %v1187
        %v1571 = vadd.f32 %v1570, %v1188
        %v1572 = vadd.f32 %v1571, %v1189
        %v1573 = vadd.f32 %v1572, %v1190
        %v1574 = vadd.f32 %v1573, %v1191
        %v1575 = vadd.f32 %v1574, %v1192
        %v1576 = vadd.f32 %v1575, %v1193
        %v1577 = vadd.f32 %v1576, %v1194
        %v1578 = vadd.f32 %v1577, %v1195
        %v1579 = vadd.f32 %v1578, %v1196
        %v1580 = vadd.f32 %v1579, %v1197
        %v1581 = vadd.f32 %v1580, %v1198
        %v1582 = vadd.f32 %v1581, %v1199
        %v1583 = vadd.f32 %v1582, %v1200
        %v1584 = vadd.f32 %v1583, %v1201
        %v1585 = vadd.f32 %v1584, %v1202
        %v1586 = vadd.f32 %v1585, %v1203
        %v1587 = vadd.f32 %v1586, %v1204
        %v1588 = vadd.f32 %v1587, %v1205
        %v1589 = vadd.f32 %v1588, %v1206
        %v1590 = vadd.f32 %v1589, %v1207
        %v1591 = vadd.f32 %v1590, %v1208
        %v1592 = vadd.f32 %v1591, %v1209
        %v1593 = vadd.f32 %v1592, %v1210
        %v1594 = vadd.f32 %v1593, %v1211
        %v1595 = vadd.f32 %v1594, %v1212
        %v1596 = vadd.f32 %v1595, %v1213
        %v1597 = vadd.f32 %v1596, %v1214
        %v1598 = vadd.f32 %v1597, %v1215
        %v1599 = vadd.f32 %v1598, %v1216
        %v1600 = vadd.f32 %v1599, %v1217
        %v1601 = vadd.f32 %v1600, %v1218
        %v1602 = vadd.f32 %v1601, %v1219
        %v1603 = vadd.f32 %v1602, %v1220
        %v1604 = vadd.f32 %v1603, %v1221
        %v1605 = vadd.f32 %v1604, %v1222
        %v1606 = vadd.f32 %v1605, %v1223
        %v1607 = vadd.f32 %v1606, %v1224
        %v1608 = vadd.f32 %v1607, %v1225
        %v1609 = vadd.f32 %v1608, %v1226
        %v1610 = vadd.f32 %v1609, %v1227
        %v1611 = vadd.f32 %v1610, %v1228
        %v1612 = vadd.f32 %v1611, %v1229
        %v1613 = vadd.f32 %v1612, %v1230
        %v1614 = vadd.f32 %v1613, %v1231
        %v1615 = vadd.f32 %v1614, %v1232
        %v1616 = vadd.f32 %v1615, %v1233
        %v1617 = vadd.f32 %v1616, %v1234
        %v1618 = vadd.f32 %v1617, %v1235
        %v1619 = vadd.f32 %v1618, %v1236
        %v1620 = vadd.f32 %v1619, %v1237
        %v1621 = vadd.f32 %v1620, %v1238
        %v1622 = vadd.f32 %v1621, %v1239
        %v1623 = vadd.f32 %v1622, %v1240
        %v1624 = vadd.f32 %v1623, %v1241
        %v1625 = vrot.slane %v1624, 4
        %v1626 = vadd.f32 %v1624, %v1625
        %v1627 = vrot.slane %v1626, 2
        %v1628 = vadd.f32 %v1626, %v1627
        %v1629 = vrot.slane %v1628, 1
        %v1630 = vadd.f32 %v1628, %v1629
        %1631 = vst [vmem:[%s392] sm:$0x1] %v1630
        %v1632 = vmul.f32 %v1178, %v1178
        %v1633 = vmul.f32 %v1179, %v1179
        %v1634 = vmul.f32 %v1180, %v1180
        %v1635 = vmul.f32 %v1181, %v1181
        %v1636 = vmul.f32 %v1182, %v1182
        %v1637 = vmul.f32 %v1183, %v1183
        %v1638 = vmul.f32 %v1184, %v1184
        %v1639 = vmul.f32 %v1185, %v1185
        %v1640 = vmul.f32 %v1186, %v1186
        %v1641 = vmul.f32 %v1187, %v1187
        %v1642 = vmul.f32 %v1188, %v1188
        %v1643 = vmul.f32 %v1189, %v1189
        %v1644 = vmul.f32 %v1190, %v1190
        %v1645 = vmul.f32 %v1191, %v1191
        %v1646 = vmul.f32 %v1192, %v1192
        %v1647 = vmul.f32 %v1193, %v1193
        %v1648 = vmul.f32 %v1194, %v1194
        %v1649 = vmul.f32 %v1195, %v1195
        %v1650 = vmul.f32 %v1196, %v1196
        %v1651 = vmul.f32 %v1197, %v1197
        %v1652 = vmul.f32 %v1198, %v1198
        %v1653 = vmul.f32 %v1199, %v1199
        %v1654 = vmul.f32 %v1200, %v1200
        %v1655 = vmul.f32 %v1201, %v1201
        %v1656 = vmul.f32 %v1202, %v1202
        %v1657 = vmul.f32 %v1203, %v1203
        %v1658 = vmul.f32 %v1204, %v1204
        %v1659 = vmul.f32 %v1205, %v1205
        %v1660 = vmul.f32 %v1206, %v1206
        %v1661 = vmul.f32 %v1207, %v1207
        %v1662 = vmul.f32 %v1208, %v1208
        %v1663 = vmul.f32 %v1209, %v1209
        %v1664 = vmul.f32 %v1210, %v1210
        %v1665 = vmul.f32 %v1211, %v1211
        %v1666 = vmul.f32 %v1212, %v1212
        %v1667 = vmul.f32 %v1213, %v1213
        %v1668 = vmul.f32 %v1214, %v1214
        %v1669 = vmul.f32 %v1215, %v1215
        %v1670 = vmul.f32 %v1216, %v1216
        %v1671 = vmul.f32 %v1217, %v1217
        %v1672 = vmul.f32 %v1218, %v1218
        %v1673 = vmul.f32 %v1219, %v1219
        %v1674 = vmul.f32 %v1220, %v1220
        %v1675 = vmul.f32 %v1221, %v1221
        %v1676 = vmul.f32 %v1222, %v1222
        %v1677 = vmul.f32 %v1223, %v1223
        %v1678 = vmul.f32 %v1224, %v1224
        %v1679 = vmul.f32 %v1225, %v1225
        %v1680 = vmul.f32 %v1226, %v1226
        %v1681 = vmul.f32 %v1227, %v1227
        %v1682 = vmul.f32 %v1228, %v1228
        %v1683 = vmul.f32 %v1229, %v1229
        %v1684 = vmul.f32 %v1230, %v1230
        %v1685 = vmul.f32 %v1231, %v1231
        %v1686 = vmul.f32 %v1232, %v1232
        %v1687 = vmul.f32 %v1233, %v1233
        %v1688 = vmul.f32 %v1234, %v1234
        %v1689 = vmul.f32 %v1235, %v1235
        %v1690 = vmul.f32 %v1236, %v1236
        %v1691 = vmul.f32 %v1237, %v1237
        %v1692 = vmul.f32 %v1238, %v1238
        %v1693 = vmul.f32 %v1239, %v1239
        %v1694 = vmul.f32 %v1240, %v1240
        %v1695 = vmul.f32 %v1241, %v1241
        %v1696 = vadd.f32 %v1632, %v1633
        %v1697 = vadd.f32 %v1696, %v1634
        %v1698 = vadd.f32 %v1697, %v1635
        %v1699 = vadd.f32 %v1698, %v1636
        %v1700 = vadd.f32 %v1699, %v1637
        %v1701 = vadd.f32 %v1700, %v1638
        %v1702 = vadd.f32 %v1701, %v1639
        %v1703 = vadd.f32 %v1702, %v1640
        %v1704 = vadd.f32 %v1703, %v1641
        %v1705 = vadd.f32 %v1704, %v1642
        %v1706 = vadd.f32 %v1705, %v1643
        %v1707 = vadd.f32 %v1706, %v1644
        %v1708 = vadd.f32 %v1707, %v1645
        %v1709 = vadd.f32 %v1708, %v1646
        %v1710 = vadd.f32 %v1709, %v1647
        %v1711 = vadd.f32 %v1710, %v1648
        %v1712 = vadd.f32 %v1711, %v1649
        %v1713 = vadd.f32 %v1712, %v1650
        %v1714 = vadd.f32 %v1713, %v1651
        %v1715 = vadd.f32 %v1714, %v1652
        %v1716 = vadd.f32 %v1715, %v1653
        %v1717 = vadd.f32 %v1716, %v1654
        %v1718 = vadd.f32 %v1717, %v1655
        %v1719 = vadd.f32 %v1718, %v1656
        %v1720 = vadd.f32 %v1719, %v1657
        %v1721 = vadd.f32 %v1720, %v1658
        %v1722 = vadd.f32 %v1721, %v1659
        %v1723 = vadd.f32 %v1722, %v1660
        %v1724 = vadd.f32 %v1723, %v1661
        %v1725 = vadd.f32 %v1724, %v1662
        %v1726 = vadd.f32 %v1725, %v1663
        %v1727 = vadd.f32 %v1726, %v1664
        %v1728 = vadd.f32 %v1727, %v1665
        %v1729 = vadd.f32 %v1728, %v1666
        %v1730 = vadd.f32 %v1729, %v1667
        %v1731 = vadd.f32 %v1730, %v1668
        %v1732 = vadd.f32 %v1731, %v1669
        %v1733 = vadd.f32 %v1732, %v1670
        %v1734 = vadd.f32 %v1733, %v1671
        %v1735 = vadd.f32 %v1734, %v1672
        %v1736 = vadd.f32 %v1735, %v1673
        %v1737 = vadd.f32 %v1736, %v1674
        %v1738 = vadd.f32 %v1737, %v1675
        %v1739 = vadd.f32 %v1738, %v1676
        %v1740 = vadd.f32 %v1739, %v1677
        %v1741 = vadd.f32 %v1740, %v1678
        %v1742 = vadd.f32 %v1741, %v1679
        %v1743 = vadd.f32 %v1742, %v1680
        %v1744 = vadd.f32 %v1743, %v1681
        %v1745 = vadd.f32 %v1744, %v1682
        %v1746 = vadd.f32 %v1745, %v1683
        %v1747 = vadd.f32 %v1746, %v1684
        %v1748 = vadd.f32 %v1747, %v1685
        %v1749 = vadd.f32 %v1748, %v1686
        %v1750 = vadd.f32 %v1749, %v1687
        %v1751 = vadd.f32 %v1750, %v1688
        %v1752 = vadd.f32 %v1751, %v1689
        %v1753 = vadd.f32 %v1752, %v1690
        %v1754 = vadd.f32 %v1753, %v1691
        %v1755 = vadd.f32 %v1754, %v1692
        %v1756 = vadd.f32 %v1755, %v1693
        %v1757 = vadd.f32 %v1756, %v1694
        %v1758 = vadd.f32 %v1757, %v1695
        %v1759 = vrot.slane %v1758, 4
        %v1760 = vadd.f32 %v1758, %v1759
        %v1761 = vrot.slane %v1760, 2
        %v1762 = vadd.f32 %v1760, %v1761
        %v1763 = vrot.slane %v1762, 1
        %v1764 = vadd.f32 %v1762, %v1763
        %1765 = vst [vmem:[%s392 + $0x1] sm:$0x1] %v1764
        %s1766 = sand.u32 %s173, 1
        %s1767 = scalar_lea.sflag [#allocation4], %s1766
        %s1768 = sand.u32 %s173, 1
        %s1769 = smul.addr %s1768, 256
        %s1770 = scalar_lea.vmem [#allocation11], %s1769
        %s1771 = sand.u32 %s201, 1
        %s1772 = scalar_lea.sflag [#allocation13], %s1771
        %s1773 = sand.u32 %s201, 1
        %s1774 = smul.addr %s1773, 2
        %s1775 = scalar_lea.vmem [#allocation12], %s1774
        // Predicated region
        $region61: #{decoder_cbn2_forward.9} parent=39 // pred_check
          %p1776 = pneg %p183
        $region62: #{decoder_cbn2_forward.9} parent=39 // pred_check_branch
          %1778 = sbr.rel (%p1776) target = $region64
        $region63: #{decoder_cbn2_forward.9} parent=39 // pred_region
          #allocation17 [shape = 'u32[6]{0}', space=smem, size = 0x18, scoped, tag = 'DMA stride descriptor']
          %s1779 = smul.u32 2, %s33
          %s1780 = smul.u32 32, %s34
          %s1782 = ssub.s32 4096, 4096
          %1783 = vsyncadd %s1767, %s1782
          %s1784 = smul.addr %s1779, 256
          %s1785 = sadd.s32 %s1780, %s1784
          %s1786 = smul.addr %s1785, 64
          %s1787 = scalar_lea.hbm %s5, %s1786
          %s1789 = sshll.u32 1, 14
          %s1790 = sxor.u32 4294967295, %s1789
          %s1793 = sshll.u32 7, 18
          %s1794 = sxor.u32 4294967295, %s1793
          %s1795 = sand.u32 0, %s1794
          %s1797 = sor.u32 %s1795, 0
          %s1799 = sshll.u32 3, 24
          %s1800 = sxor.u32 4294967295, %s1799
          %s1801 = sand.u32 %s1797, %s1800
          %s1803 = sor.u32 %s1801, 0
          %s1804 = sshll.u32 %s1770, 4
          %s1805 = int_to_ptr.vmem [resolvable:$true] %s1804
          %1811 = sst [smem:[#allocation17]] 2048
          %s1812 = scalar_lea.smem [#allocation17], 1
          %1813 = sst [smem:[%s1812]] 16384
          %s1814 = scalar_lea.smem [#allocation17], 2
          %1815 = sst [smem:[%s1814]] 32
          %s1816 = scalar_lea.smem [#allocation17], 3
          %1817 = sst [smem:[%s1816]] 64
          %s1818 = scalar_lea.smem [#allocation17], 4
          %1819 = sst [smem:[%s1818]] 64
          %s1820 = scalar_lea.smem [#allocation17], 5
          %1821 = sst [smem:[%s1820]] 4
          %1823 = dma.general %s1805, 4096, %s1787, %s1767, [#allocation16], [#allocation17], %s1803, 0
        $region64: #{decoder_cbn2_forward.9} parent=39 // pred_fallthru
          _
        // Predicated region
        $region65: #{decoder_cbn2_forward.9} parent=39 // pred_check
          %p1824 = pneg %p211
        $region66: #{decoder_cbn2_forward.9} parent=39 // pred_check_branch
          %1826 = sbr.rel (%p1824) target = $region68
        $region67: #{decoder_cbn2_forward.9} parent=39 // pred_region
          %s1828 = ssub.s32 32, 32
          %1829 = vsyncadd %s1772, %s1828
          %s1830 = smul.addr %s33, 8
          %s1831 = sadd.s32 %s34, %s1830
          %s1832 = smul.addr %s1831, 32
          %s1833 = scalar_lea.hbm %s6, %s1832
          %s1835 = sshll.u32 %s1775, 4
          %s1836 = int_to_ptr.vmem [resolvable:$true] %s1835
          %1838 = dma.vmem_to_hbm [thread:$0]  %s1836, 32, %s1833, %s1772
        $region68: #{decoder_cbn2_forward.9} parent=39 // pred_fallthru
          _
      $region40: #{decoder_cbn2_forward.9} parent=5 // pred_fallthru
        _
      %p1839 = scmp.le.s32.totalorder 2, %s24
      // Predicated region
      $region69: #{decoder_cbn2_forward.9} parent=5 // pred_check
        %p1840 = pneg %p1839
      $region70: #{decoder_cbn2_forward.9} parent=5 // pred_check_branch
        %1842 = sbr.rel (%p1840) target = $region72
      $region71: #{decoder_cbn2_forward.9} parent=5 // pred_region
        %s1843 = ssub.s32 %s24, 2
        // Predicated region
        $region73: #{decoder_cbn2_forward.9} parent=71 // pred_check
          %p1844 = pneg %p189
        $region74: #{decoder_cbn2_forward.9} parent=71 // pred_check_branch
          %1846 = sbr.rel (%p1844) target = $region76
        $region75: #{decoder_cbn2_forward.9} parent=71 // pred_region
          %s1847 = sand.u32 %s174, 1
          %s1848 = scalar_lea.sflag [#allocation4], %s1847
          %s1849 = sand.u32 %s174, 1
          %s1850 = smul.addr %s1849, 256
          %s1851 = scalar_lea.vmem [#allocation11], %s1850
          %1852 = dma.done %s1848, 4096
        $region76: #{decoder_cbn2_forward.9} parent=71 // pred_fallthru
          _
        // Predicated region
        $region77: #{decoder_cbn2_forward.9} parent=71 // pred_check
          %p1853 = pneg %p217
        $region78: #{decoder_cbn2_forward.9} parent=71 // pred_check_branch
          %1855 = sbr.rel (%p1853) target = $region80
        $region79: #{decoder_cbn2_forward.9} parent=71 // pred_region
          %s1856 = sand.u32 %s202, 1
          %s1857 = scalar_lea.sflag [#allocation13], %s1856
          %s1858 = sand.u32 %s202, 1
          %s1859 = smul.addr %s1858, 2
          %s1860 = scalar_lea.vmem [#allocation12], %s1859
          %1861 = dma.done %s1857, 32
        $region80: #{decoder_cbn2_forward.9} parent=71 // pred_fallthru
          _
      $region72: #{decoder_cbn2_forward.9} parent=5 // pred_fallthru
        _
    $region6: #{decoder_cbn2_forward.9} parent=1 // loop_footer
      %s28 = sadd.s32 1, %s24
    $region7: #{decoder_cbn2_forward.9} parent=1 // loop_footer_branch
      %23 = sbr.rel target = $region3
    $region8: #{decoder_cbn2_forward.9} parent=1 // loop_exit
      _
    %1862 = vsyncpa [#allocation3], 1
    %s1863 = scalar_lea.sflag [#allocation3], 1
    %1864 = vsyncpa %s1863, 1
    %1865 = vsyncpa [#allocation6], 1
    %1866 = vsyncpa [#allocation9], 1
    %1867 = vsyncpa [#allocation4], 1
    %s1868 = scalar_lea.sflag [#allocation4], 1
    %1869 = vsyncpa %s1868, 1
    %1870 = vsyncpa [#allocation13], 1
    %s1871 = scalar_lea.sflag [#allocation13], 1
    %1872 = vsyncpa %s1871, 1

// kernel: decoder_cbn2_forward.15
$region0: #{decoder_cbn2_forward.15}
  #allocation0 [shape = 'u32[]', space=smem, size = 0x4, offset = 0x4, fixed_abs, tag = 'smem constant byte address 0x4 - core index']
  #allocation1 [shape = 'u32[144,128]{1,0:T(1,128)}', space=vmem, size = 0x12000, scoped, tag = 'internal scratch']
  #allocation2 [shape = 'f32[1,1]{1,0:T(1,128)S(1)}', space=vmem, size = 0x200, scoped, tag = 'scoped memory for decoder_cbn2_forward.15']
  #allocation12 [shape = 's32[]', space=sflag, size = 0x4, offset = 0, fixed_abs, tag = 'sflag constant byte address 0x0 - dummy sync flag']
  %s0 = inlined_call_operand.hbm [shape: bf16[2,2048,128], index: 0, kind: input, shape index: {}]
  %s1 = inlined_call_operand.hbm [shape: f32[2,128], index: 1, kind: input, shape index: {}]
  %s2 = inlined_call_operand.hbm [shape: f32[2,128], index: 2, kind: input, shape index: {}]
  %s3 = inlined_call_operand.hbm [shape: f32[1,128], index: 3, kind: input, shape index: {}]
  %s4 = inlined_call_operand.<no memory space> [shape: f32[1,1], index: 4, kind: input, shape index: {}]
  %s5 = inlined_call_operand.hbm [shape: f32[2,2048], index: 5, kind: output, shape index: {}]
  %s6 = sld [smem:[#allocation0]]
  $region69: #{decoder_cbn2_forward.15} parent=0
    _
  %s8 = ssub.s32 1, %s6
  %s9 = scalar_select 0, %s8, %s6
  %v10 = vstv %s4
  %11 = vst [vmem:[#allocation2] sm:$0x1] %v10
  $region1: #{decoder_cbn2_forward.15} parent=0
    #allocation3 [shape = 'u8[262144]{0}', space=vmem, size = 0x40000, scoped, tag = 'input window, operand 0']
    #allocation4 [shape = 's32[2]{0}', space=sflag, size = 0x8, scoped, tag = 'scoped memory for decoder_cbn2_forward.15']
    #allocation5 [shape = 's32[2]{0}', space=sflag, size = 0x8, scoped, tag = 'scoped memory for decoder_cbn2_forward.15']
    #allocation6 [shape = 'u8[1024]{0}', space=vmem, size = 0x400, scoped, tag = 'input window, operand 1, single buffered']
    #allocation7 [shape = 's32[1]{0}', space=sflag, size = 0x4, scoped, tag = 'scoped memory for decoder_cbn2_forward.15']
    #allocation8 [shape = 'u8[1024]{0}', space=vmem, size = 0x400, scoped, tag = 'input window, operand 2, single buffered']
    #allocation9 [shape = 'u8[512]{0}', space=vmem, size = 0x400, scoped, tag = 'input window, operand 3, single buffered']
    #allocation10 [shape = 's32[1]{0}', space=sflag, size = 0x4, scoped, tag = 'scoped memory for decoder_cbn2_forward.15']
    #allocation11 [shape = 'u8[4096]{0}', space=vmem, size = 0x1000, scoped, tag = 'output window, operand 0']
    %12 = vsyncpa [#allocation4], 0
    %s13 = scalar_lea.sflag [#allocation4], 1
    %14 = vsyncpa %s13, 0
    %15 = vsyncpa [#allocation7], 0
    %16 = vsyncpa [#allocation10], 0
    %17 = vsyncpa [#allocation5], 0
    %s18 = scalar_lea.sflag [#allocation5], 1
    %19 = vsyncpa %s18, 0
    loop: start=0, step=1, limit=10
    $region2: #{decoder_cbn2_forward.15} parent=1 // loop_pre_header
      _
    $region3: #{decoder_cbn2_forward.15} parent=1 // loop_header
      %s21 = sphi 0, %s25
      %p22 = scmp.ge.s32.totalorder %s21, 10
      %s28 = sphi 0, %s40
      %s29 = sphi 0, %s36
      %s30 = sphi 0, %s28
      %s31 = sphi 0, %s29
      %s32 = sphi 0, %s30
      %s33 = sphi 0, %s31
      %s45 = sphi 0, %s47
      %s48 = sphi 0, %s45
      %s49 = sphi 0, %s48
      %s65 = sphi 0, %s49
      %s71 = sphi 0, %s73
      %s74 = sphi 0, %s71
      %s75 = sphi 0, %s74
      %s91 = sphi 0, %s75
      %s97 = sphi 0, %s99
      %s100 = sphi 0, %s97
      %s101 = sphi 0, %s100
      %s117 = sphi 0, %s101
      %s121 = sphi 0, %s121
      %s123 = sphi 0, %s121
      %s124 = sphi 0, %s123
      %s138 = sphi 0, %s124
      %s142 = sphi 0, %s142
      %s144 = sphi 0, %s142
      %s145 = sphi 0, %s144
      %s159 = sphi 0, %s145
      %s167 = sphi 0, %s169
      %s170 = sphi 0, %s167
      %s171 = sphi 0, %s170
      %s187 = sphi 0, %s171
    $region4: #{decoder_cbn2_forward.15} parent=1 // loop_header_branch
      %24 = sbr.rel (%p22) target = $region8
    $region5: #{decoder_cbn2_forward.15} parent=1 // loop_body
      %s26 = ssub.s32 %s21, 1
      %s27 = ssub.s32 %s21, 2
      %s34 = sadd.s32 1, %s29
      %p35 = scmp.ge.s32.totalorder %s34, 8
      %s36 = scalar_select %p35, 0, %s34
      %s37 = sadd.s32 1, %s28
      %s38 = scalar_select %p35, %s37, %s28
      %p39 = scmp.ge.s32.totalorder %s38, 1
      %s40 = scalar_select %p39, 0, %s38
      %s41 = ssub.s32 %s28, %s40
      %s42 = ssub.s32 %s29, %s36
      %s43 = sor.u32 %s41, %s42
      %p44 = scmp.eq.s32.totalorder %s43, 0
      %s46 = sadd.s32 %s45, 1
      %s47 = scalar_select %p44, %s45, %s46
      %p50 = pneg %p44
      %p51 = scmp.eq.s32.totalorder %s21, 7
      %p52 = por %p50, %p51
      %p53 = scmp.ne.s32.totalorder %s45, %s48
      %p54 = scmp.eq.s32.totalorder %s21, 0
      %p55 = por %p53, %p54
      %p56 = scmp.ne.s32.totalorder %s45, %s48
      %p57 = scmp.eq.s32.totalorder %s26, 7
      %p58 = por %p56, %p57
      %p59 = scmp.ne.s32.totalorder %s48, %s49
      %p60 = scmp.eq.s32.totalorder %s26, 0
      %p61 = por %p59, %p60
      %p62 = scmp.ne.s32.totalorder %s48, %s49
      %p63 = scmp.eq.s32.totalorder %s27, 7
      %p64 = por %p62, %p63
      %p66 = scmp.ne.s32.totalorder %s49, %s65
      %p67 = scmp.eq.s32.totalorder %s27, 0
      %p68 = por %p66, %p67
      %s69 = ssub.s32 %s28, %s40
      %p70 = scmp.eq.s32.totalorder %s69, 0
      %s72 = sadd.s32 %s71, 1
      %s73 = scalar_select %p70, %s71, %s72
      %p76 = pneg %p70
      %p77 = scmp.eq.s32.totalorder %s21, 7
      %p78 = por %p76, %p77
      %p79 = scmp.ne.s32.totalorder %s71, %s74
      %p80 = scmp.eq.s32.totalorder %s21, 0
      %p81 = por %p79, %p80
      %p82 = scmp.ne.s32.totalorder %s71, %s74
      %p83 = scmp.eq.s32.totalorder %s26, 7
      %p84 = por %p82, %p83
      %p85 = scmp.ne.s32.totalorder %s74, %s75
      %p86 = scmp.eq.s32.totalorder %s26, 0
      %p87 = por %p85, %p86
      %p88 = scmp.ne.s32.totalorder %s74, %s75
      %p89 = scmp.eq.s32.totalorder %s27, 7
      %p90 = por %p88, %p89
      %p92 = scmp.ne.s32.totalorder %s75, %s91
      %p93 = scmp.eq.s32.totalorder %s27, 0
      %p94 = por %p92, %p93
      %s95 = ssub.s32 %s28, %s40
      %p96 = scmp.eq.s32.totalorder %s95, 0
      %s98 = sadd.s32 %s97, 1
      %s99 = scalar_select %p96, %s97, %s98
      %p102 = pneg %p96
      %p103 = scmp.eq.s32.totalorder %s21, 7
      %p104 = por %p102, %p103
      %p105 = scmp.ne.s32.totalorder %s97, %s100
      %p106 = scmp.eq.s32.totalorder %s21, 0
      %p107 = por %p105, %p106
      %p108 = scmp.ne.s32.totalorder %s97, %s100
      %p109 = scmp.eq.s32.totalorder %s26, 7
      %p110 = por %p108, %p109
      %p111 = scmp.ne.s32.totalorder %s100, %s101
      %p112 = scmp.eq.s32.totalorder %s26, 0
      %p113 = por %p111, %p112
      %p114 = scmp.ne.s32.totalorder %s100, %s101
      %p115 = scmp.eq.s32.totalorder %s27, 7
      %p116 = por %p114, %p115
      %p118 = scmp.ne.s32.totalorder %s101, %s117
      %p119 = scmp.eq.s32.totalorder %s27, 0
      %p120 = por %p118, %p119
      %s122 = sadd.s32 %s121, 1
      %p125 = scmp.eq.s32.totalorder %s21, 7
      %p126 = scmp.ne.s32.totalorder %s121, %s123
      %p127 = scmp.eq.s32.totalorder %s21, 0
      %p128 = por %p126, %p127
      %p129 = scmp.ne.s32.totalorder %s121, %s123
      %p130 = scmp.eq.s32.totalorder %s26, 7
      %p131 = por %p129, %p130
      %p132 = scmp.ne.s32.totalorder %s123, %s124
      %p133 = scmp.eq.s32.totalorder %s26, 0
      %p134 = por %p132, %p133
      %p135 = scmp.ne.s32.totalorder %s123, %s124
      %p136 = scmp.eq.s32.totalorder %s27, 7
      %p137 = por %p135, %p136
      %p139 = scmp.ne.s32.totalorder %s124, %s138
      %p140 = scmp.eq.s32.totalorder %s27, 0
      %p141 = por %p139, %p140
      %s143 = sadd.s32 %s142, 1
      %p146 = scmp.eq.s32.totalorder %s21, 7
      %p147 = scmp.ne.s32.totalorder %s142, %s144
      %p148 = scmp.eq.s32.totalorder %s21, 0
      %p149 = por %p147, %p148
      %p150 = scmp.ne.s32.totalorder %s142, %s144
      %p151 = scmp.eq.s32.totalorder %s26, 7
      %p152 = por %p150, %p151
      %p153 = scmp.ne.s32.totalorder %s144, %s145
      %p154 = scmp.eq.s32.totalorder %s26, 0
      %p155 = por %p153, %p154
      %p156 = scmp.ne.s32.totalorder %s144, %s145
      %p157 = scmp.eq.s32.totalorder %s27, 7
      %p158 = por %p156, %p157
      %p160 = scmp.ne.s32.totalorder %s145, %s159
      %p161 = scmp.eq.s32.totalorder %s27, 0
      %p162 = por %p160, %p161
      %s163 = ssub.s32 %s28, %s40
      %s164 = ssub.s32 %s29, %s36
      %s165 = sor.u32 %s163, %s164
      %p166 = scmp.eq.s32.totalorder %s165, 0
      %s168 = sadd.s32 %s167, 1
      %s169 = scalar_select %p166, %s167, %s168
      %p172 = pneg %p166
      %p173 = scmp.eq.s32.totalorder %s21, 7
      %p174 = por %p172, %p173
      %p175 = scmp.ne.s32.totalorder %s167, %s170
      %p176 = scmp.eq.s32.totalorder %s21, 0
      %p177 = por %p175, %p176
      %p178 = scmp.ne.s32.totalorder %s167, %s170
      %p179 = scmp.eq.s32.totalorder %s26, 7
      %p180 = por %p178, %p179
      %p181 = scmp.ne.s32.totalorder %s170, %s171
      %p182 = scmp.eq.s32.totalorder %s26, 0
      %p183 = por %p181, %p182
      %p184 = scmp.ne.s32.totalorder %s170, %s171
      %p185 = scmp.eq.s32.totalorder %s27, 7
      %p186 = por %p184, %p185
      %p188 = scmp.ne.s32.totalorder %s171, %s187
      %p189 = scmp.eq.s32.totalorder %s27, 0
      %p190 = por %p188, %p189
      %p191 = scmp.le.s32.totalorder 1, %s21
      %p192 = scmp.lt.s32.totalorder %s21, 9
      %p193 = pnand %p191, %p192
      %p194 = pneg %p193
      // Predicated region
      $region9: #{decoder_cbn2_forward.15} parent=5 // pred_check
        _
      $region10: #{decoder_cbn2_forward.15} parent=5 // pred_check_branch
        %196 = sbr.rel (%p193) target = $region12
      $region11: #{decoder_cbn2_forward.15} parent=5 // pred_region
        %s197 = ssub.s32 %s21, 1
        // Predicated region
        $region13: #{decoder_cbn2_forward.15} parent=11 // pred_check
          %p198 = pneg %p87
        $region14: #{decoder_cbn2_forward.15} parent=11 // pred_check_branch
          %200 = sbr.rel (%p198) target = $region16
        $region15: #{decoder_cbn2_forward.15} parent=11 // pred_region
          %s202 = ssub.s32 32, 32
          %203 = vsyncadd [#allocation7], %s202
          %s204 = smul.addr %s30, 32
          %s205 = scalar_lea.hbm %s1, %s204
          %s207 = sshll.u32 [#allocation6], 4
          %s208 = int_to_ptr.vmem [resolvable:$true] %s207
          %210 = dma.hbm_to_vmem [thread:$0]  %s205, 32, %s208, [#allocation7]
        $region16: #{decoder_cbn2_forward.15} parent=11 // pred_fallthru
          _
        // Predicated region
        $region17: #{decoder_cbn2_forward.15} parent=11 // pred_check
          %p211 = pneg %p113
        $region18: #{decoder_cbn2_forward.15} parent=11 // pred_check_branch
          %213 = sbr.rel (%p211) target = $region20
        $region19: #{decoder_cbn2_forward.15} parent=11 // pred_region
          %s215 = ssub.s32 32, 32
          %216 = vsyncadd [#allocation7], %s215
          %s217 = smul.addr %s30, 32
          %s218 = scalar_lea.hbm %s2, %s217
          %s220 = sshll.u32 [#allocation8], 4
          %s221 = int_to_ptr.vmem [resolvable:$true] %s220
          %223 = dma.hbm_to_vmem [thread:$0]  %s218, 32, %s221, [#allocation7]
        $region20: #{decoder_cbn2_forward.15} parent=11 // pred_fallthru
          _
        // Predicated region
        $region21: #{decoder_cbn2_forward.15} parent=11 // pred_check
          %p224 = pneg %p134
        $region22: #{decoder_cbn2_forward.15} parent=11 // pred_check_branch
          %226 = sbr.rel (%p224) target = $region24
        $region23: #{decoder_cbn2_forward.15} parent=11 // pred_region
          %s228 = ssub.s32 16, 16
          %229 = vsyncadd [#allocation10], %s228
          %s231 = sshll.u32 [#allocation9], 4
          %s232 = int_to_ptr.vmem [resolvable:$true] %s231
          %234 = dma.hbm_to_vmem [thread:$0]  %s3, 16, %s232, [#allocation10]
        $region24: #{decoder_cbn2_forward.15} parent=11 // pred_fallthru
          _
        // Predicated region
        $region25: #{decoder_cbn2_forward.15} parent=11 // pred_check
          %p235 = pneg %p155
        $region26: #{decoder_cbn2_forward.15} parent=11 // pred_check_branch
          %237 = sbr.rel (%p235) target = $region28
        $region27: #{decoder_cbn2_forward.15} parent=11 // pred_region
          _
        $region28: #{decoder_cbn2_forward.15} parent=11 // pred_fallthru
          _
      $region12: #{decoder_cbn2_forward.15} parent=5 // pred_fallthru
        _
      %p238 = scmp.lt.s32.totalorder %s21, 8
      // Predicated region
      $region29: #{decoder_cbn2_forward.15} parent=5 // pred_check
        %p239 = pneg %p238
      $region30: #{decoder_cbn2_forward.15} parent=5 // pred_check_branch
        %241 = sbr.rel (%p239) target = $region32
      $region31: #{decoder_cbn2_forward.15} parent=5 // pred_region
        // Predicated region
        $region33: #{decoder_cbn2_forward.15} parent=31 // pred_check
          %p242 = pneg %p55
        $region34: #{decoder_cbn2_forward.15} parent=31 // pred_check_branch
          %244 = sbr.rel (%p242) target = $region36
        $region35: #{decoder_cbn2_forward.15} parent=31 // pred_region
          #allocation13 [shape = 'u32[6]{0}', space=smem, size = 0x18, scoped, tag = 'DMA stride descriptor']
          %s245 = sand.u32 %s45, 1
          %s246 = scalar_lea.sflag [#allocation4], %s245
          %s247 = sand.u32 %s45, 1
          %s248 = smul.addr %s247, 256
          %s249 = scalar_lea.vmem [#allocation3], %s248
          %s250 = smul.u32 2, %s28
          %s251 = smul.u32 32, %s29
          %s253 = ssub.s32 4096, 4096
          %254 = vsyncadd %s246, %s253
          %s255 = smul.addr %s250, 256
          %s256 = sadd.s32 %s251, %s255
          %s257 = smul.addr %s256, 64
          %s258 = scalar_lea.hbm %s0, %s257
          %s260 = sshll.u32 1, 14
          %s261 = sxor.u32 4294967295, %s260
          %s263 = sld [smem:[#allocation0]]
          %s264 = sadd.s32 2, %s263
          %s266 = sshll.u32 7, 26
          %s267 = sxor.u32 4294967295, %s266
          %s268 = sand.u32 0, %s267
          %s269 = sshll.u32 %s264, 26
          %s270 = sor.u32 %s268, %s269
          %s271 = sshll.u32 %s249, 4
          %s272 = int_to_ptr.vmem [resolvable:$true] %s271
          %278 = sst [smem:[#allocation13]] 16384
          %s279 = scalar_lea.smem [#allocation13], 1
          %280 = sst [smem:[%s279]] 2048
          %s281 = scalar_lea.smem [#allocation13], 2
          %282 = sst [smem:[%s281]] 32
          %s283 = scalar_lea.smem [#allocation13], 3
          %284 = sst [smem:[%s283]] 64
          %s285 = scalar_lea.smem [#allocation13], 4
          %286 = sst [smem:[%s285]] 64
          %s287 = scalar_lea.smem [#allocation13], 5
          %288 = sst [smem:[%s287]] 4
          %290 = dma.general %s258, 4096, %s272, %s246, [#allocation12], [#allocation13], %s270, 0
        $region36: #{decoder_cbn2_forward.15} parent=31 // pred_fallthru
          _
      $region32: #{decoder_cbn2_forward.15} parent=5 // pred_fallthru
        _
      %p291 = scmp.le.s32.totalorder 1, %s21
      %p292 = scmp.lt.s32.totalorder %s21, 9
      %p293 = pnand %p291, %p292
      %p294 = pneg %p293
      // Predicated region
      $region37: #{decoder_cbn2_forward.15} parent=5 // pred_check
        _
      $region38: #{decoder_cbn2_forward.15} parent=5 // pred_check_branch
        %296 = sbr.rel (%p293) target = $region40
      $region39: #{decoder_cbn2_forward.15} parent=5 // pred_region
        %s297 = ssub.s32 %s21, 1
        %s298 = sand.u32 %s48, 1
        %s299 = scalar_lea.sflag [#allocation4], %s298
        %s300 = sand.u32 %s48, 1
        %s301 = smul.addr %s300, 256
        %s302 = scalar_lea.vmem [#allocation3], %s301
        // Predicated region
        $region41: #{decoder_cbn2_forward.15} parent=39 // pred_check
          %p303 = pneg %p61
        $region42: #{decoder_cbn2_forward.15} parent=39 // pred_check_branch
          %305 = sbr.rel (%p303) target = $region44
        $region43: #{decoder_cbn2_forward.15} parent=39 // pred_region
          %306 = dma.done %s299, 4096
        $region44: #{decoder_cbn2_forward.15} parent=39 // pred_fallthru
          _
        // Predicated region
        $region45: #{decoder_cbn2_forward.15} parent=39 // pred_check
          %p307 = pneg %p87
        $region46: #{decoder_cbn2_forward.15} parent=39 // pred_check_branch
          %309 = sbr.rel (%p307) target = $region48
        $region47: #{decoder_cbn2_forward.15} parent=39 // pred_region
          %310 = dma.done [#allocation7], 32
        $region48: #{decoder_cbn2_forward.15} parent=39 // pred_fallthru
          _
        // Predicated region
        $region49: #{decoder_cbn2_forward.15} parent=39 // pred_check
          %p311 = pneg %p113
        $region50: #{decoder_cbn2_forward.15} parent=39 // pred_check_branch
          %313 = sbr.rel (%p311) target = $region52
        $region51: #{decoder_cbn2_forward.15} parent=39 // pred_region
          %314 = dma.done [#allocation7], 32
        $region52: #{decoder_cbn2_forward.15} parent=39 // pred_fallthru
          _
        // Predicated region
        $region53: #{decoder_cbn2_forward.15} parent=39 // pred_check
          %p315 = pneg %p134
        $region54: #{decoder_cbn2_forward.15} parent=39 // pred_check_branch
          %317 = sbr.rel (%p315) target = $region56
        $region55: #{decoder_cbn2_forward.15} parent=39 // pred_region
          %318 = dma.done [#allocation10], 16
        $region56: #{decoder_cbn2_forward.15} parent=39 // pred_fallthru
          _
        %s319 = sand.u32 %s48, 1
        %s320 = scalar_lea.sflag [#allocation4], %s319
        %s321 = sand.u32 %s48, 1
        %s322 = smul.addr %s321, 256
        %s323 = scalar_lea.vmem [#allocation3], %s322
        %p324 = pneg %p61
        %p325 = pneg %p58
        %p326 = pneg %p87
        %p327 = pneg %p84
        %p328 = pneg %p113
        %p329 = pneg %p110
        %p330 = pneg %p134
        %p331 = pneg %p131
        %p332 = pneg %p155
        %p333 = pneg %p152
        %p334 = pneg %p183
        %p335 = pneg %p180
        %s336 = sand.u32 %s170, 1
        %s337 = scalar_lea.sflag [#allocation5], %s336
        %s338 = sand.u32 %s170, 1
        %s339 = smul.addr %s338, 4
        %s340 = scalar_lea.vmem [#allocation11], %s339
        %s341 = smul.u32 2, %s30
        %s342 = smul.u32 32, %s31
        %s343 = smul.u32 2, %s31
        %v344 = vld [vmem:[%s302] sm:$0xf]
        %v345 = vld [vmem:[%s302 + $0x4] sm:$0xf]
        %v346 = vld [vmem:[%s302 + $0x8] sm:$0xf]
        %v347 = vld [vmem:[%s302 + $0xc] sm:$0xf]
        %v348 = vld [vmem:[%s302 + $0x10] sm:$0xf]
        %v349 = vld [vmem:[%s302 + $0x14] sm:$0xf]
        %v350 = vld [vmem:[%s302 + $0x18] sm:$0xf]
        %v351 = vld [vmem:[%s302 + $0x1c] sm:$0xf]
        %v352 = vld [vmem:[%s302 + $0x20] sm:$0xf]
        %v353 = vld [vmem:[%s302 + $0x24] sm:$0xf]
        %v354 = vld [vmem:[%s302 + $0x28] sm:$0xf]
        %v355 = vld [vmem:[%s302 + $0x2c] sm:$0xf]
        %v356 = vld [vmem:[%s302 + $0x30] sm:$0xf]
        %v357 = vld [vmem:[%s302 + $0x34] sm:$0xf]
        %v358 = vld [vmem:[%s302 + $0x38] sm:$0xf]
        %v359 = vld [vmem:[%s302 + $0x3c] sm:$0xf]
        %v360 = vld [vmem:[%s302 + $0x40] sm:$0xf]
        %v361 = vld [vmem:[%s302 + $0x44] sm:$0xf]
        %v362 = vld [vmem:[%s302 + $0x48] sm:$0xf]
        %v363 = vld [vmem:[%s302 + $0x4c] sm:$0xf]
        %v364 = vld [vmem:[%s302 + $0x50] sm:$0xf]
        %v365 = vld [vmem:[%s302 + $0x54] sm:$0xf]
        %v366 = vld [vmem:[%s302 + $0x58] sm:$0xf]
        %v367 = vld [vmem:[%s302 + $0x5c] sm:$0xf]
        %v368 = vld [vmem:[%s302 + $0x60] sm:$0xf]
        %v369 = vld [vmem:[%s302 + $0x64] sm:$0xf]
        %v370 = vld [vmem:[%s302 + $0x68] sm:$0xf]
        %v371 = vld [vmem:[%s302 + $0x6c] sm:$0xf]
        %v372 = vld [vmem:[%s302 + $0x70] sm:$0xf]
        %v373 = vld [vmem:[%s302 + $0x74] sm:$0xf]
        %v374 = vld [vmem:[%s302 + $0x78] sm:$0xf]
        %v375 = vld [vmem:[%s302 + $0x7c] sm:$0xf]
        %v376 = vld [vmem:[%s302 + $0x80] sm:$0xf]
        %v377 = vld [vmem:[%s302 + $0x84] sm:$0xf]
        %v378 = vld [vmem:[%s302 + $0x88] sm:$0xf]
        %v379 = vld [vmem:[%s302 + $0x8c] sm:$0xf]
        %v380 = vld [vmem:[%s302 + $0x90] sm:$0xf]
        %v381 = vld [vmem:[%s302 + $0x94] sm:$0xf]
        %v382 = vld [vmem:[%s302 + $0x98] sm:$0xf]
        %v383 = vld [vmem:[%s302 + $0x9c] sm:$0xf]
        %v384 = vld [vmem:[%s302 + $0xa0] sm:$0xf]
        %v385 = vld [vmem:[%s302 + $0xa4] sm:$0xf]
        %v386 = vld [vmem:[%s302 + $0xa8] sm:$0xf]
        %v387 = vld [vmem:[%s302 + $0xac] sm:$0xf]
        %v388 = vld [vmem:[%s302 + $0xb0] sm:$0xf]
        %v389 = vld [vmem:[%s302 + $0xb4] sm:$0xf]
        %v390 = vld [vmem:[%s302 + $0xb8] sm:$0xf]
        %v391 = vld [vmem:[%s302 + $0xbc] sm:$0xf]
        %v392 = vld [vmem:[%s302 + $0xc0] sm:$0xf]
        %v393 = vld [vmem:[%s302 + $0xc4] sm:$0xf]
        %v394 = vld [vmem:[%s302 + $0xc8] sm:$0xf]
        %v395 = vld [vmem:[%s302 + $0xcc] sm:$0xf]
        %v396 = vld [vmem:[%s302 + $0xd0] sm:$0xf]
        %v397 = vld [vmem:[%s302 + $0xd4] sm:$0xf]
        %v398 = vld [vmem:[%s302 + $0xd8] sm:$0xf]
        %v399 = vld [vmem:[%s302 + $0xdc] sm:$0xf]
        %v400 = vld [vmem:[%s302 + $0xe0] sm:$0xf]
        %v401 = vld [vmem:[%s302 + $0xe4] sm:$0xf]
        %v402 = vld [vmem:[%s302 + $0xe8] sm:$0xf]
        %v403 = vld [vmem:[%s302 + $0xec] sm:$0xf]
        %v404 = vld [vmem:[%s302 + $0xf0] sm:$0xf]
        %v405 = vld [vmem:[%s302 + $0xf4] sm:$0xf]
        %v406 = vld [vmem:[%s302 + $0xf8] sm:$0xf]
        %v407 = vld [vmem:[%s302 + $0xfc] sm:$0xf]
        %v408 = vunpack.c.l.bf16 %v344
        %v409 = vunpack.c.l.bf16 %v345
        %v410 = vunpack.c.l.bf16 %v346
        %v411 = vunpack.c.l.bf16 %v347
        %v412 = vunpack.c.l.bf16 %v348
        %v413 = vunpack.c.l.bf16 %v349
        %v414 = vunpack.c.l.bf16 %v350
        %v415 = vunpack.c.l.bf16 %v351
        %v416 = vunpack.c.l.bf16 %v352
        %v417 = vunpack.c.l.bf16 %v353
        %v418 = vunpack.c.l.bf16 %v354
        %v419 = vunpack.c.l.bf16 %v355
        %v420 = vunpack.c.l.bf16 %v356
        %v421 = vunpack.c.l.bf16 %v357
        %v422 = vunpack.c.l.bf16 %v358
        %v423 = vunpack.c.l.bf16 %v359
        %v424 = vunpack.c.l.bf16 %v360
        %v425 = vunpack.c.l.bf16 %v361
        %v426 = vunpack.c.l.bf16 %v362
        %v427 = vunpack.c.l.bf16 %v363
        %v428 = vunpack.c.l.bf16 %v364
        %v429 = vunpack.c.l.bf16 %v365
        %v430 = vunpack.c.l.bf16 %v366
        %v431 = vunpack.c.l.bf16 %v367
        %v432 = vunpack.c.l.bf16 %v368
        %v433 = vunpack.c.l.bf16 %v369
        %v434 = vunpack.c.l.bf16 %v370
        %v435 = vunpack.c.l.bf16 %v371
        %v436 = vunpack.c.l.bf16 %v372
        %v437 = vunpack.c.l.bf16 %v373
        %v438 = vunpack.c.l.bf16 %v374
        %v439 = vunpack.c.l.bf16 %v375
        %v440 = vunpack.c.l.bf16 %v376
        %v441 = vunpack.c.l.bf16 %v377
        %v442 = vunpack.c.l.bf16 %v378
        %v443 = vunpack.c.l.bf16 %v379
        %v444 = vunpack.c.l.bf16 %v380
        %v445 = vunpack.c.l.bf16 %v381
        %v446 = vunpack.c.l.bf16 %v382
        %v447 = vunpack.c.l.bf16 %v383
        %v448 = vunpack.c.l.bf16 %v384
        %v449 = vunpack.c.l.bf16 %v385
        %v450 = vunpack.c.l.bf16 %v386
        %v451 = vunpack.c.l.bf16 %v387
        %v452 = vunpack.c.l.bf16 %v388
        %v453 = vunpack.c.l.bf16 %v389
        %v454 = vunpack.c.l.bf16 %v390
        %v455 = vunpack.c.l.bf16 %v391
        %v456 = vunpack.c.l.bf16 %v392
        %v457 = vunpack.c.l.bf16 %v393
        %v458 = vunpack.c.l.bf16 %v394
        %v459 = vunpack.c.l.bf16 %v395
        %v460 = vunpack.c.l.bf16 %v396
        %v461 = vunpack.c.l.bf16 %v397
        %v462 = vunpack.c.l.bf16 %v398
        %v463 = vunpack.c.l.bf16 %v399
        %v464 = vunpack.c.l.bf16 %v400
        %v465 = vunpack.c.l.bf16 %v401
        %v466 = vunpack.c.l.bf16 %v402
        %v467 = vunpack.c.l.bf16 %v403
        %v468 = vunpack.c.l.bf16 %v404
        %v469 = vunpack.c.l.bf16 %v405
        %v470 = vunpack.c.l.bf16 %v406
        %v471 = vunpack.c.l.bf16 %v407
        %v472 = vld [vmem:[#allocation6] sm:$0x3]
        %v475 = vunpack.c.l.s4 1966171168
        %v476 = vunpack.c.0.s8 %v475
        %v477 = vlaneseq
        %v478 = vshrl.u32 %v477, 7
        %v479 = vsub.s32 %v476, %v478
        %v480 = vrot.slane %v472, %v479
        %v481 = vcombine.high %v480, %v480
        %v483 = vunpack.c.l.s4 1966171168
        %v484 = vunpack.c.0.s8 %v483
        %v485 = vlaneseq
        %v486 = vshrl.u32 %v485, 7
        %v487 = vsub.s32 %v484, %v486
        %v488 = vrot.slane %v480, %v487
        %v490 = vunpack.c.l.s4 1966171168
        %v491 = vunpack.c.0.s8 %v490
        %v492 = vlaneseq
        %v493 = vshrl.u32 %v492, 7
        %v494 = vsub.s32 %v491, %v493
        %v495 = vrot.slane %v481, %v494
        %v496 = vlaneseq
        %v497 = vshrl.u32 %v496, 7
        %v498 = vsub.s32 0, %v497
        %v499 = vrot.slane %v488, %v498
        %v500 = vlaneseq
        %v501 = vshrl.u32 %v500, 7
        %v502 = vsub.s32 0, %v501
        %v503 = vrot.slane %v495, %v502
        %v506 = vmul.f32 %v408, %v499
        %v507 = vmul.f32 %v409, %v499
        %v508 = vmul.f32 %v410, %v499
        %v509 = vmul.f32 %v411, %v499
        %v510 = vmul.f32 %v412, %v499
        %v511 = vmul.f32 %v413, %v499
        %v512 = vmul.f32 %v414, %v499
        %v513 = vmul.f32 %v415, %v499
        %v514 = vmul.f32 %v416, %v499
        %v515 = vmul.f32 %v417, %v499
        %v516 = vmul.f32 %v418, %v499
        %v517 = vmul.f32 %v419, %v499
        %v518 = vmul.f32 %v420, %v499
        %v519 = vmul.f32 %v421, %v499
        %v520 = vmul.f32 %v422, %v499
        %v521 = vmul.f32 %v423, %v499
        %v522 = vmul.f32 %v424, %v499
        %v523 = vmul.f32 %v425, %v499
        %v524 = vmul.f32 %v426, %v499
        %v525 = vmul.f32 %v427, %v499
        %v526 = vmul.f32 %v428, %v499
        %v527 = vmul.f32 %v429, %v499
        %v528 = vmul.f32 %v430, %v499
        %v529 = vmul.f32 %v431, %v499
        %v530 = vmul.f32 %v432, %v499
        %v531 = vmul.f32 %v433, %v499
        %v532 = vmul.f32 %v434, %v499
        %v533 = vmul.f32 %v435, %v499
        %v534 = vmul.f32 %v436, %v499
        %v535 = vmul.f32 %v437, %v499
        %v536 = vmul.f32 %v438, %v499
        %v537 = vmul.f32 %v439, %v499
        %v538 = vmul.f32 %v440, %v503
        %v539 = vmul.f32 %v441, %v503
        %v540 = vmul.f32 %v442, %v503
        %v541 = vmul.f32 %v443, %v503
        %v542 = vmul.f32 %v444, %v503
        %v543 = vmul.f32 %v445, %v503
        %v544 = vmul.f32 %v446, %v503
        %v545 = vmul.f32 %v447, %v503
        %v546 = vmul.f32 %v448, %v503
        %v547 = vmul.f32 %v449, %v503
        %v548 = vmul.f32 %v450, %v503
        %v549 = vmul.f32 %v451, %v503
        %v550 = vmul.f32 %v452, %v503
        %v551 = vmul.f32 %v453, %v503
        %v552 = vmul.f32 %v454, %v503
        %v553 = vmul.f32 %v455, %v503
        %v554 = vmul.f32 %v456, %v503
        %v555 = vmul.f32 %v457, %v503
        %v556 = vmul.f32 %v458, %v503
        %v557 = vmul.f32 %v459, %v503
        %v558 = vmul.f32 %v460, %v503
        %v559 = vmul.f32 %v461, %v503
        %v560 = vmul.f32 %v462, %v503
        %v561 = vmul.f32 %v463, %v503
        %v562 = vmul.f32 %v464, %v503
        %v563 = vmul.f32 %v465, %v503
        %v564 = vmul.f32 %v466, %v503
        %v565 = vmul.f32 %v467, %v503
        %v566 = vmul.f32 %v468, %v503
        %v567 = vmul.f32 %v469, %v503
        %v568 = vmul.f32 %v470, %v503
        %v569 = vmul.f32 %v471, %v503
        %v570 = vld [vmem:[#allocation8] sm:$0x3]
        %v573 = vunpack.c.l.s4 1966171168
        %v574 = vunpack.c.0.s8 %v573
        %v575 = vlaneseq
        %v576 = vshrl.u32 %v575, 7
        %v577 = vsub.s32 %v574, %v576
        %v578 = vrot.slane %v570, %v577
        %v579 = vcombine.high %v578, %v578
        %v581 = vunpack.c.l.s4 1966171168
        %v582 = vunpack.c.0.s8 %v581
        %v583 = vlaneseq
        %v584 = vshrl.u32 %v583, 7
        %v585 = vsub.s32 %v582, %v584
        %v586 = vrot.slane %v578, %v585
        %v588 = vunpack.c.l.s4 1966171168
        %v589 = vunpack.c.0.s8 %v588
        %v590 = vlaneseq
        %v591 = vshrl.u32 %v590, 7
        %v592 = vsub.s32 %v589, %v591
        %v593 = vrot.slane %v579, %v592
        %v594 = vlaneseq
        %v595 = vshrl.u32 %v594, 7
        %v596 = vsub.s32 0, %v595
        %v597 = vrot.slane %v586, %v596
        %v598 = vlaneseq
        %v599 = vshrl.u32 %v598, 7
        %v600 = vsub.s32 0, %v599
        %v601 = vrot.slane %v593, %v600
        %v604 = vadd.f32 %v506, %v597
        %v605 = vadd.f32 %v507, %v597
        %v606 = vadd.f32 %v508, %v597
        %v607 = vadd.f32 %v509, %v597
        %v608 = vadd.f32 %v510, %v597
        %v609 = vadd.f32 %v511, %v597
        %v610 = vadd.f32 %v512, %v597
        %v611 = vadd.f32 %v513, %v597
        %v612 = vadd.f32 %v514, %v597
        %v613 = vadd.f32 %v515, %v597
        %v614 = vadd.f32 %v516, %v597
        %v615 = vadd.f32 %v517, %v597
        %v616 = vadd.f32 %v518, %v597
        %v617 = vadd.f32 %v519, %v597
        %v618 = vadd.f32 %v520, %v597
        %v619 = vadd.f32 %v521, %v597
        %v620 = vadd.f32 %v522, %v597
        %v621 = vadd.f32 %v523, %v597
        %v622 = vadd.f32 %v524, %v597
        %v623 = vadd.f32 %v525, %v597
        %v624 = vadd.f32 %v526, %v597
        %v625 = vadd.f32 %v527, %v597
        %v626 = vadd.f32 %v528, %v597
        %v627 = vadd.f32 %v529, %v597
        %v628 = vadd.f32 %v530, %v597
        %v629 = vadd.f32 %v531, %v597
        %v630 = vadd.f32 %v532, %v597
        %v631 = vadd.f32 %v533, %v597
        %v632 = vadd.f32 %v534, %v597
        %v633 = vadd.f32 %v535, %v597
        %v634 = vadd.f32 %v536, %v597
        %v635 = vadd.f32 %v537, %v597
        %v636 = vadd.f32 %v538, %v601
        %v637 = vadd.f32 %v539, %v601
        %v638 = vadd.f32 %v540, %v601
        %v639 = vadd.f32 %v541, %v601
        %v640 = vadd.f32 %v542, %v601
        %v641 = vadd.f32 %v543, %v601
        %v642 = vadd.f32 %v544, %v601
        %v643 = vadd.f32 %v545, %v601
        %v644 = vadd.f32 %v546, %v601
        %v645 = vadd.f32 %v547, %v601
        %v646 = vadd.f32 %v548, %v601
        %v647 = vadd.f32 %v549, %v601
        %v648 = vadd.f32 %v550, %v601
        %v649 = vadd.f32 %v551, %v601
        %v650 = vadd.f32 %v552, %v601
        %v651 = vadd.f32 %v553, %v601
        %v652 = vadd.f32 %v554, %v601
        %v653 = vadd.f32 %v555, %v601
        %v654 = vadd.f32 %v556, %v601
        %v655 = vadd.f32 %v557, %v601
        %v656 = vadd.f32 %v558, %v601
        %v657 = vadd.f32 %v559, %v601
        %v658 = vadd.f32 %v560, %v601
        %v659 = vadd.f32 %v561, %v601
        %v660 = vadd.f32 %v562, %v601
        %v661 = vadd.f32 %v563, %v601
        %v662 = vadd.f32 %v564, %v601
        %v663 = vadd.f32 %v565, %v601
        %v664 = vadd.f32 %v566, %v601
        %v665 = vadd.f32 %v567, %v601
        %v666 = vadd.f32 %v568, %v601
        %v667 = vadd.f32 %v569, %v601
        %v668 = vmax.f32 %v604, 0.0
        %v669 = vmax.f32 %v605, 0.0
        %v670 = vmax.f32 %v606, 0.0
        %v671 = vmax.f32 %v607, 0.0
        %v672 = vmax.f32 %v608, 0.0
        %v673 = vmax.f32 %v609, 0.0
        %v674 = vmax.f32 %v610, 0.0
        %v675 = vmax.f32 %v611, 0.0
        %v676 = vmax.f32 %v612, 0.0
        %v677 = vmax.f32 %v613, 0.0
        %v678 = vmax.f32 %v614, 0.0
        %v679 = vmax.f32 %v615, 0.0
        %v680 = vmax.f32 %v616, 0.0
        %v681 = vmax.f32 %v617, 0.0
        %v682 = vmax.f32 %v618, 0.0
        %v683 = vmax.f32 %v619, 0.0
        %v684 = vmax.f32 %v620, 0.0
        %v685 = vmax.f32 %v621, 0.0
        %v686 = vmax.f32 %v622, 0.0
        %v687 = vmax.f32 %v623, 0.0
        %v688 = vmax.f32 %v624, 0.0
        %v689 = vmax.f32 %v625, 0.0
        %v690 = vmax.f32 %v626, 0.0
        %v691 = vmax.f32 %v627, 0.0
        %v692 = vmax.f32 %v628, 0.0
        %v693 = vmax.f32 %v629, 0.0
        %v694 = vmax.f32 %v630, 0.0
        %v695 = vmax.f32 %v631, 0.0
        %v696 = vmax.f32 %v632, 0.0
        %v697 = vmax.f32 %v633, 0.0
        %v698 = vmax.f32 %v634, 0.0
        %v699 = vmax.f32 %v635, 0.0
        %v700 = vmax.f32 %v636, 0.0
        %v701 = vmax.f32 %v637, 0.0
        %v702 = vmax.f32 %v638, 0.0
        %v703 = vmax.f32 %v639, 0.0
        %v704 = vmax.f32 %v640, 0.0
        %v705 = vmax.f32 %v641, 0.0
        %v706 = vmax.f32 %v642, 0.0
        %v707 = vmax.f32 %v643, 0.0
        %v708 = vmax.f32 %v644, 0.0
        %v709 = vmax.f32 %v645, 0.0
        %v710 = vmax.f32 %v646, 0.0
        %v711 = vmax.f32 %v647, 0.0
        %v712 = vmax.f32 %v648, 0.0
        %v713 = vmax.f32 %v649, 0.0
        %v714 = vmax.f32 %v650, 0.0
        %v715 = vmax.f32 %v651, 0.0
        %v716 = vmax.f32 %v652, 0.0
        %v717 = vmax.f32 %v653, 0.0
        %v718 = vmax.f32 %v654, 0.0
        %v719 = vmax.f32 %v655, 0.0
        %v720 = vmax.f32 %v656, 0.0
        %v721 = vmax.f32 %v657, 0.0
        %v722 = vmax.f32 %v658, 0.0
        %v723 = vmax.f32 %v659, 0.0
        %v724 = vmax.f32 %v660, 0.0
        %v725 = vmax.f32 %v661, 0.0
        %v726 = vmax.f32 %v662, 0.0
        %v727 = vmax.f32 %v663, 0.0
        %v728 = vmax.f32 %v664, 0.0
        %v729 = vmax.f32 %v665, 0.0
        %v730 = vmax.f32 %v666, 0.0
        %v731 = vmax.f32 %v667, 0.0
        %v732 = vld [vmem:[#allocation9] sm:$0x1]
        %v734 = vlaneseq
        %v735 = vshrl.u32 %v734, 7
        %v736 = vsub.s32 0, %v735
        %v737 = vrot.slane %v732, %v736
        %v739 = vmul.f32 %v668, %v737
        %v740 = vmul.f32 %v669, %v737
        %v741 = vmul.f32 %v670, %v737
        %v742 = vmul.f32 %v671, %v737
        %v743 = vmul.f32 %v672, %v737
        %v744 = vmul.f32 %v673, %v737
        %v745 = vmul.f32 %v674, %v737
        %v746 = vmul.f32 %v675, %v737
        %v747 = vmul.f32 %v676, %v737
        %v748 = vmul.f32 %v677, %v737
        %v749 = vmul.f32 %v678, %v737
        %v750 = vmul.f32 %v679, %v737
        %v751 = vmul.f32 %v680, %v737
        %v752 = vmul.f32 %v681, %v737
        %v753 = vmul.f32 %v682, %v737
        %v754 = vmul.f32 %v683, %v737
        %v755 = vmul.f32 %v684, %v737
        %v756 = vmul.f32 %v685, %v737
        %v757 = vmul.f32 %v686, %v737
        %v758 = vmul.f32 %v687, %v737
        %v759 = vmul.f32 %v688, %v737
        %v760 = vmul.f32 %v689, %v737
        %v761 = vmul.f32 %v690, %v737
        %v762 = vmul.f32 %v691, %v737
        %v763 = vmul.f32 %v692, %v737
        %v764 = vmul.f32 %v693, %v737
        %v765 = vmul.f32 %v694, %v737
        %v766 = vmul.f32 %v695, %v737
        %v767 = vmul.f32 %v696, %v737
        %v768 = vmul.f32 %v697, %v737
        %v769 = vmul.f32 %v698, %v737
        %v770 = vmul.f32 %v699, %v737
        %v771 = vmul.f32 %v700, %v737
        %v772 = vmul.f32 %v701, %v737
        %v773 = vmul.f32 %v702, %v737
        %v774 = vmul.f32 %v703, %v737
        %v775 = vmul.f32 %v704, %v737
        %v776 = vmul.f32 %v705, %v737
        %v777 = vmul.f32 %v706, %v737
        %v778 = vmul.f32 %v707, %v737
        %v779 = vmul.f32 %v708, %v737
        %v780 = vmul.f32 %v709, %v737
        %v781 = vmul.f32 %v710, %v737
        %v782 = vmul.f32 %v711, %v737
        %v783 = vmul.f32 %v712, %v737
        %v784 = vmul.f32 %v713, %v737
        %v785 = vmul.f32 %v714, %v737
        %v786 = vmul.f32 %v715, %v737
        %v787 = vmul.f32 %v716, %v737
        %v788 = vmul.f32 %v717, %v737
        %v789 = vmul.f32 %v718, %v737
        %v790 = vmul.f32 %v719, %v737
        %v791 = vmul.f32 %v720, %v737
        %v792 = vmul.f32 %v721, %v737
        %v793 = vmul.f32 %v722, %v737
        %v794 = vmul.f32 %v723, %v737
        %v795 = vmul.f32 %v724, %v737
        %v796 = vmul.f32 %v725, %v737
        %v797 = vmul.f32 %v726, %v737
        %v798 = vmul.f32 %v727, %v737
        %v799 = vmul.f32 %v728, %v737
        %v800 = vmul.f32 %v729, %v737
        %v801 = vmul.f32 %v730, %v737
        %v802 = vmul.f32 %v731, %v737
        %803 = vadd.xlane.f32.xlu0 %v739
        %v804 = vpop.xlane.xlu0 %803
        %805 = vadd.xlane.f32.xlu0 %v740
        %v806 = vpop.xlane.xlu0 %805
        %807 = vadd.xlane.f32.xlu0 %v741
        %v808 = vpop.xlane.xlu0 %807
        %809 = vadd.xlane.f32.xlu0 %v742
        %v810 = vpop.xlane.xlu0 %809
        %811 = vadd.xlane.f32.xlu0 %v743
        %v812 = vpop.xlane.xlu0 %811
        %813 = vadd.xlane.f32.xlu0 %v744
        %v814 = vpop.xlane.xlu0 %813
        %815 = vadd.xlane.f32.xlu0 %v745
        %v816 = vpop.xlane.xlu0 %815
        %817 = vadd.xlane.f32.xlu0 %v746
        %v818 = vpop.xlane.xlu0 %817
        %819 = vadd.xlane.f32.xlu0 %v747
        %v820 = vpop.xlane.xlu0 %819
        %821 = vadd.xlane.f32.xlu0 %v748
        %v822 = vpop.xlane.xlu0 %821
        %823 = vadd.xlane.f32.xlu0 %v749
        %v824 = vpop.xlane.xlu0 %823
        %825 = vadd.xlane.f32.xlu0 %v750
        %v826 = vpop.xlane.xlu0 %825
        %827 = vadd.xlane.f32.xlu0 %v751
        %v828 = vpop.xlane.xlu0 %827
        %829 = vadd.xlane.f32.xlu0 %v752
        %v830 = vpop.xlane.xlu0 %829
        %831 = vadd.xlane.f32.xlu0 %v753
        %v832 = vpop.xlane.xlu0 %831
        %833 = vadd.xlane.f32.xlu0 %v754
        %v834 = vpop.xlane.xlu0 %833
        %835 = vadd.xlane.f32.xlu0 %v755
        %v836 = vpop.xlane.xlu0 %835
        %837 = vadd.xlane.f32.xlu0 %v756
        %v838 = vpop.xlane.xlu0 %837
        %839 = vadd.xlane.f32.xlu0 %v757
        %v840 = vpop.xlane.xlu0 %839
        %841 = vadd.xlane.f32.xlu0 %v758
        %v842 = vpop.xlane.xlu0 %841
        %843 = vadd.xlane.f32.xlu0 %v759
        %v844 = vpop.xlane.xlu0 %843
        %845 = vadd.xlane.f32.xlu0 %v760
        %v846 = vpop.xlane.xlu0 %845
        %847 = vadd.xlane.f32.xlu0 %v761
        %v848 = vpop.xlane.xlu0 %847
        %849 = vadd.xlane.f32.xlu0 %v762
        %v850 = vpop.xlane.xlu0 %849
        %851 = vadd.xlane.f32.xlu0 %v763
        %v852 = vpop.xlane.xlu0 %851
        %853 = vadd.xlane.f32.xlu0 %v764
        %v854 = vpop.xlane.xlu0 %853
        %855 = vadd.xlane.f32.xlu0 %v765
        %v856 = vpop.xlane.xlu0 %855
        %857 = vadd.xlane.f32.xlu0 %v766
        %v858 = vpop.xlane.xlu0 %857
        %859 = vadd.xlane.f32.xlu0 %v767
        %v860 = vpop.xlane.xlu0 %859
        %861 = vadd.xlane.f32.xlu0 %v768
        %v862 = vpop.xlane.xlu0 %861
        %863 = vadd.xlane.f32.xlu0 %v769
        %v864 = vpop.xlane.xlu0 %863
        %865 = vadd.xlane.f32.xlu0 %v770
        %v866 = vpop.xlane.xlu0 %865
        %867 = vadd.xlane.f32.xlu0 %v771
        %v868 = vpop.xlane.xlu0 %867
        %869 = vadd.xlane.f32.xlu0 %v772
        %v870 = vpop.xlane.xlu0 %869
        %871 = vadd.xlane.f32.xlu0 %v773
        %v872 = vpop.xlane.xlu0 %871
        %873 = vadd.xlane.f32.xlu0 %v774
        %v874 = vpop.xlane.xlu0 %873
        %875 = vadd.xlane.f32.xlu0 %v775
        %v876 = vpop.xlane.xlu0 %875
        %877 = vadd.xlane.f32.xlu0 %v776
        %v878 = vpop.xlane.xlu0 %877
        %879 = vadd.xlane.f32.xlu0 %v777
        %v880 = vpop.xlane.xlu0 %879
        %881 = vadd.xlane.f32.xlu0 %v778
        %v882 = vpop.xlane.xlu0 %881
        %883 = vadd.xlane.f32.xlu0 %v779
        %v884 = vpop.xlane.xlu0 %883
        %885 = vadd.xlane.f32.xlu0 %v780
        %v886 = vpop.xlane.xlu0 %885
        %887 = vadd.xlane.f32.xlu0 %v781
        %v888 = vpop.xlane.xlu0 %887
        %889 = vadd.xlane.f32.xlu0 %v782
        %v890 = vpop.xlane.xlu0 %889
        %891 = vadd.xlane.f32.xlu0 %v783
        %v892 = vpop.xlane.xlu0 %891
        %893 = vadd.xlane.f32.xlu0 %v784
        %v894 = vpop.xlane.xlu0 %893
        %895 = vadd.xlane.f32.xlu0 %v785
        %v896 = vpop.xlane.xlu0 %895
        %897 = vadd.xlane.f32.xlu0 %v786
        %v898 = vpop.xlane.xlu0 %897
        %899 = vadd.xlane.f32.xlu0 %v787
        %v900 = vpop.xlane.xlu0 %899
        %901 = vadd.xlane.f32.xlu0 %v788
        %v902 = vpop.xlane.xlu0 %901
        %903 = vadd.xlane.f32.xlu0 %v789
        %v904 = vpop.xlane.xlu0 %903
        %905 = vadd.xlane.f32.xlu0 %v790
        %v906 = vpop.xlane.xlu0 %905
        %907 = vadd.xlane.f32.xlu0 %v791
        %v908 = vpop.xlane.xlu0 %907
        %909 = vadd.xlane.f32.xlu0 %v792
        %v910 = vpop.xlane.xlu0 %909
        %911 = vadd.xlane.f32.xlu0 %v793
        %v912 = vpop.xlane.xlu0 %911
        %913 = vadd.xlane.f32.xlu0 %v794
        %v914 = vpop.xlane.xlu0 %913
        %915 = vadd.xlane.f32.xlu0 %v795
        %v916 = vpop.xlane.xlu0 %915
        %917 = vadd.xlane.f32.xlu0 %v796
        %v918 = vpop.xlane.xlu0 %917
        %919 = vadd.xlane.f32.xlu0 %v797
        %v920 = vpop.xlane.xlu0 %919
        %921 = vadd.xlane.f32.xlu0 %v798
        %v922 = vpop.xlane.xlu0 %921
        %923 = vadd.xlane.f32.xlu0 %v799
        %v924 = vpop.xlane.xlu0 %923
        %925 = vadd.xlane.f32.xlu0 %v800
        %v926 = vpop.xlane.xlu0 %925
        %927 = vadd.xlane.f32.xlu0 %v801
        %v928 = vpop.xlane.xlu0 %927
        %929 = vadd.xlane.f32.xlu0 %v802
        %v930 = vpop.xlane.xlu0 %929
        %v931 = vld [vmem:[#allocation2] sm:$0x1]
        %v933 = vlaneseq
        %v934 = vshrl.u32 %v933, 7
        %v935 = vsub.s32 0, %v934
        %v936 = vrot.slane %v931, %v935
        %937 = vset.pattern.permute.xlu0 0
        %938 = vperm.xlu0 %937, %v936
        %v939 = vpop.permute.xlu0 %938
        %v941 = vadd.f32 %v804, %v939
        %v942 = vadd.f32 %v806, %v939
        %v943 = vadd.f32 %v808, %v939
        %v944 = vadd.f32 %v810, %v939
        %v945 = vadd.f32 %v812, %v939
        %v946 = vadd.f32 %v814, %v939
        %v947 = vadd.f32 %v816, %v939
        %v948 = vadd.f32 %v818, %v939
        %v949 = vadd.f32 %v820, %v939
        %v950 = vadd.f32 %v822, %v939
        %v951 = vadd.f32 %v824, %v939
        %v952 = vadd.f32 %v826, %v939
        %v953 = vadd.f32 %v828, %v939
        %v954 = vadd.f32 %v830, %v939
        %v955 = vadd.f32 %v832, %v939
        %v956 = vadd.f32 %v834, %v939
        %v957 = vadd.f32 %v836, %v939
        %v958 = vadd.f32 %v838, %v939
        %v959 = vadd.f32 %v840, %v939
        %v960 = vadd.f32 %v842, %v939
        %v961 = vadd.f32 %v844, %v939
        %v962 = vadd.f32 %v846, %v939
        %v963 = vadd.f32 %v848, %v939
        %v964 = vadd.f32 %v850, %v939
        %v965 = vadd.f32 %v852, %v939
        %v966 = vadd.f32 %v854, %v939
        %v967 = vadd.f32 %v856, %v939
        %v968 = vadd.f32 %v858, %v939
        %v969 = vadd.f32 %v860, %v939
        %v970 = vadd.f32 %v862, %v939
        %v971 = vadd.f32 %v864, %v939
        %v972 = vadd.f32 %v866, %v939
        %v973 = vadd.f32 %v868, %v939
        %v974 = vadd.f32 %v870, %v939
        %v975 = vadd.f32 %v872, %v939
        %v976 = vadd.f32 %v874, %v939
        %v977 = vadd.f32 %v876, %v939
        %v978 = vadd.f32 %v878, %v939
        %v979 = vadd.f32 %v880, %v939
        %v980 = vadd.f32 %v882, %v939
        %v981 = vadd.f32 %v884, %v939
        %v982 = vadd.f32 %v886, %v939
        %v983 = vadd.f32 %v888, %v939
        %v984 = vadd.f32 %v890, %v939
        %v985 = vadd.f32 %v892, %v939
        %v986 = vadd.f32 %v894, %v939
        %v987 = vadd.f32 %v896, %v939
        %v988 = vadd.f32 %v898, %v939
        %v989 = vadd.f32 %v900, %v939
        %v990 = vadd.f32 %v902, %v939
        %v991 = vadd.f32 %v904, %v939
        %v992 = vadd.f32 %v906, %v939
        %v993 = vadd.f32 %v908, %v939
        %v994 = vadd.f32 %v910, %v939
        %v995 = vadd.f32 %v912, %v939
        %v996 = vadd.f32 %v914, %v939
        %v997 = vadd.f32 %v916, %v939
        %v998 = vadd.f32 %v918, %v939
        %v999 = vadd.f32 %v920, %v939
        %v1000 = vadd.f32 %v922, %v939
        %v1001 = vadd.f32 %v924, %v939
        %v1002 = vadd.f32 %v926, %v939
        %v1003 = vadd.f32 %v928, %v939
        %v1004 = vadd.f32 %v930, %v939
        %v1070 = vunpack.c.l.s4 269488144
        %v1071 = vunpack.c.0.s8 %v1070
        %v1072 = vlaneseq
        %v1073 = vshrl.u32 %v1072, 7
        %v1074 = vsub.s32 %v1071, %v1073
        %v1075 = vrot.slane %v941, %v1074
        %v1077 = vunpack.c.l.s4 842150450
        %v1078 = vunpack.c.0.s8 %v1077
        %v1079 = vlaneseq
        %v1080 = vshrl.u32 %v1079, 7
        %v1081 = vsub.s32 %v1078, %v1080
        %v1082 = vrot.slane %v941, %v1081
        %v1084 = vunpack.c.l.s4 1414812756
        %v1085 = vunpack.c.0.s8 %v1084
        %v1086 = vlaneseq
        %v1087 = vshrl.u32 %v1086, 7
        %v1088 = vsub.s32 %v1085, %v1087
        %v1089 = vrot.slane %v941, %v1088
        %v1091 = vunpack.c.l.s4 1987475062
        %v1092 = vunpack.c.0.s8 %v1091
        %v1093 = vlaneseq
        %v1094 = vshrl.u32 %v1093, 7
        %v1095 = vsub.s32 %v1092, %v1094
        %v1096 = vrot.slane %v941, %v1095
        %v1098 = vunpack.c.l.s4 269488144
        %v1099 = vunpack.c.0.s8 %v1098
        %v1100 = vlaneseq
        %v1101 = vshrl.u32 %v1100, 7
        %v1102 = vsub.s32 %v1099, %v1101
        %v1103 = vrot.slane %v942, %v1102
        %v1105 = vunpack.c.l.s4 842150450
        %v1106 = vunpack.c.0.s8 %v1105
        %v1107 = vlaneseq
        %v1108 = vshrl.u32 %v1107, 7
        %v1109 = vsub.s32 %v1106, %v1108
        %v1110 = vrot.slane %v942, %v1109
        %v1112 = vunpack.c.l.s4 1414812756
        %v1113 = vunpack.c.0.s8 %v1112
        %v1114 = vlaneseq
        %v1115 = vshrl.u32 %v1114, 7
        %v1116 = vsub.s32 %v1113, %v1115
        %v1117 = vrot.slane %v942, %v1116
        %v1119 = vunpack.c.l.s4 1987475062
        %v1120 = vunpack.c.0.s8 %v1119
        %v1121 = vlaneseq
        %v1122 = vshrl.u32 %v1121, 7
        %v1123 = vsub.s32 %v1120, %v1122
        %v1124 = vrot.slane %v942, %v1123
        %v1126 = vunpack.c.l.s4 269488144
        %v1127 = vunpack.c.0.s8 %v1126
        %v1128 = vlaneseq
        %v1129 = vshrl.u32 %v1128, 7
        %v1130 = vsub.s32 %v1127, %v1129
        %v1131 = vrot.slane %v943, %v1130
        %v1133 = vunpack.c.l.s4 842150450
        %v1134 = vunpack.c.0.s8 %v1133
        %v1135 = vlaneseq
        %v1136 = vshrl.u32 %v1135, 7
        %v1137 = vsub.s32 %v1134, %v1136
        %v1138 = vrot.slane %v943, %v1137
        %v1140 = vunpack.c.l.s4 1414812756
        %v1141 = vunpack.c.0.s8 %v1140
        %v1142 = vlaneseq
        %v1143 = vshrl.u32 %v1142, 7
        %v1144 = vsub.s32 %v1141, %v1143
        %v1145 = vrot.slane %v943, %v1144
        %v1147 = vunpack.c.l.s4 1987475062
        %v1148 = vunpack.c.0.s8 %v1147
        %v1149 = vlaneseq
        %v1150 = vshrl.u32 %v1149, 7
        %v1151 = vsub.s32 %v1148, %v1150
        %v1152 = vrot.slane %v943, %v1151
        %v1154 = vunpack.c.l.s4 269488144
        %v1155 = vunpack.c.0.s8 %v1154
        %v1156 = vlaneseq
        %v1157 = vshrl.u32 %v1156, 7
        %v1158 = vsub.s32 %v1155, %v1157
        %v1159 = vrot.slane %v944, %v1158
        %v1161 = vunpack.c.l.s4 842150450
        %v1162 = vunpack.c.0.s8 %v1161
        %v1163 = vlaneseq
        %v1164 = vshrl.u32 %v1163, 7
        %v1165 = vsub.s32 %v1162, %v1164
        %v1166 = vrot.slane %v944, %v1165
        %v1168 = vunpack.c.l.s4 1414812756
        %v1169 = vunpack.c.0.s8 %v1168
        %v1170 = vlaneseq
        %v1171 = vshrl.u32 %v1170, 7
        %v1172 = vsub.s32 %v1169, %v1171
        %v1173 = vrot.slane %v944, %v1172
        %v1175 = vunpack.c.l.s4 1987475062
        %v1176 = vunpack.c.0.s8 %v1175
        %v1177 = vlaneseq
        %v1178 = vshrl.u32 %v1177, 7
        %v1179 = vsub.s32 %v1176, %v1178
        %v1180 = vrot.slane %v944, %v1179
        %v1182 = vunpack.c.l.s4 269488144
        %v1183 = vunpack.c.0.s8 %v1182
        %v1184 = vlaneseq
        %v1185 = vshrl.u32 %v1184, 7
        %v1186 = vsub.s32 %v1183, %v1185
        %v1187 = vrot.slane %v945, %v1186
        %v1189 = vunpack.c.l.s4 842150450
        %v1190 = vunpack.c.0.s8 %v1189
        %v1191 = vlaneseq
        %v1192 = vshrl.u32 %v1191, 7
        %v1193 = vsub.s32 %v1190, %v1192
        %v1194 = vrot.slane %v945, %v1193
        %v1196 = vunpack.c.l.s4 1414812756
        %v1197 = vunpack.c.0.s8 %v1196
        %v1198 = vlaneseq
        %v1199 = vshrl.u32 %v1198, 7
        %v1200 = vsub.s32 %v1197, %v1199
        %v1201 = vrot.slane %v945, %v1200
        %v1203 = vunpack.c.l.s4 1987475062
        %v1204 = vunpack.c.0.s8 %v1203
        %v1205 = vlaneseq
        %v1206 = vshrl.u32 %v1205, 7
        %v1207 = vsub.s32 %v1204, %v1206
        %v1208 = vrot.slane %v945, %v1207
        %v1210 = vunpack.c.l.s4 269488144
        %v1211 = vunpack.c.0.s8 %v1210
        %v1212 = vlaneseq
        %v1213 = vshrl.u32 %v1212, 7
        %v1214 = vsub.s32 %v1211, %v1213
        %v1215 = vrot.slane %v946, %v1214
        %v1217 = vunpack.c.l.s4 842150450
        %v1218 = vunpack.c.0.s8 %v1217
        %v1219 = vlaneseq
        %v1220 = vshrl.u32 %v1219, 7
        %v1221 = vsub.s32 %v1218, %v1220
        %v1222 = vrot.slane %v946, %v1221
        %v1224 = vunpack.c.l.s4 1414812756
        %v1225 = vunpack.c.0.s8 %v1224
        %v1226 = vlaneseq
        %v1227 = vshrl.u32 %v1226, 7
        %v1228 = vsub.s32 %v1225, %v1227
        %v1229 = vrot.slane %v946, %v1228
        %v1231 = vunpack.c.l.s4 1987475062
        %v1232 = vunpack.c.0.s8 %v1231
        %v1233 = vlaneseq
        %v1234 = vshrl.u32 %v1233, 7
        %v1235 = vsub.s32 %v1232, %v1234
        %v1236 = vrot.slane %v946, %v1235
        %v1238 = vunpack.c.l.s4 269488144
        %v1239 = vunpack.c.0.s8 %v1238
        %v1240 = vlaneseq
        %v1241 = vshrl.u32 %v1240, 7
        %v1242 = vsub.s32 %v1239, %v1241
        %v1243 = vrot.slane %v947, %v1242
        %v1245 = vunpack.c.l.s4 842150450
        %v1246 = vunpack.c.0.s8 %v1245
        %v1247 = vlaneseq
        %v1248 = vshrl.u32 %v1247, 7
        %v1249 = vsub.s32 %v1246, %v1248
        %v1250 = vrot.slane %v947, %v1249
        %v1252 = vunpack.c.l.s4 1414812756
        %v1253 = vunpack.c.0.s8 %v1252
        %v1254 = vlaneseq
        %v1255 = vshrl.u32 %v1254, 7
        %v1256 = vsub.s32 %v1253, %v1255
        %v1257 = vrot.slane %v947, %v1256
        %v1259 = vunpack.c.l.s4 1987475062
        %v1260 = vunpack.c.0.s8 %v1259
        %v1261 = vlaneseq
        %v1262 = vshrl.u32 %v1261, 7
        %v1263 = vsub.s32 %v1260, %v1262
        %v1264 = vrot.slane %v947, %v1263
        %v1266 = vunpack.c.l.s4 269488144
        %v1267 = vunpack.c.0.s8 %v1266
        %v1268 = vlaneseq
        %v1269 = vshrl.u32 %v1268, 7
        %v1270 = vsub.s32 %v1267, %v1269
        %v1271 = vrot.slane %v948, %v1270
        %v1273 = vunpack.c.l.s4 842150450
        %v1274 = vunpack.c.0.s8 %v1273
        %v1275 = vlaneseq
        %v1276 = vshrl.u32 %v1275, 7
        %v1277 = vsub.s32 %v1274, %v1276
        %v1278 = vrot.slane %v948, %v1277
        %v1280 = vunpack.c.l.s4 1414812756
        %v1281 = vunpack.c.0.s8 %v1280
        %v1282 = vlaneseq
        %v1283 = vshrl.u32 %v1282, 7
        %v1284 = vsub.s32 %v1281, %v1283
        %v1285 = vrot.slane %v948, %v1284
        %v1287 = vunpack.c.l.s4 1987475062
        %v1288 = vunpack.c.0.s8 %v1287
        %v1289 = vlaneseq
        %v1290 = vshrl.u32 %v1289, 7
        %v1291 = vsub.s32 %v1288, %v1290
        %v1292 = vrot.slane %v948, %v1291
        %v1294 = vunpack.c.l.s4 269488144
        %v1295 = vunpack.c.0.s8 %v1294
        %v1296 = vlaneseq
        %v1297 = vshrl.u32 %v1296, 7
        %v1298 = vsub.s32 %v1295, %v1297
        %v1299 = vrot.slane %v949, %v1298
        %v1301 = vunpack.c.l.s4 842150450
        %v1302 = vunpack.c.0.s8 %v1301
        %v1303 = vlaneseq
        %v1304 = vshrl.u32 %v1303, 7
        %v1305 = vsub.s32 %v1302, %v1304
        %v1306 = vrot.slane %v949, %v1305
        %v1308 = vunpack.c.l.s4 1414812756
        %v1309 = vunpack.c.0.s8 %v1308
        %v1310 = vlaneseq
        %v1311 = vshrl.u32 %v1310, 7
        %v1312 = vsub.s32 %v1309, %v1311
        %v1313 = vrot.slane %v949, %v1312
        %v1315 = vunpack.c.l.s4 1987475062
        %v1316 = vunpack.c.0.s8 %v1315
        %v1317 = vlaneseq
        %v1318 = vshrl.u32 %v1317, 7
        %v1319 = vsub.s32 %v1316, %v1318
        %v1320 = vrot.slane %v949, %v1319
        %v1322 = vunpack.c.l.s4 269488144
        %v1323 = vunpack.c.0.s8 %v1322
        %v1324 = vlaneseq
        %v1325 = vshrl.u32 %v1324, 7
        %v1326 = vsub.s32 %v1323, %v1325
        %v1327 = vrot.slane %v950, %v1326
        %v1329 = vunpack.c.l.s4 842150450
        %v1330 = vunpack.c.0.s8 %v1329
        %v1331 = vlaneseq
        %v1332 = vshrl.u32 %v1331, 7
        %v1333 = vsub.s32 %v1330, %v1332
        %v1334 = vrot.slane %v950, %v1333
        %v1336 = vunpack.c.l.s4 1414812756
        %v1337 = vunpack.c.0.s8 %v1336
        %v1338 = vlaneseq
        %v1339 = vshrl.u32 %v1338, 7
        %v1340 = vsub.s32 %v1337, %v1339
        %v1341 = vrot.slane %v950, %v1340
        %v1343 = vunpack.c.l.s4 1987475062
        %v1344 = vunpack.c.0.s8 %v1343
        %v1345 = vlaneseq
        %v1346 = vshrl.u32 %v1345, 7
        %v1347 = vsub.s32 %v1344, %v1346
        %v1348 = vrot.slane %v950, %v1347
        %v1350 = vunpack.c.l.s4 269488144
        %v1351 = vunpack.c.0.s8 %v1350
        %v1352 = vlaneseq
        %v1353 = vshrl.u32 %v1352, 7
        %v1354 = vsub.s32 %v1351, %v1353
        %v1355 = vrot.slane %v951, %v1354
        %v1357 = vunpack.c.l.s4 842150450
        %v1358 = vunpack.c.0.s8 %v1357
        %v1359 = vlaneseq
        %v1360 = vshrl.u32 %v1359, 7
        %v1361 = vsub.s32 %v1358, %v1360
        %v1362 = vrot.slane %v951, %v1361
        %v1364 = vunpack.c.l.s4 1414812756
        %v1365 = vunpack.c.0.s8 %v1364
        %v1366 = vlaneseq
        %v1367 = vshrl.u32 %v1366, 7
        %v1368 = vsub.s32 %v1365, %v1367
        %v1369 = vrot.slane %v951, %v1368
        %v1371 = vunpack.c.l.s4 1987475062
        %v1372 = vunpack.c.0.s8 %v1371
        %v1373 = vlaneseq
        %v1374 = vshrl.u32 %v1373, 7
        %v1375 = vsub.s32 %v1372, %v1374
        %v1376 = vrot.slane %v951, %v1375
        %v1378 = vunpack.c.l.s4 269488144
        %v1379 = vunpack.c.0.s8 %v1378
        %v1380 = vlaneseq
        %v1381 = vshrl.u32 %v1380, 7
        %v1382 = vsub.s32 %v1379, %v1381
        %v1383 = vrot.slane %v952, %v1382
        %v1385 = vunpack.c.l.s4 842150450
        %v1386 = vunpack.c.0.s8 %v1385
        %v1387 = vlaneseq
        %v1388 = vshrl.u32 %v1387, 7
        %v1389 = vsub.s32 %v1386, %v1388
        %v1390 = vrot.slane %v952, %v1389
        %v1392 = vunpack.c.l.s4 1414812756
        %v1393 = vunpack.c.0.s8 %v1392
        %v1394 = vlaneseq
        %v1395 = vshrl.u32 %v1394, 7
        %v1396 = vsub.s32 %v1393, %v1395
        %v1397 = vrot.slane %v952, %v1396
        %v1399 = vunpack.c.l.s4 1987475062
        %v1400 = vunpack.c.0.s8 %v1399
        %v1401 = vlaneseq
        %v1402 = vshrl.u32 %v1401, 7
        %v1403 = vsub.s32 %v1400, %v1402
        %v1404 = vrot.slane %v952, %v1403
        %v1406 = vunpack.c.l.s4 269488144
        %v1407 = vunpack.c.0.s8 %v1406
        %v1408 = vlaneseq
        %v1409 = vshrl.u32 %v1408, 7
        %v1410 = vsub.s32 %v1407, %v1409
        %v1411 = vrot.slane %v953, %v1410
        %v1413 = vunpack.c.l.s4 842150450
        %v1414 = vunpack.c.0.s8 %v1413
        %v1415 = vlaneseq
        %v1416 = vshrl.u32 %v1415, 7
        %v1417 = vsub.s32 %v1414, %v1416
        %v1418 = vrot.slane %v953, %v1417
        %v1420 = vunpack.c.l.s4 1414812756
        %v1421 = vunpack.c.0.s8 %v1420
        %v1422 = vlaneseq
        %v1423 = vshrl.u32 %v1422, 7
        %v1424 = vsub.s32 %v1421, %v1423
        %v1425 = vrot.slane %v953, %v1424
        %v1427 = vunpack.c.l.s4 1987475062
        %v1428 = vunpack.c.0.s8 %v1427
        %v1429 = vlaneseq
        %v1430 = vshrl.u32 %v1429, 7
        %v1431 = vsub.s32 %v1428, %v1430
        %v1432 = vrot.slane %v953, %v1431
        %v1434 = vunpack.c.l.s4 269488144
        %v1435 = vunpack.c.0.s8 %v1434
        %v1436 = vlaneseq
        %v1437 = vshrl.u32 %v1436, 7
        %v1438 = vsub.s32 %v1435, %v1437
        %v1439 = vrot.slane %v954, %v1438
        %v1441 = vunpack.c.l.s4 842150450
        %v1442 = vunpack.c.0.s8 %v1441
        %v1443 = vlaneseq
        %v1444 = vshrl.u32 %v1443, 7
        %v1445 = vsub.s32 %v1442, %v1444
        %v1446 = vrot.slane %v954, %v1445
        %v1448 = vunpack.c.l.s4 1414812756
        %v1449 = vunpack.c.0.s8 %v1448
        %v1450 = vlaneseq
        %v1451 = vshrl.u32 %v1450, 7
        %v1452 = vsub.s32 %v1449, %v1451
        %v1453 = vrot.slane %v954, %v1452
        %v1455 = vunpack.c.l.s4 1987475062
        %v1456 = vunpack.c.0.s8 %v1455
        %v1457 = vlaneseq
        %v1458 = vshrl.u32 %v1457, 7
        %v1459 = vsub.s32 %v1456, %v1458
        %v1460 = vrot.slane %v954, %v1459
        %v1462 = vunpack.c.l.s4 269488144
        %v1463 = vunpack.c.0.s8 %v1462
        %v1464 = vlaneseq
        %v1465 = vshrl.u32 %v1464, 7
        %v1466 = vsub.s32 %v1463, %v1465
        %v1467 = vrot.slane %v955, %v1466
        %v1469 = vunpack.c.l.s4 842150450
        %v1470 = vunpack.c.0.s8 %v1469
        %v1471 = vlaneseq
        %v1472 = vshrl.u32 %v1471, 7
        %v1473 = vsub.s32 %v1470, %v1472
        %v1474 = vrot.slane %v955, %v1473
        %v1476 = vunpack.c.l.s4 1414812756
        %v1477 = vunpack.c.0.s8 %v1476
        %v1478 = vlaneseq
        %v1479 = vshrl.u32 %v1478, 7
        %v1480 = vsub.s32 %v1477, %v1479
        %v1481 = vrot.slane %v955, %v1480
        %v1483 = vunpack.c.l.s4 1987475062
        %v1484 = vunpack.c.0.s8 %v1483
        %v1485 = vlaneseq
        %v1486 = vshrl.u32 %v1485, 7
        %v1487 = vsub.s32 %v1484, %v1486
        %v1488 = vrot.slane %v955, %v1487
        %v1490 = vunpack.c.l.s4 269488144
        %v1491 = vunpack.c.0.s8 %v1490
        %v1492 = vlaneseq
        %v1493 = vshrl.u32 %v1492, 7
        %v1494 = vsub.s32 %v1491, %v1493
        %v1495 = vrot.slane %v956, %v1494
        %v1497 = vunpack.c.l.s4 842150450
        %v1498 = vunpack.c.0.s8 %v1497
        %v1499 = vlaneseq
        %v1500 = vshrl.u32 %v1499, 7
        %v1501 = vsub.s32 %v1498, %v1500
        %v1502 = vrot.slane %v956, %v1501
        %v1504 = vunpack.c.l.s4 1414812756
        %v1505 = vunpack.c.0.s8 %v1504
        %v1506 = vlaneseq
        %v1507 = vshrl.u32 %v1506, 7
        %v1508 = vsub.s32 %v1505, %v1507
        %v1509 = vrot.slane %v956, %v1508
        %v1511 = vunpack.c.l.s4 1987475062
        %v1512 = vunpack.c.0.s8 %v1511
        %v1513 = vlaneseq
        %v1514 = vshrl.u32 %v1513, 7
        %v1515 = vsub.s32 %v1512, %v1514
        %v1516 = vrot.slane %v956, %v1515
        %v1518 = vunpack.c.l.s4 269488144
        %v1519 = vunpack.c.0.s8 %v1518
        %v1520 = vlaneseq
        %v1521 = vshrl.u32 %v1520, 7
        %v1522 = vsub.s32 %v1519, %v1521
        %v1523 = vrot.slane %v957, %v1522
        %v1525 = vunpack.c.l.s4 842150450
        %v1526 = vunpack.c.0.s8 %v1525
        %v1527 = vlaneseq
        %v1528 = vshrl.u32 %v1527, 7
        %v1529 = vsub.s32 %v1526, %v1528
        %v1530 = vrot.slane %v957, %v1529
        %v1532 = vunpack.c.l.s4 1414812756
        %v1533 = vunpack.c.0.s8 %v1532
        %v1534 = vlaneseq
        %v1535 = vshrl.u32 %v1534, 7
        %v1536 = vsub.s32 %v1533, %v1535
        %v1537 = vrot.slane %v957, %v1536
        %v1539 = vunpack.c.l.s4 1987475062
        %v1540 = vunpack.c.0.s8 %v1539
        %v1541 = vlaneseq
        %v1542 = vshrl.u32 %v1541, 7
        %v1543 = vsub.s32 %v1540, %v1542
        %v1544 = vrot.slane %v957, %v1543
        %v1546 = vunpack.c.l.s4 269488144
        %v1547 = vunpack.c.0.s8 %v1546
        %v1548 = vlaneseq
        %v1549 = vshrl.u32 %v1548, 7
        %v1550 = vsub.s32 %v1547, %v1549
        %v1551 = vrot.slane %v958, %v1550
        %v1553 = vunpack.c.l.s4 842150450
        %v1554 = vunpack.c.0.s8 %v1553
        %v1555 = vlaneseq
        %v1556 = vshrl.u32 %v1555, 7
        %v1557 = vsub.s32 %v1554, %v1556
        %v1558 = vrot.slane %v958, %v1557
        %v1560 = vunpack.c.l.s4 1414812756
        %v1561 = vunpack.c.0.s8 %v1560
        %v1562 = vlaneseq
        %v1563 = vshrl.u32 %v1562, 7
        %v1564 = vsub.s32 %v1561, %v1563
        %v1565 = vrot.slane %v958, %v1564
        %v1567 = vunpack.c.l.s4 1987475062
        %v1568 = vunpack.c.0.s8 %v1567
        %v1569 = vlaneseq
        %v1570 = vshrl.u32 %v1569, 7
        %v1571 = vsub.s32 %v1568, %v1570
        %v1572 = vrot.slane %v958, %v1571
        %v1574 = vunpack.c.l.s4 269488144
        %v1575 = vunpack.c.0.s8 %v1574
        %v1576 = vlaneseq
        %v1577 = vshrl.u32 %v1576, 7
        %v1578 = vsub.s32 %v1575, %v1577
        %v1579 = vrot.slane %v959, %v1578
        %v1581 = vunpack.c.l.s4 842150450
        %v1582 = vunpack.c.0.s8 %v1581
        %v1583 = vlaneseq
        %v1584 = vshrl.u32 %v1583, 7
        %v1585 = vsub.s32 %v1582, %v1584
        %v1586 = vrot.slane %v959, %v1585
        %v1588 = vunpack.c.l.s4 1414812756
        %v1589 = vunpack.c.0.s8 %v1588
        %v1590 = vlaneseq
        %v1591 = vshrl.u32 %v1590, 7
        %v1592 = vsub.s32 %v1589, %v1591
        %v1593 = vrot.slane %v959, %v1592
        %v1595 = vunpack.c.l.s4 1987475062
        %v1596 = vunpack.c.0.s8 %v1595
        %v1597 = vlaneseq
        %v1598 = vshrl.u32 %v1597, 7
        %v1599 = vsub.s32 %v1596, %v1598
        %v1600 = vrot.slane %v959, %v1599
        %v1602 = vunpack.c.l.s4 269488144
        %v1603 = vunpack.c.0.s8 %v1602
        %v1604 = vlaneseq
        %v1605 = vshrl.u32 %v1604, 7
        %v1606 = vsub.s32 %v1603, %v1605
        %v1607 = vrot.slane %v960, %v1606
        %v1609 = vunpack.c.l.s4 842150450
        %v1610 = vunpack.c.0.s8 %v1609
        %v1611 = vlaneseq
        %v1612 = vshrl.u32 %v1611, 7
        %v1613 = vsub.s32 %v1610, %v1612
        %v1614 = vrot.slane %v960, %v1613
        %v1616 = vunpack.c.l.s4 1414812756
        %v1617 = vunpack.c.0.s8 %v1616
        %v1618 = vlaneseq
        %v1619 = vshrl.u32 %v1618, 7
        %v1620 = vsub.s32 %v1617, %v1619
        %v1621 = vrot.slane %v960, %v1620
        %v1623 = vunpack.c.l.s4 1987475062
        %v1624 = vunpack.c.0.s8 %v1623
        %v1625 = vlaneseq
        %v1626 = vshrl.u32 %v1625, 7
        %v1627 = vsub.s32 %v1624, %v1626
        %v1628 = vrot.slane %v960, %v1627
        %v1630 = vunpack.c.l.s4 269488144
        %v1631 = vunpack.c.0.s8 %v1630
        %v1632 = vlaneseq
        %v1633 = vshrl.u32 %v1632, 7
        %v1634 = vsub.s32 %v1631, %v1633
        %v1635 = vrot.slane %v961, %v1634
        %v1637 = vunpack.c.l.s4 842150450
        %v1638 = vunpack.c.0.s8 %v1637
        %v1639 = vlaneseq
        %v1640 = vshrl.u32 %v1639, 7
        %v1641 = vsub.s32 %v1638, %v1640
        %v1642 = vrot.slane %v961, %v1641
        %v1644 = vunpack.c.l.s4 1414812756
        %v1645 = vunpack.c.0.s8 %v1644
        %v1646 = vlaneseq
        %v1647 = vshrl.u32 %v1646, 7
        %v1648 = vsub.s32 %v1645, %v1647
        %v1649 = vrot.slane %v961, %v1648
        %v1651 = vunpack.c.l.s4 1987475062
        %v1652 = vunpack.c.0.s8 %v1651
        %v1653 = vlaneseq
        %v1654 = vshrl.u32 %v1653, 7
        %v1655 = vsub.s32 %v1652, %v1654
        %v1656 = vrot.slane %v961, %v1655
        %v1658 = vunpack.c.l.s4 269488144
        %v1659 = vunpack.c.0.s8 %v1658
        %v1660 = vlaneseq
        %v1661 = vshrl.u32 %v1660, 7
        %v1662 = vsub.s32 %v1659, %v1661
        %v1663 = vrot.slane %v962, %v1662
        %v1665 = vunpack.c.l.s4 842150450
        %v1666 = vunpack.c.0.s8 %v1665
        %v1667 = vlaneseq
        %v1668 = vshrl.u32 %v1667, 7
        %v1669 = vsub.s32 %v1666, %v1668
        %v1670 = vrot.slane %v962, %v1669
        %v1672 = vunpack.c.l.s4 1414812756
        %v1673 = vunpack.c.0.s8 %v1672
        %v1674 = vlaneseq
        %v1675 = vshrl.u32 %v1674, 7
        %v1676 = vsub.s32 %v1673, %v1675
        %v1677 = vrot.slane %v962, %v1676
        %v1679 = vunpack.c.l.s4 1987475062
        %v1680 = vunpack.c.0.s8 %v1679
        %v1681 = vlaneseq
        %v1682 = vshrl.u32 %v1681, 7
        %v1683 = vsub.s32 %v1680, %v1682
        %v1684 = vrot.slane %v962, %v1683
        %v1686 = vunpack.c.l.s4 269488144
        %v1687 = vunpack.c.0.s8 %v1686
        %v1688 = vlaneseq
        %v1689 = vshrl.u32 %v1688, 7
        %v1690 = vsub.s32 %v1687, %v1689
        %v1691 = vrot.slane %v963, %v1690
        %v1693 = vunpack.c.l.s4 842150450
        %v1694 = vunpack.c.0.s8 %v1693
        %v1695 = vlaneseq
        %v1696 = vshrl.u32 %v1695, 7
        %v1697 = vsub.s32 %v1694, %v1696
        %v1698 = vrot.slane %v963, %v1697
        %v1700 = vunpack.c.l.s4 1414812756
        %v1701 = vunpack.c.0.s8 %v1700
        %v1702 = vlaneseq
        %v1703 = vshrl.u32 %v1702, 7
        %v1704 = vsub.s32 %v1701, %v1703
        %v1705 = vrot.slane %v963, %v1704
        %v1707 = vunpack.c.l.s4 1987475062
        %v1708 = vunpack.c.0.s8 %v1707
        %v1709 = vlaneseq
        %v1710 = vshrl.u32 %v1709, 7
        %v1711 = vsub.s32 %v1708, %v1710
        %v1712 = vrot.slane %v963, %v1711
        %v1714 = vunpack.c.l.s4 269488144
        %v1715 = vunpack.c.0.s8 %v1714
        %v1716 = vlaneseq
        %v1717 = vshrl.u32 %v1716, 7
        %v1718 = vsub.s32 %v1715, %v1717
        %v1719 = vrot.slane %v964, %v1718
        %v1721 = vunpack.c.l.s4 842150450
        %v1722 = vunpack.c.0.s8 %v1721
        %v1723 = vlaneseq
        %v1724 = vshrl.u32 %v1723, 7
        %v1725 = vsub.s32 %v1722, %v1724
        %v1726 = vrot.slane %v964, %v1725
        %v1728 = vunpack.c.l.s4 1414812756
        %v1729 = vunpack.c.0.s8 %v1728
        %v1730 = vlaneseq
        %v1731 = vshrl.u32 %v1730, 7
        %v1732 = vsub.s32 %v1729, %v1731
        %v1733 = vrot.slane %v964, %v1732
        %v1735 = vunpack.c.l.s4 1987475062
        %v1736 = vunpack.c.0.s8 %v1735
        %v1737 = vlaneseq
        %v1738 = vshrl.u32 %v1737, 7
        %v1739 = vsub.s32 %v1736, %v1738
        %v1740 = vrot.slane %v964, %v1739
        %v1742 = vunpack.c.l.s4 269488144
        %v1743 = vunpack.c.0.s8 %v1742
        %v1744 = vlaneseq
        %v1745 = vshrl.u32 %v1744, 7
        %v1746 = vsub.s32 %v1743, %v1745
        %v1747 = vrot.slane %v965, %v1746
        %v1749 = vunpack.c.l.s4 842150450
        %v1750 = vunpack.c.0.s8 %v1749
        %v1751 = vlaneseq
        %v1752 = vshrl.u32 %v1751, 7
        %v1753 = vsub.s32 %v1750, %v1752
        %v1754 = vrot.slane %v965, %v1753
        %v1756 = vunpack.c.l.s4 1414812756
        %v1757 = vunpack.c.0.s8 %v1756
        %v1758 = vlaneseq
        %v1759 = vshrl.u32 %v1758, 7
        %v1760 = vsub.s32 %v1757, %v1759
        %v1761 = vrot.slane %v965, %v1760
        %v1763 = vunpack.c.l.s4 1987475062
        %v1764 = vunpack.c.0.s8 %v1763
        %v1765 = vlaneseq
        %v1766 = vshrl.u32 %v1765, 7
        %v1767 = vsub.s32 %v1764, %v1766
        %v1768 = vrot.slane %v965, %v1767
        %v1770 = vunpack.c.l.s4 269488144
        %v1771 = vunpack.c.0.s8 %v1770
        %v1772 = vlaneseq
        %v1773 = vshrl.u32 %v1772, 7
        %v1774 = vsub.s32 %v1771, %v1773
        %v1775 = vrot.slane %v966, %v1774
        %v1777 = vunpack.c.l.s4 842150450
        %v1778 = vunpack.c.0.s8 %v1777
        %v1779 = vlaneseq
        %v1780 = vshrl.u32 %v1779, 7
        %v1781 = vsub.s32 %v1778, %v1780
        %v1782 = vrot.slane %v966, %v1781
        %v1784 = vunpack.c.l.s4 1414812756
        %v1785 = vunpack.c.0.s8 %v1784
        %v1786 = vlaneseq
        %v1787 = vshrl.u32 %v1786, 7
        %v1788 = vsub.s32 %v1785, %v1787
        %v1789 = vrot.slane %v966, %v1788
        %v1791 = vunpack.c.l.s4 1987475062
        %v1792 = vunpack.c.0.s8 %v1791
        %v1793 = vlaneseq
        %v1794 = vshrl.u32 %v1793, 7
        %v1795 = vsub.s32 %v1792, %v1794
        %v1796 = vrot.slane %v966, %v1795
        %v1798 = vunpack.c.l.s4 269488144
        %v1799 = vunpack.c.0.s8 %v1798
        %v1800 = vlaneseq
        %v1801 = vshrl.u32 %v1800, 7
        %v1802 = vsub.s32 %v1799, %v1801
        %v1803 = vrot.slane %v967, %v1802
        %v1805 = vunpack.c.l.s4 842150450
        %v1806 = vunpack.c.0.s8 %v1805
        %v1807 = vlaneseq
        %v1808 = vshrl.u32 %v1807, 7
        %v1809 = vsub.s32 %v1806, %v1808
        %v1810 = vrot.slane %v967, %v1809
        %v1812 = vunpack.c.l.s4 1414812756
        %v1813 = vunpack.c.0.s8 %v1812
        %v1814 = vlaneseq
        %v1815 = vshrl.u32 %v1814, 7
        %v1816 = vsub.s32 %v1813, %v1815
        %v1817 = vrot.slane %v967, %v1816
        %v1819 = vunpack.c.l.s4 1987475062
        %v1820 = vunpack.c.0.s8 %v1819
        %v1821 = vlaneseq
        %v1822 = vshrl.u32 %v1821, 7
        %v1823 = vsub.s32 %v1820, %v1822
        %v1824 = vrot.slane %v967, %v1823
        %v1826 = vunpack.c.l.s4 269488144
        %v1827 = vunpack.c.0.s8 %v1826
        %v1828 = vlaneseq
        %v1829 = vshrl.u32 %v1828, 7
        %v1830 = vsub.s32 %v1827, %v1829
        %v1831 = vrot.slane %v968, %v1830
        %v1833 = vunpack.c.l.s4 842150450
        %v1834 = vunpack.c.0.s8 %v1833
        %v1835 = vlaneseq
        %v1836 = vshrl.u32 %v1835, 7
        %v1837 = vsub.s32 %v1834, %v1836
        %v1838 = vrot.slane %v968, %v1837
        %v1840 = vunpack.c.l.s4 1414812756
        %v1841 = vunpack.c.0.s8 %v1840
        %v1842 = vlaneseq
        %v1843 = vshrl.u32 %v1842, 7
        %v1844 = vsub.s32 %v1841, %v1843
        %v1845 = vrot.slane %v968, %v1844
        %v1847 = vunpack.c.l.s4 1987475062
        %v1848 = vunpack.c.0.s8 %v1847
        %v1849 = vlaneseq
        %v1850 = vshrl.u32 %v1849, 7
        %v1851 = vsub.s32 %v1848, %v1850
        %v1852 = vrot.slane %v968, %v1851
        %v1854 = vunpack.c.l.s4 269488144
        %v1855 = vunpack.c.0.s8 %v1854
        %v1856 = vlaneseq
        %v1857 = vshrl.u32 %v1856, 7
        %v1858 = vsub.s32 %v1855, %v1857
        %v1859 = vrot.slane %v969, %v1858
        %v1861 = vunpack.c.l.s4 842150450
        %v1862 = vunpack.c.0.s8 %v1861
        %v1863 = vlaneseq
        %v1864 = vshrl.u32 %v1863, 7
        %v1865 = vsub.s32 %v1862, %v1864
        %v1866 = vrot.slane %v969, %v1865
        %v1868 = vunpack.c.l.s4 1414812756
        %v1869 = vunpack.c.0.s8 %v1868
        %v1870 = vlaneseq
        %v1871 = vshrl.u32 %v1870, 7
        %v1872 = vsub.s32 %v1869, %v1871
        %v1873 = vrot.slane %v969, %v1872
        %v1875 = vunpack.c.l.s4 1987475062
        %v1876 = vunpack.c.0.s8 %v1875
        %v1877 = vlaneseq
        %v1878 = vshrl.u32 %v1877, 7
        %v1879 = vsub.s32 %v1876, %v1878
        %v1880 = vrot.slane %v969, %v1879
        %v1882 = vunpack.c.l.s4 269488144
        %v1883 = vunpack.c.0.s8 %v1882
        %v1884 = vlaneseq
        %v1885 = vshrl.u32 %v1884, 7
        %v1886 = vsub.s32 %v1883, %v1885
        %v1887 = vrot.slane %v970, %v1886
        %v1889 = vunpack.c.l.s4 842150450
        %v1890 = vunpack.c.0.s8 %v1889
        %v1891 = vlaneseq
        %v1892 = vshrl.u32 %v1891, 7
        %v1893 = vsub.s32 %v1890, %v1892
        %v1894 = vrot.slane %v970, %v1893
        %v1896 = vunpack.c.l.s4 1414812756
        %v1897 = vunpack.c.0.s8 %v1896
        %v1898 = vlaneseq
        %v1899 = vshrl.u32 %v1898, 7
        %v1900 = vsub.s32 %v1897, %v1899
        %v1901 = vrot.slane %v970, %v1900
        %v1903 = vunpack.c.l.s4 1987475062
        %v1904 = vunpack.c.0.s8 %v1903
        %v1905 = vlaneseq
        %v1906 = vshrl.u32 %v1905, 7
        %v1907 = vsub.s32 %v1904, %v1906
        %v1908 = vrot.slane %v970, %v1907
        %v1910 = vunpack.c.l.s4 269488144
        %v1911 = vunpack.c.0.s8 %v1910
        %v1912 = vlaneseq
        %v1913 = vshrl.u32 %v1912, 7
        %v1914 = vsub.s32 %v1911, %v1913
        %v1915 = vrot.slane %v971, %v1914
        %v1917 = vunpack.c.l.s4 842150450
        %v1918 = vunpack.c.0.s8 %v1917
        %v1919 = vlaneseq
        %v1920 = vshrl.u32 %v1919, 7
        %v1921 = vsub.s32 %v1918, %v1920
        %v1922 = vrot.slane %v971, %v1921
        %v1924 = vunpack.c.l.s4 1414812756
        %v1925 = vunpack.c.0.s8 %v1924
        %v1926 = vlaneseq
        %v1927 = vshrl.u32 %v1926, 7
        %v1928 = vsub.s32 %v1925, %v1927
        %v1929 = vrot.slane %v971, %v1928
        %v1931 = vunpack.c.l.s4 1987475062
        %v1932 = vunpack.c.0.s8 %v1931
        %v1933 = vlaneseq
        %v1934 = vshrl.u32 %v1933, 7
        %v1935 = vsub.s32 %v1932, %v1934
        %v1936 = vrot.slane %v971, %v1935
        %v1938 = vunpack.c.l.s4 269488144
        %v1939 = vunpack.c.0.s8 %v1938
        %v1940 = vlaneseq
        %v1941 = vshrl.u32 %v1940, 7
        %v1942 = vsub.s32 %v1939, %v1941
        %v1943 = vrot.slane %v972, %v1942
        %v1945 = vunpack.c.l.s4 842150450
        %v1946 = vunpack.c.0.s8 %v1945
        %v1947 = vlaneseq
        %v1948 = vshrl.u32 %v1947, 7
        %v1949 = vsub.s32 %v1946, %v1948
        %v1950 = vrot.slane %v972, %v1949
        %v1952 = vunpack.c.l.s4 1414812756
        %v1953 = vunpack.c.0.s8 %v1952
        %v1954 = vlaneseq
        %v1955 = vshrl.u32 %v1954, 7
        %v1956 = vsub.s32 %v1953, %v1955
        %v1957 = vrot.slane %v972, %v1956
        %v1959 = vunpack.c.l.s4 1987475062
        %v1960 = vunpack.c.0.s8 %v1959
        %v1961 = vlaneseq
        %v1962 = vshrl.u32 %v1961, 7
        %v1963 = vsub.s32 %v1960, %v1962
        %v1964 = vrot.slane %v972, %v1963
        %v1966 = vunpack.c.l.s4 269488144
        %v1967 = vunpack.c.0.s8 %v1966
        %v1968 = vlaneseq
        %v1969 = vshrl.u32 %v1968, 7
        %v1970 = vsub.s32 %v1967, %v1969
        %v1971 = vrot.slane %v973, %v1970
        %v1973 = vunpack.c.l.s4 842150450
        %v1974 = vunpack.c.0.s8 %v1973
        %v1975 = vlaneseq
        %v1976 = vshrl.u32 %v1975, 7
        %v1977 = vsub.s32 %v1974, %v1976
        %v1978 = vrot.slane %v973, %v1977
        %v1980 = vunpack.c.l.s4 1414812756
        %v1981 = vunpack.c.0.s8 %v1980
        %v1982 = vlaneseq
        %v1983 = vshrl.u32 %v1982, 7
        %v1984 = vsub.s32 %v1981, %v1983
        %v1985 = vrot.slane %v973, %v1984
        %v1987 = vunpack.c.l.s4 1987475062
        %v1988 = vunpack.c.0.s8 %v1987
        %v1989 = vlaneseq
        %v1990 = vshrl.u32 %v1989, 7
        %v1991 = vsub.s32 %v1988, %v1990
        %v1992 = vrot.slane %v973, %v1991
        %v1994 = vunpack.c.l.s4 269488144
        %v1995 = vunpack.c.0.s8 %v1994
        %v1996 = vlaneseq
        %v1997 = vshrl.u32 %v1996, 7
        %v1998 = vsub.s32 %v1995, %v1997
        %v1999 = vrot.slane %v974, %v1998
        %v2001 = vunpack.c.l.s4 842150450
        %v2002 = vunpack.c.0.s8 %v2001
        %v2003 = vlaneseq
        %v2004 = vshrl.u32 %v2003, 7
        %v2005 = vsub.s32 %v2002, %v2004
        %v2006 = vrot.slane %v974, %v2005
        %v2008 = vunpack.c.l.s4 1414812756
        %v2009 = vunpack.c.0.s8 %v2008
        %v2010 = vlaneseq
        %v2011 = vshrl.u32 %v2010, 7
        %v2012 = vsub.s32 %v2009, %v2011
        %v2013 = vrot.slane %v974, %v2012
        %v2015 = vunpack.c.l.s4 1987475062
        %v2016 = vunpack.c.0.s8 %v2015
        %v2017 = vlaneseq
        %v2018 = vshrl.u32 %v2017, 7
        %v2019 = vsub.s32 %v2016, %v2018
        %v2020 = vrot.slane %v974, %v2019
        %v2022 = vunpack.c.l.s4 269488144
        %v2023 = vunpack.c.0.s8 %v2022
        %v2024 = vlaneseq
        %v2025 = vshrl.u32 %v2024, 7
        %v2026 = vsub.s32 %v2023, %v2025
        %v2027 = vrot.slane %v975, %v2026
        %v2029 = vunpack.c.l.s4 842150450
        %v2030 = vunpack.c.0.s8 %v2029
        %v2031 = vlaneseq
        %v2032 = vshrl.u32 %v2031, 7
        %v2033 = vsub.s32 %v2030, %v2032
        %v2034 = vrot.slane %v975, %v2033
        %v2036 = vunpack.c.l.s4 1414812756
        %v2037 = vunpack.c.0.s8 %v2036
        %v2038 = vlaneseq
        %v2039 = vshrl.u32 %v2038, 7
        %v2040 = vsub.s32 %v2037, %v2039
        %v2041 = vrot.slane %v975, %v2040
        %v2043 = vunpack.c.l.s4 1987475062
        %v2044 = vunpack.c.0.s8 %v2043
        %v2045 = vlaneseq
        %v2046 = vshrl.u32 %v2045, 7
        %v2047 = vsub.s32 %v2044, %v2046
        %v2048 = vrot.slane %v975, %v2047
        %v2050 = vunpack.c.l.s4 269488144
        %v2051 = vunpack.c.0.s8 %v2050
        %v2052 = vlaneseq
        %v2053 = vshrl.u32 %v2052, 7
        %v2054 = vsub.s32 %v2051, %v2053
        %v2055 = vrot.slane %v976, %v2054
        %v2057 = vunpack.c.l.s4 842150450
        %v2058 = vunpack.c.0.s8 %v2057
        %v2059 = vlaneseq
        %v2060 = vshrl.u32 %v2059, 7
        %v2061 = vsub.s32 %v2058, %v2060
        %v2062 = vrot.slane %v976, %v2061
        %v2064 = vunpack.c.l.s4 1414812756
        %v2065 = vunpack.c.0.s8 %v2064
        %v2066 = vlaneseq
        %v2067 = vshrl.u32 %v2066, 7
        %v2068 = vsub.s32 %v2065, %v2067
        %v2069 = vrot.slane %v976, %v2068
        %v2071 = vunpack.c.l.s4 1987475062
        %v2072 = vunpack.c.0.s8 %v2071
        %v2073 = vlaneseq
        %v2074 = vshrl.u32 %v2073, 7
        %v2075 = vsub.s32 %v2072, %v2074
        %v2076 = vrot.slane %v976, %v2075
        %v2078 = vunpack.c.l.s4 269488144
        %v2079 = vunpack.c.0.s8 %v2078
        %v2080 = vlaneseq
        %v2081 = vshrl.u32 %v2080, 7
        %v2082 = vsub.s32 %v2079, %v2081
        %v2083 = vrot.slane %v977, %v2082
        %v2085 = vunpack.c.l.s4 842150450
        %v2086 = vunpack.c.0.s8 %v2085
        %v2087 = vlaneseq
        %v2088 = vshrl.u32 %v2087, 7
        %v2089 = vsub.s32 %v2086, %v2088
        %v2090 = vrot.slane %v977, %v2089
        %v2092 = vunpack.c.l.s4 1414812756
        %v2093 = vunpack.c.0.s8 %v2092
        %v2094 = vlaneseq
        %v2095 = vshrl.u32 %v2094, 7
        %v2096 = vsub.s32 %v2093, %v2095
        %v2097 = vrot.slane %v977, %v2096
        %v2099 = vunpack.c.l.s4 1987475062
        %v2100 = vunpack.c.0.s8 %v2099
        %v2101 = vlaneseq
        %v2102 = vshrl.u32 %v2101, 7
        %v2103 = vsub.s32 %v2100, %v2102
        %v2104 = vrot.slane %v977, %v2103
        %v2106 = vunpack.c.l.s4 269488144
        %v2107 = vunpack.c.0.s8 %v2106
        %v2108 = vlaneseq
        %v2109 = vshrl.u32 %v2108, 7
        %v2110 = vsub.s32 %v2107, %v2109
        %v2111 = vrot.slane %v978, %v2110
        %v2113 = vunpack.c.l.s4 842150450
        %v2114 = vunpack.c.0.s8 %v2113
        %v2115 = vlaneseq
        %v2116 = vshrl.u32 %v2115, 7
        %v2117 = vsub.s32 %v2114, %v2116
        %v2118 = vrot.slane %v978, %v2117
        %v2120 = vunpack.c.l.s4 1414812756
        %v2121 = vunpack.c.0.s8 %v2120
        %v2122 = vlaneseq
        %v2123 = vshrl.u32 %v2122, 7
        %v2124 = vsub.s32 %v2121, %v2123
        %v2125 = vrot.slane %v978, %v2124
        %v2127 = vunpack.c.l.s4 1987475062
        %v2128 = vunpack.c.0.s8 %v2127
        %v2129 = vlaneseq
        %v2130 = vshrl.u32 %v2129, 7
        %v2131 = vsub.s32 %v2128, %v2130
        %v2132 = vrot.slane %v978, %v2131
        %v2134 = vunpack.c.l.s4 269488144
        %v2135 = vunpack.c.0.s8 %v2134
        %v2136 = vlaneseq
        %v2137 = vshrl.u32 %v2136, 7
        %v2138 = vsub.s32 %v2135, %v2137
        %v2139 = vrot.slane %v979, %v2138
        %v2141 = vunpack.c.l.s4 842150450
        %v2142 = vunpack.c.0.s8 %v2141
        %v2143 = vlaneseq
        %v2144 = vshrl.u32 %v2143, 7
        %v2145 = vsub.s32 %v2142, %v2144
        %v2146 = vrot.slane %v979, %v2145
        %v2148 = vunpack.c.l.s4 1414812756
        %v2149 = vunpack.c.0.s8 %v2148
        %v2150 = vlaneseq
        %v2151 = vshrl.u32 %v2150, 7
        %v2152 = vsub.s32 %v2149, %v2151
        %v2153 = vrot.slane %v979, %v2152
        %v2155 = vunpack.c.l.s4 1987475062
        %v2156 = vunpack.c.0.s8 %v2155
        %v2157 = vlaneseq
        %v2158 = vshrl.u32 %v2157, 7
        %v2159 = vsub.s32 %v2156, %v2158
        %v2160 = vrot.slane %v979, %v2159
        %v2162 = vunpack.c.l.s4 269488144
        %v2163 = vunpack.c.0.s8 %v2162
        %v2164 = vlaneseq
        %v2165 = vshrl.u32 %v2164, 7
        %v2166 = vsub.s32 %v2163, %v2165
        %v2167 = vrot.slane %v980, %v2166
        %v2169 = vunpack.c.l.s4 842150450
        %v2170 = vunpack.c.0.s8 %v2169
        %v2171 = vlaneseq
        %v2172 = vshrl.u32 %v2171, 7
        %v2173 = vsub.s32 %v2170, %v2172
        %v2174 = vrot.slane %v980, %v2173
        %v2176 = vunpack.c.l.s4 1414812756
        %v2177 = vunpack.c.0.s8 %v2176
        %v2178 = vlaneseq
        %v2179 = vshrl.u32 %v2178, 7
        %v2180 = vsub.s32 %v2177, %v2179
        %v2181 = vrot.slane %v980, %v2180
        %v2183 = vunpack.c.l.s4 1987475062
        %v2184 = vunpack.c.0.s8 %v2183
        %v2185 = vlaneseq
        %v2186 = vshrl.u32 %v2185, 7
        %v2187 = vsub.s32 %v2184, %v2186
        %v2188 = vrot.slane %v980, %v2187
        %v2190 = vunpack.c.l.s4 269488144
        %v2191 = vunpack.c.0.s8 %v2190
        %v2192 = vlaneseq
        %v2193 = vshrl.u32 %v2192, 7
        %v2194 = vsub.s32 %v2191, %v2193
        %v2195 = vrot.slane %v981, %v2194
        %v2197 = vunpack.c.l.s4 842150450
        %v2198 = vunpack.c.0.s8 %v2197
        %v2199 = vlaneseq
        %v2200 = vshrl.u32 %v2199, 7
        %v2201 = vsub.s32 %v2198, %v2200
        %v2202 = vrot.slane %v981, %v2201
        %v2204 = vunpack.c.l.s4 1414812756
        %v2205 = vunpack.c.0.s8 %v2204
        %v2206 = vlaneseq
        %v2207 = vshrl.u32 %v2206, 7
        %v2208 = vsub.s32 %v2205, %v2207
        %v2209 = vrot.slane %v981, %v2208
        %v2211 = vunpack.c.l.s4 1987475062
        %v2212 = vunpack.c.0.s8 %v2211
        %v2213 = vlaneseq
        %v2214 = vshrl.u32 %v2213, 7
        %v2215 = vsub.s32 %v2212, %v2214
        %v2216 = vrot.slane %v981, %v2215
        %v2218 = vunpack.c.l.s4 269488144
        %v2219 = vunpack.c.0.s8 %v2218
        %v2220 = vlaneseq
        %v2221 = vshrl.u32 %v2220, 7
        %v2222 = vsub.s32 %v2219, %v2221
        %v2223 = vrot.slane %v982, %v2222
        %v2225 = vunpack.c.l.s4 842150450
        %v2226 = vunpack.c.0.s8 %v2225
        %v2227 = vlaneseq
        %v2228 = vshrl.u32 %v2227, 7
        %v2229 = vsub.s32 %v2226, %v2228
        %v2230 = vrot.slane %v982, %v2229
        %v2232 = vunpack.c.l.s4 1414812756
        %v2233 = vunpack.c.0.s8 %v2232
        %v2234 = vlaneseq
        %v2235 = vshrl.u32 %v2234, 7
        %v2236 = vsub.s32 %v2233, %v2235
        %v2237 = vrot.slane %v982, %v2236
        %v2239 = vunpack.c.l.s4 1987475062
        %v2240 = vunpack.c.0.s8 %v2239
        %v2241 = vlaneseq
        %v2242 = vshrl.u32 %v2241, 7
        %v2243 = vsub.s32 %v2240, %v2242
        %v2244 = vrot.slane %v982, %v2243
        %v2246 = vunpack.c.l.s4 269488144
        %v2247 = vunpack.c.0.s8 %v2246
        %v2248 = vlaneseq
        %v2249 = vshrl.u32 %v2248, 7
        %v2250 = vsub.s32 %v2247, %v2249
        %v2251 = vrot.slane %v983, %v2250
        %v2253 = vunpack.c.l.s4 842150450
        %v2254 = vunpack.c.0.s8 %v2253
        %v2255 = vlaneseq
        %v2256 = vshrl.u32 %v2255, 7
        %v2257 = vsub.s32 %v2254, %v2256
        %v2258 = vrot.slane %v983, %v2257
        %v2260 = vunpack.c.l.s4 1414812756
        %v2261 = vunpack.c.0.s8 %v2260
        %v2262 = vlaneseq
        %v2263 = vshrl.u32 %v2262, 7
        %v2264 = vsub.s32 %v2261, %v2263
        %v2265 = vrot.slane %v983, %v2264
        %v2267 = vunpack.c.l.s4 1987475062
        %v2268 = vunpack.c.0.s8 %v2267
        %v2269 = vlaneseq
        %v2270 = vshrl.u32 %v2269, 7
        %v2271 = vsub.s32 %v2268, %v2270
        %v2272 = vrot.slane %v983, %v2271
        %v2274 = vunpack.c.l.s4 269488144
        %v2275 = vunpack.c.0.s8 %v2274
        %v2276 = vlaneseq
        %v2277 = vshrl.u32 %v2276, 7
        %v2278 = vsub.s32 %v2275, %v2277
        %v2279 = vrot.slane %v984, %v2278
        %v2281 = vunpack.c.l.s4 842150450
        %v2282 = vunpack.c.0.s8 %v2281
        %v2283 = vlaneseq
        %v2284 = vshrl.u32 %v2283, 7
        %v2285 = vsub.s32 %v2282, %v2284
        %v2286 = vrot.slane %v984, %v2285
        %v2288 = vunpack.c.l.s4 1414812756
        %v2289 = vunpack.c.0.s8 %v2288
        %v2290 = vlaneseq
        %v2291 = vshrl.u32 %v2290, 7
        %v2292 = vsub.s32 %v2289, %v2291
        %v2293 = vrot.slane %v984, %v2292
        %v2295 = vunpack.c.l.s4 1987475062
        %v2296 = vunpack.c.0.s8 %v2295
        %v2297 = vlaneseq
        %v2298 = vshrl.u32 %v2297, 7
        %v2299 = vsub.s32 %v2296, %v2298
        %v2300 = vrot.slane %v984, %v2299
        %v2302 = vunpack.c.l.s4 269488144
        %v2303 = vunpack.c.0.s8 %v2302
        %v2304 = vlaneseq
        %v2305 = vshrl.u32 %v2304, 7
        %v2306 = vsub.s32 %v2303, %v2305
        %v2307 = vrot.slane %v985, %v2306
        %v2309 = vunpack.c.l.s4 842150450
        %v2310 = vunpack.c.0.s8 %v2309
        %v2311 = vlaneseq
        %v2312 = vshrl.u32 %v2311, 7
        %v2313 = vsub.s32 %v2310, %v2312
        %v2314 = vrot.slane %v985, %v2313
        %v2316 = vunpack.c.l.s4 1414812756
        %v2317 = vunpack.c.0.s8 %v2316
        %v2318 = vlaneseq
        %v2319 = vshrl.u32 %v2318, 7
        %v2320 = vsub.s32 %v2317, %v2319
        %v2321 = vrot.slane %v985, %v2320
        %v2323 = vunpack.c.l.s4 1987475062
        %v2324 = vunpack.c.0.s8 %v2323
        %v2325 = vlaneseq
        %v2326 = vshrl.u32 %v2325, 7
        %v2327 = vsub.s32 %v2324, %v2326
        %v2328 = vrot.slane %v985, %v2327
        %v2330 = vunpack.c.l.s4 269488144
        %v2331 = vunpack.c.0.s8 %v2330
        %v2332 = vlaneseq
        %v2333 = vshrl.u32 %v2332, 7
        %v2334 = vsub.s32 %v2331, %v2333
        %v2335 = vrot.slane %v986, %v2334
        %v2337 = vunpack.c.l.s4 842150450
        %v2338 = vunpack.c.0.s8 %v2337
        %v2339 = vlaneseq
        %v2340 = vshrl.u32 %v2339, 7
        %v2341 = vsub.s32 %v2338, %v2340
        %v2342 = vrot.slane %v986, %v2341
        %v2344 = vunpack.c.l.s4 1414812756
        %v2345 = vunpack.c.0.s8 %v2344
        %v2346 = vlaneseq
        %v2347 = vshrl.u32 %v2346, 7
        %v2348 = vsub.s32 %v2345, %v2347
        %v2349 = vrot.slane %v986, %v2348
        %v2351 = vunpack.c.l.s4 1987475062
        %v2352 = vunpack.c.0.s8 %v2351
        %v2353 = vlaneseq
        %v2354 = vshrl.u32 %v2353, 7
        %v2355 = vsub.s32 %v2352, %v2354
        %v2356 = vrot.slane %v986, %v2355
        %v2358 = vunpack.c.l.s4 269488144
        %v2359 = vunpack.c.0.s8 %v2358
        %v2360 = vlaneseq
        %v2361 = vshrl.u32 %v2360, 7
        %v2362 = vsub.s32 %v2359, %v2361
        %v2363 = vrot.slane %v987, %v2362
        %v2365 = vunpack.c.l.s4 842150450
        %v2366 = vunpack.c.0.s8 %v2365
        %v2367 = vlaneseq
        %v2368 = vshrl.u32 %v2367, 7
        %v2369 = vsub.s32 %v2366, %v2368
        %v2370 = vrot.slane %v987, %v2369
        %v2372 = vunpack.c.l.s4 1414812756
        %v2373 = vunpack.c.0.s8 %v2372
        %v2374 = vlaneseq
        %v2375 = vshrl.u32 %v2374, 7
        %v2376 = vsub.s32 %v2373, %v2375
        %v2377 = vrot.slane %v987, %v2376
        %v2379 = vunpack.c.l.s4 1987475062
        %v2380 = vunpack.c.0.s8 %v2379
        %v2381 = vlaneseq
        %v2382 = vshrl.u32 %v2381, 7
        %v2383 = vsub.s32 %v2380, %v2382
        %v2384 = vrot.slane %v987, %v2383
        %v2386 = vunpack.c.l.s4 269488144
        %v2387 = vunpack.c.0.s8 %v2386
        %v2388 = vlaneseq
        %v2389 = vshrl.u32 %v2388, 7
        %v2390 = vsub.s32 %v2387, %v2389
        %v2391 = vrot.slane %v988, %v2390
        %v2393 = vunpack.c.l.s4 842150450
        %v2394 = vunpack.c.0.s8 %v2393
        %v2395 = vlaneseq
        %v2396 = vshrl.u32 %v2395, 7
        %v2397 = vsub.s32 %v2394, %v2396
        %v2398 = vrot.slane %v988, %v2397
        %v2400 = vunpack.c.l.s4 1414812756
        %v2401 = vunpack.c.0.s8 %v2400
        %v2402 = vlaneseq
        %v2403 = vshrl.u32 %v2402, 7
        %v2404 = vsub.s32 %v2401, %v2403
        %v2405 = vrot.slane %v988, %v2404
        %v2407 = vunpack.c.l.s4 1987475062
        %v2408 = vunpack.c.0.s8 %v2407
        %v2409 = vlaneseq
        %v2410 = vshrl.u32 %v2409, 7
        %v2411 = vsub.s32 %v2408, %v2410
        %v2412 = vrot.slane %v988, %v2411
        %v2414 = vunpack.c.l.s4 269488144
        %v2415 = vunpack.c.0.s8 %v2414
        %v2416 = vlaneseq
        %v2417 = vshrl.u32 %v2416, 7
        %v2418 = vsub.s32 %v2415, %v2417
        %v2419 = vrot.slane %v989, %v2418
        %v2421 = vunpack.c.l.s4 842150450
        %v2422 = vunpack.c.0.s8 %v2421
        %v2423 = vlaneseq
        %v2424 = vshrl.u32 %v2423, 7
        %v2425 = vsub.s32 %v2422, %v2424
        %v2426 = vrot.slane %v989, %v2425
        %v2428 = vunpack.c.l.s4 1414812756
        %v2429 = vunpack.c.0.s8 %v2428
        %v2430 = vlaneseq
        %v2431 = vshrl.u32 %v2430, 7
        %v2432 = vsub.s32 %v2429, %v2431
        %v2433 = vrot.slane %v989, %v2432
        %v2435 = vunpack.c.l.s4 1987475062
        %v2436 = vunpack.c.0.s8 %v2435
        %v2437 = vlaneseq
        %v2438 = vshrl.u32 %v2437, 7
        %v2439 = vsub.s32 %v2436, %v2438
        %v2440 = vrot.slane %v989, %v2439
        %v2442 = vunpack.c.l.s4 269488144
        %v2443 = vunpack.c.0.s8 %v2442
        %v2444 = vlaneseq
        %v2445 = vshrl.u32 %v2444, 7
        %v2446 = vsub.s32 %v2443, %v2445
        %v2447 = vrot.slane %v990, %v2446
        %v2449 = vunpack.c.l.s4 842150450
        %v2450 = vunpack.c.0.s8 %v2449
        %v2451 = vlaneseq
        %v2452 = vshrl.u32 %v2451, 7
        %v2453 = vsub.s32 %v2450, %v2452
        %v2454 = vrot.slane %v990, %v2453
        %v2456 = vunpack.c.l.s4 1414812756
        %v2457 = vunpack.c.0.s8 %v2456
        %v2458 = vlaneseq
        %v2459 = vshrl.u32 %v2458, 7
        %v2460 = vsub.s32 %v2457, %v2459
        %v2461 = vrot.slane %v990, %v2460
        %v2463 = vunpack.c.l.s4 1987475062
        %v2464 = vunpack.c.0.s8 %v2463
        %v2465 = vlaneseq
        %v2466 = vshrl.u32 %v2465, 7
        %v2467 = vsub.s32 %v2464, %v2466
        %v2468 = vrot.slane %v990, %v2467
        %v2470 = vunpack.c.l.s4 269488144
        %v2471 = vunpack.c.0.s8 %v2470
        %v2472 = vlaneseq
        %v2473 = vshrl.u32 %v2472, 7
        %v2474 = vsub.s32 %v2471, %v2473
        %v2475 = vrot.slane %v991, %v2474
        %v2477 = vunpack.c.l.s4 842150450
        %v2478 = vunpack.c.0.s8 %v2477
        %v2479 = vlaneseq
        %v2480 = vshrl.u32 %v2479, 7
        %v2481 = vsub.s32 %v2478, %v2480
        %v2482 = vrot.slane %v991, %v2481
        %v2484 = vunpack.c.l.s4 1414812756
        %v2485 = vunpack.c.0.s8 %v2484
        %v2486 = vlaneseq
        %v2487 = vshrl.u32 %v2486, 7
        %v2488 = vsub.s32 %v2485, %v2487
        %v2489 = vrot.slane %v991, %v2488
        %v2491 = vunpack.c.l.s4 1987475062
        %v2492 = vunpack.c.0.s8 %v2491
        %v2493 = vlaneseq
        %v2494 = vshrl.u32 %v2493, 7
        %v2495 = vsub.s32 %v2492, %v2494
        %v2496 = vrot.slane %v991, %v2495
        %v2498 = vunpack.c.l.s4 269488144
        %v2499 = vunpack.c.0.s8 %v2498
        %v2500 = vlaneseq
        %v2501 = vshrl.u32 %v2500, 7
        %v2502 = vsub.s32 %v2499, %v2501
        %v2503 = vrot.slane %v992, %v2502
        %v2505 = vunpack.c.l.s4 842150450
        %v2506 = vunpack.c.0.s8 %v2505
        %v2507 = vlaneseq
        %v2508 = vshrl.u32 %v2507, 7
        %v2509 = vsub.s32 %v2506, %v2508
        %v2510 = vrot.slane %v992, %v2509
        %v2512 = vunpack.c.l.s4 1414812756
        %v2513 = vunpack.c.0.s8 %v2512
        %v2514 = vlaneseq
        %v2515 = vshrl.u32 %v2514, 7
        %v2516 = vsub.s32 %v2513, %v2515
        %v2517 = vrot.slane %v992, %v2516
        %v2519 = vunpack.c.l.s4 1987475062
        %v2520 = vunpack.c.0.s8 %v2519
        %v2521 = vlaneseq
        %v2522 = vshrl.u32 %v2521, 7
        %v2523 = vsub.s32 %v2520, %v2522
        %v2524 = vrot.slane %v992, %v2523
        %v2526 = vunpack.c.l.s4 269488144
        %v2527 = vunpack.c.0.s8 %v2526
        %v2528 = vlaneseq
        %v2529 = vshrl.u32 %v2528, 7
        %v2530 = vsub.s32 %v2527, %v2529
        %v2531 = vrot.slane %v993, %v2530
        %v2533 = vunpack.c.l.s4 842150450
        %v2534 = vunpack.c.0.s8 %v2533
        %v2535 = vlaneseq
        %v2536 = vshrl.u32 %v2535, 7
        %v2537 = vsub.s32 %v2534, %v2536
        %v2538 = vrot.slane %v993, %v2537
        %v2540 = vunpack.c.l.s4 1414812756
        %v2541 = vunpack.c.0.s8 %v2540
        %v2542 = vlaneseq
        %v2543 = vshrl.u32 %v2542, 7
        %v2544 = vsub.s32 %v2541, %v2543
        %v2545 = vrot.slane %v993, %v2544
        %v2547 = vunpack.c.l.s4 1987475062
        %v2548 = vunpack.c.0.s8 %v2547
        %v2549 = vlaneseq
        %v2550 = vshrl.u32 %v2549, 7
        %v2551 = vsub.s32 %v2548, %v2550
        %v2552 = vrot.slane %v993, %v2551
        %v2554 = vunpack.c.l.s4 269488144
        %v2555 = vunpack.c.0.s8 %v2554
        %v2556 = vlaneseq
        %v2557 = vshrl.u32 %v2556, 7
        %v2558 = vsub.s32 %v2555, %v2557
        %v2559 = vrot.slane %v994, %v2558
        %v2561 = vunpack.c.l.s4 842150450
        %v2562 = vunpack.c.0.s8 %v2561
        %v2563 = vlaneseq
        %v2564 = vshrl.u32 %v2563, 7
        %v2565 = vsub.s32 %v2562, %v2564
        %v2566 = vrot.slane %v994, %v2565
        %v2568 = vunpack.c.l.s4 1414812756
        %v2569 = vunpack.c.0.s8 %v2568
        %v2570 = vlaneseq
        %v2571 = vshrl.u32 %v2570, 7
        %v2572 = vsub.s32 %v2569, %v2571
        %v2573 = vrot.slane %v994, %v2572
        %v2575 = vunpack.c.l.s4 1987475062
        %v2576 = vunpack.c.0.s8 %v2575
        %v2577 = vlaneseq
        %v2578 = vshrl.u32 %v2577, 7
        %v2579 = vsub.s32 %v2576, %v2578
        %v2580 = vrot.slane %v994, %v2579
        %v2582 = vunpack.c.l.s4 269488144
        %v2583 = vunpack.c.0.s8 %v2582
        %v2584 = vlaneseq
        %v2585 = vshrl.u32 %v2584, 7
        %v2586 = vsub.s32 %v2583, %v2585
        %v2587 = vrot.slane %v995, %v2586
        %v2589 = vunpack.c.l.s4 842150450
        %v2590 = vunpack.c.0.s8 %v2589
        %v2591 = vlaneseq
        %v2592 = vshrl.u32 %v2591, 7
        %v2593 = vsub.s32 %v2590, %v2592
        %v2594 = vrot.slane %v995, %v2593
        %v2596 = vunpack.c.l.s4 1414812756
        %v2597 = vunpack.c.0.s8 %v2596
        %v2598 = vlaneseq
        %v2599 = vshrl.u32 %v2598, 7
        %v2600 = vsub.s32 %v2597, %v2599
        %v2601 = vrot.slane %v995, %v2600
        %v2603 = vunpack.c.l.s4 1987475062
        %v2604 = vunpack.c.0.s8 %v2603
        %v2605 = vlaneseq
        %v2606 = vshrl.u32 %v2605, 7
        %v2607 = vsub.s32 %v2604, %v2606
        %v2608 = vrot.slane %v995, %v2607
        %v2610 = vunpack.c.l.s4 269488144
        %v2611 = vunpack.c.0.s8 %v2610
        %v2612 = vlaneseq
        %v2613 = vshrl.u32 %v2612, 7
        %v2614 = vsub.s32 %v2611, %v2613
        %v2615 = vrot.slane %v996, %v2614
        %v2617 = vunpack.c.l.s4 842150450
        %v2618 = vunpack.c.0.s8 %v2617
        %v2619 = vlaneseq
        %v2620 = vshrl.u32 %v2619, 7
        %v2621 = vsub.s32 %v2618, %v2620
        %v2622 = vrot.slane %v996, %v2621
        %v2624 = vunpack.c.l.s4 1414812756
        %v2625 = vunpack.c.0.s8 %v2624
        %v2626 = vlaneseq
        %v2627 = vshrl.u32 %v2626, 7
        %v2628 = vsub.s32 %v2625, %v2627
        %v2629 = vrot.slane %v996, %v2628
        %v2631 = vunpack.c.l.s4 1987475062
        %v2632 = vunpack.c.0.s8 %v2631
        %v2633 = vlaneseq
        %v2634 = vshrl.u32 %v2633, 7
        %v2635 = vsub.s32 %v2632, %v2634
        %v2636 = vrot.slane %v996, %v2635
        %v2638 = vunpack.c.l.s4 269488144
        %v2639 = vunpack.c.0.s8 %v2638
        %v2640 = vlaneseq
        %v2641 = vshrl.u32 %v2640, 7
        %v2642 = vsub.s32 %v2639, %v2641
        %v2643 = vrot.slane %v997, %v2642
        %v2645 = vunpack.c.l.s4 842150450
        %v2646 = vunpack.c.0.s8 %v2645
        %v2647 = vlaneseq
        %v2648 = vshrl.u32 %v2647, 7
        %v2649 = vsub.s32 %v2646, %v2648
        %v2650 = vrot.slane %v997, %v2649
        %v2652 = vunpack.c.l.s4 1414812756
        %v2653 = vunpack.c.0.s8 %v2652
        %v2654 = vlaneseq
        %v2655 = vshrl.u32 %v2654, 7
        %v2656 = vsub.s32 %v2653, %v2655
        %v2657 = vrot.slane %v997, %v2656
        %v2659 = vunpack.c.l.s4 1987475062
        %v2660 = vunpack.c.0.s8 %v2659
        %v2661 = vlaneseq
        %v2662 = vshrl.u32 %v2661, 7
        %v2663 = vsub.s32 %v2660, %v2662
        %v2664 = vrot.slane %v997, %v2663
        %v2666 = vunpack.c.l.s4 269488144
        %v2667 = vunpack.c.0.s8 %v2666
        %v2668 = vlaneseq
        %v2669 = vshrl.u32 %v2668, 7
        %v2670 = vsub.s32 %v2667, %v2669
        %v2671 = vrot.slane %v998, %v2670
        %v2673 = vunpack.c.l.s4 842150450
        %v2674 = vunpack.c.0.s8 %v2673
        %v2675 = vlaneseq
        %v2676 = vshrl.u32 %v2675, 7
        %v2677 = vsub.s32 %v2674, %v2676
        %v2678 = vrot.slane %v998, %v2677
        %v2680 = vunpack.c.l.s4 1414812756
        %v2681 = vunpack.c.0.s8 %v2680
        %v2682 = vlaneseq
        %v2683 = vshrl.u32 %v2682, 7
        %v2684 = vsub.s32 %v2681, %v2683
        %v2685 = vrot.slane %v998, %v2684
        %v2687 = vunpack.c.l.s4 1987475062
        %v2688 = vunpack.c.0.s8 %v2687
        %v2689 = vlaneseq
        %v2690 = vshrl.u32 %v2689, 7
        %v2691 = vsub.s32 %v2688, %v2690
        %v2692 = vrot.slane %v998, %v2691
        %v2694 = vunpack.c.l.s4 269488144
        %v2695 = vunpack.c.0.s8 %v2694
        %v2696 = vlaneseq
        %v2697 = vshrl.u32 %v2696, 7
        %v2698 = vsub.s32 %v2695, %v2697
        %v2699 = vrot.slane %v999, %v2698
        %v2701 = vunpack.c.l.s4 842150450
        %v2702 = vunpack.c.0.s8 %v2701
        %v2703 = vlaneseq
        %v2704 = vshrl.u32 %v2703, 7
        %v2705 = vsub.s32 %v2702, %v2704
        %v2706 = vrot.slane %v999, %v2705
        %v2708 = vunpack.c.l.s4 1414812756
        %v2709 = vunpack.c.0.s8 %v2708
        %v2710 = vlaneseq
        %v2711 = vshrl.u32 %v2710, 7
        %v2712 = vsub.s32 %v2709, %v2711
        %v2713 = vrot.slane %v999, %v2712
        %v2715 = vunpack.c.l.s4 1987475062
        %v2716 = vunpack.c.0.s8 %v2715
        %v2717 = vlaneseq
        %v2718 = vshrl.u32 %v2717, 7
        %v2719 = vsub.s32 %v2716, %v2718
        %v2720 = vrot.slane %v999, %v2719
        %v2722 = vunpack.c.l.s4 269488144
        %v2723 = vunpack.c.0.s8 %v2722
        %v2724 = vlaneseq
        %v2725 = vshrl.u32 %v2724, 7
        %v2726 = vsub.s32 %v2723, %v2725
        %v2727 = vrot.slane %v1000, %v2726
        %v2729 = vunpack.c.l.s4 842150450
        %v2730 = vunpack.c.0.s8 %v2729
        %v2731 = vlaneseq
        %v2732 = vshrl.u32 %v2731, 7
        %v2733 = vsub.s32 %v2730, %v2732
        %v2734 = vrot.slane %v1000, %v2733
        %v2736 = vunpack.c.l.s4 1414812756
        %v2737 = vunpack.c.0.s8 %v2736
        %v2738 = vlaneseq
        %v2739 = vshrl.u32 %v2738, 7
        %v2740 = vsub.s32 %v2737, %v2739
        %v2741 = vrot.slane %v1000, %v2740
        %v2743 = vunpack.c.l.s4 1987475062
        %v2744 = vunpack.c.0.s8 %v2743
        %v2745 = vlaneseq
        %v2746 = vshrl.u32 %v2745, 7
        %v2747 = vsub.s32 %v2744, %v2746
        %v2748 = vrot.slane %v1000, %v2747
        %v2750 = vunpack.c.l.s4 269488144
        %v2751 = vunpack.c.0.s8 %v2750
        %v2752 = vlaneseq
        %v2753 = vshrl.u32 %v2752, 7
        %v2754 = vsub.s32 %v2751, %v2753
        %v2755 = vrot.slane %v1001, %v2754
        %v2757 = vunpack.c.l.s4 842150450
        %v2758 = vunpack.c.0.s8 %v2757
        %v2759 = vlaneseq
        %v2760 = vshrl.u32 %v2759, 7
        %v2761 = vsub.s32 %v2758, %v2760
        %v2762 = vrot.slane %v1001, %v2761
        %v2764 = vunpack.c.l.s4 1414812756
        %v2765 = vunpack.c.0.s8 %v2764
        %v2766 = vlaneseq
        %v2767 = vshrl.u32 %v2766, 7
        %v2768 = vsub.s32 %v2765, %v2767
        %v2769 = vrot.slane %v1001, %v2768
        %v2771 = vunpack.c.l.s4 1987475062
        %v2772 = vunpack.c.0.s8 %v2771
        %v2773 = vlaneseq
        %v2774 = vshrl.u32 %v2773, 7
        %v2775 = vsub.s32 %v2772, %v2774
        %v2776 = vrot.slane %v1001, %v2775
        %v2778 = vunpack.c.l.s4 269488144
        %v2779 = vunpack.c.0.s8 %v2778
        %v2780 = vlaneseq
        %v2781 = vshrl.u32 %v2780, 7
        %v2782 = vsub.s32 %v2779, %v2781
        %v2783 = vrot.slane %v1002, %v2782
        %v2785 = vunpack.c.l.s4 842150450
        %v2786 = vunpack.c.0.s8 %v2785
        %v2787 = vlaneseq
        %v2788 = vshrl.u32 %v2787, 7
        %v2789 = vsub.s32 %v2786, %v2788
        %v2790 = vrot.slane %v1002, %v2789
        %v2792 = vunpack.c.l.s4 1414812756
        %v2793 = vunpack.c.0.s8 %v2792
        %v2794 = vlaneseq
        %v2795 = vshrl.u32 %v2794, 7
        %v2796 = vsub.s32 %v2793, %v2795
        %v2797 = vrot.slane %v1002, %v2796
        %v2799 = vunpack.c.l.s4 1987475062
        %v2800 = vunpack.c.0.s8 %v2799
        %v2801 = vlaneseq
        %v2802 = vshrl.u32 %v2801, 7
        %v2803 = vsub.s32 %v2800, %v2802
        %v2804 = vrot.slane %v1002, %v2803
        %v2806 = vunpack.c.l.s4 269488144
        %v2807 = vunpack.c.0.s8 %v2806
        %v2808 = vlaneseq
        %v2809 = vshrl.u32 %v2808, 7
        %v2810 = vsub.s32 %v2807, %v2809
        %v2811 = vrot.slane %v1003, %v2810
        %v2813 = vunpack.c.l.s4 842150450
        %v2814 = vunpack.c.0.s8 %v2813
        %v2815 = vlaneseq
        %v2816 = vshrl.u32 %v2815, 7
        %v2817 = vsub.s32 %v2814, %v2816
        %v2818 = vrot.slane %v1003, %v2817
        %v2820 = vunpack.c.l.s4 1414812756
        %v2821 = vunpack.c.0.s8 %v2820
        %v2822 = vlaneseq
        %v2823 = vshrl.u32 %v2822, 7
        %v2824 = vsub.s32 %v2821, %v2823
        %v2825 = vrot.slane %v1003, %v2824
        %v2827 = vunpack.c.l.s4 1987475062
        %v2828 = vunpack.c.0.s8 %v2827
        %v2829 = vlaneseq
        %v2830 = vshrl.u32 %v2829, 7
        %v2831 = vsub.s32 %v2828, %v2830
        %v2832 = vrot.slane %v1003, %v2831
        %v2834 = vunpack.c.l.s4 269488144
        %v2835 = vunpack.c.0.s8 %v2834
        %v2836 = vlaneseq
        %v2837 = vshrl.u32 %v2836, 7
        %v2838 = vsub.s32 %v2835, %v2837
        %v2839 = vrot.slane %v1004, %v2838
        %v2841 = vunpack.c.l.s4 842150450
        %v2842 = vunpack.c.0.s8 %v2841
        %v2843 = vlaneseq
        %v2844 = vshrl.u32 %v2843, 7
        %v2845 = vsub.s32 %v2842, %v2844
        %v2846 = vrot.slane %v1004, %v2845
        %v2848 = vunpack.c.l.s4 1414812756
        %v2849 = vunpack.c.0.s8 %v2848
        %v2850 = vlaneseq
        %v2851 = vshrl.u32 %v2850, 7
        %v2852 = vsub.s32 %v2849, %v2851
        %v2853 = vrot.slane %v1004, %v2852
        %v2855 = vunpack.c.l.s4 1987475062
        %v2856 = vunpack.c.0.s8 %v2855
        %v2857 = vlaneseq
        %v2858 = vshrl.u32 %v2857, 7
        %v2859 = vsub.s32 %v2856, %v2858
        %v2860 = vrot.slane %v1004, %v2859
        %v2861 = vcombine.low %v1075, %v1082
        %v2862 = vcombine.low %v1089, %v1096
        %v2864 = vunpack.c.l.s4 1983009808
        %v2865 = vunpack.c.0.s8 %v2864
        %v2866 = vlaneseq
        %v2867 = vshrl.u32 %v2866, 7
        %v2868 = vsub.s32 %v2865, %v2867
        %v2869 = vrot.slane %v2861, %v2868
        %v2871 = vunpack.c.l.s4 1983009808
        %v2872 = vunpack.c.0.s8 %v2871
        %v2873 = vlaneseq
        %v2874 = vshrl.u32 %v2873, 7
        %v2875 = vsub.s32 %v2872, %v2874
        %v2876 = vrot.slane %v2862, %v2875
        %v2877 = vcombine.low %v2869, %v2876
        %v2878 = vcombine.low %v1103, %v1110
        %v2879 = vcombine.low %v1117, %v1124
        %v2881 = vunpack.c.l.s4 1983009808
        %v2882 = vunpack.c.0.s8 %v2881
        %v2883 = vlaneseq
        %v2884 = vshrl.u32 %v2883, 7
        %v2885 = vsub.s32 %v2882, %v2884
        %v2886 = vrot.slane %v2878, %v2885
        %v2888 = vunpack.c.l.s4 1983009808
        %v2889 = vunpack.c.0.s8 %v2888
        %v2890 = vlaneseq
        %v2891 = vshrl.u32 %v2890, 7
        %v2892 = vsub.s32 %v2889, %v2891
        %v2893 = vrot.slane %v2879, %v2892
        %v2894 = vcombine.low %v2886, %v2893
        %v2895 = vcombine.low %v1131, %v1138
        %v2896 = vcombine.low %v1145, %v1152
        %v2898 = vunpack.c.l.s4 1983009808
        %v2899 = vunpack.c.0.s8 %v2898
        %v2900 = vlaneseq
        %v2901 = vshrl.u32 %v2900, 7
        %v2902 = vsub.s32 %v2899, %v2901
        %v2903 = vrot.slane %v2895, %v2902
        %v2905 = vunpack.c.l.s4 1983009808
        %v2906 = vunpack.c.0.s8 %v2905
        %v2907 = vlaneseq
        %v2908 = vshrl.u32 %v2907, 7
        %v2909 = vsub.s32 %v2906, %v2908
        %v2910 = vrot.slane %v2896, %v2909
        %v2911 = vcombine.low %v2903, %v2910
        %v2912 = vcombine.low %v1159, %v1166
        %v2913 = vcombine.low %v1173, %v1180
        %v2915 = vunpack.c.l.s4 1983009808
        %v2916 = vunpack.c.0.s8 %v2915
        %v2917 = vlaneseq
        %v2918 = vshrl.u32 %v2917, 7
        %v2919 = vsub.s32 %v2916, %v2918
        %v2920 = vrot.slane %v2912, %v2919
        %v2922 = vunpack.c.l.s4 1983009808
        %v2923 = vunpack.c.0.s8 %v2922
        %v2924 = vlaneseq
        %v2925 = vshrl.u32 %v2924, 7
        %v2926 = vsub.s32 %v2923, %v2925
        %v2927 = vrot.slane %v2913, %v2926
        %v2928 = vcombine.low %v2920, %v2927
        %v2929 = vcombine.low %v1187, %v1194
        %v2930 = vcombine.low %v1201, %v1208
        %v2932 = vunpack.c.l.s4 1983009808
        %v2933 = vunpack.c.0.s8 %v2932
        %v2934 = vlaneseq
        %v2935 = vshrl.u32 %v2934, 7
        %v2936 = vsub.s32 %v2933, %v2935
        %v2937 = vrot.slane %v2929, %v2936
        %v2939 = vunpack.c.l.s4 1983009808
        %v2940 = vunpack.c.0.s8 %v2939
        %v2941 = vlaneseq
        %v2942 = vshrl.u32 %v2941, 7
        %v2943 = vsub.s32 %v2940, %v2942
        %v2944 = vrot.slane %v2930, %v2943
        %v2945 = vcombine.low %v2937, %v2944
        %v2946 = vcombine.low %v1215, %v1222
        %v2947 = vcombine.low %v1229, %v1236
        %v2949 = vunpack.c.l.s4 1983009808
        %v2950 = vunpack.c.0.s8 %v2949
        %v2951 = vlaneseq
        %v2952 = vshrl.u32 %v2951, 7
        %v2953 = vsub.s32 %v2950, %v2952
        %v2954 = vrot.slane %v2946, %v2953
        %v2956 = vunpack.c.l.s4 1983009808
        %v2957 = vunpack.c.0.s8 %v2956
        %v2958 = vlaneseq
        %v2959 = vshrl.u32 %v2958, 7
        %v2960 = vsub.s32 %v2957, %v2959
        %v2961 = vrot.slane %v2947, %v2960
        %v2962 = vcombine.low %v2954, %v2961
        %v2963 = vcombine.low %v1243, %v1250
        %v2964 = vcombine.low %v1257, %v1264
        %v2966 = vunpack.c.l.s4 1983009808
        %v2967 = vunpack.c.0.s8 %v2966
        %v2968 = vlaneseq
        %v2969 = vshrl.u32 %v2968, 7
        %v2970 = vsub.s32 %v2967, %v2969
        %v2971 = vrot.slane %v2963, %v2970
        %v2973 = vunpack.c.l.s4 1983009808
        %v2974 = vunpack.c.0.s8 %v2973
        %v2975 = vlaneseq
        %v2976 = vshrl.u32 %v2975, 7
        %v2977 = vsub.s32 %v2974, %v2976
        %v2978 = vrot.slane %v2964, %v2977
        %v2979 = vcombine.low %v2971, %v2978
        %v2980 = vcombine.low %v1271, %v1278
        %v2981 = vcombine.low %v1285, %v1292
        %v2983 = vunpack.c.l.s4 1983009808
        %v2984 = vunpack.c.0.s8 %v2983
        %v2985 = vlaneseq
        %v2986 = vshrl.u32 %v2985, 7
        %v2987 = vsub.s32 %v2984, %v2986
        %v2988 = vrot.slane %v2980, %v2987
        %v2990 = vunpack.c.l.s4 1983009808
        %v2991 = vunpack.c.0.s8 %v2990
        %v2992 = vlaneseq
        %v2993 = vshrl.u32 %v2992, 7
        %v2994 = vsub.s32 %v2991, %v2993
        %v2995 = vrot.slane %v2981, %v2994
        %v2996 = vcombine.low %v2988, %v2995
        %v2997 = vcombine.low %v1299, %v1306
        %v2998 = vcombine.low %v1313, %v1320
        %v3000 = vunpack.c.l.s4 1983009808
        %v3001 = vunpack.c.0.s8 %v3000
        %v3002 = vlaneseq
        %v3003 = vshrl.u32 %v3002, 7
        %v3004 = vsub.s32 %v3001, %v3003
        %v3005 = vrot.slane %v2997, %v3004
        %v3007 = vunpack.c.l.s4 1983009808
        %v3008 = vunpack.c.0.s8 %v3007
        %v3009 = vlaneseq
        %v3010 = vshrl.u32 %v3009, 7
        %v3011 = vsub.s32 %v3008, %v3010
        %v3012 = vrot.slane %v2998, %v3011
        %v3013 = vcombine.low %v3005, %v3012
        %v3014 = vcombine.low %v1327, %v1334
        %v3015 = vcombine.low %v1341, %v1348
        %v3017 = vunpack.c.l.s4 1983009808
        %v3018 = vunpack.c.0.s8 %v3017
        %v3019 = vlaneseq
        %v3020 = vshrl.u32 %v3019, 7
        %v3021 = vsub.s32 %v3018, %v3020
        %v3022 = vrot.slane %v3014, %v3021
        %v3024 = vunpack.c.l.s4 1983009808
        %v3025 = vunpack.c.0.s8 %v3024
        %v3026 = vlaneseq
        %v3027 = vshrl.u32 %v3026, 7
        %v3028 = vsub.s32 %v3025, %v3027
        %v3029 = vrot.slane %v3015, %v3028
        %v3030 = vcombine.low %v3022, %v3029
        %v3031 = vcombine.low %v1355, %v1362
        %v3032 = vcombine.low %v1369, %v1376
        %v3034 = vunpack.c.l.s4 1983009808
        %v3035 = vunpack.c.0.s8 %v3034
        %v3036 = vlaneseq
        %v3037 = vshrl.u32 %v3036, 7
        %v3038 = vsub.s32 %v3035, %v3037
        %v3039 = vrot.slane %v3031, %v3038
        %v3041 = vunpack.c.l.s4 1983009808
        %v3042 = vunpack.c.0.s8 %v3041
        %v3043 = vlaneseq
        %v3044 = vshrl.u32 %v3043, 7
        %v3045 = vsub.s32 %v3042, %v3044
        %v3046 = vrot.slane %v3032, %v3045
        %v3047 = vcombine.low %v3039, %v3046
        %v3048 = vcombine.low %v1383, %v1390
        %v3049 = vcombine.low %v1397, %v1404
        %v3051 = vunpack.c.l.s4 1983009808
        %v3052 = vunpack.c.0.s8 %v3051
        %v3053 = vlaneseq
        %v3054 = vshrl.u32 %v3053, 7
        %v3055 = vsub.s32 %v3052, %v3054
        %v3056 = vrot.slane %v3048, %v3055
        %v3058 = vunpack.c.l.s4 1983009808
        %v3059 = vunpack.c.0.s8 %v3058
        %v3060 = vlaneseq
        %v3061 = vshrl.u32 %v3060, 7
        %v3062 = vsub.s32 %v3059, %v3061
        %v3063 = vrot.slane %v3049, %v3062
        %v3064 = vcombine.low %v3056, %v3063
        %v3065 = vcombine.low %v1411, %v1418
        %v3066 = vcombine.low %v1425, %v1432
        %v3068 = vunpack.c.l.s4 1983009808
        %v3069 = vunpack.c.0.s8 %v3068
        %v3070 = vlaneseq
        %v3071 = vshrl.u32 %v3070, 7
        %v3072 = vsub.s32 %v3069, %v3071
        %v3073 = vrot.slane %v3065, %v3072
        %v3075 = vunpack.c.l.s4 1983009808
        %v3076 = vunpack.c.0.s8 %v3075
        %v3077 = vlaneseq
        %v3078 = vshrl.u32 %v3077, 7
        %v3079 = vsub.s32 %v3076, %v3078
        %v3080 = vrot.slane %v3066, %v3079
        %v3081 = vcombine.low %v3073, %v3080
        %v3082 = vcombine.low %v1439, %v1446
        %v3083 = vcombine.low %v1453, %v1460
        %v3085 = vunpack.c.l.s4 1983009808
        %v3086 = vunpack.c.0.s8 %v3085
        %v3087 = vlaneseq
        %v3088 = vshrl.u32 %v3087, 7
        %v3089 = vsub.s32 %v3086, %v3088
        %v3090 = vrot.slane %v3082, %v3089
        %v3092 = vunpack.c.l.s4 1983009808
        %v3093 = vunpack.c.0.s8 %v3092
        %v3094 = vlaneseq
        %v3095 = vshrl.u32 %v3094, 7
        %v3096 = vsub.s32 %v3093, %v3095
        %v3097 = vrot.slane %v3083, %v3096
        %v3098 = vcombine.low %v3090, %v3097
        %v3099 = vcombine.low %v1467, %v1474
        %v3100 = vcombine.low %v1481, %v1488
        %v3102 = vunpack.c.l.s4 1983009808
        %v3103 = vunpack.c.0.s8 %v3102
        %v3104 = vlaneseq
        %v3105 = vshrl.u32 %v3104, 7
        %v3106 = vsub.s32 %v3103, %v3105
        %v3107 = vrot.slane %v3099, %v3106
        %v3109 = vunpack.c.l.s4 1983009808
        %v3110 = vunpack.c.0.s8 %v3109
        %v3111 = vlaneseq
        %v3112 = vshrl.u32 %v3111, 7
        %v3113 = vsub.s32 %v3110, %v3112
        %v3114 = vrot.slane %v3100, %v3113
        %v3115 = vcombine.low %v3107, %v3114
        %v3116 = vcombine.low %v1495, %v1502
        %v3117 = vcombine.low %v1509, %v1516
        %v3119 = vunpack.c.l.s4 1983009808
        %v3120 = vunpack.c.0.s8 %v3119
        %v3121 = vlaneseq
        %v3122 = vshrl.u32 %v3121, 7
        %v3123 = vsub.s32 %v3120, %v3122
        %v3124 = vrot.slane %v3116, %v3123
        %v3126 = vunpack.c.l.s4 1983009808
        %v3127 = vunpack.c.0.s8 %v3126
        %v3128 = vlaneseq
        %v3129 = vshrl.u32 %v3128, 7
        %v3130 = vsub.s32 %v3127, %v3129
        %v3131 = vrot.slane %v3117, %v3130
        %v3132 = vcombine.low %v3124, %v3131
        %v3133 = vcombine.low %v1523, %v1530
        %v3134 = vcombine.low %v1537, %v1544
        %v3136 = vunpack.c.l.s4 1983009808
        %v3137 = vunpack.c.0.s8 %v3136
        %v3138 = vlaneseq
        %v3139 = vshrl.u32 %v3138, 7
        %v3140 = vsub.s32 %v3137, %v3139
        %v3141 = vrot.slane %v3133, %v3140
        %v3143 = vunpack.c.l.s4 1983009808
        %v3144 = vunpack.c.0.s8 %v3143
        %v3145 = vlaneseq
        %v3146 = vshrl.u32 %v3145, 7
        %v3147 = vsub.s32 %v3144, %v3146
        %v3148 = vrot.slane %v3134, %v3147
        %v3149 = vcombine.low %v3141, %v3148
        %v3150 = vcombine.low %v1551, %v1558
        %v3151 = vcombine.low %v1565, %v1572
        %v3153 = vunpack.c.l.s4 1983009808
        %v3154 = vunpack.c.0.s8 %v3153
        %v3155 = vlaneseq
        %v3156 = vshrl.u32 %v3155, 7
        %v3157 = vsub.s32 %v3154, %v3156
        %v3158 = vrot.slane %v3150, %v3157
        %v3160 = vunpack.c.l.s4 1983009808
        %v3161 = vunpack.c.0.s8 %v3160
        %v3162 = vlaneseq
        %v3163 = vshrl.u32 %v3162, 7
        %v3164 = vsub.s32 %v3161, %v3163
        %v3165 = vrot.slane %v3151, %v3164
        %v3166 = vcombine.low %v3158, %v3165
        %v3167 = vcombine.low %v1579, %v1586
        %v3168 = vcombine.low %v1593, %v1600
        %v3170 = vunpack.c.l.s4 1983009808
        %v3171 = vunpack.c.0.s8 %v3170
        %v3172 = vlaneseq
        %v3173 = vshrl.u32 %v3172, 7
        %v3174 = vsub.s32 %v3171, %v3173
        %v3175 = vrot.slane %v3167, %v3174
        %v3177 = vunpack.c.l.s4 1983009808
        %v3178 = vunpack.c.0.s8 %v3177
        %v3179 = vlaneseq
        %v3180 = vshrl.u32 %v3179, 7
        %v3181 = vsub.s32 %v3178, %v3180
        %v3182 = vrot.slane %v3168, %v3181
        %v3183 = vcombine.low %v3175, %v3182
        %v3184 = vcombine.low %v1607, %v1614
        %v3185 = vcombine.low %v1621, %v1628
        %v3187 = vunpack.c.l.s4 1983009808
        %v3188 = vunpack.c.0.s8 %v3187
        %v3189 = vlaneseq
        %v3190 = vshrl.u32 %v3189, 7
        %v3191 = vsub.s32 %v3188, %v3190
        %v3192 = vrot.slane %v3184, %v3191
        %v3194 = vunpack.c.l.s4 1983009808
        %v3195 = vunpack.c.0.s8 %v3194
        %v3196 = vlaneseq
        %v3197 = vshrl.u32 %v3196, 7
        %v3198 = vsub.s32 %v3195, %v3197
        %v3199 = vrot.slane %v3185, %v3198
        %v3200 = vcombine.low %v3192, %v3199
        %v3201 = vcombine.low %v1635, %v1642
        %v3202 = vcombine.low %v1649, %v1656
        %v3204 = vunpack.c.l.s4 1983009808
        %v3205 = vunpack.c.0.s8 %v3204
        %v3206 = vlaneseq
        %v3207 = vshrl.u32 %v3206, 7
        %v3208 = vsub.s32 %v3205, %v3207
        %v3209 = vrot.slane %v3201, %v3208
        %v3211 = vunpack.c.l.s4 1983009808
        %v3212 = vunpack.c.0.s8 %v3211
        %v3213 = vlaneseq
        %v3214 = vshrl.u32 %v3213, 7
        %v3215 = vsub.s32 %v3212, %v3214
        %v3216 = vrot.slane %v3202, %v3215
        %v3217 = vcombine.low %v3209, %v3216
        %v3218 = vcombine.low %v1663, %v1670
        %v3219 = vcombine.low %v1677, %v1684
        %v3221 = vunpack.c.l.s4 1983009808
        %v3222 = vunpack.c.0.s8 %v3221
        %v3223 = vlaneseq
        %v3224 = vshrl.u32 %v3223, 7
        %v3225 = vsub.s32 %v3222, %v3224
        %v3226 = vrot.slane %v3218, %v3225
        %v3228 = vunpack.c.l.s4 1983009808
        %v3229 = vunpack.c.0.s8 %v3228
        %v3230 = vlaneseq
        %v3231 = vshrl.u32 %v3230, 7
        %v3232 = vsub.s32 %v3229, %v3231
        %v3233 = vrot.slane %v3219, %v3232
        %v3234 = vcombine.low %v3226, %v3233
        %v3235 = vcombine.low %v1691, %v1698
        %v3236 = vcombine.low %v1705, %v1712
        %v3238 = vunpack.c.l.s4 1983009808
        %v3239 = vunpack.c.0.s8 %v3238
        %v3240 = vlaneseq
        %v3241 = vshrl.u32 %v3240, 7
        %v3242 = vsub.s32 %v3239, %v3241
        %v3243 = vrot.slane %v3235, %v3242
        %v3245 = vunpack.c.l.s4 1983009808
        %v3246 = vunpack.c.0.s8 %v3245
        %v3247 = vlaneseq
        %v3248 = vshrl.u32 %v3247, 7
        %v3249 = vsub.s32 %v3246, %v3248
        %v3250 = vrot.slane %v3236, %v3249
        %v3251 = vcombine.low %v3243, %v3250
        %v3252 = vcombine.low %v1719, %v1726
        %v3253 = vcombine.low %v1733, %v1740
        %v3255 = vunpack.c.l.s4 1983009808
        %v3256 = vunpack.c.0.s8 %v3255
        %v3257 = vlaneseq
        %v3258 = vshrl.u32 %v3257, 7
        %v3259 = vsub.s32 %v3256, %v3258
        %v3260 = vrot.slane %v3252, %v3259
        %v3262 = vunpack.c.l.s4 1983009808
        %v3263 = vunpack.c.0.s8 %v3262
        %v3264 = vlaneseq
        %v3265 = vshrl.u32 %v3264, 7
        %v3266 = vsub.s32 %v3263, %v3265
        %v3267 = vrot.slane %v3253, %v3266
        %v3268 = vcombine.low %v3260, %v3267
        %v3269 = vcombine.low %v1747, %v1754
        %v3270 = vcombine.low %v1761, %v1768
        %v3272 = vunpack.c.l.s4 1983009808
        %v3273 = vunpack.c.0.s8 %v3272
        %v3274 = vlaneseq
        %v3275 = vshrl.u32 %v3274, 7
        %v3276 = vsub.s32 %v3273, %v3275
        %v3277 = vrot.slane %v3269, %v3276
        %v3279 = vunpack.c.l.s4 1983009808
        %v3280 = vunpack.c.0.s8 %v3279
        %v3281 = vlaneseq
        %v3282 = vshrl.u32 %v3281, 7
        %v3283 = vsub.s32 %v3280, %v3282
        %v3284 = vrot.slane %v3270, %v3283
        %v3285 = vcombine.low %v3277, %v3284
        %v3286 = vcombine.low %v1775, %v1782
        %v3287 = vcombine.low %v1789, %v1796
        %v3289 = vunpack.c.l.s4 1983009808
        %v3290 = vunpack.c.0.s8 %v3289
        %v3291 = vlaneseq
        %v3292 = vshrl.u32 %v3291, 7
        %v3293 = vsub.s32 %v3290, %v3292
        %v3294 = vrot.slane %v3286, %v3293
        %v3296 = vunpack.c.l.s4 1983009808
        %v3297 = vunpack.c.0.s8 %v3296
        %v3298 = vlaneseq
        %v3299 = vshrl.u32 %v3298, 7
        %v3300 = vsub.s32 %v3297, %v3299
        %v3301 = vrot.slane %v3287, %v3300
        %v3302 = vcombine.low %v3294, %v3301
        %v3303 = vcombine.low %v1803, %v1810
        %v3304 = vcombine.low %v1817, %v1824
        %v3306 = vunpack.c.l.s4 1983009808
        %v3307 = vunpack.c.0.s8 %v3306
        %v3308 = vlaneseq
        %v3309 = vshrl.u32 %v3308, 7
        %v3310 = vsub.s32 %v3307, %v3309
        %v3311 = vrot.slane %v3303, %v3310
        %v3313 = vunpack.c.l.s4 1983009808
        %v3314 = vunpack.c.0.s8 %v3313
        %v3315 = vlaneseq
        %v3316 = vshrl.u32 %v3315, 7
        %v3317 = vsub.s32 %v3314, %v3316
        %v3318 = vrot.slane %v3304, %v3317
        %v3319 = vcombine.low %v3311, %v3318
        %v3320 = vcombine.low %v1831, %v1838
        %v3321 = vcombine.low %v1845, %v1852
        %v3323 = vunpack.c.l.s4 1983009808
        %v3324 = vunpack.c.0.s8 %v3323
        %v3325 = vlaneseq
        %v3326 = vshrl.u32 %v3325, 7
        %v3327 = vsub.s32 %v3324, %v3326
        %v3328 = vrot.slane %v3320, %v3327
        %v3330 = vunpack.c.l.s4 1983009808
        %v3331 = vunpack.c.0.s8 %v3330
        %v3332 = vlaneseq
        %v3333 = vshrl.u32 %v3332, 7
        %v3334 = vsub.s32 %v3331, %v3333
        %v3335 = vrot.slane %v3321, %v3334
        %v3336 = vcombine.low %v3328, %v3335
        %v3337 = vcombine.low %v1859, %v1866
        %v3338 = vcombine.low %v1873, %v1880
        %v3340 = vunpack.c.l.s4 1983009808
        %v3341 = vunpack.c.0.s8 %v3340
        %v3342 = vlaneseq
        %v3343 = vshrl.u32 %v3342, 7
        %v3344 = vsub.s32 %v3341, %v3343
        %v3345 = vrot.slane %v3337, %v3344
        %v3347 = vunpack.c.l.s4 1983009808
        %v3348 = vunpack.c.0.s8 %v3347
        %v3349 = vlaneseq
        %v3350 = vshrl.u32 %v3349, 7
        %v3351 = vsub.s32 %v3348, %v3350
        %v3352 = vrot.slane %v3338, %v3351
        %v3353 = vcombine.low %v3345, %v3352
        %v3354 = vcombine.low %v1887, %v1894
        %v3355 = vcombine.low %v1901, %v1908
        %v3357 = vunpack.c.l.s4 1983009808
        %v3358 = vunpack.c.0.s8 %v3357
        %v3359 = vlaneseq
        %v3360 = vshrl.u32 %v3359, 7
        %v3361 = vsub.s32 %v3358, %v3360
        %v3362 = vrot.slane %v3354, %v3361
        %v3364 = vunpack.c.l.s4 1983009808
        %v3365 = vunpack.c.0.s8 %v3364
        %v3366 = vlaneseq
        %v3367 = vshrl.u32 %v3366, 7
        %v3368 = vsub.s32 %v3365, %v3367
        %v3369 = vrot.slane %v3355, %v3368
        %v3370 = vcombine.low %v3362, %v3369
        %v3371 = vcombine.low %v1915, %v1922
        %v3372 = vcombine.low %v1929, %v1936
        %v3374 = vunpack.c.l.s4 1983009808
        %v3375 = vunpack.c.0.s8 %v3374
        %v3376 = vlaneseq
        %v3377 = vshrl.u32 %v3376, 7
        %v3378 = vsub.s32 %v3375, %v3377
        %v3379 = vrot.slane %v3371, %v3378
        %v3381 = vunpack.c.l.s4 1983009808
        %v3382 = vunpack.c.0.s8 %v3381
        %v3383 = vlaneseq
        %v3384 = vshrl.u32 %v3383, 7
        %v3385 = vsub.s32 %v3382, %v3384
        %v3386 = vrot.slane %v3372, %v3385
        %v3387 = vcombine.low %v3379, %v3386
        %v3388 = vcombine.low %v1943, %v1950
        %v3389 = vcombine.low %v1957, %v1964
        %v3391 = vunpack.c.l.s4 1983009808
        %v3392 = vunpack.c.0.s8 %v3391
        %v3393 = vlaneseq
        %v3394 = vshrl.u32 %v3393, 7
        %v3395 = vsub.s32 %v3392, %v3394
        %v3396 = vrot.slane %v3388, %v3395
        %v3398 = vunpack.c.l.s4 1983009808
        %v3399 = vunpack.c.0.s8 %v3398
        %v3400 = vlaneseq
        %v3401 = vshrl.u32 %v3400, 7
        %v3402 = vsub.s32 %v3399, %v3401
        %v3403 = vrot.slane %v3389, %v3402
        %v3404 = vcombine.low %v3396, %v3403
        %v3405 = vcombine.low %v1971, %v1978
        %v3406 = vcombine.low %v1985, %v1992
        %v3408 = vunpack.c.l.s4 1983009808
        %v3409 = vunpack.c.0.s8 %v3408
        %v3410 = vlaneseq
        %v3411 = vshrl.u32 %v3410, 7
        %v3412 = vsub.s32 %v3409, %v3411
        %v3413 = vrot.slane %v3405, %v3412
        %v3415 = vunpack.c.l.s4 1983009808
        %v3416 = vunpack.c.0.s8 %v3415
        %v3417 = vlaneseq
        %v3418 = vshrl.u32 %v3417, 7
        %v3419 = vsub.s32 %v3416, %v3418
        %v3420 = vrot.slane %v3406, %v3419
        %v3421 = vcombine.low %v3413, %v3420
        %v3422 = vcombine.low %v1999, %v2006
        %v3423 = vcombine.low %v2013, %v2020
        %v3425 = vunpack.c.l.s4 1983009808
        %v3426 = vunpack.c.0.s8 %v3425
        %v3427 = vlaneseq
        %v3428 = vshrl.u32 %v3427, 7
        %v3429 = vsub.s32 %v3426, %v3428
        %v3430 = vrot.slane %v3422, %v3429
        %v3432 = vunpack.c.l.s4 1983009808
        %v3433 = vunpack.c.0.s8 %v3432
        %v3434 = vlaneseq
        %v3435 = vshrl.u32 %v3434, 7
        %v3436 = vsub.s32 %v3433, %v3435
        %v3437 = vrot.slane %v3423, %v3436
        %v3438 = vcombine.low %v3430, %v3437
        %v3439 = vcombine.low %v2027, %v2034
        %v3440 = vcombine.low %v2041, %v2048
        %v3442 = vunpack.c.l.s4 1983009808
        %v3443 = vunpack.c.0.s8 %v3442
        %v3444 = vlaneseq
        %v3445 = vshrl.u32 %v3444, 7
        %v3446 = vsub.s32 %v3443, %v3445
        %v3447 = vrot.slane %v3439, %v3446
        %v3449 = vunpack.c.l.s4 1983009808
        %v3450 = vunpack.c.0.s8 %v3449
        %v3451 = vlaneseq
        %v3452 = vshrl.u32 %v3451, 7
        %v3453 = vsub.s32 %v3450, %v3452
        %v3454 = vrot.slane %v3440, %v3453
        %v3455 = vcombine.low %v3447, %v3454
        %v3456 = vcombine.low %v2055, %v2062
        %v3457 = vcombine.low %v2069, %v2076
        %v3459 = vunpack.c.l.s4 1983009808
        %v3460 = vunpack.c.0.s8 %v3459
        %v3461 = vlaneseq
        %v3462 = vshrl.u32 %v3461, 7
        %v3463 = vsub.s32 %v3460, %v3462
        %v3464 = vrot.slane %v3456, %v3463
        %v3466 = vunpack.c.l.s4 1983009808
        %v3467 = vunpack.c.0.s8 %v3466
        %v3468 = vlaneseq
        %v3469 = vshrl.u32 %v3468, 7
        %v3470 = vsub.s32 %v3467, %v3469
        %v3471 = vrot.slane %v3457, %v3470
        %v3472 = vcombine.low %v3464, %v3471
        %v3473 = vcombine.low %v2083, %v2090
        %v3474 = vcombine.low %v2097, %v2104
        %v3476 = vunpack.c.l.s4 1983009808
        %v3477 = vunpack.c.0.s8 %v3476
        %v3478 = vlaneseq
        %v3479 = vshrl.u32 %v3478, 7
        %v3480 = vsub.s32 %v3477, %v3479
        %v3481 = vrot.slane %v3473, %v3480
        %v3483 = vunpack.c.l.s4 1983009808
        %v3484 = vunpack.c.0.s8 %v3483
        %v3485 = vlaneseq
        %v3486 = vshrl.u32 %v3485, 7
        %v3487 = vsub.s32 %v3484, %v3486
        %v3488 = vrot.slane %v3474, %v3487
        %v3489 = vcombine.low %v3481, %v3488
        %v3490 = vcombine.low %v2111, %v2118
        %v3491 = vcombine.low %v2125, %v2132
        %v3493 = vunpack.c.l.s4 1983009808
        %v3494 = vunpack.c.0.s8 %v3493
        %v3495 = vlaneseq
        %v3496 = vshrl.u32 %v3495, 7
        %v3497 = vsub.s32 %v3494, %v3496
        %v3498 = vrot.slane %v3490, %v3497
        %v3500 = vunpack.c.l.s4 1983009808
        %v3501 = vunpack.c.0.s8 %v3500
        %v3502 = vlaneseq
        %v3503 = vshrl.u32 %v3502, 7
        %v3504 = vsub.s32 %v3501, %v3503
        %v3505 = vrot.slane %v3491, %v3504
        %v3506 = vcombine.low %v3498, %v3505
        %v3507 = vcombine.low %v2139, %v2146
        %v3508 = vcombine.low %v2153, %v2160
        %v3510 = vunpack.c.l.s4 1983009808
        %v3511 = vunpack.c.0.s8 %v3510
        %v3512 = vlaneseq
        %v3513 = vshrl.u32 %v3512, 7
        %v3514 = vsub.s32 %v3511, %v3513
        %v3515 = vrot.slane %v3507, %v3514
        %v3517 = vunpack.c.l.s4 1983009808
        %v3518 = vunpack.c.0.s8 %v3517
        %v3519 = vlaneseq
        %v3520 = vshrl.u32 %v3519, 7
        %v3521 = vsub.s32 %v3518, %v3520
        %v3522 = vrot.slane %v3508, %v3521
        %v3523 = vcombine.low %v3515, %v3522
        %v3524 = vcombine.low %v2167, %v2174
        %v3525 = vcombine.low %v2181, %v2188
        %v3527 = vunpack.c.l.s4 1983009808
        %v3528 = vunpack.c.0.s8 %v3527
        %v3529 = vlaneseq
        %v3530 = vshrl.u32 %v3529, 7
        %v3531 = vsub.s32 %v3528, %v3530
        %v3532 = vrot.slane %v3524, %v3531
        %v3534 = vunpack.c.l.s4 1983009808
        %v3535 = vunpack.c.0.s8 %v3534
        %v3536 = vlaneseq
        %v3537 = vshrl.u32 %v3536, 7
        %v3538 = vsub.s32 %v3535, %v3537
        %v3539 = vrot.slane %v3525, %v3538
        %v3540 = vcombine.low %v3532, %v3539
        %v3541 = vcombine.low %v2195, %v2202
        %v3542 = vcombine.low %v2209, %v2216
        %v3544 = vunpack.c.l.s4 1983009808
        %v3545 = vunpack.c.0.s8 %v3544
        %v3546 = vlaneseq
        %v3547 = vshrl.u32 %v3546, 7
        %v3548 = vsub.s32 %v3545, %v3547
        %v3549 = vrot.slane %v3541, %v3548
        %v3551 = vunpack.c.l.s4 1983009808
        %v3552 = vunpack.c.0.s8 %v3551
        %v3553 = vlaneseq
        %v3554 = vshrl.u32 %v3553, 7
        %v3555 = vsub.s32 %v3552, %v3554
        %v3556 = vrot.slane %v3542, %v3555
        %v3557 = vcombine.low %v3549, %v3556
        %v3558 = vcombine.low %v2223, %v2230
        %v3559 = vcombine.low %v2237, %v2244
        %v3561 = vunpack.c.l.s4 1983009808
        %v3562 = vunpack.c.0.s8 %v3561
        %v3563 = vlaneseq
        %v3564 = vshrl.u32 %v3563, 7
        %v3565 = vsub.s32 %v3562, %v3564
        %v3566 = vrot.slane %v3558, %v3565
        %v3568 = vunpack.c.l.s4 1983009808
        %v3569 = vunpack.c.0.s8 %v3568
        %v3570 = vlaneseq
        %v3571 = vshrl.u32 %v3570, 7
        %v3572 = vsub.s32 %v3569, %v3571
        %v3573 = vrot.slane %v3559, %v3572
        %v3574 = vcombine.low %v3566, %v3573
        %v3575 = vcombine.low %v2251, %v2258
        %v3576 = vcombine.low %v2265, %v2272
        %v3578 = vunpack.c.l.s4 1983009808
        %v3579 = vunpack.c.0.s8 %v3578
        %v3580 = vlaneseq
        %v3581 = vshrl.u32 %v3580, 7
        %v3582 = vsub.s32 %v3579, %v3581
        %v3583 = vrot.slane %v3575, %v3582
        %v3585 = vunpack.c.l.s4 1983009808
        %v3586 = vunpack.c.0.s8 %v3585
        %v3587 = vlaneseq
        %v3588 = vshrl.u32 %v3587, 7
        %v3589 = vsub.s32 %v3586, %v3588
        %v3590 = vrot.slane %v3576, %v3589
        %v3591 = vcombine.low %v3583, %v3590
        %v3592 = vcombine.low %v2279, %v2286
        %v3593 = vcombine.low %v2293, %v2300
        %v3595 = vunpack.c.l.s4 1983009808
        %v3596 = vunpack.c.0.s8 %v3595
        %v3597 = vlaneseq
        %v3598 = vshrl.u32 %v3597, 7
        %v3599 = vsub.s32 %v3596, %v3598
        %v3600 = vrot.slane %v3592, %v3599
        %v3602 = vunpack.c.l.s4 1983009808
        %v3603 = vunpack.c.0.s8 %v3602
        %v3604 = vlaneseq
        %v3605 = vshrl.u32 %v3604, 7
        %v3606 = vsub.s32 %v3603, %v3605
        %v3607 = vrot.slane %v3593, %v3606
        %v3608 = vcombine.low %v3600, %v3607
        %v3609 = vcombine.low %v2307, %v2314
        %v3610 = vcombine.low %v2321, %v2328
        %v3612 = vunpack.c.l.s4 1983009808
        %v3613 = vunpack.c.0.s8 %v3612
        %v3614 = vlaneseq
        %v3615 = vshrl.u32 %v3614, 7
        %v3616 = vsub.s32 %v3613, %v3615
        %v3617 = vrot.slane %v3609, %v3616
        %v3619 = vunpack.c.l.s4 1983009808
        %v3620 = vunpack.c.0.s8 %v3619
        %v3621 = vlaneseq
        %v3622 = vshrl.u32 %v3621, 7
        %v3623 = vsub.s32 %v3620, %v3622
        %v3624 = vrot.slane %v3610, %v3623
        %v3625 = vcombine.low %v3617, %v3624
        %v3626 = vcombine.low %v2335, %v2342
        %v3627 = vcombine.low %v2349, %v2356
        %v3629 = vunpack.c.l.s4 1983009808
        %v3630 = vunpack.c.0.s8 %v3629
        %v3631 = vlaneseq
        %v3632 = vshrl.u32 %v3631, 7
        %v3633 = vsub.s32 %v3630, %v3632
        %v3634 = vrot.slane %v3626, %v3633
        %v3636 = vunpack.c.l.s4 1983009808
        %v3637 = vunpack.c.0.s8 %v3636
        %v3638 = vlaneseq
        %v3639 = vshrl.u32 %v3638, 7
        %v3640 = vsub.s32 %v3637, %v3639
        %v3641 = vrot.slane %v3627, %v3640
        %v3642 = vcombine.low %v3634, %v3641
        %v3643 = vcombine.low %v2363, %v2370
        %v3644 = vcombine.low %v2377, %v2384
        %v3646 = vunpack.c.l.s4 1983009808
        %v3647 = vunpack.c.0.s8 %v3646
        %v3648 = vlaneseq
        %v3649 = vshrl.u32 %v3648, 7
        %v3650 = vsub.s32 %v3647, %v3649
        %v3651 = vrot.slane %v3643, %v3650
        %v3653 = vunpack.c.l.s4 1983009808
        %v3654 = vunpack.c.0.s8 %v3653
        %v3655 = vlaneseq
        %v3656 = vshrl.u32 %v3655, 7
        %v3657 = vsub.s32 %v3654, %v3656
        %v3658 = vrot.slane %v3644, %v3657
        %v3659 = vcombine.low %v3651, %v3658
        %v3660 = vcombine.low %v2391, %v2398
        %v3661 = vcombine.low %v2405, %v2412
        %v3663 = vunpack.c.l.s4 1983009808
        %v3664 = vunpack.c.0.s8 %v3663
        %v3665 = vlaneseq
        %v3666 = vshrl.u32 %v3665, 7
        %v3667 = vsub.s32 %v3664, %v3666
        %v3668 = vrot.slane %v3660, %v3667
        %v3670 = vunpack.c.l.s4 1983009808
        %v3671 = vunpack.c.0.s8 %v3670
        %v3672 = vlaneseq
        %v3673 = vshrl.u32 %v3672, 7
        %v3674 = vsub.s32 %v3671, %v3673
        %v3675 = vrot.slane %v3661, %v3674
        %v3676 = vcombine.low %v3668, %v3675
        %v3677 = vcombine.low %v2419, %v2426
        %v3678 = vcombine.low %v2433, %v2440
        %v3680 = vunpack.c.l.s4 1983009808
        %v3681 = vunpack.c.0.s8 %v3680
        %v3682 = vlaneseq
        %v3683 = vshrl.u32 %v3682, 7
        %v3684 = vsub.s32 %v3681, %v3683
        %v3685 = vrot.slane %v3677, %v3684
        %v3687 = vunpack.c.l.s4 1983009808
        %v3688 = vunpack.c.0.s8 %v3687
        %v3689 = vlaneseq
        %v3690 = vshrl.u32 %v3689, 7
        %v3691 = vsub.s32 %v3688, %v3690
        %v3692 = vrot.slane %v3678, %v3691
        %v3693 = vcombine.low %v3685, %v3692
        %v3694 = vcombine.low %v2447, %v2454
        %v3695 = vcombine.low %v2461, %v2468
        %v3697 = vunpack.c.l.s4 1983009808
        %v3698 = vunpack.c.0.s8 %v3697
        %v3699 = vlaneseq
        %v3700 = vshrl.u32 %v3699, 7
        %v3701 = vsub.s32 %v3698, %v3700
        %v3702 = vrot.slane %v3694, %v3701
        %v3704 = vunpack.c.l.s4 1983009808
        %v3705 = vunpack.c.0.s8 %v3704
        %v3706 = vlaneseq
        %v3707 = vshrl.u32 %v3706, 7
        %v3708 = vsub.s32 %v3705, %v3707
        %v3709 = vrot.slane %v3695, %v3708
        %v3710 = vcombine.low %v3702, %v3709
        %v3711 = vcombine.low %v2475, %v2482
        %v3712 = vcombine.low %v2489, %v2496
        %v3714 = vunpack.c.l.s4 1983009808
        %v3715 = vunpack.c.0.s8 %v3714
        %v3716 = vlaneseq
        %v3717 = vshrl.u32 %v3716, 7
        %v3718 = vsub.s32 %v3715, %v3717
        %v3719 = vrot.slane %v3711, %v3718
        %v3721 = vunpack.c.l.s4 1983009808
        %v3722 = vunpack.c.0.s8 %v3721
        %v3723 = vlaneseq
        %v3724 = vshrl.u32 %v3723, 7
        %v3725 = vsub.s32 %v3722, %v3724
        %v3726 = vrot.slane %v3712, %v3725
        %v3727 = vcombine.low %v3719, %v3726
        %v3728 = vcombine.low %v2503, %v2510
        %v3729 = vcombine.low %v2517, %v2524
        %v3731 = vunpack.c.l.s4 1983009808
        %v3732 = vunpack.c.0.s8 %v3731
        %v3733 = vlaneseq
        %v3734 = vshrl.u32 %v3733, 7
        %v3735 = vsub.s32 %v3732, %v3734
        %v3736 = vrot.slane %v3728, %v3735
        %v3738 = vunpack.c.l.s4 1983009808
        %v3739 = vunpack.c.0.s8 %v3738
        %v3740 = vlaneseq
        %v3741 = vshrl.u32 %v3740, 7
        %v3742 = vsub.s32 %v3739, %v3741
        %v3743 = vrot.slane %v3729, %v3742
        %v3744 = vcombine.low %v3736, %v3743
        %v3745 = vcombine.low %v2531, %v2538
        %v3746 = vcombine.low %v2545, %v2552
        %v3748 = vunpack.c.l.s4 1983009808
        %v3749 = vunpack.c.0.s8 %v3748
        %v3750 = vlaneseq
        %v3751 = vshrl.u32 %v3750, 7
        %v3752 = vsub.s32 %v3749, %v3751
        %v3753 = vrot.slane %v3745, %v3752
        %v3755 = vunpack.c.l.s4 1983009808
        %v3756 = vunpack.c.0.s8 %v3755
        %v3757 = vlaneseq
        %v3758 = vshrl.u32 %v3757, 7
        %v3759 = vsub.s32 %v3756, %v3758
        %v3760 = vrot.slane %v3746, %v3759
        %v3761 = vcombine.low %v3753, %v3760
        %v3762 = vcombine.low %v2559, %v2566
        %v3763 = vcombine.low %v2573, %v2580
        %v3765 = vunpack.c.l.s4 1983009808
        %v3766 = vunpack.c.0.s8 %v3765
        %v3767 = vlaneseq
        %v3768 = vshrl.u32 %v3767, 7
        %v3769 = vsub.s32 %v3766, %v3768
        %v3770 = vrot.slane %v3762, %v3769
        %v3772 = vunpack.c.l.s4 1983009808
        %v3773 = vunpack.c.0.s8 %v3772
        %v3774 = vlaneseq
        %v3775 = vshrl.u32 %v3774, 7
        %v3776 = vsub.s32 %v3773, %v3775
        %v3777 = vrot.slane %v3763, %v3776
        %v3778 = vcombine.low %v3770, %v3777
        %v3779 = vcombine.low %v2587, %v2594
        %v3780 = vcombine.low %v2601, %v2608
        %v3782 = vunpack.c.l.s4 1983009808
        %v3783 = vunpack.c.0.s8 %v3782
        %v3784 = vlaneseq
        %v3785 = vshrl.u32 %v3784, 7
        %v3786 = vsub.s32 %v3783, %v3785
        %v3787 = vrot.slane %v3779, %v3786
        %v3789 = vunpack.c.l.s4 1983009808
        %v3790 = vunpack.c.0.s8 %v3789
        %v3791 = vlaneseq
        %v3792 = vshrl.u32 %v3791, 7
        %v3793 = vsub.s32 %v3790, %v3792
        %v3794 = vrot.slane %v3780, %v3793
        %v3795 = vcombine.low %v3787, %v3794
        %v3796 = vcombine.low %v2615, %v2622
        %v3797 = vcombine.low %v2629, %v2636
        %v3799 = vunpack.c.l.s4 1983009808
        %v3800 = vunpack.c.0.s8 %v3799
        %v3801 = vlaneseq
        %v3802 = vshrl.u32 %v3801, 7
        %v3803 = vsub.s32 %v3800, %v3802
        %v3804 = vrot.slane %v3796, %v3803
        %v3806 = vunpack.c.l.s4 1983009808
        %v3807 = vunpack.c.0.s8 %v3806
        %v3808 = vlaneseq
        %v3809 = vshrl.u32 %v3808, 7
        %v3810 = vsub.s32 %v3807, %v3809
        %v3811 = vrot.slane %v3797, %v3810
        %v3812 = vcombine.low %v3804, %v3811
        %v3813 = vcombine.low %v2643, %v2650
        %v3814 = vcombine.low %v2657, %v2664
        %v3816 = vunpack.c.l.s4 1983009808
        %v3817 = vunpack.c.0.s8 %v3816
        %v3818 = vlaneseq
        %v3819 = vshrl.u32 %v3818, 7
        %v3820 = vsub.s32 %v3817, %v3819
        %v3821 = vrot.slane %v3813, %v3820
        %v3823 = vunpack.c.l.s4 1983009808
        %v3824 = vunpack.c.0.s8 %v3823
        %v3825 = vlaneseq
        %v3826 = vshrl.u32 %v3825, 7
        %v3827 = vsub.s32 %v3824, %v3826
        %v3828 = vrot.slane %v3814, %v3827
        %v3829 = vcombine.low %v3821, %v3828
        %v3830 = vcombine.low %v2671, %v2678
        %v3831 = vcombine.low %v2685, %v2692
        %v3833 = vunpack.c.l.s4 1983009808
        %v3834 = vunpack.c.0.s8 %v3833
        %v3835 = vlaneseq
        %v3836 = vshrl.u32 %v3835, 7
        %v3837 = vsub.s32 %v3834, %v3836
        %v3838 = vrot.slane %v3830, %v3837
        %v3840 = vunpack.c.l.s4 1983009808
        %v3841 = vunpack.c.0.s8 %v3840
        %v3842 = vlaneseq
        %v3843 = vshrl.u32 %v3842, 7
        %v3844 = vsub.s32 %v3841, %v3843
        %v3845 = vrot.slane %v3831, %v3844
        %v3846 = vcombine.low %v3838, %v3845
        %v3847 = vcombine.low %v2699, %v2706
        %v3848 = vcombine.low %v2713, %v2720
        %v3850 = vunpack.c.l.s4 1983009808
        %v3851 = vunpack.c.0.s8 %v3850
        %v3852 = vlaneseq
        %v3853 = vshrl.u32 %v3852, 7
        %v3854 = vsub.s32 %v3851, %v3853
        %v3855 = vrot.slane %v3847, %v3854
        %v3857 = vunpack.c.l.s4 1983009808
        %v3858 = vunpack.c.0.s8 %v3857
        %v3859 = vlaneseq
        %v3860 = vshrl.u32 %v3859, 7
        %v3861 = vsub.s32 %v3858, %v3860
        %v3862 = vrot.slane %v3848, %v3861
        %v3863 = vcombine.low %v3855, %v3862
        %v3864 = vcombine.low %v2727, %v2734
        %v3865 = vcombine.low %v2741, %v2748
        %v3867 = vunpack.c.l.s4 1983009808
        %v3868 = vunpack.c.0.s8 %v3867
        %v3869 = vlaneseq
        %v3870 = vshrl.u32 %v3869, 7
        %v3871 = vsub.s32 %v3868, %v3870
        %v3872 = vrot.slane %v3864, %v3871
        %v3874 = vunpack.c.l.s4 1983009808
        %v3875 = vunpack.c.0.s8 %v3874
        %v3876 = vlaneseq
        %v3877 = vshrl.u32 %v3876, 7
        %v3878 = vsub.s32 %v3875, %v3877
        %v3879 = vrot.slane %v3865, %v3878
        %v3880 = vcombine.low %v3872, %v3879
        %v3881 = vcombine.low %v2755, %v2762
        %v3882 = vcombine.low %v2769, %v2776
        %v3884 = vunpack.c.l.s4 1983009808
        %v3885 = vunpack.c.0.s8 %v3884
        %v3886 = vlaneseq
        %v3887 = vshrl.u32 %v3886, 7
        %v3888 = vsub.s32 %v3885, %v3887
        %v3889 = vrot.slane %v3881, %v3888
        %v3891 = vunpack.c.l.s4 1983009808
        %v3892 = vunpack.c.0.s8 %v3891
        %v3893 = vlaneseq
        %v3894 = vshrl.u32 %v3893, 7
        %v3895 = vsub.s32 %v3892, %v3894
        %v3896 = vrot.slane %v3882, %v3895
        %v3897 = vcombine.low %v3889, %v3896
        %v3898 = vcombine.low %v2783, %v2790
        %v3899 = vcombine.low %v2797, %v2804
        %v3901 = vunpack.c.l.s4 1983009808
        %v3902 = vunpack.c.0.s8 %v3901
        %v3903 = vlaneseq
        %v3904 = vshrl.u32 %v3903, 7
        %v3905 = vsub.s32 %v3902, %v3904
        %v3906 = vrot.slane %v3898, %v3905
        %v3908 = vunpack.c.l.s4 1983009808
        %v3909 = vunpack.c.0.s8 %v3908
        %v3910 = vlaneseq
        %v3911 = vshrl.u32 %v3910, 7
        %v3912 = vsub.s32 %v3909, %v3911
        %v3913 = vrot.slane %v3899, %v3912
        %v3914 = vcombine.low %v3906, %v3913
        %v3915 = vcombine.low %v2811, %v2818
        %v3916 = vcombine.low %v2825, %v2832
        %v3918 = vunpack.c.l.s4 1983009808
        %v3919 = vunpack.c.0.s8 %v3918
        %v3920 = vlaneseq
        %v3921 = vshrl.u32 %v3920, 7
        %v3922 = vsub.s32 %v3919, %v3921
        %v3923 = vrot.slane %v3915, %v3922
        %v3925 = vunpack.c.l.s4 1983009808
        %v3926 = vunpack.c.0.s8 %v3925
        %v3927 = vlaneseq
        %v3928 = vshrl.u32 %v3927, 7
        %v3929 = vsub.s32 %v3926, %v3928
        %v3930 = vrot.slane %v3916, %v3929
        %v3931 = vcombine.low %v3923, %v3930
        %v3932 = vcombine.low %v2839, %v2846
        %v3933 = vcombine.low %v2853, %v2860
        %v3935 = vunpack.c.l.s4 1983009808
        %v3936 = vunpack.c.0.s8 %v3935
        %v3937 = vlaneseq
        %v3938 = vshrl.u32 %v3937, 7
        %v3939 = vsub.s32 %v3936, %v3938
        %v3940 = vrot.slane %v3932, %v3939
        %v3942 = vunpack.c.l.s4 1983009808
        %v3943 = vunpack.c.0.s8 %v3942
        %v3944 = vlaneseq
        %v3945 = vshrl.u32 %v3944, 7
        %v3946 = vsub.s32 %v3943, %v3945
        %v3947 = vrot.slane %v3933, %v3946
        %v3948 = vcombine.low %v3940, %v3947
        %3949 = vset.pattern.permute.xlu0 0
        %3950 = vperm.xlu0 %3949, %v2877
        %v3951 = vpop.permute.xlu0 %3950
        %3952 = vset.pattern.permute.xlu0 0
        %3953 = vperm.xlu0 %3952, %v2894
        %v3954 = vpop.permute.xlu0 %3953
        %3955 = vset.pattern.permute.xlu0 0
        %3956 = vperm.xlu0 %3955, %v2911
        %v3957 = vpop.permute.xlu0 %3956
        %3958 = vset.pattern.permute.xlu0 0
        %3959 = vperm.xlu0 %3958, %v2928
        %v3960 = vpop.permute.xlu0 %3959
        %3961 = vset.pattern.permute.xlu0 0
        %3962 = vperm.xlu0 %3961, %v2945
        %v3963 = vpop.permute.xlu0 %3962
        %3964 = vset.pattern.permute.xlu0 0
        %3965 = vperm.xlu0 %3964, %v2962
        %v3966 = vpop.permute.xlu0 %3965
        %3967 = vset.pattern.permute.xlu0 0
        %3968 = vperm.xlu0 %3967, %v2979
        %v3969 = vpop.permute.xlu0 %3968
        %3970 = vset.pattern.permute.xlu0 0
        %3971 = vperm.xlu0 %3970, %v2996
        %v3972 = vpop.permute.xlu0 %3971
        %3973 = vset.pattern.permute.xlu0 0
        %3974 = vperm.xlu0 %3973, %v3013
        %v3975 = vpop.permute.xlu0 %3974
        %3976 = vset.pattern.permute.xlu0 0
        %3977 = vperm.xlu0 %3976, %v3030
        %v3978 = vpop.permute.xlu0 %3977
        %3979 = vset.pattern.permute.xlu0 0
        %3980 = vperm.xlu0 %3979, %v3047
        %v3981 = vpop.permute.xlu0 %3980
        %3982 = vset.pattern.permute.xlu0 0
        %3983 = vperm.xlu0 %3982, %v3064
        %v3984 = vpop.permute.xlu0 %3983
        %3985 = vset.pattern.permute.xlu0 0
        %3986 = vperm.xlu0 %3985, %v3081
        %v3987 = vpop.permute.xlu0 %3986
        %3988 = vset.pattern.permute.xlu0 0
        %3989 = vperm.xlu0 %3988, %v3098
        %v3990 = vpop.permute.xlu0 %3989
        %3991 = vset.pattern.permute.xlu0 0
        %3992 = vperm.xlu0 %3991, %v3115
        %v3993 = vpop.permute.xlu0 %3992
        %3994 = vset.pattern.permute.xlu0 0
        %3995 = vperm.xlu0 %3994, %v3132
        %v3996 = vpop.permute.xlu0 %3995
        %3997 = vset.pattern.permute.xlu0 0
        %3998 = vperm.xlu0 %3997, %v3149
        %v3999 = vpop.permute.xlu0 %3998
        %4000 = vset.pattern.permute.xlu0 0
        %4001 = vperm.xlu0 %4000, %v3166
        %v4002 = vpop.permute.xlu0 %4001
        %4003 = vset.pattern.permute.xlu0 0
        %4004 = vperm.xlu0 %4003, %v3183
        %v4005 = vpop.permute.xlu0 %4004
        %4006 = vset.pattern.permute.xlu0 0
        %4007 = vperm.xlu0 %4006, %v3200
        %v4008 = vpop.permute.xlu0 %4007
        %4009 = vset.pattern.permute.xlu0 0
        %4010 = vperm.xlu0 %4009, %v3217
        %v4011 = vpop.permute.xlu0 %4010
        %4012 = vset.pattern.permute.xlu0 0
        %4013 = vperm.xlu0 %4012, %v3234
        %v4014 = vpop.permute.xlu0 %4013
        %4015 = vset.pattern.permute.xlu0 0
        %4016 = vperm.xlu0 %4015, %v3251
        %v4017 = vpop.permute.xlu0 %4016
        %4018 = vset.pattern.permute.xlu0 0
        %4019 = vperm.xlu0 %4018, %v3268
        %v4020 = vpop.permute.xlu0 %4019
        %4021 = vset.pattern.permute.xlu0 0
        %4022 = vperm.xlu0 %4021, %v3285
        %v4023 = vpop.permute.xlu0 %4022
        %4024 = vset.pattern.permute.xlu0 0
        %4025 = vperm.xlu0 %4024, %v3302
        %v4026 = vpop.permute.xlu0 %4025
        %4027 = vset.pattern.permute.xlu0 0
        %4028 = vperm.xlu0 %4027, %v3319
        %v4029 = vpop.permute.xlu0 %4028
        %4030 = vset.pattern.permute.xlu0 0
        %4031 = vperm.xlu0 %4030, %v3336
        %v4032 = vpop.permute.xlu0 %4031
        %4033 = vset.pattern.permute.xlu0 0
        %4034 = vperm.xlu0 %4033, %v3353
        %v4035 = vpop.permute.xlu0 %4034
        %4036 = vset.pattern.permute.xlu0 0
        %4037 = vperm.xlu0 %4036, %v3370
        %v4038 = vpop.permute.xlu0 %4037
        %4039 = vset.pattern.permute.xlu0 0
        %4040 = vperm.xlu0 %4039, %v3387
        %v4041 = vpop.permute.xlu0 %4040
        %4042 = vset.pattern.permute.xlu0 0
        %4043 = vperm.xlu0 %4042, %v3404
        %v4044 = vpop.permute.xlu0 %4043
        %4045 = vset.pattern.permute.xlu0 0
        %4046 = vperm.xlu0 %4045, %v3421
        %v4047 = vpop.permute.xlu0 %4046
        %4048 = vset.pattern.permute.xlu0 0
        %4049 = vperm.xlu0 %4048, %v3438
        %v4050 = vpop.permute.xlu0 %4049
        %4051 = vset.pattern.permute.xlu0 0
        %4052 = vperm.xlu0 %4051, %v3455
        %v4053 = vpop.permute.xlu0 %4052
        %4054 = vset.pattern.permute.xlu0 0
        %4055 = vperm.xlu0 %4054, %v3472
        %v4056 = vpop.permute.xlu0 %4055
        %4057 = vset.pattern.permute.xlu0 0
        %4058 = vperm.xlu0 %4057, %v3489
        %v4059 = vpop.permute.xlu0 %4058
        %4060 = vset.pattern.permute.xlu0 0
        %4061 = vperm.xlu0 %4060, %v3506
        %v4062 = vpop.permute.xlu0 %4061
        %4063 = vset.pattern.permute.xlu0 0
        %4064 = vperm.xlu0 %4063, %v3523
        %v4065 = vpop.permute.xlu0 %4064
        %4066 = vset.pattern.permute.xlu0 0
        %4067 = vperm.xlu0 %4066, %v3540
        %v4068 = vpop.permute.xlu0 %4067
        %4069 = vset.pattern.permute.xlu0 0
        %4070 = vperm.xlu0 %4069, %v3557
        %v4071 = vpop.permute.xlu0 %4070
        %4072 = vset.pattern.permute.xlu0 0
        %4073 = vperm.xlu0 %4072, %v3574
        %v4074 = vpop.permute.xlu0 %4073
        %4075 = vset.pattern.permute.xlu0 0
        %4076 = vperm.xlu0 %4075, %v3591
        %v4077 = vpop.permute.xlu0 %4076
        %4078 = vset.pattern.permute.xlu0 0
        %4079 = vperm.xlu0 %4078, %v3608
        %v4080 = vpop.permute.xlu0 %4079
        %4081 = vset.pattern.permute.xlu0 0
        %4082 = vperm.xlu0 %4081, %v3625
        %v4083 = vpop.permute.xlu0 %4082
        %4084 = vset.pattern.permute.xlu0 0
        %4085 = vperm.xlu0 %4084, %v3642
        %v4086 = vpop.permute.xlu0 %4085
        %4087 = vset.pattern.permute.xlu0 0
        %4088 = vperm.xlu0 %4087, %v3659
        %v4089 = vpop.permute.xlu0 %4088
        %4090 = vset.pattern.permute.xlu0 0
        %4091 = vperm.xlu0 %4090, %v3676
        %v4092 = vpop.permute.xlu0 %4091
        %4093 = vset.pattern.permute.xlu0 0
        %4094 = vperm.xlu0 %4093, %v3693
        %v4095 = vpop.permute.xlu0 %4094
        %4096 = vset.pattern.permute.xlu0 0
        %4097 = vperm.xlu0 %4096, %v3710
        %v4098 = vpop.permute.xlu0 %4097
        %4099 = vset.pattern.permute.xlu0 0
        %4100 = vperm.xlu0 %4099, %v3727
        %v4101 = vpop.permute.xlu0 %4100
        %4102 = vset.pattern.permute.xlu0 0
        %4103 = vperm.xlu0 %4102, %v3744
        %v4104 = vpop.permute.xlu0 %4103
        %4105 = vset.pattern.permute.xlu0 0
        %4106 = vperm.xlu0 %4105, %v3761
        %v4107 = vpop.permute.xlu0 %4106
        %4108 = vset.pattern.permute.xlu0 0
        %4109 = vperm.xlu0 %4108, %v3778
        %v4110 = vpop.permute.xlu0 %4109
        %4111 = vset.pattern.permute.xlu0 0
        %4112 = vperm.xlu0 %4111, %v3795
        %v4113 = vpop.permute.xlu0 %4112
        %4114 = vset.pattern.permute.xlu0 0
        %4115 = vperm.xlu0 %4114, %v3812
        %v4116 = vpop.permute.xlu0 %4115
        %4117 = vset.pattern.permute.xlu0 0
        %4118 = vperm.xlu0 %4117, %v3829
        %v4119 = vpop.permute.xlu0 %4118
        %4120 = vset.pattern.permute.xlu0 0
        %4121 = vperm.xlu0 %4120, %v3846
        %v4122 = vpop.permute.xlu0 %4121
        %4123 = vset.pattern.permute.xlu0 0
        %4124 = vperm.xlu0 %4123, %v3863
        %v4125 = vpop.permute.xlu0 %4124
        %4126 = vset.pattern.permute.xlu0 0
        %4127 = vperm.xlu0 %4126, %v3880
        %v4128 = vpop.permute.xlu0 %4127
        %4129 = vset.pattern.permute.xlu0 0
        %4130 = vperm.xlu0 %4129, %v3897
        %v4131 = vpop.permute.xlu0 %4130
        %4132 = vset.pattern.permute.xlu0 0
        %4133 = vperm.xlu0 %4132, %v3914
        %v4134 = vpop.permute.xlu0 %4133
        %4135 = vset.pattern.permute.xlu0 0
        %4136 = vperm.xlu0 %4135, %v3931
        %v4137 = vpop.permute.xlu0 %4136
        %4138 = vset.pattern.permute.xlu0 0
        %4139 = vperm.xlu0 %4138, %v3948
        %v4140 = vpop.permute.xlu0 %4139
        %v4141 = vlaneseq
        %v4142 = vand.u32 %v4141, 127
        %v4143 = vlaneseq
        %v4144 = vshrl.u32 %v4143, 7
        %v4145 = vsub.s32 %v4142, %v4144
        %v4146 = vrot.slane %v3951, %v4145
        %v4147 = vadd.s32 %v4142, 4294967288
        %v4148 = vlaneseq
        %v4149 = vshrl.u32 %v4148, 7
        %v4150 = vsub.s32 %v4147, %v4149
        %v4151 = vrot.slane %v3954, %v4150
        %vm4152 = vcmask 130112
        %v4153 = vsel %vm4152, %v4151, %v4146
        %v4154 = vadd.s32 %v4142, 4294967280
        %v4155 = vlaneseq
        %v4156 = vshrl.u32 %v4155, 7
        %v4157 = vsub.s32 %v4154, %v4156
        %v4158 = vrot.slane %v3957, %v4157
        %vm4159 = vcmask 195712
        %v4160 = vsel %vm4159, %v4158, %v4153
        %v4161 = vadd.s32 %v4142, 4294967272
        %v4162 = vlaneseq
        %v4163 = vshrl.u32 %v4162, 7
        %v4164 = vsub.s32 %v4161, %v4163
        %v4165 = vrot.slane %v3960, %v4164
        %vm4166 = vcmask 261312
        %v4167 = vsel %vm4166, %v4165, %v4160
        %v4168 = vadd.s32 %v4142, 4294967264
        %v4169 = vlaneseq
        %v4170 = vshrl.u32 %v4169, 7
        %v4171 = vsub.s32 %v4168, %v4170
        %v4172 = vrot.slane %v3963, %v4171
        %vm4173 = vcmask 326912
        %v4174 = vsel %vm4173, %v4172, %v4167
        %v4175 = vadd.s32 %v4142, 4294967256
        %v4176 = vlaneseq
        %v4177 = vshrl.u32 %v4176, 7
        %v4178 = vsub.s32 %v4175, %v4177
        %v4179 = vrot.slane %v3966, %v4178
        %vm4180 = vcmask 392512
        %v4181 = vsel %vm4180, %v4179, %v4174
        %v4182 = vadd.s32 %v4142, 4294967248
        %v4183 = vlaneseq
        %v4184 = vshrl.u32 %v4183, 7
        %v4185 = vsub.s32 %v4182, %v4184
        %v4186 = vrot.slane %v3969, %v4185
        %vm4187 = vcmask 458112
        %v4188 = vsel %vm4187, %v4186, %v4181
        %v4189 = vadd.s32 %v4142, 4294967240
        %v4190 = vlaneseq
        %v4191 = vshrl.u32 %v4190, 7
        %v4192 = vsub.s32 %v4189, %v4191
        %v4193 = vrot.slane %v3972, %v4192
        %vm4194 = vcmask 523712
        %v4195 = vsel %vm4194, %v4193, %v4188
        %v4196 = vadd.s32 %v4142, 4294967232
        %v4197 = vlaneseq
        %v4198 = vshrl.u32 %v4197, 7
        %v4199 = vsub.s32 %v4196, %v4198
        %v4200 = vrot.slane %v3975, %v4199
        %vm4201 = vcmask 589312
        %v4202 = vsel %vm4201, %v4200, %v4195
        %v4203 = vadd.s32 %v4142, 4294967224
        %v4204 = vlaneseq
        %v4205 = vshrl.u32 %v4204, 7
        %v4206 = vsub.s32 %v4203, %v4205
        %v4207 = vrot.slane %v3978, %v4206
        %vm4208 = vcmask 654912
        %v4209 = vsel %vm4208, %v4207, %v4202
        %v4210 = vadd.s32 %v4142, 4294967216
        %v4211 = vlaneseq
        %v4212 = vshrl.u32 %v4211, 7
        %v4213 = vsub.s32 %v4210, %v4212
        %v4214 = vrot.slane %v3981, %v4213
        %vm4215 = vcmask 720512
        %v4216 = vsel %vm4215, %v4214, %v4209
        %v4217 = vadd.s32 %v4142, 4294967208
        %v4218 = vlaneseq
        %v4219 = vshrl.u32 %v4218, 7
        %v4220 = vsub.s32 %v4217, %v4219
        %v4221 = vrot.slane %v3984, %v4220
        %vm4222 = vcmask 786112
        %v4223 = vsel %vm4222, %v4221, %v4216
        %v4224 = vadd.s32 %v4142, 4294967200
        %v4225 = vlaneseq
        %v4226 = vshrl.u32 %v4225, 7
        %v4227 = vsub.s32 %v4224, %v4226
        %v4228 = vrot.slane %v3987, %v4227
        %vm4229 = vcmask 851712
        %v4230 = vsel %vm4229, %v4228, %v4223
        %v4231 = vadd.s32 %v4142, 4294967192
        %v4232 = vlaneseq
        %v4233 = vshrl.u32 %v4232, 7
        %v4234 = vsub.s32 %v4231, %v4233
        %v4235 = vrot.slane %v3990, %v4234
        %vm4236 = vcmask 917312
        %v4237 = vsel %vm4236, %v4235, %v4230
        %v4238 = vadd.s32 %v4142, 4294967184
        %v4239 = vlaneseq
        %v4240 = vshrl.u32 %v4239, 7
        %v4241 = vsub.s32 %v4238, %v4240
        %v4242 = vrot.slane %v3993, %v4241
        %vm4243 = vcmask 982912
        %v4244 = vsel %vm4243, %v4242, %v4237
        %v4245 = vadd.s32 %v4142, 4294967176
        %v4246 = vlaneseq
        %v4247 = vshrl.u32 %v4246, 7
        %v4248 = vsub.s32 %v4245, %v4247
        %v4249 = vrot.slane %v3996, %v4248
        %vm4250 = vcmask 1048512
        %v4251 = vsel %vm4250, %v4249, %v4244
        %v4252 = vlaneseq
        %v4253 = vshrl.u32 %v4252, 7
        %v4254 = vsub.s32 %v4142, %v4253
        %v4255 = vrot.slane %v3999, %v4254
        %v4256 = vlaneseq
        %v4257 = vshrl.u32 %v4256, 7
        %v4258 = vsub.s32 %v4147, %v4257
        %v4259 = vrot.slane %v4002, %v4258
        %v4260 = vsel %vm4152, %v4259, %v4255
        %v4261 = vlaneseq
        %v4262 = vshrl.u32 %v4261, 7
        %v4263 = vsub.s32 %v4154, %v4262
        %v4264 = vrot.slane %v4005, %v4263
        %v4265 = vsel %vm4159, %v4264, %v4260
        %v4266 = vlaneseq
        %v4267 = vshrl.u32 %v4266, 7
        %v4268 = vsub.s32 %v4161, %v4267
        %v4269 = vrot.slane %v4008, %v4268
        %v4270 = vsel %vm4166, %v4269, %v4265
        %v4271 = vlaneseq
        %v4272 = vshrl.u32 %v4271, 7
        %v4273 = vsub.s32 %v4168, %v4272
        %v4274 = vrot.slane %v4011, %v4273
        %v4275 = vsel %vm4173, %v4274, %v4270
        %v4276 = vlaneseq
        %v4277 = vshrl.u32 %v4276, 7
        %v4278 = vsub.s32 %v4175, %v4277
        %v4279 = vrot.slane %v4014, %v4278
        %v4280 = vsel %vm4180, %v4279, %v4275
        %v4281 = vlaneseq
        %v4282 = vshrl.u32 %v4281, 7
        %v4283 = vsub.s32 %v4182, %v4282
        %v4284 = vrot.slane %v4017, %v4283
        %v4285 = vsel %vm4187, %v4284, %v4280
        %v4286 = vlaneseq
        %v4287 = vshrl.u32 %v4286, 7
        %v4288 = vsub.s32 %v4189, %v4287
        %v4289 = vrot.slane %v4020, %v4288
        %v4290 = vsel %vm4194, %v4289, %v4285
        %v4291 = vlaneseq
        %v4292 = vshrl.u32 %v4291, 7
        %v4293 = vsub.s32 %v4196, %v4292
        %v4294 = vrot.slane %v4023, %v4293
        %v4295 = vsel %vm4201, %v4294, %v4290
        %v4296 = vlaneseq
        %v4297 = vshrl.u32 %v4296, 7
        %v4298 = vsub.s32 %v4203, %v4297
        %v4299 = vrot.slane %v4026, %v4298
        %v4300 = vsel %vm4208, %v4299, %v4295
        %v4301 = vlaneseq
        %v4302 = vshrl.u32 %v4301, 7
        %v4303 = vsub.s32 %v4210, %v4302
        %v4304 = vrot.slane %v4029, %v4303
        %v4305 = vsel %vm4215, %v4304, %v4300
        %v4306 = vlaneseq
        %v4307 = vshrl.u32 %v4306, 7
        %v4308 = vsub.s32 %v4217, %v4307
        %v4309 = vrot.slane %v4032, %v4308
        %v4310 = vsel %vm4222, %v4309, %v4305
        %v4311 = vlaneseq
        %v4312 = vshrl.u32 %v4311, 7
        %v4313 = vsub.s32 %v4224, %v4312
        %v4314 = vrot.slane %v4035, %v4313
        %v4315 = vsel %vm4229, %v4314, %v4310
        %v4316 = vlaneseq
        %v4317 = vshrl.u32 %v4316, 7
        %v4318 = vsub.s32 %v4231, %v4317
        %v4319 = vrot.slane %v4038, %v4318
        %v4320 = vsel %vm4236, %v4319, %v4315
        %v4321 = vlaneseq
        %v4322 = vshrl.u32 %v4321, 7
        %v4323 = vsub.s32 %v4238, %v4322
        %v4324 = vrot.slane %v4041, %v4323
        %v4325 = vsel %vm4243, %v4324, %v4320
        %v4326 = vlaneseq
        %v4327 = vshrl.u32 %v4326, 7
        %v4328 = vsub.s32 %v4245, %v4327
        %v4329 = vrot.slane %v4044, %v4328
        %v4330 = vsel %vm4250, %v4329, %v4325
        %v4331 = vlaneseq
        %v4332 = vshrl.u32 %v4331, 7
        %v4333 = vsub.s32 %v4142, %v4332
        %v4334 = vrot.slane %v4047, %v4333
        %v4335 = vlaneseq
        %v4336 = vshrl.u32 %v4335, 7
        %v4337 = vsub.s32 %v4147, %v4336
        %v4338 = vrot.slane %v4050, %v4337
        %v4339 = vsel %vm4152, %v4338, %v4334
        %v4340 = vlaneseq
        %v4341 = vshrl.u32 %v4340, 7
        %v4342 = vsub.s32 %v4154, %v4341
        %v4343 = vrot.slane %v4053, %v4342
        %v4344 = vsel %vm4159, %v4343, %v4339
        %v4345 = vlaneseq
        %v4346 = vshrl.u32 %v4345, 7
        %v4347 = vsub.s32 %v4161, %v4346
        %v4348 = vrot.slane %v4056, %v4347
        %v4349 = vsel %vm4166, %v4348, %v4344
        %v4350 = vlaneseq
        %v4351 = vshrl.u32 %v4350, 7
        %v4352 = vsub.s32 %v4168, %v4351
        %v4353 = vrot.slane %v4059, %v4352
        %v4354 = vsel %vm4173, %v4353, %v4349
        %v4355 = vlaneseq
        %v4356 = vshrl.u32 %v4355, 7
        %v4357 = vsub.s32 %v4175, %v4356
        %v4358 = vrot.slane %v4062, %v4357
        %v4359 = vsel %vm4180, %v4358, %v4354
        %v4360 = vlaneseq
        %v4361 = vshrl.u32 %v4360, 7
        %v4362 = vsub.s32 %v4182, %v4361
        %v4363 = vrot.slane %v4065, %v4362
        %v4364 = vsel %vm4187, %v4363, %v4359
        %v4365 = vlaneseq
        %v4366 = vshrl.u32 %v4365, 7
        %v4367 = vsub.s32 %v4189, %v4366
        %v4368 = vrot.slane %v4068, %v4367
        %v4369 = vsel %vm4194, %v4368, %v4364
        %v4370 = vlaneseq
        %v4371 = vshrl.u32 %v4370, 7
        %v4372 = vsub.s32 %v4196, %v4371
        %v4373 = vrot.slane %v4071, %v4372
        %v4374 = vsel %vm4201, %v4373, %v4369
        %v4375 = vlaneseq
        %v4376 = vshrl.u32 %v4375, 7
        %v4377 = vsub.s32 %v4203, %v4376
        %v4378 = vrot.slane %v4074, %v4377
        %v4379 = vsel %vm4208, %v4378, %v4374
        %v4380 = vlaneseq
        %v4381 = vshrl.u32 %v4380, 7
        %v4382 = vsub.s32 %v4210, %v4381
        %v4383 = vrot.slane %v4077, %v4382
        %v4384 = vsel %vm4215, %v4383, %v4379
        %v4385 = vlaneseq
        %v4386 = vshrl.u32 %v4385, 7
        %v4387 = vsub.s32 %v4217, %v4386
        %v4388 = vrot.slane %v4080, %v4387
        %v4389 = vsel %vm4222, %v4388, %v4384
        %v4390 = vlaneseq
        %v4391 = vshrl.u32 %v4390, 7
        %v4392 = vsub.s32 %v4224, %v4391
        %v4393 = vrot.slane %v4083, %v4392
        %v4394 = vsel %vm4229, %v4393, %v4389
        %v4395 = vlaneseq
        %v4396 = vshrl.u32 %v4395, 7
        %v4397 = vsub.s32 %v4231, %v4396
        %v4398 = vrot.slane %v4086, %v4397
        %v4399 = vsel %vm4236, %v4398, %v4394
        %v4400 = vlaneseq
        %v4401 = vshrl.u32 %v4400, 7
        %v4402 = vsub.s32 %v4238, %v4401
        %v4403 = vrot.slane %v4089, %v4402
        %v4404 = vsel %vm4243, %v4403, %v4399
        %v4405 = vlaneseq
        %v4406 = vshrl.u32 %v4405, 7
        %v4407 = vsub.s32 %v4245, %v4406
        %v4408 = vrot.slane %v4092, %v4407
        %v4409 = vsel %vm4250, %v4408, %v4404
        %v4410 = vlaneseq
        %v4411 = vshrl.u32 %v4410, 7
        %v4412 = vsub.s32 %v4142, %v4411
        %v4413 = vrot.slane %v4095, %v4412
        %v4414 = vlaneseq
        %v4415 = vshrl.u32 %v4414, 7
        %v4416 = vsub.s32 %v4147, %v4415
        %v4417 = vrot.slane %v4098, %v4416
        %v4418 = vsel %vm4152, %v4417, %v4413
        %v4419 = vlaneseq
        %v4420 = vshrl.u32 %v4419, 7
        %v4421 = vsub.s32 %v4154, %v4420
        %v4422 = vrot.slane %v4101, %v4421
        %v4423 = vsel %vm4159, %v4422, %v4418
        %v4424 = vlaneseq
        %v4425 = vshrl.u32 %v4424, 7
        %v4426 = vsub.s32 %v4161, %v4425
        %v4427 = vrot.slane %v4104, %v4426
        %v4428 = vsel %vm4166, %v4427, %v4423
        %v4429 = vlaneseq
        %v4430 = vshrl.u32 %v4429, 7
        %v4431 = vsub.s32 %v4168, %v4430
        %v4432 = vrot.slane %v4107, %v4431
        %v4433 = vsel %vm4173, %v4432, %v4428
        %v4434 = vlaneseq
        %v4435 = vshrl.u32 %v4434, 7
        %v4436 = vsub.s32 %v4175, %v4435
        %v4437 = vrot.slane %v4110, %v4436
        %v4438 = vsel %vm4180, %v4437, %v4433
        %v4439 = vlaneseq
        %v4440 = vshrl.u32 %v4439, 7
        %v4441 = vsub.s32 %v4182, %v4440
        %v4442 = vrot.slane %v4113, %v4441
        %v4443 = vsel %vm4187, %v4442, %v4438
        %v4444 = vlaneseq
        %v4445 = vshrl.u32 %v4444, 7
        %v4446 = vsub.s32 %v4189, %v4445
        %v4447 = vrot.slane %v4116, %v4446
        %v4448 = vsel %vm4194, %v4447, %v4443
        %v4449 = vlaneseq
        %v4450 = vshrl.u32 %v4449, 7
        %v4451 = vsub.s32 %v4196, %v4450
        %v4452 = vrot.slane %v4119, %v4451
        %v4453 = vsel %vm4201, %v4452, %v4448
        %v4454 = vlaneseq
        %v4455 = vshrl.u32 %v4454, 7
        %v4456 = vsub.s32 %v4203, %v4455
        %v4457 = vrot.slane %v4122, %v4456
        %v4458 = vsel %vm4208, %v4457, %v4453
        %v4459 = vlaneseq
        %v4460 = vshrl.u32 %v4459, 7
        %v4461 = vsub.s32 %v4210, %v4460
        %v4462 = vrot.slane %v4125, %v4461
        %v4463 = vsel %vm4215, %v4462, %v4458
        %v4464 = vlaneseq
        %v4465 = vshrl.u32 %v4464, 7
        %v4466 = vsub.s32 %v4217, %v4465
        %v4467 = vrot.slane %v4128, %v4466
        %v4468 = vsel %vm4222, %v4467, %v4463
        %v4469 = vlaneseq
        %v4470 = vshrl.u32 %v4469, 7
        %v4471 = vsub.s32 %v4224, %v4470
        %v4472 = vrot.slane %v4131, %v4471
        %v4473 = vsel %vm4229, %v4472, %v4468
        %v4474 = vlaneseq
        %v4475 = vshrl.u32 %v4474, 7
        %v4476 = vsub.s32 %v4231, %v4475
        %v4477 = vrot.slane %v4134, %v4476
        %v4478 = vsel %vm4236, %v4477, %v4473
        %v4479 = vlaneseq
        %v4480 = vshrl.u32 %v4479, 7
        %v4481 = vsub.s32 %v4238, %v4480
        %v4482 = vrot.slane %v4137, %v4481
        %v4483 = vsel %vm4243, %v4482, %v4478
        %v4484 = vlaneseq
        %v4485 = vshrl.u32 %v4484, 7
        %v4486 = vsub.s32 %v4245, %v4485
        %v4487 = vrot.slane %v4140, %v4486
        %v4488 = vsel %vm4250, %v4487, %v4483
        %vm4489 = vcmask 1041409
        %v4490 = vsel %vm4489, %v4409, %v4251
        %v4491 = vsel %vm4489, %v4488, %v4330
        %v4492 = vcombine.low %v4490, %v4491
        %v4494 = vunpack.c.l.s4 1983009808
        %v4495 = vunpack.c.0.s8 %v4494
        %v4496 = vlaneseq
        %v4497 = vshrl.u32 %v4496, 7
        %v4498 = vsub.s32 %v4495, %v4497
        %v4499 = vrot.slane %v4492, %v4498
        %4501 = vst [vmem:[%s340] sm:$0xf] %v4499
        %s4502 = sand.u32 %s170, 1
        %s4503 = scalar_lea.sflag [#allocation5], %s4502
        %s4504 = sand.u32 %s170, 1
        %s4505 = smul.addr %s4504, 4
        %s4506 = scalar_lea.vmem [#allocation11], %s4505
        // Predicated region
        $region57: #{decoder_cbn2_forward.15} parent=39 // pred_check
          %p4507 = pneg %p180
        $region58: #{decoder_cbn2_forward.15} parent=39 // pred_check_branch
          %4509 = sbr.rel (%p4507) target = $region60
        $region59: #{decoder_cbn2_forward.15} parent=39 // pred_region
          %s4510 = smul.u32 2, %s31
          %s4512 = ssub.s32 64, 64
          %4513 = vsyncadd %s4503, %s4512
          %s4514 = smul.addr %s30, 16
          %s4515 = sadd.s32 %s4510, %s4514
          %s4516 = smul.addr %s4515, 32
          %s4517 = scalar_lea.hbm %s5, %s4516
          %s4519 = sshll.u32 %s4506, 4
          %s4520 = int_to_ptr.vmem [resolvable:$true] %s4519
          %4522 = dma.vmem_to_hbm [thread:$0]  %s4520, 64, %s4517, %s4503
        $region60: #{decoder_cbn2_forward.15} parent=39 // pred_fallthru
          _
      $region40: #{decoder_cbn2_forward.15} parent=5 // pred_fallthru
        _
      %p4523 = scmp.le.s32.totalorder 2, %s21
      // Predicated region
      $region61: #{decoder_cbn2_forward.15} parent=5 // pred_check
        %p4524 = pneg %p4523
      $region62: #{decoder_cbn2_forward.15} parent=5 // pred_check_branch
        %4526 = sbr.rel (%p4524) target = $region64
      $region63: #{decoder_cbn2_forward.15} parent=5 // pred_region
        %s4527 = ssub.s32 %s21, 2
        // Predicated region
        $region65: #{decoder_cbn2_forward.15} parent=63 // pred_check
          %p4528 = pneg %p186
        $region66: #{decoder_cbn2_forward.15} parent=63 // pred_check_branch
          %4530 = sbr.rel (%p4528) target = $region68
        $region67: #{decoder_cbn2_forward.15} parent=63 // pred_region
          %s4531 = sand.u32 %s171, 1
          %s4532 = scalar_lea.sflag [#allocation5], %s4531
          %s4533 = sand.u32 %s171, 1
          %s4534 = smul.addr %s4533, 4
          %s4535 = scalar_lea.vmem [#allocation11], %s4534
          %4536 = dma.done %s4532, 64
        $region68: #{decoder_cbn2_forward.15} parent=63 // pred_fallthru
          _
      $region64: #{decoder_cbn2_forward.15} parent=5 // pred_fallthru
        _
    $region6: #{decoder_cbn2_forward.15} parent=1 // loop_footer
      %s25 = sadd.s32 1, %s21
    $region7: #{decoder_cbn2_forward.15} parent=1 // loop_footer_branch
      %20 = sbr.rel target = $region3
    $region8: #{decoder_cbn2_forward.15} parent=1 // loop_exit
      _
    %4537 = vsyncpa [#allocation4], 1
    %s4538 = scalar_lea.sflag [#allocation4], 1
    %4539 = vsyncpa %s4538, 1
    %4540 = vsyncpa [#allocation7], 1
    %4541 = vsyncpa [#allocation10], 1
    %4542 = vsyncpa [#allocation5], 1
    %s4543 = scalar_lea.sflag [#allocation5], 1
    %4544 = vsyncpa %s4543, 1

</llo_original>
